<compile_context>
chip_gen: v6e
topology: v6e:2x2x1
jax: 0.10.0
libtpu: 0.0.40
codegen_flags: <defaults>
</compile_context>

<pallas_src>
import functools

import jax
import jax.numpy as jnp
from jax.experimental import pallas as pl
from jax.experimental.pallas import tpu as pltpu


_VMEM_LIMIT = 64 * 1024 * 1024

_MM_PARAMS = pltpu.CompilerParams(
    dimension_semantics=("parallel",), vmem_limit_bytes=_VMEM_LIMIT)
_GRID2_PARAMS = pltpu.CompilerParams(
    dimension_semantics=("parallel", "parallel"), vmem_limit_bytes=_VMEM_LIMIT)


# ---------------------------------------------------------------------------
# Tiling helpers
# ---------------------------------------------------------------------------

def _pick_tile(m, cap=1024):
    """Row tile for flat (M, K) matmuls: <= cap, divides M, >=2 grid steps."""
    t = min(m, cap)
    if m // t < 2 and m >= 16:
        t = m // 2
    while m % t:
        t -= 1
    return t


def _pick_depth_tile(d, rows_per_depth, target_rows=256):
    """Depth tile: ~target_rows rows/step (keeps the f32 accumulator in vregs),
    divides d, and keeps >=2 grid steps when possible (v7x megacore)."""
    t = max(1, min(d, max(1, target_rows // rows_per_depth)))
    while d % t:
        t -= 1
    if d // t < 2 and d >= 2:
        t = d // 2
    return t


def _act(x, act):
    if act == "relu":
        return jnp.maximum(x, 0.0)
    if act == "sigmoid":
        return jax.nn.sigmoid(x)
    return x


# ---------------------------------------------------------------------------
# Matmul-family Pallas kernels (1x1 convs, attention fusions, final head)
# ---------------------------------------------------------------------------

def _mm_kernel(a_ref, b_ref, bias_ref, o_ref, *, act):
    acc = jnp.dot(a_ref[...], b_ref[...], preferred_element_type=jnp.float32)
    o_ref[...] = _act(acc + bias_ref[...], act)


def matmul_bias_act(a, b, bias, act="none"):
    """act((M,K)@(K,N) + bias[N]); bf16 MXU operands, f32 accumulate/output."""
    m, k = a.shape
    n = b.shape[1]
    tm = _pick_tile(m)
    return pl.pallas_call(
        functools.partial(_mm_kernel, act=act),
        out_shape=jax.ShapeDtypeStruct((m, n), jnp.float32),
        grid_spec=pltpu.PrefetchScalarGridSpec(
            num_scalar_prefetch=0,
            grid=(m // tm,),
            in_specs=[pl.BlockSpec((tm, k), lambda i: (i, 0)),
                      pl.BlockSpec((k, n), lambda i: (0, 0)),
                      pl.BlockSpec((1, n), lambda i: (0, 0))],
            out_specs=pl.BlockSpec((tm, n), lambda i: (i, 0)),
        ),
        compiler_params=_MM_PARAMS,
    )(a.astype(jnp.bfloat16), b.astype(jnp.bfloat16),
      bias.reshape(1, n).astype(jnp.float32))


def _mm_add_relu_kernel(a_ref, b_ref, bias_ref, c_ref, o_ref):
    acc = jnp.dot(a_ref[...], b_ref[...], preferred_element_type=jnp.float32)
    o_ref[...] = jnp.maximum(acc + bias_ref[...] + c_ref[...], 0.0)


def matmul_bias_add_relu(a, b, bias, c):
    """relu(a@b + bias + c)  — attention: relu(phi(g) + theta(x)) in one kernel."""
    m, k = a.shape
    n = b.shape[1]
    tm = _pick_tile(m)
    return pl.pallas_call(
        _mm_add_relu_kernel,
        out_shape=jax.ShapeDtypeStruct((m, n), jnp.float32),
        grid_spec=pltpu.PrefetchScalarGridSpec(
            num_scalar_prefetch=0,
            grid=(m // tm,),
            in_specs=[pl.BlockSpec((tm, k), lambda i: (i, 0)),
                      pl.BlockSpec((k, n), lambda i: (0, 0)),
                      pl.BlockSpec((1, n), lambda i: (0, 0)),
                      pl.BlockSpec((tm, n), lambda i: (i, 0))],
            out_specs=pl.BlockSpec((tm, n), lambda i: (i, 0)),
        ),
        compiler_params=_MM_PARAMS,
    )(a.astype(jnp.bfloat16), b.astype(jnp.bfloat16),
      bias.reshape(1, n).astype(jnp.float32), c.astype(jnp.float32))


def _mm_rowscale_kernel(a_ref, s_ref, b_ref, bias_ref, o_ref):
    a = a_ref[...].astype(jnp.float32) * s_ref[...]          # gating multiply fused
    acc = jnp.dot(a.astype(jnp.bfloat16), b_ref[...],
                  preferred_element_type=jnp.float32)
    o_ref[...] = acc + bias_ref[...]


def matmul_rowscale_bias(a, s, b, bias):
    """(a * s) @ b + bias  — attention W(x * sigmoid_mask) in one kernel."""
    m, k = a.shape
    n = b.shape[1]
    tm = _pick_tile(m)
    return pl.pallas_call(
        _mm_rowscale_kernel,
        out_shape=jax.ShapeDtypeStruct((m, n), jnp.float32),
        grid_spec=pltpu.PrefetchScalarGridSpec(
            num_scalar_prefetch=0,
            grid=(m // tm,),
            in_specs=[pl.BlockSpec((tm, k), lambda i: (i, 0)),
                      pl.BlockSpec((tm, 1), lambda i: (i, 0)),
                      pl.BlockSpec((k, n), lambda i: (0, 0)),
                      pl.BlockSpec((1, n), lambda i: (0, 0))],
            out_specs=pl.BlockSpec((tm, n), lambda i: (i, 0)),
        ),
        compiler_params=_MM_PARAMS,
    )(a.astype(jnp.bfloat16), s.astype(jnp.float32),
      b.astype(jnp.bfloat16), bias.reshape(1, n).astype(jnp.float32))


def _mm_mean3_kernel(a_ref, b_ref, bias_ref, o_ref):
    a = a_ref[...].astype(jnp.float32)                       # (3, tm, c)
    m = (a[0] + a[1] + a[2]) * (1.0 / 3.0)
    acc = jnp.dot(m.astype(jnp.bfloat16), b_ref[...],
                  preferred_element_type=jnp.float32)
    o_ref[...] = acc + bias_ref[...]


def final_conv_mean3(xs, w, b):
    """Shared final 1x1 conv on three maps + average, fused into one kernel
    (linearity: mean(conv(x_i)) == conv(mean(x_i)))."""
    n, d, h, wd, c = xs[0].shape
    cout = w.shape[-1]
    a = jnp.stack([x.reshape(-1, c) for x in xs], axis=0).astype(jnp.bfloat16)
    m = a.shape[1]
    tm = _pick_tile(m)
    out = pl.pallas_call(
        _mm_mean3_kernel,
        out_shape=jax.ShapeDtypeStruct((m, cout), jnp.float32),
        grid_spec=pltpu.PrefetchScalarGridSpec(
            num_scalar_prefetch=0,
            grid=(m // tm,),
            in_specs=[pl.BlockSpec((3, tm, c), lambda i: (0, i, 0)),
                      pl.BlockSpec((c, cout), lambda i: (0, 0)),
                      pl.BlockSpec((1, cout), lambda i: (0, 0))],
            out_specs=pl.BlockSpec((tm, cout), lambda i: (i, 0)),
        ),
        compiler_params=_MM_PARAMS,
    )(a, w.astype(jnp.bfloat16), b.reshape(1, cout).astype(jnp.float32))
    return out.reshape(n, d, h, wd, cout)


# ---------------------------------------------------------------------------
# Fused 3x3x3 conv (stride 1, pad 1) — no im2col materialization in HBM
# ---------------------------------------------------------------------------

def _conv3x3_kernel(x_ref, w_ref, b_ref, o_ref, *, tz, hh, ww, cin, cout, act):
    z0 = pl.program_id(1) * tz
    rows = tz * hh * ww
    acc = jnp.zeros((rows, cout), jnp.float32)
    for kd in range(3):
        for kh in range(3):
            for kw in range(3):
                xs = x_ref[pl.ds(z0 + kd, tz), pl.ds(kh, hh), pl.ds(kw, ww), :]
                a = xs.astype(jnp.float32).reshape(rows, cin)
                wk = w_ref[kd * 9 + kh * 3 + kw]
                if cin == 1:
                    acc = acc + a * wk.astype(jnp.float32)
                else:
                    acc = acc + jnp.dot(a.astype(jnp.bfloat16), wk,
                                        preferred_element_type=jnp.float32)
    acc = _act(acc + b_ref[...], act)
    o_ref[...] = acc.reshape(tz, hh, ww, cout)


def conv3d_3x3(x, w, b, act="none"):
    """3x3x3 conv, stride 1, padding 1, NDHWC.  w: (3,3,3,Cin,Cout)."""
    n, d, h, wd, cin = x.shape
    cout = w.shape[-1]
    if wd % 8 != 0:                       # tiny deep levels: keep proven path
        return _conv3d_3x3_im2col(x, w, b, act)
    xp = jnp.pad(x, ((0, 0), (1, 1), (1, 1), (1, 1), (0, 0))).astype(jnp.bfloat16)
    w27 = w.reshape(27, cin, cout).astype(jnp.bfloat16)
    b2 = b.reshape(1, cout).astype(jnp.float32)
    tz = _pick_depth_tile(d, h * wd)
    kernel = functools.partial(_conv3x3_kernel, tz=tz, hh=h, ww=wd,
                               cin=cin, cout=cout, act=act)
    return pl.pallas_call(
        kernel,
        out_shape=jax.ShapeDtypeStruct((n, d, h, wd, cout), jnp.float32),
        grid_spec=pltpu.PrefetchScalarGridSpec(
            num_scalar_prefetch=0,
            grid=(n, d // tz),
            in_specs=[
                pl.BlockSpec((None, d + 2, h + 2, wd + 2, cin),
                             lambda i, j: (i, 0, 0, 0, 0)),
                pl.BlockSpec((27, cin, cout), lambda i, j: (0, 0, 0)),
                pl.BlockSpec((1, cout), lambda i, j: (0, 0)),
            ],
            out_specs=pl.BlockSpec((None, tz, h, wd, cout),
                                   lambda i, j: (i, j, 0, 0, 0)),
        ),
        compiler_params=_GRID2_PARAMS,
    )(xp, w27, b2)


def _conv3d_3x3_im2col(x, w, b, act):
    # Fallback for tiny deep levels (spatial < 8 rows along W).
    n, d, h, wd, cin = x.shape
    cout = w.shape[-1]
    xp = jnp.pad(x, ((0, 0), (1, 1), (1, 1), (1, 1), (0, 0)))
    patches = []
    for kd in range(3):
        for kh in range(3):
            for kw in range(3):
                patches.append(xp[:, kd:kd + d, kh:kh + h, kw:kw + wd, :])
    a = jnp.concatenate(patches, axis=-1).reshape(-1, 27 * cin)
    out = matmul_bias_act(a, w.reshape(27 * cin, cout), b, act)
    return out.reshape(n, d, h, wd, cout)


# ---------------------------------------------------------------------------
# 2x2x2 stride-2 conv (attention theta) and 2x2x2 max-pool, no host transpose
# ---------------------------------------------------------------------------

def _conv2s2_kernel(x_ref, w_ref, o_ref, *, td, cin, cout):
    x = x_ref[...]                                   # (2*td, H, Wo, 2*cin) bf16
    hh, wo = x.shape[1], x.shape[2]
    ho = hh // 2
    rows = td * ho * wo
    x = x.reshape(td, 2, hh, wo, 2 * cin)            # outer split (free)
    acc = jnp.zeros((rows, cout), jnp.float32)
    for kd in range(2):
        xd = x[:, kd].reshape(td, ho, 2, wo, 2 * cin)
        for kh in range(2):
            xh = xd[:, :, kh]                        # (td, ho, wo, 2*cin)
            for kw in range(2):
                xt = xh[..., kw * cin:(kw + 1) * cin]
                a = xt.astype(jnp.float32).reshape(rows, cin)
                acc = acc + jnp.dot(a.astype(jnp.bfloat16),
                                    w_ref[kd * 4 + kh * 2 + kw],
                                    preferred_element_type=jnp.float32)
    o_ref[...] = acc.reshape(td, ho, wo, cout)


def conv3d_2x2_stride2(x, w):
    """2x2x2 conv, stride 2, no bias (attention theta).  w: (2,2,2,Cin,Cout)."""
    n, d, h, wd, cin = x.shape
    cout = w.shape[-1]
    do, ho, wo = d // 2, h // 2, wd // 2
    if wo % 8 != 0:                       # tiny levels: proven fallback
        return _conv2s2_small(x, w)
    x2 = x.reshape(n, d, h, wo, 2 * cin).astype(jnp.bfloat16)   # free reshape
    w8 = w.reshape(8, cin, cout).astype(jnp.bfloat16)
    td = _pick_depth_tile(do, ho * wo)
    kernel = functools.partial(_conv2s2_kernel, td=td, cin=cin, cout=cout)
    return pl.pallas_call(
        kernel,
        out_shape=jax.ShapeDtypeStruct((n, do, ho, wo, cout), jnp.float32),
        grid_spec=pltpu.PrefetchScalarGridSpec(
            num_scalar_prefetch=0,
            grid=(n, do // td),
            in_specs=[pl.BlockSpec((None, 2 * td, h, wo, 2 * cin),
                                   lambda i, j: (i, j, 0, 0, 0)),
                      pl.BlockSpec((8, cin, cout), lambda i, j: (0, 0, 0))],
            out_specs=pl.BlockSpec((None, td, ho, wo, cout),
                                   lambda i, j: (i, j, 0, 0, 0)),
        ),
        compiler_params=_GRID2_PARAMS,
    )(x2, w8)


def _conv2s2_small(x, w):
    n, d, h, wd, cin = x.shape
    cout = w.shape[-1]
    xr = x.reshape(n, d // 2, 2, h // 2, 2, wd // 2, 2, cin)
    xr = xr.transpose(0, 1, 3, 5, 2, 4, 6, 7).reshape(-1, 8 * cin)
    out = matmul_bias_act(xr, w.reshape(8 * cin, cout),
                          jnp.zeros((cout,), jnp.float32), "none")
    return out.reshape(n, d // 2, h // 2, wd // 2, cout)


def _maxpool_kernel(x_ref, o_ref, *, td, c):
    x = x_ref[...]                                   # (2*td, H, Wo, 2*C)
    hh, wo = x.shape[1], x.shape[2]
    x = x.reshape(td, 2, hh, wo, 2 * c)
    m = jnp.maximum(x[:, 0], x[:, 1])                # depth pairs
    m = m.reshape(td, hh // 2, 2, wo, 2 * c)
    m = jnp.maximum(m[:, :, 0], m[:, :, 1])          # height pairs
    m = jnp.maximum(m[..., :c], m[..., c:])          # width pairs (lane halves)
    o_ref[...] = m


def maxpool2x(x):
    """MaxPool3d(kernel=2, stride=2) on NDHWC, all-in-kernel (free host reshape)."""
    n, d, h, wd, c = x.shape
    do, ho, wo = d // 2, h // 2, wd // 2
    x2 = x.reshape(n, d, h, wo, 2 * c)
    td = _pick_depth_tile(do, ho * wo)
    kernel = functools.partial(_maxpool_kernel, td=td, c=c)
    return pl.pallas_call(
        kernel,
        out_shape=jax.ShapeDtypeStruct((n, do, ho, wo, c), x.dtype),
        grid_spec=pltpu.PrefetchScalarGridSpec(
            num_scalar_prefetch=0,
            grid=(n, do // td),
            in_specs=[pl.BlockSpec((None, 2 * td, h, wo, 2 * c),
                                   lambda i, j: (i, j, 0, 0, 0))],
            out_specs=pl.BlockSpec((None, td, ho, wo, c),
                                   lambda i, j: (i, j, 0, 0, 0)),
        ),
        compiler_params=_GRID2_PARAMS,
    )(x2)


def upsample2x_nearest(x):
    # TODO(synk): nearest upsample kept as plain-JAX glue (not fused into the
    #             following decoder conv read).
    x = jnp.repeat(x, 2, axis=1)
    x = jnp.repeat(x, 2, axis=2)
    x = jnp.repeat(x, 2, axis=3)
    return x


# ---------------------------------------------------------------------------
# Parameter construction (deterministic)
# ---------------------------------------------------------------------------

class KeyGen:
    def __init__(self, seed=0):
        self.key = jax.random.PRNGKey(seed)

    def __call__(self):
        self.key, sub = jax.random.split(self.key)
        return sub


def _uniform(kg, shape, fan_in):
    bound = 1.0 / (fan_in ** 0.5)
    return jax.random.uniform(kg(), shape, jnp.float32, -bound, bound)


def init_conv(kg, kshape, fan_in, bias=True):
    w = _uniform(kg, kshape, fan_in)
    if bias:
        b = _uniform(kg, (kshape[-1],), fan_in)
    else:
        b = jnp.zeros((kshape[-1],), jnp.float32)
    return {"w": w, "b": b}


def create_feature_maps(c, number_of_fmaps):
    return [c * 2 ** k for k in range(number_of_fmaps)]


def init_double_conv(kg, cin, cout, encoder):
    # pytorch-3dunet DoubleConv, conv_layer_order='cr' (conv -> ReLU, no norm)
    if encoder:
        mid = cout // 2
        if mid < cin:
            mid = cin
    else:
        mid = cout
    return {
        "c1": init_conv(kg, (3, 3, 3, cin, mid), cin * 27),
        "c2": init_conv(kg, (3, 3, 3, mid, cout), mid * 27),
    }


def init_attention(kg, cin, cgate, cinter):
    return {
        "theta_w": _uniform(kg, (2, 2, 2, cin, cinter), cin * 8),   # no bias
        "phi": init_conv(kg, (cgate, cinter), cgate),
        "psi": init_conv(kg, (cinter, 1), cinter),
        "W": init_conv(kg, (cin, cin), cin),
        "bn_gamma": jnp.ones((cin,), jnp.float32),
        "bn_beta": jnp.zeros((cin,), jnp.float32),
    }


def build_params(in_channels, out_channels, fea_maps):
    kg = KeyGen(0)
    f0, f1, f2, f3 = fea_maps
    params = {}
    enc, prev = [], in_channels
    for f in fea_maps:
        enc.append(init_double_conv(kg, prev, f, encoder=True))
        prev = f
    params["encoders"] = enc
    att_specs = [(f0, f1, f0), (f1, f2, f1), (f2, f3, f2),
                 (f0, f1, f0), (f1, f2, f1), (f0, f1, f0)]
    params["atts"] = [init_attention(kg, a, g, i) for (a, g, i) in att_specs]
    dec_specs = [(f0 + f1, f0), (f1 + f2, f1), (f2 + f3, f2),
                 (f1 + 2 * f0, f0), (f2 + 2 * f1, f1), (f1 + 3 * f0, f0)]
    params["decoders"] = [init_double_conv(kg, ci, co, encoder=False)
                          for ci, co in dec_specs]
    params["final"] = init_conv(kg, (f0, out_channels), f0)
    return params


# ---------------------------------------------------------------------------
# Module forward pieces
# ---------------------------------------------------------------------------

def encoder_forward(p, x, pool):
    if pool:
        x = maxpool2x(x)
    x = conv3d_3x3(x, p["c1"]["w"], p["c1"]["b"], "relu")
    x = conv3d_3x3(x, p["c2"]["w"], p["c2"]["b"], "relu")
    return x


def attention_forward(p, x, g):
    """Grid attention ('concatenation' mode), returns (W(y), sigmoid_mask)."""
    n, d, h, w, cin = x.shape
    cinter = p["theta_w"].shape[-1]
    theta_x = conv3d_2x2_stride2(x, p["theta_w"])        # (n, d/2, h/2, w/2, inter)
    # relu(phi(g) + theta(x)) fused into the phi matmul epilogue.
    f = matmul_bias_add_relu(g.reshape(-1, g.shape[-1]),
                             p["phi"]["w"], p["phi"]["b"],
                             theta_x.reshape(-1, cinter))
    sigm = matmul_bias_act(f, p["psi"]["w"], p["psi"]["b"], act="sigmoid")
    sigm = sigm.reshape(n, d // 2, h // 2, w // 2, 1)
    # TODO(synk): trilinear upsample (align_corners=False) + training-mode
    #             BatchNorm batch statistics are plain-JAX glue.
    sig_up = jax.image.resize(sigm, (n, d, h, w, 1), method="trilinear")
    # W(x * sigmoid_mask) fused: row-scale inside the matmul kernel.
    wy = matmul_rowscale_bias(x.reshape(-1, cin), sig_up.reshape(-1, 1),
                              p["W"]["w"], p["W"]["b"]).reshape(n, d, h, w, cin)
    mean = wy.mean(axis=(0, 1, 2, 3))
    var = wy.var(axis=(0, 1, 2, 3))
    wy = (wy - mean) / jnp.sqrt(var + 1e-5) * p["bn_gamma"] + p["bn_beta"]
    return wy, sigm


def decoder_forward(p, skips, gating):
    up = upsample2x_nearest(gating)
    cat = jnp.concatenate(list(skips) + [up], axis=-1)
    h = conv3d_3x3(cat, p["c1"]["w"], p["c1"]["b"], "relu")
    h = conv3d_3x3(h, p["c2"]["w"], p["c2"]["b"], "relu")
    return h


def unet2_attention_da_forward(params, x):
    """x: (N, D, H, W, Cin) float32.  Returns (N, D, H, W, out_channels)."""
    feats = []
    h = x
    for i, ep in enumerate(params["encoders"]):
        h = encoder_forward(ep, h, pool=(i != 0))
        feats.append(h)                                 # feats[0..3]

    atts = params["atts"]
    decs = params["decoders"]

    # d_i = 0,1,2 : first UNet++ column
    a0, _ = attention_forward(atts[0], feats[0], feats[1])
    feats.append(decoder_forward(decs[0], [a0], feats[1]))            # feats[4]
    a1, _ = attention_forward(atts[1], feats[1], feats[2])
    feats.append(decoder_forward(decs[1], [a1], feats[2]))            # feats[5]
    a2, _ = attention_forward(atts[2], feats[2], feats[3])
    feats.append(decoder_forward(decs[2], [a2], feats[3]))            # feats[6]
    # d_i = 3,4 : second column (dense skips)
    a3, _ = attention_forward(atts[3], feats[0], feats[5])
    feats.append(decoder_forward(decs[3], [a3, feats[4]], feats[5]))  # feats[7]
    a4, _ = attention_forward(atts[4], feats[1], feats[6])
    feats.append(decoder_forward(decs[4], [a4, feats[5]], feats[6]))  # feats[8]
    # d_i = 5 : third column
    a5, _ = attention_forward(atts[5], feats[0], feats[8])
    feats.append(decoder_forward(decs[5], [a5, feats[4], feats[7]], feats[8]))  # feats[9]

    # NOTE: final_activation (sigmoid/softmax) is defined but never applied in
    # the reference forward(); match that.  The three shared final convs plus
    # the /3 average are one fused kernel (linear, so mathematically identical).
    return final_conv_mean3([feats[4], feats[7], feats[9]],
                            params["final"]["w"], params["final"]["b"])


# ---------------------------------------------------------------------------
# Demo
# ---------------------------------------------------------------------------

if __name__ == "__main__":
    in_channels, out_channels = 1, 2
    fea_maps = create_feature_maps(8, 4)          # [8, 16, 32, 64]
    N, D, H, W = 1, 16, 16, 16                    # NDHWC layout

    params = build_params(in_channels, out_channels, fea_maps)

    key = jax.random.PRNGKey(0)
    x = jax.random.normal(key, (N, D, H, W, in_channels), jnp.float32)

    out = unet2_attention_da_forward(params, x)
    out = jax.block_until_ready(out)

    assert out.shape == (N, D, H, W, out_channels), out.shape
    assert jnp.all(jnp.isfinite(out))
    print("KERNEL_OK")
</pallas_src>

<mosaic_0001>
module attributes {stable_mosaic.version = 11 : i64} {
  func.func @_conv3x3_kernel(%arg0: i32, %arg1: i32, %arg2: memref<1x18x18x18x1xbf16, #tpu.memory_space<vmem>>, %arg3: memref<27x1x4xbf16, #tpu.memory_space<vmem>>, %arg4: memref<1x4xf32, #tpu.memory_space<vmem>>, %arg5: memref<1x1x16x16x4xf32, #tpu.memory_space<vmem>>) attributes {dimension_semantics = [#tpu.dimension_semantics<parallel>, #tpu.dimension_semantics<parallel>], iteration_bounds = array<i64: 1, 16>, scalar_prefetch = 0 : i64, scratch_operands = 0 : i64, tpu.core_type = #tpu.core_type<tc>, window_params = [{transform_indices = @transform_0, window_bounds = array<i64: 1, 18, 18, 18, 1>}, {pipeline_mode = #tpu.pipeline_mode<synchronous>, transform_indices = @transform_1, window_bounds = array<i64: 27, 1, 4>}, {pipeline_mode = #tpu.pipeline_mode<synchronous>, transform_indices = @transform_2, window_bounds = array<i64: 1, 4>}, {transform_indices = @transform_3, window_bounds = array<i64: 1, 1, 16, 16, 4>}]} {
    %c1_i32 = arith.constant 1 : i32
    %0 = arith.muli %arg1, %c1_i32 : i32
    %cst = arith.constant 0.000000e+00 : f32
    %1 = vector.broadcast %cst : f32 to vector<256x4xf32>
    %c0_i32 = arith.constant 0 : i32
    %2 = arith.addi %0, %c0_i32 : i32
    %c0 = arith.constant 0 : index
    %3 = arith.index_cast %2 : i32 to index
    %c0_0 = arith.constant 0 : index
    %c0_1 = arith.constant 0 : index
    %c0_2 = arith.constant 0 : index
    %4 = vector.load %arg2[%c0, %3, %c0_0, %c0_1, %c0_2] : memref<1x18x18x18x1xbf16, #tpu.memory_space<vmem>>, vector<1x1x16x16x1xbf16>
    %5 = vector.shape_cast %4 : vector<1x1x16x16x1xbf16> to vector<1x16x16x1xbf16>
    %6 = arith.extf %5 : vector<1x16x16x1xbf16> to vector<1x16x16x1xf32>
    %7 = vector.shape_cast %6 : vector<1x16x16x1xf32> to vector<256x1xf32>
    %c0_3 = arith.constant 0 : index
    %c0_4 = arith.constant 0 : index
    %c0_5 = arith.constant 0 : index
    %8 = vector.load %arg3[%c0_3, %c0_4, %c0_5] : memref<27x1x4xbf16, #tpu.memory_space<vmem>>, vector<1x1x4xbf16>
    %9 = vector.shape_cast %8 : vector<1x1x4xbf16> to vector<1x4xbf16>
    %10 = arith.extf %9 : vector<1x4xbf16> to vector<1x4xf32>
    %11 = vector.broadcast %7 : vector<256x1xf32> to vector<256x4xf32>
    %12 = vector.broadcast %10 : vector<1x4xf32> to vector<256x4xf32>
    %13 = arith.mulf %11, %12 : vector<256x4xf32>
    %14 = arith.addf %1, %13 : vector<256x4xf32>
    %c0_i32_6 = arith.constant 0 : i32
    %15 = arith.addi %0, %c0_i32_6 : i32
    %c0_7 = arith.constant 0 : index
    %16 = arith.index_cast %15 : i32 to index
    %c0_8 = arith.constant 0 : index
    %c1 = arith.constant 1 : index
    %c0_9 = arith.constant 0 : index
    %17 = vector.load %arg2[%c0_7, %16, %c0_8, %c1, %c0_9] : memref<1x18x18x18x1xbf16, #tpu.memory_space<vmem>>, vector<1x1x16x16x1xbf16>
    %18 = vector.shape_cast %17 : vector<1x1x16x16x1xbf16> to vector<1x16x16x1xbf16>
    %19 = arith.extf %18 : vector<1x16x16x1xbf16> to vector<1x16x16x1xf32>
    %20 = vector.shape_cast %19 : vector<1x16x16x1xf32> to vector<256x1xf32>
    %c1_10 = arith.constant 1 : index
    %c0_11 = arith.constant 0 : index
    %c0_12 = arith.constant 0 : index
    %21 = vector.load %arg3[%c1_10, %c0_11, %c0_12] : memref<27x1x4xbf16, #tpu.memory_space<vmem>>, vector<1x1x4xbf16>
    %22 = vector.shape_cast %21 : vector<1x1x4xbf16> to vector<1x4xbf16>
    %23 = arith.extf %22 : vector<1x4xbf16> to vector<1x4xf32>
    %24 = vector.broadcast %20 : vector<256x1xf32> to vector<256x4xf32>
    %25 = vector.broadcast %23 : vector<1x4xf32> to vector<256x4xf32>
    %26 = arith.mulf %24, %25 : vector<256x4xf32>
    %27 = arith.addf %14, %26 : vector<256x4xf32>
    %c0_i32_13 = arith.constant 0 : i32
    %28 = arith.addi %0, %c0_i32_13 : i32
    %c0_14 = arith.constant 0 : index
    %29 = arith.index_cast %28 : i32 to index
    %c0_15 = arith.constant 0 : index
    %c2 = arith.constant 2 : index
    %c0_16 = arith.constant 0 : index
    %30 = vector.load %arg2[%c0_14, %29, %c0_15, %c2, %c0_16] : memref<1x18x18x18x1xbf16, #tpu.memory_space<vmem>>, vector<1x1x16x16x1xbf16>
    %31 = vector.shape_cast %30 : vector<1x1x16x16x1xbf16> to vector<1x16x16x1xbf16>
    %32 = arith.extf %31 : vector<1x16x16x1xbf16> to vector<1x16x16x1xf32>
    %33 = vector.shape_cast %32 : vector<1x16x16x1xf32> to vector<256x1xf32>
    %c2_17 = arith.constant 2 : index
    %c0_18 = arith.constant 0 : index
    %c0_19 = arith.constant 0 : index
    %34 = vector.load %arg3[%c2_17, %c0_18, %c0_19] : memref<27x1x4xbf16, #tpu.memory_space<vmem>>, vector<1x1x4xbf16>
    %35 = vector.shape_cast %34 : vector<1x1x4xbf16> to vector<1x4xbf16>
    %36 = arith.extf %35 : vector<1x4xbf16> to vector<1x4xf32>
    %37 = vector.broadcast %33 : vector<256x1xf32> to vector<256x4xf32>
    %38 = vector.broadcast %36 : vector<1x4xf32> to vector<256x4xf32>
    %39 = arith.mulf %37, %38 : vector<256x4xf32>
    %40 = arith.addf %27, %39 : vector<256x4xf32>
    %c0_i32_20 = arith.constant 0 : i32
    %41 = arith.addi %0, %c0_i32_20 : i32
    %c0_21 = arith.constant 0 : index
    %42 = arith.index_cast %41 : i32 to index
    %c1_22 = arith.constant 1 : index
    %c0_23 = arith.constant 0 : index
    %c0_24 = arith.constant 0 : index
    %43 = vector.load %arg2[%c0_21, %42, %c1_22, %c0_23, %c0_24] : memref<1x18x18x18x1xbf16, #tpu.memory_space<vmem>>, vector<1x1x16x16x1xbf16>
    %44 = vector.shape_cast %43 : vector<1x1x16x16x1xbf16> to vector<1x16x16x1xbf16>
    %45 = arith.extf %44 : vector<1x16x16x1xbf16> to vector<1x16x16x1xf32>
    %46 = vector.shape_cast %45 : vector<1x16x16x1xf32> to vector<256x1xf32>
    %c3 = arith.constant 3 : index
    %c0_25 = arith.constant 0 : index
    %c0_26 = arith.constant 0 : index
    %47 = vector.load %arg3[%c3, %c0_25, %c0_26] : memref<27x1x4xbf16, #tpu.memory_space<vmem>>, vector<1x1x4xbf16>
    %48 = vector.shape_cast %47 : vector<1x1x4xbf16> to vector<1x4xbf16>
    %49 = arith.extf %48 : vector<1x4xbf16> to vector<1x4xf32>
    %50 = vector.broadcast %46 : vector<256x1xf32> to vector<256x4xf32>
    %51 = vector.broadcast %49 : vector<1x4xf32> to vector<256x4xf32>
    %52 = arith.mulf %50, %51 : vector<256x4xf32>
    %53 = arith.addf %40, %52 : vector<256x4xf32>
    %c0_i32_27 = arith.constant 0 : i32
    %54 = arith.addi %0, %c0_i32_27 : i32
    %c0_28 = arith.constant 0 : index
    %55 = arith.index_cast %54 : i32 to index
    %c1_29 = arith.constant 1 : index
    %c1_30 = arith.constant 1 : index
    %c0_31 = arith.constant 0 : index
    %56 = vector.load %arg2[%c0_28, %55, %c1_29, %c1_30, %c0_31] : memref<1x18x18x18x1xbf16, #tpu.memory_space<vmem>>, vector<1x1x16x16x1xbf16>
    %57 = vector.shape_cast %56 : vector<1x1x16x16x1xbf16> to vector<1x16x16x1xbf16>
    %58 = arith.extf %57 : vector<1x16x16x1xbf16> to vector<1x16x16x1xf32>
    %59 = vector.shape_cast %58 : vector<1x16x16x1xf32> to vector<256x1xf32>
    %c4 = arith.constant 4 : index
    %c0_32 = arith.constant 0 : index
    %c0_33 = arith.constant 0 : index
    %60 = vector.load %arg3[%c4, %c0_32, %c0_33] : memref<27x1x4xbf16, #tpu.memory_space<vmem>>, vector<1x1x4xbf16>
    %61 = vector.shape_cast %60 : vector<1x1x4xbf16> to vector<1x4xbf16>
    %62 = arith.extf %61 : vector<1x4xbf16> to vector<1x4xf32>
    %63 = vector.broadcast %59 : vector<256x1xf32> to vector<256x4xf32>
    %64 = vector.broadcast %62 : vector<1x4xf32> to vector<256x4xf32>
    %65 = arith.mulf %63, %64 : vector<256x4xf32>
    %66 = arith.addf %53, %65 : vector<256x4xf32>
    %c0_i32_34 = arith.constant 0 : i32
    %67 = arith.addi %0, %c0_i32_34 : i32
    %c0_35 = arith.constant 0 : index
    %68 = arith.index_cast %67 : i32 to index
    %c1_36 = arith.constant 1 : index
    %c2_37 = arith.constant 2 : index
    %c0_38 = arith.constant 0 : index
    %69 = vector.load %arg2[%c0_35, %68, %c1_36, %c2_37, %c0_38] : memref<1x18x18x18x1xbf16, #tpu.memory_space<vmem>>, vector<1x1x16x16x1xbf16>
    %70 = vector.shape_cast %69 : vector<1x1x16x16x1xbf16> to vector<1x16x16x1xbf16>
    %71 = arith.extf %70 : vector<1x16x16x1xbf16> to vector<1x16x16x1xf32>
    %72 = vector.shape_cast %71 : vector<1x16x16x1xf32> to vector<256x1xf32>
    %c5 = arith.constant 5 : index
    %c0_39 = arith.constant 0 : index
    %c0_40 = arith.constant 0 : index
    %73 = vector.load %arg3[%c5, %c0_39, %c0_40] : memref<27x1x4xbf16, #tpu.memory_space<vmem>>, vector<1x1x4xbf16>
    %74 = vector.shape_cast %73 : vector<1x1x4xbf16> to vector<1x4xbf16>
    %75 = arith.extf %74 : vector<1x4xbf16> to vector<1x4xf32>
    %76 = vector.broadcast %72 : vector<256x1xf32> to vector<256x4xf32>
    %77 = vector.broadcast %75 : vector<1x4xf32> to vector<256x4xf32>
    %78 = arith.mulf %76, %77 : vector<256x4xf32>
    %79 = arith.addf %66, %78 : vector<256x4xf32>
    %c0_i32_41 = arith.constant 0 : i32
    %80 = arith.addi %0, %c0_i32_41 : i32
    %c0_42 = arith.constant 0 : index
    %81 = arith.index_cast %80 : i32 to index
    %c2_43 = arith.constant 2 : index
    %c0_44 = arith.constant 0 : index
    %c0_45 = arith.constant 0 : index
    %82 = vector.load %arg2[%c0_42, %81, %c2_43, %c0_44, %c0_45] : memref<1x18x18x18x1xbf16, #tpu.memory_space<vmem>>, vector<1x1x16x16x1xbf16>
    %83 = vector.shape_cast %82 : vector<1x1x16x16x1xbf16> to vector<1x16x16x1xbf16>
    %84 = arith.extf %83 : vector<1x16x16x1xbf16> to vector<1x16x16x1xf32>
    %85 = vector.shape_cast %84 : vector<1x16x16x1xf32> to vector<256x1xf32>
    %c6 = arith.constant 6 : index
    %c0_46 = arith.constant 0 : index
    %c0_47 = arith.constant 0 : index
    %86 = vector.load %arg3[%c6, %c0_46, %c0_47] : memref<27x1x4xbf16, #tpu.memory_space<vmem>>, vector<1x1x4xbf16>
    %87 = vector.shape_cast %86 : vector<1x1x4xbf16> to vector<1x4xbf16>
    %88 = arith.extf %87 : vector<1x4xbf16> to vector<1x4xf32>
    %89 = vector.broadcast %85 : vector<256x1xf32> to vector<256x4xf32>
    %90 = vector.broadcast %88 : vector<1x4xf32> to vector<256x4xf32>
    %91 = arith.mulf %89, %90 : vector<256x4xf32>
    %92 = arith.addf %79, %91 : vector<256x4xf32>
    %c0_i32_48 = arith.constant 0 : i32
    %93 = arith.addi %0, %c0_i32_48 : i32
    %c0_49 = arith.constant 0 : index
    %94 = arith.index_cast %93 : i32 to index
    %c2_50 = arith.constant 2 : index
    %c1_51 = arith.constant 1 : index
    %c0_52 = arith.constant 0 : index
    %95 = vector.load %arg2[%c0_49, %94, %c2_50, %c1_51, %c0_52] : memref<1x18x18x18x1xbf16, #tpu.memory_space<vmem>>, vector<1x1x16x16x1xbf16>
    %96 = vector.shape_cast %95 : vector<1x1x16x16x1xbf16> to vector<1x16x16x1xbf16>
    %97 = arith.extf %96 : vector<1x16x16x1xbf16> to vector<1x16x16x1xf32>
    %98 = vector.shape_cast %97 : vector<1x16x16x1xf32> to vector<256x1xf32>
    %c7 = arith.constant 7 : index
    %c0_53 = arith.constant 0 : index
    %c0_54 = arith.constant 0 : index
    %99 = vector.load %arg3[%c7, %c0_53, %c0_54] : memref<27x1x4xbf16, #tpu.memory_space<vmem>>, vector<1x1x4xbf16>
    %100 = vector.shape_cast %99 : vector<1x1x4xbf16> to vector<1x4xbf16>
    %101 = arith.extf %100 : vector<1x4xbf16> to vector<1x4xf32>
    %102 = vector.broadcast %98 : vector<256x1xf32> to vector<256x4xf32>
    %103 = vector.broadcast %101 : vector<1x4xf32> to vector<256x4xf32>
    %104 = arith.mulf %102, %103 : vector<256x4xf32>
    %105 = arith.addf %92, %104 : vector<256x4xf32>
    %c0_i32_55 = arith.constant 0 : i32
    %106 = arith.addi %0, %c0_i32_55 : i32
    %c0_56 = arith.constant 0 : index
    %107 = arith.index_cast %106 : i32 to index
    %c2_57 = arith.constant 2 : index
    %c2_58 = arith.constant 2 : index
    %c0_59 = arith.constant 0 : index
    %108 = vector.load %arg2[%c0_56, %107, %c2_57, %c2_58, %c0_59] : memref<1x18x18x18x1xbf16, #tpu.memory_space<vmem>>, vector<1x1x16x16x1xbf16>
    %109 = vector.shape_cast %108 : vector<1x1x16x16x1xbf16> to vector<1x16x16x1xbf16>
    %110 = arith.extf %109 : vector<1x16x16x1xbf16> to vector<1x16x16x1xf32>
    %111 = vector.shape_cast %110 : vector<1x16x16x1xf32> to vector<256x1xf32>
    %c8 = arith.constant 8 : index
    %c0_60 = arith.constant 0 : index
    %c0_61 = arith.constant 0 : index
    %112 = vector.load %arg3[%c8, %c0_60, %c0_61] : memref<27x1x4xbf16, #tpu.memory_space<vmem>>, vector<1x1x4xbf16>
    %113 = vector.shape_cast %112 : vector<1x1x4xbf16> to vector<1x4xbf16>
    %114 = arith.extf %113 : vector<1x4xbf16> to vector<1x4xf32>
    %115 = vector.broadcast %111 : vector<256x1xf32> to vector<256x4xf32>
    %116 = vector.broadcast %114 : vector<1x4xf32> to vector<256x4xf32>
    %117 = arith.mulf %115, %116 : vector<256x4xf32>
    %118 = arith.addf %105, %117 : vector<256x4xf32>
    %c1_i32_62 = arith.constant 1 : i32
    %119 = arith.addi %0, %c1_i32_62 : i32
    %c0_63 = arith.constant 0 : index
    %120 = arith.index_cast %119 : i32 to index
    %c0_64 = arith.constant 0 : index
    %c0_65 = arith.constant 0 : index
    %c0_66 = arith.constant 0 : index
    %121 = vector.load %arg2[%c0_63, %120, %c0_64, %c0_65, %c0_66] : memref<1x18x18x18x1xbf16, #tpu.memory_space<vmem>>, vector<1x1x16x16x1xbf16>
    %122 = vector.shape_cast %121 : vector<1x1x16x16x1xbf16> to vector<1x16x16x1xbf16>
    %123 = arith.extf %122 : vector<1x16x16x1xbf16> to vector<1x16x16x1xf32>
    %124 = vector.shape_cast %123 : vector<1x16x16x1xf32> to vector<256x1xf32>
    %c9 = arith.constant 9 : index
    %c0_67 = arith.constant 0 : index
    %c0_68 = arith.constant 0 : index
    %125 = vector.load %arg3[%c9, %c0_67, %c0_68] : memref<27x1x4xbf16, #tpu.memory_space<vmem>>, vector<1x1x4xbf16>
    %126 = vector.shape_cast %125 : vector<1x1x4xbf16> to vector<1x4xbf16>
    %127 = arith.extf %126 : vector<1x4xbf16> to vector<1x4xf32>
    %128 = vector.broadcast %124 : vector<256x1xf32> to vector<256x4xf32>
    %129 = vector.broadcast %127 : vector<1x4xf32> to vector<256x4xf32>
    %130 = arith.mulf %128, %129 : vector<256x4xf32>
    %131 = arith.addf %118, %130 : vector<256x4xf32>
    %c1_i32_69 = arith.constant 1 : i32
    %132 = arith.addi %0, %c1_i32_69 : i32
    %c0_70 = arith.constant 0 : index
    %133 = arith.index_cast %132 : i32 to index
    %c0_71 = arith.constant 0 : index
    %c1_72 = arith.constant 1 : index
    %c0_73 = arith.constant 0 : index
    %134 = vector.load %arg2[%c0_70, %133, %c0_71, %c1_72, %c0_73] : memref<1x18x18x18x1xbf16, #tpu.memory_space<vmem>>, vector<1x1x16x16x1xbf16>
    %135 = vector.shape_cast %134 : vector<1x1x16x16x1xbf16> to vector<1x16x16x1xbf16>
    %136 = arith.extf %135 : vector<1x16x16x1xbf16> to vector<1x16x16x1xf32>
    %137 = vector.shape_cast %136 : vector<1x16x16x1xf32> to vector<256x1xf32>
    %c10 = arith.constant 10 : index
    %c0_74 = arith.constant 0 : index
    %c0_75 = arith.constant 0 : index
    %138 = vector.load %arg3[%c10, %c0_74, %c0_75] : memref<27x1x4xbf16, #tpu.memory_space<vmem>>, vector<1x1x4xbf16>
    %139 = vector.shape_cast %138 : vector<1x1x4xbf16> to vector<1x4xbf16>
    %140 = arith.extf %139 : vector<1x4xbf16> to vector<1x4xf32>
    %141 = vector.broadcast %137 : vector<256x1xf32> to vector<256x4xf32>
    %142 = vector.broadcast %140 : vector<1x4xf32> to vector<256x4xf32>
    %143 = arith.mulf %141, %142 : vector<256x4xf32>
    %144 = arith.addf %131, %143 : vector<256x4xf32>
    %c1_i32_76 = arith.constant 1 : i32
    %145 = arith.addi %0, %c1_i32_76 : i32
    %c0_77 = arith.constant 0 : index
    %146 = arith.index_cast %145 : i32 to index
    %c0_78 = arith.constant 0 : index
    %c2_79 = arith.constant 2 : index
    %c0_80 = arith.constant 0 : index
    %147 = vector.load %arg2[%c0_77, %146, %c0_78, %c2_79, %c0_80] : memref<1x18x18x18x1xbf16, #tpu.memory_space<vmem>>, vector<1x1x16x16x1xbf16>
    %148 = vector.shape_cast %147 : vector<1x1x16x16x1xbf16> to vector<1x16x16x1xbf16>
    %149 = arith.extf %148 : vector<1x16x16x1xbf16> to vector<1x16x16x1xf32>
    %150 = vector.shape_cast %149 : vector<1x16x16x1xf32> to vector<256x1xf32>
    %c11 = arith.constant 11 : index
    %c0_81 = arith.constant 0 : index
    %c0_82 = arith.constant 0 : index
    %151 = vector.load %arg3[%c11, %c0_81, %c0_82] : memref<27x1x4xbf16, #tpu.memory_space<vmem>>, vector<1x1x4xbf16>
    %152 = vector.shape_cast %151 : vector<1x1x4xbf16> to vector<1x4xbf16>
    %153 = arith.extf %152 : vector<1x4xbf16> to vector<1x4xf32>
    %154 = vector.broadcast %150 : vector<256x1xf32> to vector<256x4xf32>
    %155 = vector.broadcast %153 : vector<1x4xf32> to vector<256x4xf32>
    %156 = arith.mulf %154, %155 : vector<256x4xf32>
    %157 = arith.addf %144, %156 : vector<256x4xf32>
    %c1_i32_83 = arith.constant 1 : i32
    %158 = arith.addi %0, %c1_i32_83 : i32
    %c0_84 = arith.constant 0 : index
    %159 = arith.index_cast %158 : i32 to index
    %c1_85 = arith.constant 1 : index
    %c0_86 = arith.constant 0 : index
    %c0_87 = arith.constant 0 : index
    %160 = vector.load %arg2[%c0_84, %159, %c1_85, %c0_86, %c0_87] : memref<1x18x18x18x1xbf16, #tpu.memory_space<vmem>>, vector<1x1x16x16x1xbf16>
    %161 = vector.shape_cast %160 : vector<1x1x16x16x1xbf16> to vector<1x16x16x1xbf16>
    %162 = arith.extf %161 : vector<1x16x16x1xbf16> to vector<1x16x16x1xf32>
    %163 = vector.shape_cast %162 : vector<1x16x16x1xf32> to vector<256x1xf32>
    %c12 = arith.constant 12 : index
    %c0_88 = arith.constant 0 : index
    %c0_89 = arith.constant 0 : index
    %164 = vector.load %arg3[%c12, %c0_88, %c0_89] : memref<27x1x4xbf16, #tpu.memory_space<vmem>>, vector<1x1x4xbf16>
    %165 = vector.shape_cast %164 : vector<1x1x4xbf16> to vector<1x4xbf16>
    %166 = arith.extf %165 : vector<1x4xbf16> to vector<1x4xf32>
    %167 = vector.broadcast %163 : vector<256x1xf32> to vector<256x4xf32>
    %168 = vector.broadcast %166 : vector<1x4xf32> to vector<256x4xf32>
    %169 = arith.mulf %167, %168 : vector<256x4xf32>
    %170 = arith.addf %157, %169 : vector<256x4xf32>
    %c1_i32_90 = arith.constant 1 : i32
    %171 = arith.addi %0, %c1_i32_90 : i32
    %c0_91 = arith.constant 0 : index
    %172 = arith.index_cast %171 : i32 to index
    %c1_92 = arith.constant 1 : index
    %c1_93 = arith.constant 1 : index
    %c0_94 = arith.constant 0 : index
    %173 = vector.load %arg2[%c0_91, %172, %c1_92, %c1_93, %c0_94] : memref<1x18x18x18x1xbf16, #tpu.memory_space<vmem>>, vector<1x1x16x16x1xbf16>
    %174 = vector.shape_cast %173 : vector<1x1x16x16x1xbf16> to vector<1x16x16x1xbf16>
    %175 = arith.extf %174 : vector<1x16x16x1xbf16> to vector<1x16x16x1xf32>
    %176 = vector.shape_cast %175 : vector<1x16x16x1xf32> to vector<256x1xf32>
    %c13 = arith.constant 13 : index
    %c0_95 = arith.constant 0 : index
    %c0_96 = arith.constant 0 : index
    %177 = vector.load %arg3[%c13, %c0_95, %c0_96] : memref<27x1x4xbf16, #tpu.memory_space<vmem>>, vector<1x1x4xbf16>
    %178 = vector.shape_cast %177 : vector<1x1x4xbf16> to vector<1x4xbf16>
    %179 = arith.extf %178 : vector<1x4xbf16> to vector<1x4xf32>
    %180 = vector.broadcast %176 : vector<256x1xf32> to vector<256x4xf32>
    %181 = vector.broadcast %179 : vector<1x4xf32> to vector<256x4xf32>
    %182 = arith.mulf %180, %181 : vector<256x4xf32>
    %183 = arith.addf %170, %182 : vector<256x4xf32>
    %c1_i32_97 = arith.constant 1 : i32
    %184 = arith.addi %0, %c1_i32_97 : i32
    %c0_98 = arith.constant 0 : index
    %185 = arith.index_cast %184 : i32 to index
    %c1_99 = arith.constant 1 : index
    %c2_100 = arith.constant 2 : index
    %c0_101 = arith.constant 0 : index
    %186 = vector.load %arg2[%c0_98, %185, %c1_99, %c2_100, %c0_101] : memref<1x18x18x18x1xbf16, #tpu.memory_space<vmem>>, vector<1x1x16x16x1xbf16>
    %187 = vector.shape_cast %186 : vector<1x1x16x16x1xbf16> to vector<1x16x16x1xbf16>
    %188 = arith.extf %187 : vector<1x16x16x1xbf16> to vector<1x16x16x1xf32>
    %189 = vector.shape_cast %188 : vector<1x16x16x1xf32> to vector<256x1xf32>
    %c14 = arith.constant 14 : index
    %c0_102 = arith.constant 0 : index
    %c0_103 = arith.constant 0 : index
    %190 = vector.load %arg3[%c14, %c0_102, %c0_103] : memref<27x1x4xbf16, #tpu.memory_space<vmem>>, vector<1x1x4xbf16>
    %191 = vector.shape_cast %190 : vector<1x1x4xbf16> to vector<1x4xbf16>
    %192 = arith.extf %191 : vector<1x4xbf16> to vector<1x4xf32>
    %193 = vector.broadcast %189 : vector<256x1xf32> to vector<256x4xf32>
    %194 = vector.broadcast %192 : vector<1x4xf32> to vector<256x4xf32>
    %195 = arith.mulf %193, %194 : vector<256x4xf32>
    %196 = arith.addf %183, %195 : vector<256x4xf32>
    %c1_i32_104 = arith.constant 1 : i32
    %197 = arith.addi %0, %c1_i32_104 : i32
    %c0_105 = arith.constant 0 : index
    %198 = arith.index_cast %197 : i32 to index
    %c2_106 = arith.constant 2 : index
    %c0_107 = arith.constant 0 : index
    %c0_108 = arith.constant 0 : index
    %199 = vector.load %arg2[%c0_105, %198, %c2_106, %c0_107, %c0_108] : memref<1x18x18x18x1xbf16, #tpu.memory_space<vmem>>, vector<1x1x16x16x1xbf16>
    %200 = vector.shape_cast %199 : vector<1x1x16x16x1xbf16> to vector<1x16x16x1xbf16>
    %201 = arith.extf %200 : vector<1x16x16x1xbf16> to vector<1x16x16x1xf32>
    %202 = vector.shape_cast %201 : vector<1x16x16x1xf32> to vector<256x1xf32>
    %c15 = arith.constant 15 : index
    %c0_109 = arith.constant 0 : index
    %c0_110 = arith.constant 0 : index
    %203 = vector.load %arg3[%c15, %c0_109, %c0_110] : memref<27x1x4xbf16, #tpu.memory_space<vmem>>, vector<1x1x4xbf16>
    %204 = vector.shape_cast %203 : vector<1x1x4xbf16> to vector<1x4xbf16>
    %205 = arith.extf %204 : vector<1x4xbf16> to vector<1x4xf32>
    %206 = vector.broadcast %202 : vector<256x1xf32> to vector<256x4xf32>
    %207 = vector.broadcast %205 : vector<1x4xf32> to vector<256x4xf32>
    %208 = arith.mulf %206, %207 : vector<256x4xf32>
    %209 = arith.addf %196, %208 : vector<256x4xf32>
    %c1_i32_111 = arith.constant 1 : i32
    %210 = arith.addi %0, %c1_i32_111 : i32
    %c0_112 = arith.constant 0 : index
    %211 = arith.index_cast %210 : i32 to index
    %c2_113 = arith.constant 2 : index
    %c1_114 = arith.constant 1 : index
    %c0_115 = arith.constant 0 : index
    %212 = vector.load %arg2[%c0_112, %211, %c2_113, %c1_114, %c0_115] : memref<1x18x18x18x1xbf16, #tpu.memory_space<vmem>>, vector<1x1x16x16x1xbf16>
    %213 = vector.shape_cast %212 : vector<1x1x16x16x1xbf16> to vector<1x16x16x1xbf16>
    %214 = arith.extf %213 : vector<1x16x16x1xbf16> to vector<1x16x16x1xf32>
    %215 = vector.shape_cast %214 : vector<1x16x16x1xf32> to vector<256x1xf32>
    %c16 = arith.constant 16 : index
    %c0_116 = arith.constant 0 : index
    %c0_117 = arith.constant 0 : index
    %216 = vector.load %arg3[%c16, %c0_116, %c0_117] : memref<27x1x4xbf16, #tpu.memory_space<vmem>>, vector<1x1x4xbf16>
    %217 = vector.shape_cast %216 : vector<1x1x4xbf16> to vector<1x4xbf16>
    %218 = arith.extf %217 : vector<1x4xbf16> to vector<1x4xf32>
    %219 = vector.broadcast %215 : vector<256x1xf32> to vector<256x4xf32>
    %220 = vector.broadcast %218 : vector<1x4xf32> to vector<256x4xf32>
    %221 = arith.mulf %219, %220 : vector<256x4xf32>
    %222 = arith.addf %209, %221 : vector<256x4xf32>
    %c1_i32_118 = arith.constant 1 : i32
    %223 = arith.addi %0, %c1_i32_118 : i32
    %c0_119 = arith.constant 0 : index
    %224 = arith.index_cast %223 : i32 to index
    %c2_120 = arith.constant 2 : index
    %c2_121 = arith.constant 2 : index
    %c0_122 = arith.constant 0 : index
    %225 = vector.load %arg2[%c0_119, %224, %c2_120, %c2_121, %c0_122] : memref<1x18x18x18x1xbf16, #tpu.memory_space<vmem>>, vector<1x1x16x16x1xbf16>
    %226 = vector.shape_cast %225 : vector<1x1x16x16x1xbf16> to vector<1x16x16x1xbf16>
    %227 = arith.extf %226 : vector<1x16x16x1xbf16> to vector<1x16x16x1xf32>
    %228 = vector.shape_cast %227 : vector<1x16x16x1xf32> to vector<256x1xf32>
    %c17 = arith.constant 17 : index
    %c0_123 = arith.constant 0 : index
    %c0_124 = arith.constant 0 : index
    %229 = vector.load %arg3[%c17, %c0_123, %c0_124] : memref<27x1x4xbf16, #tpu.memory_space<vmem>>, vector<1x1x4xbf16>
    %230 = vector.shape_cast %229 : vector<1x1x4xbf16> to vector<1x4xbf16>
    %231 = arith.extf %230 : vector<1x4xbf16> to vector<1x4xf32>
    %232 = vector.broadcast %228 : vector<256x1xf32> to vector<256x4xf32>
    %233 = vector.broadcast %231 : vector<1x4xf32> to vector<256x4xf32>
    %234 = arith.mulf %232, %233 : vector<256x4xf32>
    %235 = arith.addf %222, %234 : vector<256x4xf32>
    %c2_i32 = arith.constant 2 : i32
    %236 = arith.addi %0, %c2_i32 : i32
    %c0_125 = arith.constant 0 : index
    %237 = arith.index_cast %236 : i32 to index
    %c0_126 = arith.constant 0 : index
    %c0_127 = arith.constant 0 : index
    %c0_128 = arith.constant 0 : index
    %238 = vector.load %arg2[%c0_125, %237, %c0_126, %c0_127, %c0_128] : memref<1x18x18x18x1xbf16, #tpu.memory_space<vmem>>, vector<1x1x16x16x1xbf16>
    %239 = vector.shape_cast %238 : vector<1x1x16x16x1xbf16> to vector<1x16x16x1xbf16>
    %240 = arith.extf %239 : vector<1x16x16x1xbf16> to vector<1x16x16x1xf32>
    %241 = vector.shape_cast %240 : vector<1x16x16x1xf32> to vector<256x1xf32>
    %c18 = arith.constant 18 : index
    %c0_129 = arith.constant 0 : index
    %c0_130 = arith.constant 0 : index
    %242 = vector.load %arg3[%c18, %c0_129, %c0_130] : memref<27x1x4xbf16, #tpu.memory_space<vmem>>, vector<1x1x4xbf16>
    %243 = vector.shape_cast %242 : vector<1x1x4xbf16> to vector<1x4xbf16>
    %244 = arith.extf %243 : vector<1x4xbf16> to vector<1x4xf32>
    %245 = vector.broadcast %241 : vector<256x1xf32> to vector<256x4xf32>
    %246 = vector.broadcast %244 : vector<1x4xf32> to vector<256x4xf32>
    %247 = arith.mulf %245, %246 : vector<256x4xf32>
    %248 = arith.addf %235, %247 : vector<256x4xf32>
    %c2_i32_131 = arith.constant 2 : i32
    %249 = arith.addi %0, %c2_i32_131 : i32
    %c0_132 = arith.constant 0 : index
    %250 = arith.index_cast %249 : i32 to index
    %c0_133 = arith.constant 0 : index
    %c1_134 = arith.constant 1 : index
    %c0_135 = arith.constant 0 : index
    %251 = vector.load %arg2[%c0_132, %250, %c0_133, %c1_134, %c0_135] : memref<1x18x18x18x1xbf16, #tpu.memory_space<vmem>>, vector<1x1x16x16x1xbf16>
    %252 = vector.shape_cast %251 : vector<1x1x16x16x1xbf16> to vector<1x16x16x1xbf16>
    %253 = arith.extf %252 : vector<1x16x16x1xbf16> to vector<1x16x16x1xf32>
    %254 = vector.shape_cast %253 : vector<1x16x16x1xf32> to vector<256x1xf32>
    %c19 = arith.constant 19 : index
    %c0_136 = arith.constant 0 : index
    %c0_137 = arith.constant 0 : index
    %255 = vector.load %arg3[%c19, %c0_136, %c0_137] : memref<27x1x4xbf16, #tpu.memory_space<vmem>>, vector<1x1x4xbf16>
    %256 = vector.shape_cast %255 : vector<1x1x4xbf16> to vector<1x4xbf16>
    %257 = arith.extf %256 : vector<1x4xbf16> to vector<1x4xf32>
    %258 = vector.broadcast %254 : vector<256x1xf32> to vector<256x4xf32>
    %259 = vector.broadcast %257 : vector<1x4xf32> to vector<256x4xf32>
    %260 = arith.mulf %258, %259 : vector<256x4xf32>
    %261 = arith.addf %248, %260 : vector<256x4xf32>
    %c2_i32_138 = arith.constant 2 : i32
    %262 = arith.addi %0, %c2_i32_138 : i32
    %c0_139 = arith.constant 0 : index
    %263 = arith.index_cast %262 : i32 to index
    %c0_140 = arith.constant 0 : index
    %c2_141 = arith.constant 2 : index
    %c0_142 = arith.constant 0 : index
    %264 = vector.load %arg2[%c0_139, %263, %c0_140, %c2_141, %c0_142] : memref<1x18x18x18x1xbf16, #tpu.memory_space<vmem>>, vector<1x1x16x16x1xbf16>
    %265 = vector.shape_cast %264 : vector<1x1x16x16x1xbf16> to vector<1x16x16x1xbf16>
    %266 = arith.extf %265 : vector<1x16x16x1xbf16> to vector<1x16x16x1xf32>
    %267 = vector.shape_cast %266 : vector<1x16x16x1xf32> to vector<256x1xf32>
    %c20 = arith.constant 20 : index
    %c0_143 = arith.constant 0 : index
    %c0_144 = arith.constant 0 : index
    %268 = vector.load %arg3[%c20, %c0_143, %c0_144] : memref<27x1x4xbf16, #tpu.memory_space<vmem>>, vector<1x1x4xbf16>
    %269 = vector.shape_cast %268 : vector<1x1x4xbf16> to vector<1x4xbf16>
    %270 = arith.extf %269 : vector<1x4xbf16> to vector<1x4xf32>
    %271 = vector.broadcast %267 : vector<256x1xf32> to vector<256x4xf32>
    %272 = vector.broadcast %270 : vector<1x4xf32> to vector<256x4xf32>
    %273 = arith.mulf %271, %272 : vector<256x4xf32>
    %274 = arith.addf %261, %273 : vector<256x4xf32>
    %c2_i32_145 = arith.constant 2 : i32
    %275 = arith.addi %0, %c2_i32_145 : i32
    %c0_146 = arith.constant 0 : index
    %276 = arith.index_cast %275 : i32 to index
    %c1_147 = arith.constant 1 : index
    %c0_148 = arith.constant 0 : index
    %c0_149 = arith.constant 0 : index
    %277 = vector.load %arg2[%c0_146, %276, %c1_147, %c0_148, %c0_149] : memref<1x18x18x18x1xbf16, #tpu.memory_space<vmem>>, vector<1x1x16x16x1xbf16>
    %278 = vector.shape_cast %277 : vector<1x1x16x16x1xbf16> to vector<1x16x16x1xbf16>
    %279 = arith.extf %278 : vector<1x16x16x1xbf16> to vector<1x16x16x1xf32>
    %280 = vector.shape_cast %279 : vector<1x16x16x1xf32> to vector<256x1xf32>
    %c21 = arith.constant 21 : index
    %c0_150 = arith.constant 0 : index
    %c0_151 = arith.constant 0 : index
    %281 = vector.load %arg3[%c21, %c0_150, %c0_151] : memref<27x1x4xbf16, #tpu.memory_space<vmem>>, vector<1x1x4xbf16>
    %282 = vector.shape_cast %281 : vector<1x1x4xbf16> to vector<1x4xbf16>
    %283 = arith.extf %282 : vector<1x4xbf16> to vector<1x4xf32>
    %284 = vector.broadcast %280 : vector<256x1xf32> to vector<256x4xf32>
    %285 = vector.broadcast %283 : vector<1x4xf32> to vector<256x4xf32>
    %286 = arith.mulf %284, %285 : vector<256x4xf32>
    %287 = arith.addf %274, %286 : vector<256x4xf32>
    %c2_i32_152 = arith.constant 2 : i32
    %288 = arith.addi %0, %c2_i32_152 : i32
    %c0_153 = arith.constant 0 : index
    %289 = arith.index_cast %288 : i32 to index
    %c1_154 = arith.constant 1 : index
    %c1_155 = arith.constant 1 : index
    %c0_156 = arith.constant 0 : index
    %290 = vector.load %arg2[%c0_153, %289, %c1_154, %c1_155, %c0_156] : memref<1x18x18x18x1xbf16, #tpu.memory_space<vmem>>, vector<1x1x16x16x1xbf16>
    %291 = vector.shape_cast %290 : vector<1x1x16x16x1xbf16> to vector<1x16x16x1xbf16>
    %292 = arith.extf %291 : vector<1x16x16x1xbf16> to vector<1x16x16x1xf32>
    %293 = vector.shape_cast %292 : vector<1x16x16x1xf32> to vector<256x1xf32>
    %c22 = arith.constant 22 : index
    %c0_157 = arith.constant 0 : index
    %c0_158 = arith.constant 0 : index
    %294 = vector.load %arg3[%c22, %c0_157, %c0_158] : memref<27x1x4xbf16, #tpu.memory_space<vmem>>, vector<1x1x4xbf16>
    %295 = vector.shape_cast %294 : vector<1x1x4xbf16> to vector<1x4xbf16>
    %296 = arith.extf %295 : vector<1x4xbf16> to vector<1x4xf32>
    %297 = vector.broadcast %293 : vector<256x1xf32> to vector<256x4xf32>
    %298 = vector.broadcast %296 : vector<1x4xf32> to vector<256x4xf32>
    %299 = arith.mulf %297, %298 : vector<256x4xf32>
    %300 = arith.addf %287, %299 : vector<256x4xf32>
    %c2_i32_159 = arith.constant 2 : i32
    %301 = arith.addi %0, %c2_i32_159 : i32
    %c0_160 = arith.constant 0 : index
    %302 = arith.index_cast %301 : i32 to index
    %c1_161 = arith.constant 1 : index
    %c2_162 = arith.constant 2 : index
    %c0_163 = arith.constant 0 : index
    %303 = vector.load %arg2[%c0_160, %302, %c1_161, %c2_162, %c0_163] : memref<1x18x18x18x1xbf16, #tpu.memory_space<vmem>>, vector<1x1x16x16x1xbf16>
    %304 = vector.shape_cast %303 : vector<1x1x16x16x1xbf16> to vector<1x16x16x1xbf16>
    %305 = arith.extf %304 : vector<1x16x16x1xbf16> to vector<1x16x16x1xf32>
    %306 = vector.shape_cast %305 : vector<1x16x16x1xf32> to vector<256x1xf32>
    %c23 = arith.constant 23 : index
    %c0_164 = arith.constant 0 : index
    %c0_165 = arith.constant 0 : index
    %307 = vector.load %arg3[%c23, %c0_164, %c0_165] : memref<27x1x4xbf16, #tpu.memory_space<vmem>>, vector<1x1x4xbf16>
    %308 = vector.shape_cast %307 : vector<1x1x4xbf16> to vector<1x4xbf16>
    %309 = arith.extf %308 : vector<1x4xbf16> to vector<1x4xf32>
    %310 = vector.broadcast %306 : vector<256x1xf32> to vector<256x4xf32>
    %311 = vector.broadcast %309 : vector<1x4xf32> to vector<256x4xf32>
    %312 = arith.mulf %310, %311 : vector<256x4xf32>
    %313 = arith.addf %300, %312 : vector<256x4xf32>
    %c2_i32_166 = arith.constant 2 : i32
    %314 = arith.addi %0, %c2_i32_166 : i32
    %c0_167 = arith.constant 0 : index
    %315 = arith.index_cast %314 : i32 to index
    %c2_168 = arith.constant 2 : index
    %c0_169 = arith.constant 0 : index
    %c0_170 = arith.constant 0 : index
    %316 = vector.load %arg2[%c0_167, %315, %c2_168, %c0_169, %c0_170] : memref<1x18x18x18x1xbf16, #tpu.memory_space<vmem>>, vector<1x1x16x16x1xbf16>
    %317 = vector.shape_cast %316 : vector<1x1x16x16x1xbf16> to vector<1x16x16x1xbf16>
    %318 = arith.extf %317 : vector<1x16x16x1xbf16> to vector<1x16x16x1xf32>
    %319 = vector.shape_cast %318 : vector<1x16x16x1xf32> to vector<256x1xf32>
    %c24 = arith.constant 24 : index
    %c0_171 = arith.constant 0 : index
    %c0_172 = arith.constant 0 : index
    %320 = vector.load %arg3[%c24, %c0_171, %c0_172] : memref<27x1x4xbf16, #tpu.memory_space<vmem>>, vector<1x1x4xbf16>
    %321 = vector.shape_cast %320 : vector<1x1x4xbf16> to vector<1x4xbf16>
    %322 = arith.extf %321 : vector<1x4xbf16> to vector<1x4xf32>
    %323 = vector.broadcast %319 : vector<256x1xf32> to vector<256x4xf32>
    %324 = vector.broadcast %322 : vector<1x4xf32> to vector<256x4xf32>
    %325 = arith.mulf %323, %324 : vector<256x4xf32>
    %326 = arith.addf %313, %325 : vector<256x4xf32>
    %c2_i32_173 = arith.constant 2 : i32
    %327 = arith.addi %0, %c2_i32_173 : i32
    %c0_174 = arith.constant 0 : index
    %328 = arith.index_cast %327 : i32 to index
    %c2_175 = arith.constant 2 : index
    %c1_176 = arith.constant 1 : index
    %c0_177 = arith.constant 0 : index
    %329 = vector.load %arg2[%c0_174, %328, %c2_175, %c1_176, %c0_177] : memref<1x18x18x18x1xbf16, #tpu.memory_space<vmem>>, vector<1x1x16x16x1xbf16>
    %330 = vector.shape_cast %329 : vector<1x1x16x16x1xbf16> to vector<1x16x16x1xbf16>
    %331 = arith.extf %330 : vector<1x16x16x1xbf16> to vector<1x16x16x1xf32>
    %332 = vector.shape_cast %331 : vector<1x16x16x1xf32> to vector<256x1xf32>
    %c25 = arith.constant 25 : index
    %c0_178 = arith.constant 0 : index
    %c0_179 = arith.constant 0 : index
    %333 = vector.load %arg3[%c25, %c0_178, %c0_179] : memref<27x1x4xbf16, #tpu.memory_space<vmem>>, vector<1x1x4xbf16>
    %334 = vector.shape_cast %333 : vector<1x1x4xbf16> to vector<1x4xbf16>
    %335 = arith.extf %334 : vector<1x4xbf16> to vector<1x4xf32>
    %336 = vector.broadcast %332 : vector<256x1xf32> to vector<256x4xf32>
    %337 = vector.broadcast %335 : vector<1x4xf32> to vector<256x4xf32>
    %338 = arith.mulf %336, %337 : vector<256x4xf32>
    %339 = arith.addf %326, %338 : vector<256x4xf32>
    %c2_i32_180 = arith.constant 2 : i32
    %340 = arith.addi %0, %c2_i32_180 : i32
    %c0_181 = arith.constant 0 : index
    %341 = arith.index_cast %340 : i32 to index
    %c2_182 = arith.constant 2 : index
    %c2_183 = arith.constant 2 : index
    %c0_184 = arith.constant 0 : index
    %342 = vector.load %arg2[%c0_181, %341, %c2_182, %c2_183, %c0_184] : memref<1x18x18x18x1xbf16, #tpu.memory_space<vmem>>, vector<1x1x16x16x1xbf16>
    %343 = vector.shape_cast %342 : vector<1x1x16x16x1xbf16> to vector<1x16x16x1xbf16>
    %344 = arith.extf %343 : vector<1x16x16x1xbf16> to vector<1x16x16x1xf32>
    %345 = vector.shape_cast %344 : vector<1x16x16x1xf32> to vector<256x1xf32>
    %c26 = arith.constant 26 : index
    %c0_185 = arith.constant 0 : index
    %c0_186 = arith.constant 0 : index
    %346 = vector.load %arg3[%c26, %c0_185, %c0_186] : memref<27x1x4xbf16, #tpu.memory_space<vmem>>, vector<1x1x4xbf16>
    %347 = vector.shape_cast %346 : vector<1x1x4xbf16> to vector<1x4xbf16>
    %348 = arith.extf %347 : vector<1x4xbf16> to vector<1x4xf32>
    %349 = vector.broadcast %345 : vector<256x1xf32> to vector<256x4xf32>
    %350 = vector.broadcast %348 : vector<1x4xf32> to vector<256x4xf32>
    %351 = arith.mulf %349, %350 : vector<256x4xf32>
    %352 = arith.addf %339, %351 : vector<256x4xf32>
    %c0_187 = arith.constant 0 : index
    %c0_188 = arith.constant 0 : index
    %353 = vector.load %arg4[%c0_187, %c0_188] : memref<1x4xf32, #tpu.memory_space<vmem>>, vector<1x4xf32>
    %354 = vector.broadcast %353 : vector<1x4xf32> to vector<256x4xf32>
    %355 = arith.addf %352, %354 : vector<256x4xf32>
    %cst_189 = arith.constant 0.000000e+00 : f32
    %356 = vector.broadcast %cst_189 : f32 to vector<256x4xf32>
    %357 = arith.maximumf %355, %356 : vector<256x4xf32>
    %358 = vector.shape_cast %357 : vector<256x4xf32> to vector<1x16x16x4xf32>
    %c0_190 = arith.constant 0 : index
    %c0_191 = arith.constant 0 : index
    %c0_192 = arith.constant 0 : index
    %c0_193 = arith.constant 0 : index
    %c0_194 = arith.constant 0 : index
    %359 = vector.load %arg5[%c0_190, %c0_191, %c0_192, %c0_193, %c0_194] : memref<1x1x16x16x4xf32, #tpu.memory_space<vmem>>, vector<1x1x16x16x4xf32>
    %360 = vector.shape_cast %359 : vector<1x1x16x16x4xf32> to vector<1x16x16x4xf32>
    %361 = vector.shape_cast %358 : vector<1x16x16x4xf32> to vector<1x1x16x16x4xf32>
    tpu.vector_store %arg5[%c0_190, %c0_191, %c0_192, %c0_193, %c0_194], %361 {strides = array<i32>} : memref<1x1x16x16x4xf32, #tpu.memory_space<vmem>>, vector<1x1x16x16x4xf32>,
    return
  }
  func.func @transform_0(%arg0: i32, %arg1: i32) -> (i32, i32, i32, i32, i32) {
    %c0_i32 = arith.constant 0 : i32
    %c0_i32_0 = arith.constant 0 : i32
    %c0_i32_1 = arith.constant 0 : i32
    %c0_i32_2 = arith.constant 0 : i32
    %c0_i32_3 = arith.constant 0 : i32
    return %arg0, %c0_i32, %c0_i32_0, %c0_i32_1, %c0_i32_2 : i32, i32, i32, i32, i32
  }
  func.func @transform_1(%arg0: i32, %arg1: i32) -> (i32, i32, i32) {
    %c0_i32 = arith.constant 0 : i32
    %c0_i32_0 = arith.constant 0 : i32
    %c0_i32_1 = arith.constant 0 : i32
    %c0_i32_2 = arith.constant 0 : i32
    return %c0_i32, %c0_i32_0, %c0_i32_1 : i32, i32, i32
  }
  func.func @transform_2(%arg0: i32, %arg1: i32) -> (i32, i32) {
    %c0_i32 = arith.constant 0 : i32
    %c0_i32_0 = arith.constant 0 : i32
    %c0_i32_1 = arith.constant 0 : i32
    return %c0_i32, %c0_i32_0 : i32, i32
  }
  func.func @transform_3(%arg0: i32, %arg1: i32) -> (i32, i32, i32, i32, i32) {
    %c0_i32 = arith.constant 0 : i32
    %c0_i32_0 = arith.constant 0 : i32
    %c0_i32_1 = arith.constant 0 : i32
    %c0_i32_2 = arith.constant 0 : i32
    return %arg0, %arg1, %c0_i32, %c0_i32_0, %c0_i32_1 : i32, i32, i32, i32, i32
  }
}

</mosaic_0001>

<llo_original>
// kernel: tpu_custom_call.1
$region0: #{tpu_custom_call.1}
  #allocation0 [shape = 'u32[]', space=smem, size = 0x4, offset = 0x4, fixed_abs, tag = 'smem constant byte address 0x4 - core index']
  #allocation1 [shape = 'u32[144,128]{1,0:T(1,128)}', space=vmem, size = 0x12000, scoped, tag = 'internal scratch']
  %s0 = inlined_call_operand.vmem [shape: bf16[1,18,18,18,1], index: 0, kind: input, shape index: {}]
  %s1 = inlined_call_operand.vmem [shape: bf16[27,1,4], index: 1, kind: input, shape index: {}]
  %s2 = inlined_call_operand.vmem [shape: f32[1,4], index: 2, kind: input, shape index: {}]
  %s3 = inlined_call_operand.vmem [shape: f32[1,16,16,16,4], index: 3, kind: output, shape index: {}]
  %s4 = sld [smem:[#allocation0]]
  $region45: #{tpu_custom_call.1} parent=0
    _
  %s6 = ssub.s32 1, %s4
  %s7 = scalar_select 0, %s6, %s4
  loop: start=0, step=1, limit=18
  $region2: #{tpu_custom_call.1} parent=0 // loop_pre_header
    _
  $region3: #{tpu_custom_call.1} parent=0 // loop_header
    %s9 = sphi 0, %s13
    %p10 = scmp.ge.s32.totalorder %s9, 18
    %s16 = sphi 0, %s28
    %s17 = sphi 0, %s24
    %s18 = sphi 0, %s16
    %s19 = sphi 0, %s17
    %s20 = sphi 0, %s18
    %s21 = sphi 0, %s19
    %s31 = sphi 0, %s33
    %s34 = sphi 0, %s31
    %s35 = sphi 0, %s34
    %s51 = sphi 0, %s35
    %s55 = sphi 0, %s55
    %s57 = sphi 0, %s55
    %s58 = sphi 0, %s57
    %s72 = sphi 0, %s58
    %s76 = sphi 0, %s76
    %s78 = sphi 0, %s76
    %s79 = sphi 0, %s78
    %s93 = sphi 0, %s79
    %s101 = sphi 0, %s103
    %s104 = sphi 0, %s101
    %s105 = sphi 0, %s104
    %s121 = sphi 0, %s105
  $region4: #{tpu_custom_call.1} parent=0 // loop_header_branch
    %12 = sbr.rel (%p10) target = $region8
  $region5: #{tpu_custom_call.1} parent=0 // loop_body
    %s14 = ssub.s32 %s9, 1
    %s15 = ssub.s32 %s9, 2
    %s22 = sadd.s32 1, %s17
    %p23 = scmp.ge.s32.totalorder %s22, 16
    %s24 = scalar_select %p23, 0, %s22
    %s25 = sadd.s32 1, %s16
    %s26 = scalar_select %p23, %s25, %s16
    %p27 = scmp.ge.s32.totalorder %s26, 1
    %s28 = scalar_select %p27, 0, %s26
    %s29 = ssub.s32 %s16, %s28
    %p30 = scmp.eq.s32.totalorder %s29, 0
    %s32 = sadd.s32 %s31, 1
    %s33 = scalar_select %p30, %s31, %s32
    %p36 = pneg %p30
    %p37 = scmp.eq.s32.totalorder %s9, 15
    %p38 = por %p36, %p37
    %p39 = scmp.ne.s32.totalorder %s31, %s34
    %p40 = scmp.eq.s32.totalorder %s9, 0
    %p41 = por %p39, %p40
    %p42 = scmp.ne.s32.totalorder %s31, %s34
    %p43 = scmp.eq.s32.totalorder %s14, 15
    %p44 = por %p42, %p43
    %p45 = scmp.ne.s32.totalorder %s34, %s35
    %p46 = scmp.eq.s32.totalorder %s14, 0
    %p47 = por %p45, %p46
    %p48 = scmp.ne.s32.totalorder %s34, %s35
    %p49 = scmp.eq.s32.totalorder %s15, 15
    %p50 = por %p48, %p49
    %p52 = scmp.ne.s32.totalorder %s35, %s51
    %p53 = scmp.eq.s32.totalorder %s15, 0
    %p54 = por %p52, %p53
    %s56 = sadd.s32 %s55, 1
    %p59 = scmp.eq.s32.totalorder %s9, 15
    %p60 = scmp.ne.s32.totalorder %s55, %s57
    %p61 = scmp.eq.s32.totalorder %s9, 0
    %p62 = por %p60, %p61
    %p63 = scmp.ne.s32.totalorder %s55, %s57
    %p64 = scmp.eq.s32.totalorder %s14, 15
    %p65 = por %p63, %p64
    %p66 = scmp.ne.s32.totalorder %s57, %s58
    %p67 = scmp.eq.s32.totalorder %s14, 0
    %p68 = por %p66, %p67
    %p69 = scmp.ne.s32.totalorder %s57, %s58
    %p70 = scmp.eq.s32.totalorder %s15, 15
    %p71 = por %p69, %p70
    %p73 = scmp.ne.s32.totalorder %s58, %s72
    %p74 = scmp.eq.s32.totalorder %s15, 0
    %p75 = por %p73, %p74
    %s77 = sadd.s32 %s76, 1
    %p80 = scmp.eq.s32.totalorder %s9, 15
    %p81 = scmp.ne.s32.totalorder %s76, %s78
    %p82 = scmp.eq.s32.totalorder %s9, 0
    %p83 = por %p81, %p82
    %p84 = scmp.ne.s32.totalorder %s76, %s78
    %p85 = scmp.eq.s32.totalorder %s14, 15
    %p86 = por %p84, %p85
    %p87 = scmp.ne.s32.totalorder %s78, %s79
    %p88 = scmp.eq.s32.totalorder %s14, 0
    %p89 = por %p87, %p88
    %p90 = scmp.ne.s32.totalorder %s78, %s79
    %p91 = scmp.eq.s32.totalorder %s15, 15
    %p92 = por %p90, %p91
    %p94 = scmp.ne.s32.totalorder %s79, %s93
    %p95 = scmp.eq.s32.totalorder %s15, 0
    %p96 = por %p94, %p95
    %s97 = ssub.s32 %s16, %s28
    %s98 = ssub.s32 %s17, %s24
    %s99 = sor.u32 %s97, %s98
    %p100 = scmp.eq.s32.totalorder %s99, 0
    %s102 = sadd.s32 %s101, 1
    %s103 = scalar_select %p100, %s101, %s102
    %p106 = pneg %p100
    %p107 = scmp.eq.s32.totalorder %s9, 15
    %p108 = por %p106, %p107
    %p109 = scmp.ne.s32.totalorder %s101, %s104
    %p110 = scmp.eq.s32.totalorder %s9, 0
    %p111 = por %p109, %p110
    %p112 = scmp.ne.s32.totalorder %s101, %s104
    %p113 = scmp.eq.s32.totalorder %s14, 15
    %p114 = por %p112, %p113
    %p115 = scmp.ne.s32.totalorder %s104, %s105
    %p116 = scmp.eq.s32.totalorder %s14, 0
    %p117 = por %p115, %p116
    %p118 = scmp.ne.s32.totalorder %s104, %s105
    %p119 = scmp.eq.s32.totalorder %s15, 15
    %p120 = por %p118, %p119
    %p122 = scmp.ne.s32.totalorder %s105, %s121
    %p123 = scmp.eq.s32.totalorder %s15, 0
    %p124 = por %p122, %p123
    %p125 = scmp.le.s32.totalorder 1, %s9
    %p126 = scmp.lt.s32.totalorder %s9, 17
    %p127 = pnand %p125, %p126
    %p128 = pneg %p127
    // Predicated region
    $region9: #{tpu_custom_call.1} parent=5 // pred_check
      _
    $region10: #{tpu_custom_call.1} parent=5 // pred_check_branch
      %130 = sbr.rel (%p127) target = $region12
    $region11: #{tpu_custom_call.1} parent=5 // pred_region
      %s131 = ssub.s32 %s9, 1
      // Predicated region
      $region13: #{tpu_custom_call.1} parent=11 // pred_check
        %p132 = pneg %p47
      $region14: #{tpu_custom_call.1} parent=11 // pred_check_branch
        %134 = sbr.rel (%p132) target = $region16
      $region15: #{tpu_custom_call.1} parent=11 // pred_region
        %p135 = scmp.lt.s32.totalorder %s18, 0
        %s136 = scalar_select %p135, %s18, 0
        %s137 = smul.addr %s136, 972
        %s138 = smul.addr %s137, 4
        %s139 = scalar_lea.vmem %s0, %s138
      $region16: #{tpu_custom_call.1} parent=11 // pred_fallthru
        _
      // Predicated region
      $region17: #{tpu_custom_call.1} parent=11 // pred_check
        %p140 = pneg %p68
      $region18: #{tpu_custom_call.1} parent=11 // pred_check_branch
        %142 = sbr.rel (%p140) target = $region20
      $region19: #{tpu_custom_call.1} parent=11 // pred_region
        _
      $region20: #{tpu_custom_call.1} parent=11 // pred_fallthru
        _
      // Predicated region
      $region21: #{tpu_custom_call.1} parent=11 // pred_check
        %p143 = pneg %p89
      $region22: #{tpu_custom_call.1} parent=11 // pred_check_branch
        %145 = sbr.rel (%p143) target = $region24
      $region23: #{tpu_custom_call.1} parent=11 // pred_region
        _
      $region24: #{tpu_custom_call.1} parent=11 // pred_fallthru
        _
    $region12: #{tpu_custom_call.1} parent=5 // pred_fallthru
      _
    %p146 = scmp.lt.s32.totalorder %s9, 16
    // Predicated region
    $region25: #{tpu_custom_call.1} parent=5 // pred_check
      %p147 = pneg %p146
    $region26: #{tpu_custom_call.1} parent=5 // pred_check_branch
      %149 = sbr.rel (%p147) target = $region28
    $region27: #{tpu_custom_call.1} parent=5 // pred_region
      _
    $region28: #{tpu_custom_call.1} parent=5 // pred_fallthru
      _
    %p150 = scmp.le.s32.totalorder 1, %s9
    %p151 = scmp.lt.s32.totalorder %s9, 17
    %p152 = pnand %p150, %p151
    %p153 = pneg %p152
    // Predicated region
    $region29: #{tpu_custom_call.1} parent=5 // pred_check
      _
    $region30: #{tpu_custom_call.1} parent=5 // pred_check_branch
      %155 = sbr.rel (%p152) target = $region32
    $region31: #{tpu_custom_call.1} parent=5 // pred_region
      %s156 = ssub.s32 %s9, 1
      %p157 = scmp.lt.s32.totalorder %s18, 0
      %s158 = scalar_select %p157, %s18, 0
      %s159 = smul.addr %s158, 972
      %s160 = smul.addr %s159, 4
      %s161 = scalar_lea.vmem %s0, %s160
      %p162 = pneg %p47
      %p163 = pneg %p44
      %p164 = pneg %p68
      %p165 = pneg %p65
      %p166 = pneg %p89
      %p167 = pneg %p86
      %p168 = pneg %p117
      %p169 = pneg %p114
      %p170 = scmp.lt.s32.totalorder %s18, 0
      %s171 = scalar_select %p170, %s18, 0
      %p172 = scmp.lt.s32.totalorder %s19, 15
      %s173 = scalar_select %p172, %s19, 15
      %s174 = smul.addr %s173, 32
      %s175 = smul.addr %s171, 512
      %s176 = sadd.s32 %s174, %s175
      %s177 = smul.addr %s176, 8
      %s178 = scalar_lea.vmem %s3, %s177
      %p179 = scmp.lt.s32.totalorder %s18, 0
      %s180 = scalar_select %p179, %s18, 0
      %s181 = smul.addr %s180, 972
      %s182 = smul.addr %s181, 4
      %s183 = scalar_lea.vmem %s0, %s182
      %p184 = scmp.lt.s32.totalorder %s18, 0
      %s185 = scalar_select %p184, %s18, 0
      %p186 = scmp.lt.s32.totalorder %s19, 15
      %s187 = scalar_select %p186, %s19, 15
      %s188 = smul.addr %s187, 32
      %s189 = smul.addr %s185, 512
      %s190 = sadd.s32 %s188, %s189
      %s191 = smul.addr %s190, 8
      %s192 = scalar_lea.vmem %s3, %s191
      %s193 = smul.u32 %s19, 54
      %s194 = smul.addr %s193, 4
      %s195 = scalar_lea.vmem %s183, %s194
      %v196 = vld [vmem:[%s195] sm:$0xf]
      %v197 = vld [vmem:[%s195 + $0x4] sm:$0xf]
      %v198 = vld [vmem:[%s195 + $0xc] sm:$0xf]
      %v199 = vld [vmem:[%s195 + $0x10] sm:$0xf]
      %v200 = vld [vmem:[%s195 + $0x18] sm:$0xf]
      %v201 = vld [vmem:[%s195 + $0x1c] sm:$0xf]
      %v202 = vld [vmem:[%s195 + $0x24] sm:$0xf]
      %v203 = vld [vmem:[%s195 + $0x28] sm:$0xf]
      %v204 = vld [vmem:[%s195 + $0x30] sm:$0xf]
      %v205 = vld [vmem:[%s195 + $0x34] sm:$0xf]
      %v206 = vld [vmem:[%s195 + $0x3c] sm:$0xf]
      %v207 = vld [vmem:[%s195 + $0x40] sm:$0xf]
      %v208 = vld [vmem:[%s195 + $0x48] sm:$0xf]
      %v209 = vld [vmem:[%s195 + $0x4c] sm:$0xf]
      %v210 = vld [vmem:[%s195 + $0x54] sm:$0xf]
      %v211 = vld [vmem:[%s195 + $0x58] sm:$0xf]
      %v212 = vld [vmem:[%s195 + $0x60] sm:$0xf]
      %v213 = vld [vmem:[%s195 + $0x64] sm:$0xf]
      %v214 = vld [vmem:[%s195 + $0x6c] sm:$0xf]
      %v215 = vld [vmem:[%s195 + $0x70] sm:$0xf]
      %v216 = vld [vmem:[%s195 + $0x78] sm:$0xf]
      %v217 = vld [vmem:[%s195 + $0x7c] sm:$0xf]
      %v218 = vld [vmem:[%s195 + $0x84] sm:$0xf]
      %v219 = vld [vmem:[%s195 + $0x88] sm:$0xf]
      %v220 = vld [vmem:[%s195 + $0x90] sm:$0xf]
      %v221 = vld [vmem:[%s195 + $0x94] sm:$0xf]
      %v222 = vld [vmem:[%s195 + $0x9c] sm:$0xf]
      %v223 = vld [vmem:[%s195 + $0xa0] sm:$0xf]
      %v224 = vld [vmem:[%s195 + $0xa8] sm:$0xf]
      %v225 = vld [vmem:[%s195 + $0xac] sm:$0xf]
      %v226 = vld [vmem:[%s195 + $0xb4] sm:$0xf]
      %v227 = vld [vmem:[%s195 + $0xb8] sm:$0xf]
      %v228 = vunpack.c.l.bf16 %v196
      %v229 = vunpack.c.l.bf16 %v197
      %v230 = vunpack.c.l.bf16 %v198
      %v231 = vunpack.c.l.bf16 %v199
      %v232 = vunpack.c.l.bf16 %v200
      %v233 = vunpack.c.l.bf16 %v201
      %v234 = vunpack.c.l.bf16 %v202
      %v235 = vunpack.c.l.bf16 %v203
      %v236 = vunpack.c.l.bf16 %v204
      %v237 = vunpack.c.l.bf16 %v205
      %v238 = vunpack.c.l.bf16 %v206
      %v239 = vunpack.c.l.bf16 %v207
      %v240 = vunpack.c.l.bf16 %v208
      %v241 = vunpack.c.l.bf16 %v209
      %v242 = vunpack.c.l.bf16 %v210
      %v243 = vunpack.c.l.bf16 %v211
      %v244 = vunpack.c.l.bf16 %v212
      %v245 = vunpack.c.l.bf16 %v213
      %v246 = vunpack.c.l.bf16 %v214
      %v247 = vunpack.c.l.bf16 %v215
      %v248 = vunpack.c.l.bf16 %v216
      %v249 = vunpack.c.l.bf16 %v217
      %v250 = vunpack.c.l.bf16 %v218
      %v251 = vunpack.c.l.bf16 %v219
      %v252 = vunpack.c.l.bf16 %v220
      %v253 = vunpack.c.l.bf16 %v221
      %v254 = vunpack.c.l.bf16 %v222
      %v255 = vunpack.c.l.bf16 %v223
      %v256 = vunpack.c.l.bf16 %v224
      %v257 = vunpack.c.l.bf16 %v225
      %v258 = vunpack.c.l.bf16 %v226
      %v259 = vunpack.c.l.bf16 %v227
      %v260 = vld [vmem:[%s1] sm:$0x1]
      %v261 = vunpack.c.l.bf16 %v260
      %263 = vset.pattern.permute.xlu0 0
      %264 = vperm.xlu0 %263, %v228
      %v265 = vpop.permute.xlu0 %264
      %268 = vset.pattern.permute.xlu0 0
      %269 = vperm.xlu0 %268, %v229
      %v270 = vpop.permute.xlu0 %269
      %273 = vset.pattern.permute.xlu0 0
      %274 = vperm.xlu0 %273, %v230
      %v275 = vpop.permute.xlu0 %274
      %278 = vset.pattern.permute.xlu0 0
      %279 = vperm.xlu0 %278, %v231
      %v280 = vpop.permute.xlu0 %279
      %283 = vset.pattern.permute.xlu0 0
      %284 = vperm.xlu0 %283, %v232
      %v285 = vpop.permute.xlu0 %284
      %288 = vset.pattern.permute.xlu0 0
      %289 = vperm.xlu0 %288, %v233
      %v290 = vpop.permute.xlu0 %289
      %293 = vset.pattern.permute.xlu0 0
      %294 = vperm.xlu0 %293, %v234
      %v295 = vpop.permute.xlu0 %294
      %298 = vset.pattern.permute.xlu0 0
      %299 = vperm.xlu0 %298, %v235
      %v300 = vpop.permute.xlu0 %299
      %303 = vset.pattern.permute.xlu0 0
      %304 = vperm.xlu0 %303, %v236
      %v305 = vpop.permute.xlu0 %304
      %308 = vset.pattern.permute.xlu0 0
      %309 = vperm.xlu0 %308, %v237
      %v310 = vpop.permute.xlu0 %309
      %313 = vset.pattern.permute.xlu0 0
      %314 = vperm.xlu0 %313, %v238
      %v315 = vpop.permute.xlu0 %314
      %318 = vset.pattern.permute.xlu0 0
      %319 = vperm.xlu0 %318, %v239
      %v320 = vpop.permute.xlu0 %319
      %323 = vset.pattern.permute.xlu0 0
      %324 = vperm.xlu0 %323, %v240
      %v325 = vpop.permute.xlu0 %324
      %328 = vset.pattern.permute.xlu0 0
      %329 = vperm.xlu0 %328, %v241
      %v330 = vpop.permute.xlu0 %329
      %333 = vset.pattern.permute.xlu0 0
      %334 = vperm.xlu0 %333, %v242
      %v335 = vpop.permute.xlu0 %334
      %338 = vset.pattern.permute.xlu0 0
      %339 = vperm.xlu0 %338, %v243
      %v340 = vpop.permute.xlu0 %339
      %343 = vset.pattern.permute.xlu0 0
      %344 = vperm.xlu0 %343, %v244
      %v345 = vpop.permute.xlu0 %344
      %348 = vset.pattern.permute.xlu0 0
      %349 = vperm.xlu0 %348, %v245
      %v350 = vpop.permute.xlu0 %349
      %353 = vset.pattern.permute.xlu0 0
      %354 = vperm.xlu0 %353, %v246
      %v355 = vpop.permute.xlu0 %354
      %358 = vset.pattern.permute.xlu0 0
      %359 = vperm.xlu0 %358, %v247
      %v360 = vpop.permute.xlu0 %359
      %363 = vset.pattern.permute.xlu0 0
      %364 = vperm.xlu0 %363, %v248
      %v365 = vpop.permute.xlu0 %364
      %368 = vset.pattern.permute.xlu0 0
      %369 = vperm.xlu0 %368, %v249
      %v370 = vpop.permute.xlu0 %369
      %373 = vset.pattern.permute.xlu0 0
      %374 = vperm.xlu0 %373, %v250
      %v375 = vpop.permute.xlu0 %374
      %378 = vset.pattern.permute.xlu0 0
      %379 = vperm.xlu0 %378, %v251
      %v380 = vpop.permute.xlu0 %379
      %383 = vset.pattern.permute.xlu0 0
      %384 = vperm.xlu0 %383, %v252
      %v385 = vpop.permute.xlu0 %384
      %388 = vset.pattern.permute.xlu0 0
      %389 = vperm.xlu0 %388, %v253
      %v390 = vpop.permute.xlu0 %389
      %393 = vset.pattern.permute.xlu0 0
      %394 = vperm.xlu0 %393, %v254
      %v395 = vpop.permute.xlu0 %394
      %398 = vset.pattern.permute.xlu0 0
      %399 = vperm.xlu0 %398, %v255
      %v400 = vpop.permute.xlu0 %399
      %403 = vset.pattern.permute.xlu0 0
      %404 = vperm.xlu0 %403, %v256
      %v405 = vpop.permute.xlu0 %404
      %408 = vset.pattern.permute.xlu0 0
      %409 = vperm.xlu0 %408, %v257
      %v410 = vpop.permute.xlu0 %409
      %413 = vset.pattern.permute.xlu0 0
      %414 = vperm.xlu0 %413, %v258
      %v415 = vpop.permute.xlu0 %414
      %418 = vset.pattern.permute.xlu0 0
      %419 = vperm.xlu0 %418, %v259
      %v420 = vpop.permute.xlu0 %419
      %v422 = vlaneseq
      %v423 = vshrl.u32 %v422, 7
      %v424 = vsub.s32 0, %v423
      %v425 = vrot.slane %v261, %v424
      %v426 = vmul.f32 %v265, %v425
      %v427 = vmul.f32 %v270, %v425
      %v428 = vmul.f32 %v275, %v425
      %v429 = vmul.f32 %v280, %v425
      %v430 = vmul.f32 %v285, %v425
      %v431 = vmul.f32 %v290, %v425
      %v432 = vmul.f32 %v295, %v425
      %v433 = vmul.f32 %v300, %v425
      %v434 = vmul.f32 %v305, %v425
      %v435 = vmul.f32 %v310, %v425
      %v436 = vmul.f32 %v315, %v425
      %v437 = vmul.f32 %v320, %v425
      %v438 = vmul.f32 %v325, %v425
      %v439 = vmul.f32 %v330, %v425
      %v440 = vmul.f32 %v335, %v425
      %v441 = vmul.f32 %v340, %v425
      %v442 = vmul.f32 %v345, %v425
      %v443 = vmul.f32 %v350, %v425
      %v444 = vmul.f32 %v355, %v425
      %v445 = vmul.f32 %v360, %v425
      %v446 = vmul.f32 %v365, %v425
      %v447 = vmul.f32 %v370, %v425
      %v448 = vmul.f32 %v375, %v425
      %v449 = vmul.f32 %v380, %v425
      %v450 = vmul.f32 %v385, %v425
      %v451 = vmul.f32 %v390, %v425
      %v452 = vmul.f32 %v395, %v425
      %v453 = vmul.f32 %v400, %v425
      %v454 = vmul.f32 %v405, %v425
      %v455 = vmul.f32 %v410, %v425
      %v456 = vmul.f32 %v415, %v425
      %v457 = vmul.f32 %v420, %v425
      %v458 = vadd.f32 %v426, 0.0
      %v459 = vadd.f32 %v427, 0.0
      %v460 = vadd.f32 %v428, 0.0
      %v461 = vadd.f32 %v429, 0.0
      %v462 = vadd.f32 %v430, 0.0
      %v463 = vadd.f32 %v431, 0.0
      %v464 = vadd.f32 %v432, 0.0
      %v465 = vadd.f32 %v433, 0.0
      %v466 = vadd.f32 %v434, 0.0
      %v467 = vadd.f32 %v435, 0.0
      %v468 = vadd.f32 %v436, 0.0
      %v469 = vadd.f32 %v437, 0.0
      %v470 = vadd.f32 %v438, 0.0
      %v471 = vadd.f32 %v439, 0.0
      %v472 = vadd.f32 %v440, 0.0
      %v473 = vadd.f32 %v441, 0.0
      %v474 = vadd.f32 %v442, 0.0
      %v475 = vadd.f32 %v443, 0.0
      %v476 = vadd.f32 %v444, 0.0
      %v477 = vadd.f32 %v445, 0.0
      %v478 = vadd.f32 %v446, 0.0
      %v479 = vadd.f32 %v447, 0.0
      %v480 = vadd.f32 %v448, 0.0
      %v481 = vadd.f32 %v449, 0.0
      %v482 = vadd.f32 %v450, 0.0
      %v483 = vadd.f32 %v451, 0.0
      %v484 = vadd.f32 %v452, 0.0
      %v485 = vadd.f32 %v453, 0.0
      %v486 = vadd.f32 %v454, 0.0
      %v487 = vadd.f32 %v455, 0.0
      %v488 = vadd.f32 %v456, 0.0
      %v489 = vadd.f32 %v457, 0.0
      %v490 = vld [vmem:[%s195] sm:$0xf]
      %v491 = vld [vmem:[%s195 + $0x4] sm:$0xf]
      %v492 = vld [vmem:[%s195 + $0x8] sm:$0x1]
      %v493 = vld [vmem:[%s195 + $0xc] sm:$0xf]
      %v494 = vld [vmem:[%s195 + $0x10] sm:$0xf]
      %v495 = vld [vmem:[%s195 + $0x14] sm:$0x1]
      %v496 = vld [vmem:[%s195 + $0x18] sm:$0xf]
      %v497 = vld [vmem:[%s195 + $0x1c] sm:$0xf]
      %v498 = vld [vmem:[%s195 + $0x20] sm:$0x1]
      %v499 = vld [vmem:[%s195 + $0x24] sm:$0xf]
      %v500 = vld [vmem:[%s195 + $0x28] sm:$0xf]
      %v501 = vld [vmem:[%s195 + $0x2c] sm:$0x1]
      %v502 = vld [vmem:[%s195 + $0x30] sm:$0xf]
      %v503 = vld [vmem:[%s195 + $0x34] sm:$0xf]
      %v504 = vld [vmem:[%s195 + $0x38] sm:$0x1]
      %v505 = vld [vmem:[%s195 + $0x3c] sm:$0xf]
      %v506 = vld [vmem:[%s195 + $0x40] sm:$0xf]
      %v507 = vld [vmem:[%s195 + $0x44] sm:$0x1]
      %v508 = vld [vmem:[%s195 + $0x48] sm:$0xf]
      %v509 = vld [vmem:[%s195 + $0x4c] sm:$0xf]
      %v510 = vld [vmem:[%s195 + $0x50] sm:$0x1]
      %v511 = vld [vmem:[%s195 + $0x54] sm:$0xf]
      %v512 = vld [vmem:[%s195 + $0x58] sm:$0xf]
      %v513 = vld [vmem:[%s195 + $0x5c] sm:$0x1]
      %v514 = vld [vmem:[%s195 + $0x60] sm:$0xf]
      %v515 = vld [vmem:[%s195 + $0x64] sm:$0xf]
      %v516 = vld [vmem:[%s195 + $0x68] sm:$0x1]
      %v517 = vld [vmem:[%s195 + $0x6c] sm:$0xf]
      %v518 = vld [vmem:[%s195 + $0x70] sm:$0xf]
      %v519 = vld [vmem:[%s195 + $0x74] sm:$0x1]
      %v520 = vld [vmem:[%s195 + $0x78] sm:$0xf]
      %v521 = vld [vmem:[%s195 + $0x7c] sm:$0xf]
      %v522 = vld [vmem:[%s195 + $0x80] sm:$0x1]
      %v523 = vld [vmem:[%s195 + $0x84] sm:$0xf]
      %v524 = vld [vmem:[%s195 + $0x88] sm:$0xf]
      %v525 = vld [vmem:[%s195 + $0x8c] sm:$0x1]
      %v526 = vld [vmem:[%s195 + $0x90] sm:$0xf]
      %v527 = vld [vmem:[%s195 + $0x94] sm:$0xf]
      %v528 = vld [vmem:[%s195 + $0x98] sm:$0x1]
      %v529 = vld [vmem:[%s195 + $0x9c] sm:$0xf]
      %v530 = vld [vmem:[%s195 + $0xa0] sm:$0xf]
      %v531 = vld [vmem:[%s195 + $0xa4] sm:$0x1]
      %v532 = vld [vmem:[%s195 + $0xa8] sm:$0xf]
      %v533 = vld [vmem:[%s195 + $0xac] sm:$0xf]
      %v534 = vld [vmem:[%s195 + $0xb0] sm:$0x1]
      %v535 = vld [vmem:[%s195 + $0xb4] sm:$0xf]
      %v536 = vld [vmem:[%s195 + $0xb8] sm:$0xf]
      %v537 = vld [vmem:[%s195 + $0xbc] sm:$0x1]
      %v538 = vunpack.c.l.bf16 %v490
      %v539 = vunpack.c.l.bf16 %v491
      %v540 = vunpack.c.l.bf16 %v492
      %v541 = vunpack.c.l.bf16 %v493
      %v542 = vunpack.c.l.bf16 %v494
      %v543 = vunpack.c.l.bf16 %v495
      %v544 = vunpack.c.l.bf16 %v496
      %v545 = vunpack.c.l.bf16 %v497
      %v546 = vunpack.c.l.bf16 %v498
      %v547 = vunpack.c.l.bf16 %v499
      %v548 = vunpack.c.l.bf16 %v500
      %v549 = vunpack.c.l.bf16 %v501
      %v550 = vunpack.c.l.bf16 %v502
      %v551 = vunpack.c.l.bf16 %v503
      %v552 = vunpack.c.l.bf16 %v504
      %v553 = vunpack.c.l.bf16 %v505
      %v554 = vunpack.c.l.bf16 %v506
      %v555 = vunpack.c.l.bf16 %v507
      %v556 = vunpack.c.l.bf16 %v508
      %v557 = vunpack.c.l.bf16 %v509
      %v558 = vunpack.c.l.bf16 %v510
      %v559 = vunpack.c.l.bf16 %v511
      %v560 = vunpack.c.l.bf16 %v512
      %v561 = vunpack.c.l.bf16 %v513
      %v562 = vunpack.c.l.bf16 %v514
      %v563 = vunpack.c.l.bf16 %v515
      %v564 = vunpack.c.l.bf16 %v516
      %v565 = vunpack.c.l.bf16 %v517
      %v566 = vunpack.c.l.bf16 %v518
      %v567 = vunpack.c.l.bf16 %v519
      %v568 = vunpack.c.l.bf16 %v520
      %v569 = vunpack.c.l.bf16 %v521
      %v570 = vunpack.c.l.bf16 %v522
      %v571 = vunpack.c.l.bf16 %v523
      %v572 = vunpack.c.l.bf16 %v524
      %v573 = vunpack.c.l.bf16 %v525
      %v574 = vunpack.c.l.bf16 %v526
      %v575 = vunpack.c.l.bf16 %v527
      %v576 = vunpack.c.l.bf16 %v528
      %v577 = vunpack.c.l.bf16 %v529
      %v578 = vunpack.c.l.bf16 %v530
      %v579 = vunpack.c.l.bf16 %v531
      %v580 = vunpack.c.l.bf16 %v532
      %v581 = vunpack.c.l.bf16 %v533
      %v582 = vunpack.c.l.bf16 %v534
      %v583 = vunpack.c.l.bf16 %v535
      %v584 = vunpack.c.l.bf16 %v536
      %v585 = vunpack.c.l.bf16 %v537
      %vm634 = vcmask 1046528
      %v635 = vrot.slane %v538, 1
      %v636 = vrot.slane %v539, 1
      %v637 = vsel %vm634, %v635, %v636
      %v638 = vrot.slane %v540, 1
      %v639 = vsel %vm634, %v636, %v638
      %v640 = vrot.slane %v541, 1
      %v641 = vrot.slane %v542, 1
      %v642 = vsel %vm634, %v640, %v641
      %v643 = vrot.slane %v543, 1
      %v644 = vsel %vm634, %v641, %v643
      %v645 = vrot.slane %v544, 1
      %v646 = vrot.slane %v545, 1
      %v647 = vsel %vm634, %v645, %v646
      %v648 = vrot.slane %v546, 1
      %v649 = vsel %vm634, %v646, %v648
      %v650 = vrot.slane %v547, 1
      %v651 = vrot.slane %v548, 1
      %v652 = vsel %vm634, %v650, %v651
      %v653 = vrot.slane %v549, 1
      %v654 = vsel %vm634, %v651, %v653
      %v655 = vrot.slane %v550, 1
      %v656 = vrot.slane %v551, 1
      %v657 = vsel %vm634, %v655, %v656
      %v658 = vrot.slane %v552, 1
      %v659 = vsel %vm634, %v656, %v658
      %v660 = vrot.slane %v553, 1
      %v661 = vrot.slane %v554, 1
      %v662 = vsel %vm634, %v660, %v661
      %v663 = vrot.slane %v555, 1
      %v664 = vsel %vm634, %v661, %v663
      %v665 = vrot.slane %v556, 1
      %v666 = vrot.slane %v557, 1
      %v667 = vsel %vm634, %v665, %v666
      %v668 = vrot.slane %v558, 1
      %v669 = vsel %vm634, %v666, %v668
      %v670 = vrot.slane %v559, 1
      %v671 = vrot.slane %v560, 1
      %v672 = vsel %vm634, %v670, %v671
      %v673 = vrot.slane %v561, 1
      %v674 = vsel %vm634, %v671, %v673
      %v675 = vrot.slane %v562, 1
      %v676 = vrot.slane %v563, 1
      %v677 = vsel %vm634, %v675, %v676
      %v678 = vrot.slane %v564, 1
      %v679 = vsel %vm634, %v676, %v678
      %v680 = vrot.slane %v565, 1
      %v681 = vrot.slane %v566, 1
      %v682 = vsel %vm634, %v680, %v681
      %v683 = vrot.slane %v567, 1
      %v684 = vsel %vm634, %v681, %v683
      %v685 = vrot.slane %v568, 1
      %v686 = vrot.slane %v569, 1
      %v687 = vsel %vm634, %v685, %v686
      %v688 = vrot.slane %v570, 1
      %v689 = vsel %vm634, %v686, %v688
      %v690 = vrot.slane %v571, 1
      %v691 = vrot.slane %v572, 1
      %v692 = vsel %vm634, %v690, %v691
      %v693 = vrot.slane %v573, 1
      %v694 = vsel %vm634, %v691, %v693
      %v695 = vrot.slane %v574, 1
      %v696 = vrot.slane %v575, 1
      %v697 = vsel %vm634, %v695, %v696
      %v698 = vrot.slane %v576, 1
      %v699 = vsel %vm634, %v696, %v698
      %v700 = vrot.slane %v577, 1
      %v701 = vrot.slane %v578, 1
      %v702 = vsel %vm634, %v700, %v701
      %v703 = vrot.slane %v579, 1
      %v704 = vsel %vm634, %v701, %v703
      %v705 = vrot.slane %v580, 1
      %v706 = vrot.slane %v581, 1
      %v707 = vsel %vm634, %v705, %v706
      %v708 = vrot.slane %v582, 1
      %v709 = vsel %vm634, %v706, %v708
      %v710 = vrot.slane %v583, 1
      %v711 = vrot.slane %v584, 1
      %v712 = vsel %vm634, %v710, %v711
      %v713 = vrot.slane %v585, 1
      %v714 = vsel %vm634, %v711, %v713
      %s715 = scalar_lea.vmem %s1, 1
      %v716 = vld [vmem:[%s715] sm:$0x1]
      %v717 = vunpack.c.l.bf16 %v716
      %718 = vset.pattern.permute.xlu0 0
      %719 = vperm.xlu0 %718, %v637
      %v720 = vpop.permute.xlu0 %719
      %722 = vset.pattern.permute.xlu0 0
      %723 = vperm.xlu0 %722, %v639
      %v724 = vpop.permute.xlu0 %723
      %726 = vset.pattern.permute.xlu0 0
      %727 = vperm.xlu0 %726, %v642
      %v728 = vpop.permute.xlu0 %727
      %730 = vset.pattern.permute.xlu0 0
      %731 = vperm.xlu0 %730, %v644
      %v732 = vpop.permute.xlu0 %731
      %734 = vset.pattern.permute.xlu0 0
      %735 = vperm.xlu0 %734, %v647
      %v736 = vpop.permute.xlu0 %735
      %738 = vset.pattern.permute.xlu0 0
      %739 = vperm.xlu0 %738, %v649
      %v740 = vpop.permute.xlu0 %739
      %742 = vset.pattern.permute.xlu0 0
      %743 = vperm.xlu0 %742, %v652
      %v744 = vpop.permute.xlu0 %743
      %746 = vset.pattern.permute.xlu0 0
      %747 = vperm.xlu0 %746, %v654
      %v748 = vpop.permute.xlu0 %747
      %750 = vset.pattern.permute.xlu0 0
      %751 = vperm.xlu0 %750, %v657
      %v752 = vpop.permute.xlu0 %751
      %754 = vset.pattern.permute.xlu0 0
      %755 = vperm.xlu0 %754, %v659
      %v756 = vpop.permute.xlu0 %755
      %758 = vset.pattern.permute.xlu0 0
      %759 = vperm.xlu0 %758, %v662
      %v760 = vpop.permute.xlu0 %759
      %762 = vset.pattern.permute.xlu0 0
      %763 = vperm.xlu0 %762, %v664
      %v764 = vpop.permute.xlu0 %763
      %766 = vset.pattern.permute.xlu0 0
      %767 = vperm.xlu0 %766, %v667
      %v768 = vpop.permute.xlu0 %767
      %770 = vset.pattern.permute.xlu0 0
      %771 = vperm.xlu0 %770, %v669
      %v772 = vpop.permute.xlu0 %771
      %774 = vset.pattern.permute.xlu0 0
      %775 = vperm.xlu0 %774, %v672
      %v776 = vpop.permute.xlu0 %775
      %778 = vset.pattern.permute.xlu0 0
      %779 = vperm.xlu0 %778, %v674
      %v780 = vpop.permute.xlu0 %779
      %782 = vset.pattern.permute.xlu0 0
      %783 = vperm.xlu0 %782, %v677
      %v784 = vpop.permute.xlu0 %783
      %786 = vset.pattern.permute.xlu0 0
      %787 = vperm.xlu0 %786, %v679
      %v788 = vpop.permute.xlu0 %787
      %790 = vset.pattern.permute.xlu0 0
      %791 = vperm.xlu0 %790, %v682
      %v792 = vpop.permute.xlu0 %791
      %794 = vset.pattern.permute.xlu0 0
      %795 = vperm.xlu0 %794, %v684
      %v796 = vpop.permute.xlu0 %795
      %798 = vset.pattern.permute.xlu0 0
      %799 = vperm.xlu0 %798, %v687
      %v800 = vpop.permute.xlu0 %799
      %802 = vset.pattern.permute.xlu0 0
      %803 = vperm.xlu0 %802, %v689
      %v804 = vpop.permute.xlu0 %803
      %806 = vset.pattern.permute.xlu0 0
      %807 = vperm.xlu0 %806, %v692
      %v808 = vpop.permute.xlu0 %807
      %810 = vset.pattern.permute.xlu0 0
      %811 = vperm.xlu0 %810, %v694
      %v812 = vpop.permute.xlu0 %811
      %814 = vset.pattern.permute.xlu0 0
      %815 = vperm.xlu0 %814, %v697
      %v816 = vpop.permute.xlu0 %815
      %818 = vset.pattern.permute.xlu0 0
      %819 = vperm.xlu0 %818, %v699
      %v820 = vpop.permute.xlu0 %819
      %822 = vset.pattern.permute.xlu0 0
      %823 = vperm.xlu0 %822, %v702
      %v824 = vpop.permute.xlu0 %823
      %826 = vset.pattern.permute.xlu0 0
      %827 = vperm.xlu0 %826, %v704
      %v828 = vpop.permute.xlu0 %827
      %830 = vset.pattern.permute.xlu0 0
      %831 = vperm.xlu0 %830, %v707
      %v832 = vpop.permute.xlu0 %831
      %834 = vset.pattern.permute.xlu0 0
      %835 = vperm.xlu0 %834, %v709
      %v836 = vpop.permute.xlu0 %835
      %838 = vset.pattern.permute.xlu0 0
      %839 = vperm.xlu0 %838, %v712
      %v840 = vpop.permute.xlu0 %839
      %842 = vset.pattern.permute.xlu0 0
      %843 = vperm.xlu0 %842, %v714
      %v844 = vpop.permute.xlu0 %843
      %v846 = vlaneseq
      %v847 = vshrl.u32 %v846, 7
      %v848 = vsub.s32 0, %v847
      %v849 = vrot.slane %v717, %v848
      %v850 = vmul.f32 %v720, %v849
      %v851 = vmul.f32 %v724, %v849
      %v852 = vmul.f32 %v728, %v849
      %v853 = vmul.f32 %v732, %v849
      %v854 = vmul.f32 %v736, %v849
      %v855 = vmul.f32 %v740, %v849
      %v856 = vmul.f32 %v744, %v849
      %v857 = vmul.f32 %v748, %v849
      %v858 = vmul.f32 %v752, %v849
      %v859 = vmul.f32 %v756, %v849
      %v860 = vmul.f32 %v760, %v849
      %v861 = vmul.f32 %v764, %v849
      %v862 = vmul.f32 %v768, %v849
      %v863 = vmul.f32 %v772, %v849
      %v864 = vmul.f32 %v776, %v849
      %v865 = vmul.f32 %v780, %v849
      %v866 = vmul.f32 %v784, %v849
      %v867 = vmul.f32 %v788, %v849
      %v868 = vmul.f32 %v792, %v849
      %v869 = vmul.f32 %v796, %v849
      %v870 = vmul.f32 %v800, %v849
      %v871 = vmul.f32 %v804, %v849
      %v872 = vmul.f32 %v808, %v849
      %v873 = vmul.f32 %v812, %v849
      %v874 = vmul.f32 %v816, %v849
      %v875 = vmul.f32 %v820, %v849
      %v876 = vmul.f32 %v824, %v849
      %v877 = vmul.f32 %v828, %v849
      %v878 = vmul.f32 %v832, %v849
      %v879 = vmul.f32 %v836, %v849
      %v880 = vmul.f32 %v840, %v849
      %v881 = vmul.f32 %v844, %v849
      %v882 = vadd.f32 %v458, %v850
      %v883 = vadd.f32 %v459, %v851
      %v884 = vadd.f32 %v460, %v852
      %v885 = vadd.f32 %v461, %v853
      %v886 = vadd.f32 %v462, %v854
      %v887 = vadd.f32 %v463, %v855
      %v888 = vadd.f32 %v464, %v856
      %v889 = vadd.f32 %v465, %v857
      %v890 = vadd.f32 %v466, %v858
      %v891 = vadd.f32 %v467, %v859
      %v892 = vadd.f32 %v468, %v860
      %v893 = vadd.f32 %v469, %v861
      %v894 = vadd.f32 %v470, %v862
      %v895 = vadd.f32 %v471, %v863
      %v896 = vadd.f32 %v472, %v864
      %v897 = vadd.f32 %v473, %v865
      %v898 = vadd.f32 %v474, %v866
      %v899 = vadd.f32 %v475, %v867
      %v900 = vadd.f32 %v476, %v868
      %v901 = vadd.f32 %v477, %v869
      %v902 = vadd.f32 %v478, %v870
      %v903 = vadd.f32 %v479, %v871
      %v904 = vadd.f32 %v480, %v872
      %v905 = vadd.f32 %v481, %v873
      %v906 = vadd.f32 %v482, %v874
      %v907 = vadd.f32 %v483, %v875
      %v908 = vadd.f32 %v484, %v876
      %v909 = vadd.f32 %v485, %v877
      %v910 = vadd.f32 %v486, %v878
      %v911 = vadd.f32 %v487, %v879
      %v912 = vadd.f32 %v488, %v880
      %v913 = vadd.f32 %v489, %v881
      %v914 = vld [vmem:[%s195] sm:$0xe]
      %v915 = vld [vmem:[%s195 + $0xc] sm:$0xe]
      %v916 = vld [vmem:[%s195 + $0x18] sm:$0xe]
      %v917 = vld [vmem:[%s195 + $0x24] sm:$0xe]
      %v918 = vld [vmem:[%s195 + $0x30] sm:$0xe]
      %v919 = vld [vmem:[%s195 + $0x3c] sm:$0xe]
      %v920 = vld [vmem:[%s195 + $0x48] sm:$0xe]
      %v921 = vld [vmem:[%s195 + $0x54] sm:$0xe]
      %v922 = vld [vmem:[%s195 + $0x60] sm:$0xe]
      %v923 = vld [vmem:[%s195 + $0x6c] sm:$0xe]
      %v924 = vld [vmem:[%s195 + $0x78] sm:$0xe]
      %v925 = vld [vmem:[%s195 + $0x84] sm:$0xe]
      %v926 = vld [vmem:[%s195 + $0x90] sm:$0xe]
      %v927 = vld [vmem:[%s195 + $0x9c] sm:$0xe]
      %v928 = vld [vmem:[%s195 + $0xa8] sm:$0xe]
      %v929 = vld [vmem:[%s195 + $0xb4] sm:$0xe]
      %v930 = vunpack.c.l.bf16 %v914
      %v931 = vunpack.c.l.bf16 %v915
      %v932 = vunpack.c.l.bf16 %v916
      %v933 = vunpack.c.l.bf16 %v917
      %v934 = vunpack.c.l.bf16 %v918
      %v935 = vunpack.c.l.bf16 %v919
      %v936 = vunpack.c.l.bf16 %v920
      %v937 = vunpack.c.l.bf16 %v921
      %v938 = vunpack.c.l.bf16 %v922
      %v939 = vunpack.c.l.bf16 %v923
      %v940 = vunpack.c.l.bf16 %v924
      %v941 = vunpack.c.l.bf16 %v925
      %v942 = vunpack.c.l.bf16 %v926
      %v943 = vunpack.c.l.bf16 %v927
      %v944 = vunpack.c.l.bf16 %v928
      %v945 = vunpack.c.l.bf16 %v929
      %vm962 = vcmask 1045504
      %v963 = vrot.slane %v930, 2
      %v964 = vrot.slane %v539, 2
      %v965 = vsel %vm962, %v963, %v964
      %v966 = vrot.slane %v540, 2
      %v967 = vsel %vm962, %v964, %v966
      %v968 = vrot.slane %v931, 2
      %v969 = vrot.slane %v542, 2
      %v970 = vsel %vm962, %v968, %v969
      %v971 = vrot.slane %v543, 2
      %v972 = vsel %vm962, %v969, %v971
      %v973 = vrot.slane %v932, 2
      %v974 = vrot.slane %v545, 2
      %v975 = vsel %vm962, %v973, %v974
      %v976 = vrot.slane %v546, 2
      %v977 = vsel %vm962, %v974, %v976
      %v978 = vrot.slane %v933, 2
      %v979 = vrot.slane %v548, 2
      %v980 = vsel %vm962, %v978, %v979
      %v981 = vrot.slane %v549, 2
      %v982 = vsel %vm962, %v979, %v981
      %v983 = vrot.slane %v934, 2
      %v984 = vrot.slane %v551, 2
      %v985 = vsel %vm962, %v983, %v984
      %v986 = vrot.slane %v552, 2
      %v987 = vsel %vm962, %v984, %v986
      %v988 = vrot.slane %v935, 2
      %v989 = vrot.slane %v554, 2
      %v990 = vsel %vm962, %v988, %v989
      %v991 = vrot.slane %v555, 2
      %v992 = vsel %vm962, %v989, %v991
      %v993 = vrot.slane %v936, 2
      %v994 = vrot.slane %v557, 2
      %v995 = vsel %vm962, %v993, %v994
      %v996 = vrot.slane %v558, 2
      %v997 = vsel %vm962, %v994, %v996
      %v998 = vrot.slane %v937, 2
      %v999 = vrot.slane %v560, 2
      %v1000 = vsel %vm962, %v998, %v999
      %v1001 = vrot.slane %v561, 2
      %v1002 = vsel %vm962, %v999, %v1001
      %v1003 = vrot.slane %v938, 2
      %v1004 = vrot.slane %v563, 2
      %v1005 = vsel %vm962, %v1003, %v1004
      %v1006 = vrot.slane %v564, 2
      %v1007 = vsel %vm962, %v1004, %v1006
      %v1008 = vrot.slane %v939, 2
      %v1009 = vrot.slane %v566, 2
      %v1010 = vsel %vm962, %v1008, %v1009
      %v1011 = vrot.slane %v567, 2
      %v1012 = vsel %vm962, %v1009, %v1011
      %v1013 = vrot.slane %v940, 2
      %v1014 = vrot.slane %v569, 2
      %v1015 = vsel %vm962, %v1013, %v1014
      %v1016 = vrot.slane %v570, 2
      %v1017 = vsel %vm962, %v1014, %v1016
      %v1018 = vrot.slane %v941, 2
      %v1019 = vrot.slane %v572, 2
      %v1020 = vsel %vm962, %v1018, %v1019
      %v1021 = vrot.slane %v573, 2
      %v1022 = vsel %vm962, %v1019, %v1021
      %v1023 = vrot.slane %v942, 2
      %v1024 = vrot.slane %v575, 2
      %v1025 = vsel %vm962, %v1023, %v1024
      %v1026 = vrot.slane %v576, 2
      %v1027 = vsel %vm962, %v1024, %v1026
      %v1028 = vrot.slane %v943, 2
      %v1029 = vrot.slane %v578, 2
      %v1030 = vsel %vm962, %v1028, %v1029
      %v1031 = vrot.slane %v579, 2
      %v1032 = vsel %vm962, %v1029, %v1031
      %v1033 = vrot.slane %v944, 2
      %v1034 = vrot.slane %v581, 2
      %v1035 = vsel %vm962, %v1033, %v1034
      %v1036 = vrot.slane %v582, 2
      %v1037 = vsel %vm962, %v1034, %v1036
      %v1038 = vrot.slane %v945, 2
      %v1039 = vrot.slane %v584, 2
      %v1040 = vsel %vm962, %v1038, %v1039
      %v1041 = vrot.slane %v585, 2
      %v1042 = vsel %vm962, %v1039, %v1041
      %s1043 = scalar_lea.vmem %s1, 2
      %v1044 = vld [vmem:[%s1043] sm:$0x1]
      %v1045 = vunpack.c.l.bf16 %v1044
      %1046 = vset.pattern.permute.xlu0 0
      %1047 = vperm.xlu0 %1046, %v965
      %v1048 = vpop.permute.xlu0 %1047
      %1050 = vset.pattern.permute.xlu0 0
      %1051 = vperm.xlu0 %1050, %v967
      %v1052 = vpop.permute.xlu0 %1051
      %1054 = vset.pattern.permute.xlu0 0
      %1055 = vperm.xlu0 %1054, %v970
      %v1056 = vpop.permute.xlu0 %1055
      %1058 = vset.pattern.permute.xlu0 0
      %1059 = vperm.xlu0 %1058, %v972
      %v1060 = vpop.permute.xlu0 %1059
      %1062 = vset.pattern.permute.xlu0 0
      %1063 = vperm.xlu0 %1062, %v975
      %v1064 = vpop.permute.xlu0 %1063
      %1066 = vset.pattern.permute.xlu0 0
      %1067 = vperm.xlu0 %1066, %v977
      %v1068 = vpop.permute.xlu0 %1067
      %1070 = vset.pattern.permute.xlu0 0
      %1071 = vperm.xlu0 %1070, %v980
      %v1072 = vpop.permute.xlu0 %1071
      %1074 = vset.pattern.permute.xlu0 0
      %1075 = vperm.xlu0 %1074, %v982
      %v1076 = vpop.permute.xlu0 %1075
      %1078 = vset.pattern.permute.xlu0 0
      %1079 = vperm.xlu0 %1078, %v985
      %v1080 = vpop.permute.xlu0 %1079
      %1082 = vset.pattern.permute.xlu0 0
      %1083 = vperm.xlu0 %1082, %v987
      %v1084 = vpop.permute.xlu0 %1083
      %1086 = vset.pattern.permute.xlu0 0
      %1087 = vperm.xlu0 %1086, %v990
      %v1088 = vpop.permute.xlu0 %1087
      %1090 = vset.pattern.permute.xlu0 0
      %1091 = vperm.xlu0 %1090, %v992
      %v1092 = vpop.permute.xlu0 %1091
      %1094 = vset.pattern.permute.xlu0 0
      %1095 = vperm.xlu0 %1094, %v995
      %v1096 = vpop.permute.xlu0 %1095
      %1098 = vset.pattern.permute.xlu0 0
      %1099 = vperm.xlu0 %1098, %v997
      %v1100 = vpop.permute.xlu0 %1099
      %1102 = vset.pattern.permute.xlu0 0
      %1103 = vperm.xlu0 %1102, %v1000
      %v1104 = vpop.permute.xlu0 %1103
      %1106 = vset.pattern.permute.xlu0 0
      %1107 = vperm.xlu0 %1106, %v1002
      %v1108 = vpop.permute.xlu0 %1107
      %1110 = vset.pattern.permute.xlu0 0
      %1111 = vperm.xlu0 %1110, %v1005
      %v1112 = vpop.permute.xlu0 %1111
      %1114 = vset.pattern.permute.xlu0 0
      %1115 = vperm.xlu0 %1114, %v1007
      %v1116 = vpop.permute.xlu0 %1115
      %1118 = vset.pattern.permute.xlu0 0
      %1119 = vperm.xlu0 %1118, %v1010
      %v1120 = vpop.permute.xlu0 %1119
      %1122 = vset.pattern.permute.xlu0 0
      %1123 = vperm.xlu0 %1122, %v1012
      %v1124 = vpop.permute.xlu0 %1123
      %1126 = vset.pattern.permute.xlu0 0
      %1127 = vperm.xlu0 %1126, %v1015
      %v1128 = vpop.permute.xlu0 %1127
      %1130 = vset.pattern.permute.xlu0 0
      %1131 = vperm.xlu0 %1130, %v1017
      %v1132 = vpop.permute.xlu0 %1131
      %1134 = vset.pattern.permute.xlu0 0
      %1135 = vperm.xlu0 %1134, %v1020
      %v1136 = vpop.permute.xlu0 %1135
      %1138 = vset.pattern.permute.xlu0 0
      %1139 = vperm.xlu0 %1138, %v1022
      %v1140 = vpop.permute.xlu0 %1139
      %1142 = vset.pattern.permute.xlu0 0
      %1143 = vperm.xlu0 %1142, %v1025
      %v1144 = vpop.permute.xlu0 %1143
      %1146 = vset.pattern.permute.xlu0 0
      %1147 = vperm.xlu0 %1146, %v1027
      %v1148 = vpop.permute.xlu0 %1147
      %1150 = vset.pattern.permute.xlu0 0
      %1151 = vperm.xlu0 %1150, %v1030
      %v1152 = vpop.permute.xlu0 %1151
      %1154 = vset.pattern.permute.xlu0 0
      %1155 = vperm.xlu0 %1154, %v1032
      %v1156 = vpop.permute.xlu0 %1155
      %1158 = vset.pattern.permute.xlu0 0
      %1159 = vperm.xlu0 %1158, %v1035
      %v1160 = vpop.permute.xlu0 %1159
      %1162 = vset.pattern.permute.xlu0 0
      %1163 = vperm.xlu0 %1162, %v1037
      %v1164 = vpop.permute.xlu0 %1163
      %1166 = vset.pattern.permute.xlu0 0
      %1167 = vperm.xlu0 %1166, %v1040
      %v1168 = vpop.permute.xlu0 %1167
      %1170 = vset.pattern.permute.xlu0 0
      %1171 = vperm.xlu0 %1170, %v1042
      %v1172 = vpop.permute.xlu0 %1171
      %v1174 = vlaneseq
      %v1175 = vshrl.u32 %v1174, 7
      %v1176 = vsub.s32 0, %v1175
      %v1177 = vrot.slane %v1045, %v1176
      %v1178 = vmul.f32 %v1048, %v1177
      %v1179 = vmul.f32 %v1052, %v1177
      %v1180 = vmul.f32 %v1056, %v1177
      %v1181 = vmul.f32 %v1060, %v1177
      %v1182 = vmul.f32 %v1064, %v1177
      %v1183 = vmul.f32 %v1068, %v1177
      %v1184 = vmul.f32 %v1072, %v1177
      %v1185 = vmul.f32 %v1076, %v1177
      %v1186 = vmul.f32 %v1080, %v1177
      %v1187 = vmul.f32 %v1084, %v1177
      %v1188 = vmul.f32 %v1088, %v1177
      %v1189 = vmul.f32 %v1092, %v1177
      %v1190 = vmul.f32 %v1096, %v1177
      %v1191 = vmul.f32 %v1100, %v1177
      %v1192 = vmul.f32 %v1104, %v1177
      %v1193 = vmul.f32 %v1108, %v1177
      %v1194 = vmul.f32 %v1112, %v1177
      %v1195 = vmul.f32 %v1116, %v1177
      %v1196 = vmul.f32 %v1120, %v1177
      %v1197 = vmul.f32 %v1124, %v1177
      %v1198 = vmul.f32 %v1128, %v1177
      %v1199 = vmul.f32 %v1132, %v1177
      %v1200 = vmul.f32 %v1136, %v1177
      %v1201 = vmul.f32 %v1140, %v1177
      %v1202 = vmul.f32 %v1144, %v1177
      %v1203 = vmul.f32 %v1148, %v1177
      %v1204 = vmul.f32 %v1152, %v1177
      %v1205 = vmul.f32 %v1156, %v1177
      %v1206 = vmul.f32 %v1160, %v1177
      %v1207 = vmul.f32 %v1164, %v1177
      %v1208 = vmul.f32 %v1168, %v1177
      %v1209 = vmul.f32 %v1172, %v1177
      %v1210 = vadd.f32 %v882, %v1178
      %v1211 = vadd.f32 %v883, %v1179
      %v1212 = vadd.f32 %v884, %v1180
      %v1213 = vadd.f32 %v885, %v1181
      %v1214 = vadd.f32 %v886, %v1182
      %v1215 = vadd.f32 %v887, %v1183
      %v1216 = vadd.f32 %v888, %v1184
      %v1217 = vadd.f32 %v889, %v1185
      %v1218 = vadd.f32 %v890, %v1186
      %v1219 = vadd.f32 %v891, %v1187
      %v1220 = vadd.f32 %v892, %v1188
      %v1221 = vadd.f32 %v893, %v1189
      %v1222 = vadd.f32 %v894, %v1190
      %v1223 = vadd.f32 %v895, %v1191
      %v1224 = vadd.f32 %v896, %v1192
      %v1225 = vadd.f32 %v897, %v1193
      %v1226 = vadd.f32 %v898, %v1194
      %v1227 = vadd.f32 %v899, %v1195
      %v1228 = vadd.f32 %v900, %v1196
      %v1229 = vadd.f32 %v901, %v1197
      %v1230 = vadd.f32 %v902, %v1198
      %v1231 = vadd.f32 %v903, %v1199
      %v1232 = vadd.f32 %v904, %v1200
      %v1233 = vadd.f32 %v905, %v1201
      %v1234 = vadd.f32 %v906, %v1202
      %v1235 = vadd.f32 %v907, %v1203
      %v1236 = vadd.f32 %v908, %v1204
      %v1237 = vadd.f32 %v909, %v1205
      %v1238 = vadd.f32 %v910, %v1206
      %v1239 = vadd.f32 %v911, %v1207
      %v1240 = vadd.f32 %v912, %v1208
      %v1241 = vadd.f32 %v913, %v1209
      %s1242 = sadd.s32 3, %s193
      %s1243 = smul.addr %s1242, 4
      %s1244 = scalar_lea.vmem %s183, %s1243
      %v1245 = vld [vmem:[%s1244] sm:$0xf]
      %v1246 = vld [vmem:[%s1244 + $0x4] sm:$0xf]
      %v1247 = vld [vmem:[%s1244 + $0xc] sm:$0xf]
      %v1248 = vld [vmem:[%s1244 + $0x10] sm:$0xf]
      %v1249 = vld [vmem:[%s1244 + $0x18] sm:$0xf]
      %v1250 = vld [vmem:[%s1244 + $0x1c] sm:$0xf]
      %v1251 = vld [vmem:[%s1244 + $0x24] sm:$0xf]
      %v1252 = vld [vmem:[%s1244 + $0x28] sm:$0xf]
      %v1253 = vld [vmem:[%s1244 + $0x30] sm:$0xf]
      %v1254 = vld [vmem:[%s1244 + $0x34] sm:$0xf]
      %v1255 = vld [vmem:[%s1244 + $0x3c] sm:$0xf]
      %v1256 = vld [vmem:[%s1244 + $0x40] sm:$0xf]
      %v1257 = vld [vmem:[%s1244 + $0x48] sm:$0xf]
      %v1258 = vld [vmem:[%s1244 + $0x4c] sm:$0xf]
      %v1259 = vld [vmem:[%s1244 + $0x54] sm:$0xf]
      %v1260 = vld [vmem:[%s1244 + $0x58] sm:$0xf]
      %v1261 = vld [vmem:[%s1244 + $0x60] sm:$0xf]
      %v1262 = vld [vmem:[%s1244 + $0x64] sm:$0xf]
      %v1263 = vld [vmem:[%s1244 + $0x6c] sm:$0xf]
      %v1264 = vld [vmem:[%s1244 + $0x70] sm:$0xf]
      %v1265 = vld [vmem:[%s1244 + $0x78] sm:$0xf]
      %v1266 = vld [vmem:[%s1244 + $0x7c] sm:$0xf]
      %v1267 = vld [vmem:[%s1244 + $0x84] sm:$0xf]
      %v1268 = vld [vmem:[%s1244 + $0x88] sm:$0xf]
      %v1269 = vld [vmem:[%s1244 + $0x90] sm:$0xf]
      %v1270 = vld [vmem:[%s1244 + $0x94] sm:$0xf]
      %v1271 = vld [vmem:[%s1244 + $0x9c] sm:$0xf]
      %v1272 = vld [vmem:[%s1244 + $0xa0] sm:$0xf]
      %v1273 = vld [vmem:[%s1244 + $0xa8] sm:$0xf]
      %v1274 = vld [vmem:[%s1244 + $0xac] sm:$0xf]
      %v1275 = vld [vmem:[%s1244 + $0xb4] sm:$0xf]
      %v1276 = vld [vmem:[%s1244 + $0xb8] sm:$0xf]
      %v1277 = vunpack.c.l.bf16 %v1245
      %v1278 = vunpack.c.l.bf16 %v1246
      %v1279 = vunpack.c.l.bf16 %v1247
      %v1280 = vunpack.c.l.bf16 %v1248
      %v1281 = vunpack.c.l.bf16 %v1249
      %v1282 = vunpack.c.l.bf16 %v1250
      %v1283 = vunpack.c.l.bf16 %v1251
      %v1284 = vunpack.c.l.bf16 %v1252
      %v1285 = vunpack.c.l.bf16 %v1253
      %v1286 = vunpack.c.l.bf16 %v1254
      %v1287 = vunpack.c.l.bf16 %v1255
      %v1288 = vunpack.c.l.bf16 %v1256
      %v1289 = vunpack.c.l.bf16 %v1257
      %v1290 = vunpack.c.l.bf16 %v1258
      %v1291 = vunpack.c.l.bf16 %v1259
      %v1292 = vunpack.c.l.bf16 %v1260
      %v1293 = vunpack.c.l.bf16 %v1261
      %v1294 = vunpack.c.l.bf16 %v1262
      %v1295 = vunpack.c.l.bf16 %v1263
      %v1296 = vunpack.c.l.bf16 %v1264
      %v1297 = vunpack.c.l.bf16 %v1265
      %v1298 = vunpack.c.l.bf16 %v1266
      %v1299 = vunpack.c.l.bf16 %v1267
      %v1300 = vunpack.c.l.bf16 %v1268
      %v1301 = vunpack.c.l.bf16 %v1269
      %v1302 = vunpack.c.l.bf16 %v1270
      %v1303 = vunpack.c.l.bf16 %v1271
      %v1304 = vunpack.c.l.bf16 %v1272
      %v1305 = vunpack.c.l.bf16 %v1273
      %v1306 = vunpack.c.l.bf16 %v1274
      %v1307 = vunpack.c.l.bf16 %v1275
      %v1308 = vunpack.c.l.bf16 %v1276
      %s1309 = scalar_lea.vmem %s1, 3
      %v1310 = vld [vmem:[%s1309] sm:$0x1]
      %v1311 = vunpack.c.l.bf16 %v1310
      %1313 = vset.pattern.permute.xlu0 0
      %1314 = vperm.xlu0 %1313, %v1277
      %v1315 = vpop.permute.xlu0 %1314
      %1318 = vset.pattern.permute.xlu0 0
      %1319 = vperm.xlu0 %1318, %v1278
      %v1320 = vpop.permute.xlu0 %1319
      %1323 = vset.pattern.permute.xlu0 0
      %1324 = vperm.xlu0 %1323, %v1279
      %v1325 = vpop.permute.xlu0 %1324
      %1328 = vset.pattern.permute.xlu0 0
      %1329 = vperm.xlu0 %1328, %v1280
      %v1330 = vpop.permute.xlu0 %1329
      %1333 = vset.pattern.permute.xlu0 0
      %1334 = vperm.xlu0 %1333, %v1281
      %v1335 = vpop.permute.xlu0 %1334
      %1338 = vset.pattern.permute.xlu0 0
      %1339 = vperm.xlu0 %1338, %v1282
      %v1340 = vpop.permute.xlu0 %1339
      %1343 = vset.pattern.permute.xlu0 0
      %1344 = vperm.xlu0 %1343, %v1283
      %v1345 = vpop.permute.xlu0 %1344
      %1348 = vset.pattern.permute.xlu0 0
      %1349 = vperm.xlu0 %1348, %v1284
      %v1350 = vpop.permute.xlu0 %1349
      %1353 = vset.pattern.permute.xlu0 0
      %1354 = vperm.xlu0 %1353, %v1285
      %v1355 = vpop.permute.xlu0 %1354
      %1358 = vset.pattern.permute.xlu0 0
      %1359 = vperm.xlu0 %1358, %v1286
      %v1360 = vpop.permute.xlu0 %1359
      %1363 = vset.pattern.permute.xlu0 0
      %1364 = vperm.xlu0 %1363, %v1287
      %v1365 = vpop.permute.xlu0 %1364
      %1368 = vset.pattern.permute.xlu0 0
      %1369 = vperm.xlu0 %1368, %v1288
      %v1370 = vpop.permute.xlu0 %1369
      %1373 = vset.pattern.permute.xlu0 0
      %1374 = vperm.xlu0 %1373, %v1289
      %v1375 = vpop.permute.xlu0 %1374
      %1378 = vset.pattern.permute.xlu0 0
      %1379 = vperm.xlu0 %1378, %v1290
      %v1380 = vpop.permute.xlu0 %1379
      %1383 = vset.pattern.permute.xlu0 0
      %1384 = vperm.xlu0 %1383, %v1291
      %v1385 = vpop.permute.xlu0 %1384
      %1388 = vset.pattern.permute.xlu0 0
      %1389 = vperm.xlu0 %1388, %v1292
      %v1390 = vpop.permute.xlu0 %1389
      %1393 = vset.pattern.permute.xlu0 0
      %1394 = vperm.xlu0 %1393, %v1293
      %v1395 = vpop.permute.xlu0 %1394
      %1398 = vset.pattern.permute.xlu0 0
      %1399 = vperm.xlu0 %1398, %v1294
      %v1400 = vpop.permute.xlu0 %1399
      %1403 = vset.pattern.permute.xlu0 0
      %1404 = vperm.xlu0 %1403, %v1295
      %v1405 = vpop.permute.xlu0 %1404
      %1408 = vset.pattern.permute.xlu0 0
      %1409 = vperm.xlu0 %1408, %v1296
      %v1410 = vpop.permute.xlu0 %1409
      %1413 = vset.pattern.permute.xlu0 0
      %1414 = vperm.xlu0 %1413, %v1297
      %v1415 = vpop.permute.xlu0 %1414
      %1418 = vset.pattern.permute.xlu0 0
      %1419 = vperm.xlu0 %1418, %v1298
      %v1420 = vpop.permute.xlu0 %1419
      %1423 = vset.pattern.permute.xlu0 0
      %1424 = vperm.xlu0 %1423, %v1299
      %v1425 = vpop.permute.xlu0 %1424
      %1428 = vset.pattern.permute.xlu0 0
      %1429 = vperm.xlu0 %1428, %v1300
      %v1430 = vpop.permute.xlu0 %1429
      %1433 = vset.pattern.permute.xlu0 0
      %1434 = vperm.xlu0 %1433, %v1301
      %v1435 = vpop.permute.xlu0 %1434
      %1438 = vset.pattern.permute.xlu0 0
      %1439 = vperm.xlu0 %1438, %v1302
      %v1440 = vpop.permute.xlu0 %1439
      %1443 = vset.pattern.permute.xlu0 0
      %1444 = vperm.xlu0 %1443, %v1303
      %v1445 = vpop.permute.xlu0 %1444
      %1448 = vset.pattern.permute.xlu0 0
      %1449 = vperm.xlu0 %1448, %v1304
      %v1450 = vpop.permute.xlu0 %1449
      %1453 = vset.pattern.permute.xlu0 0
      %1454 = vperm.xlu0 %1453, %v1305
      %v1455 = vpop.permute.xlu0 %1454
      %1458 = vset.pattern.permute.xlu0 0
      %1459 = vperm.xlu0 %1458, %v1306
      %v1460 = vpop.permute.xlu0 %1459
      %1463 = vset.pattern.permute.xlu0 0
      %1464 = vperm.xlu0 %1463, %v1307
      %v1465 = vpop.permute.xlu0 %1464
      %1468 = vset.pattern.permute.xlu0 0
      %1469 = vperm.xlu0 %1468, %v1308
      %v1470 = vpop.permute.xlu0 %1469
      %v1472 = vlaneseq
      %v1473 = vshrl.u32 %v1472, 7
      %v1474 = vsub.s32 0, %v1473
      %v1475 = vrot.slane %v1311, %v1474
      %v1476 = vmul.f32 %v1315, %v1475
      %v1477 = vmul.f32 %v1320, %v1475
      %v1478 = vmul.f32 %v1325, %v1475
      %v1479 = vmul.f32 %v1330, %v1475
      %v1480 = vmul.f32 %v1335, %v1475
      %v1481 = vmul.f32 %v1340, %v1475
      %v1482 = vmul.f32 %v1345, %v1475
      %v1483 = vmul.f32 %v1350, %v1475
      %v1484 = vmul.f32 %v1355, %v1475
      %v1485 = vmul.f32 %v1360, %v1475
      %v1486 = vmul.f32 %v1365, %v1475
      %v1487 = vmul.f32 %v1370, %v1475
      %v1488 = vmul.f32 %v1375, %v1475
      %v1489 = vmul.f32 %v1380, %v1475
      %v1490 = vmul.f32 %v1385, %v1475
      %v1491 = vmul.f32 %v1390, %v1475
      %v1492 = vmul.f32 %v1395, %v1475
      %v1493 = vmul.f32 %v1400, %v1475
      %v1494 = vmul.f32 %v1405, %v1475
      %v1495 = vmul.f32 %v1410, %v1475
      %v1496 = vmul.f32 %v1415, %v1475
      %v1497 = vmul.f32 %v1420, %v1475
      %v1498 = vmul.f32 %v1425, %v1475
      %v1499 = vmul.f32 %v1430, %v1475
      %v1500 = vmul.f32 %v1435, %v1475
      %v1501 = vmul.f32 %v1440, %v1475
      %v1502 = vmul.f32 %v1445, %v1475
      %v1503 = vmul.f32 %v1450, %v1475
      %v1504 = vmul.f32 %v1455, %v1475
      %v1505 = vmul.f32 %v1460, %v1475
      %v1506 = vmul.f32 %v1465, %v1475
      %v1507 = vmul.f32 %v1470, %v1475
      %v1508 = vadd.f32 %v1210, %v1476
      %v1509 = vadd.f32 %v1211, %v1477
      %v1510 = vadd.f32 %v1212, %v1478
      %v1511 = vadd.f32 %v1213, %v1479
      %v1512 = vadd.f32 %v1214, %v1480
      %v1513 = vadd.f32 %v1215, %v1481
      %v1514 = vadd.f32 %v1216, %v1482
      %v1515 = vadd.f32 %v1217, %v1483
      %v1516 = vadd.f32 %v1218, %v1484
      %v1517 = vadd.f32 %v1219, %v1485
      %v1518 = vadd.f32 %v1220, %v1486
      %v1519 = vadd.f32 %v1221, %v1487
      %v1520 = vadd.f32 %v1222, %v1488
      %v1521 = vadd.f32 %v1223, %v1489
      %v1522 = vadd.f32 %v1224, %v1490
      %v1523 = vadd.f32 %v1225, %v1491
      %v1524 = vadd.f32 %v1226, %v1492
      %v1525 = vadd.f32 %v1227, %v1493
      %v1526 = vadd.f32 %v1228, %v1494
      %v1527 = vadd.f32 %v1229, %v1495
      %v1528 = vadd.f32 %v1230, %v1496
      %v1529 = vadd.f32 %v1231, %v1497
      %v1530 = vadd.f32 %v1232, %v1498
      %v1531 = vadd.f32 %v1233, %v1499
      %v1532 = vadd.f32 %v1234, %v1500
      %v1533 = vadd.f32 %v1235, %v1501
      %v1534 = vadd.f32 %v1236, %v1502
      %v1535 = vadd.f32 %v1237, %v1503
      %v1536 = vadd.f32 %v1238, %v1504
      %v1537 = vadd.f32 %v1239, %v1505
      %v1538 = vadd.f32 %v1240, %v1506
      %v1539 = vadd.f32 %v1241, %v1507
      %v1540 = vld [vmem:[%s1244] sm:$0xf]
      %v1541 = vld [vmem:[%s1244 + $0x4] sm:$0xf]
      %v1542 = vld [vmem:[%s1244 + $0x8] sm:$0x1]
      %v1543 = vld [vmem:[%s1244 + $0xc] sm:$0xf]
      %v1544 = vld [vmem:[%s1244 + $0x10] sm:$0xf]
      %v1545 = vld [vmem:[%s1244 + $0x14] sm:$0x1]
      %v1546 = vld [vmem:[%s1244 + $0x18] sm:$0xf]
      %v1547 = vld [vmem:[%s1244 + $0x1c] sm:$0xf]
      %v1548 = vld [vmem:[%s1244 + $0x20] sm:$0x1]
      %v1549 = vld [vmem:[%s1244 + $0x24] sm:$0xf]
      %v1550 = vld [vmem:[%s1244 + $0x28] sm:$0xf]
      %v1551 = vld [vmem:[%s1244 + $0x2c] sm:$0x1]
      %v1552 = vld [vmem:[%s1244 + $0x30] sm:$0xf]
      %v1553 = vld [vmem:[%s1244 + $0x34] sm:$0xf]
      %v1554 = vld [vmem:[%s1244 + $0x38] sm:$0x1]
      %v1555 = vld [vmem:[%s1244 + $0x3c] sm:$0xf]
      %v1556 = vld [vmem:[%s1244 + $0x40] sm:$0xf]
      %v1557 = vld [vmem:[%s1244 + $0x44] sm:$0x1]
      %v1558 = vld [vmem:[%s1244 + $0x48] sm:$0xf]
      %v1559 = vld [vmem:[%s1244 + $0x4c] sm:$0xf]
      %v1560 = vld [vmem:[%s1244 + $0x50] sm:$0x1]
      %v1561 = vld [vmem:[%s1244 + $0x54] sm:$0xf]
      %v1562 = vld [vmem:[%s1244 + $0x58] sm:$0xf]
      %v1563 = vld [vmem:[%s1244 + $0x5c] sm:$0x1]
      %v1564 = vld [vmem:[%s1244 + $0x60] sm:$0xf]
      %v1565 = vld [vmem:[%s1244 + $0x64] sm:$0xf]
      %v1566 = vld [vmem:[%s1244 + $0x68] sm:$0x1]
      %v1567 = vld [vmem:[%s1244 + $0x6c] sm:$0xf]
      %v1568 = vld [vmem:[%s1244 + $0x70] sm:$0xf]
      %v1569 = vld [vmem:[%s1244 + $0x74] sm:$0x1]
      %v1570 = vld [vmem:[%s1244 + $0x78] sm:$0xf]
      %v1571 = vld [vmem:[%s1244 + $0x7c] sm:$0xf]
      %v1572 = vld [vmem:[%s1244 + $0x80] sm:$0x1]
      %v1573 = vld [vmem:[%s1244 + $0x84] sm:$0xf]
      %v1574 = vld [vmem:[%s1244 + $0x88] sm:$0xf]
      %v1575 = vld [vmem:[%s1244 + $0x8c] sm:$0x1]
      %v1576 = vld [vmem:[%s1244 + $0x90] sm:$0xf]
      %v1577 = vld [vmem:[%s1244 + $0x94] sm:$0xf]
      %v1578 = vld [vmem:[%s1244 + $0x98] sm:$0x1]
      %v1579 = vld [vmem:[%s1244 + $0x9c] sm:$0xf]
      %v1580 = vld [vmem:[%s1244 + $0xa0] sm:$0xf]
      %v1581 = vld [vmem:[%s1244 + $0xa4] sm:$0x1]
      %v1582 = vld [vmem:[%s1244 + $0xa8] sm:$0xf]
      %v1583 = vld [vmem:[%s1244 + $0xac] sm:$0xf]
      %v1584 = vld [vmem:[%s1244 + $0xb0] sm:$0x1]
      %v1585 = vld [vmem:[%s1244 + $0xb4] sm:$0xf]
      %v1586 = vld [vmem:[%s1244 + $0xb8] sm:$0xf]
      %v1587 = vld [vmem:[%s1244 + $0xbc] sm:$0x1]
      %v1588 = vunpack.c.l.bf16 %v1540
      %v1589 = vunpack.c.l.bf16 %v1541
      %v1590 = vunpack.c.l.bf16 %v1542
      %v1591 = vunpack.c.l.bf16 %v1543
      %v1592 = vunpack.c.l.bf16 %v1544
      %v1593 = vunpack.c.l.bf16 %v1545
      %v1594 = vunpack.c.l.bf16 %v1546
      %v1595 = vunpack.c.l.bf16 %v1547
      %v1596 = vunpack.c.l.bf16 %v1548
      %v1597 = vunpack.c.l.bf16 %v1549
      %v1598 = vunpack.c.l.bf16 %v1550
      %v1599 = vunpack.c.l.bf16 %v1551
      %v1600 = vunpack.c.l.bf16 %v1552
      %v1601 = vunpack.c.l.bf16 %v1553
      %v1602 = vunpack.c.l.bf16 %v1554
      %v1603 = vunpack.c.l.bf16 %v1555
      %v1604 = vunpack.c.l.bf16 %v1556
      %v1605 = vunpack.c.l.bf16 %v1557
      %v1606 = vunpack.c.l.bf16 %v1558
      %v1607 = vunpack.c.l.bf16 %v1559
      %v1608 = vunpack.c.l.bf16 %v1560
      %v1609 = vunpack.c.l.bf16 %v1561
      %v1610 = vunpack.c.l.bf16 %v1562
      %v1611 = vunpack.c.l.bf16 %v1563
      %v1612 = vunpack.c.l.bf16 %v1564
      %v1613 = vunpack.c.l.bf16 %v1565
      %v1614 = vunpack.c.l.bf16 %v1566
      %v1615 = vunpack.c.l.bf16 %v1567
      %v1616 = vunpack.c.l.bf16 %v1568
      %v1617 = vunpack.c.l.bf16 %v1569
      %v1618 = vunpack.c.l.bf16 %v1570
      %v1619 = vunpack.c.l.bf16 %v1571
      %v1620 = vunpack.c.l.bf16 %v1572
      %v1621 = vunpack.c.l.bf16 %v1573
      %v1622 = vunpack.c.l.bf16 %v1574
      %v1623 = vunpack.c.l.bf16 %v1575
      %v1624 = vunpack.c.l.bf16 %v1576
      %v1625 = vunpack.c.l.bf16 %v1577
      %v1626 = vunpack.c.l.bf16 %v1578
      %v1627 = vunpack.c.l.bf16 %v1579
      %v1628 = vunpack.c.l.bf16 %v1580
      %v1629 = vunpack.c.l.bf16 %v1581
      %v1630 = vunpack.c.l.bf16 %v1582
      %v1631 = vunpack.c.l.bf16 %v1583
      %v1632 = vunpack.c.l.bf16 %v1584
      %v1633 = vunpack.c.l.bf16 %v1585
      %v1634 = vunpack.c.l.bf16 %v1586
      %v1635 = vunpack.c.l.bf16 %v1587
      %v1684 = vrot.slane %v1588, 1
      %v1685 = vrot.slane %v1589, 1
      %v1686 = vsel %vm634, %v1684, %v1685
      %v1687 = vrot.slane %v1590, 1
      %v1688 = vsel %vm634, %v1685, %v1687
      %v1689 = vrot.slane %v1591, 1
      %v1690 = vrot.slane %v1592, 1
      %v1691 = vsel %vm634, %v1689, %v1690
      %v1692 = vrot.slane %v1593, 1
      %v1693 = vsel %vm634, %v1690, %v1692
      %v1694 = vrot.slane %v1594, 1
      %v1695 = vrot.slane %v1595, 1
      %v1696 = vsel %vm634, %v1694, %v1695
      %v1697 = vrot.slane %v1596, 1
      %v1698 = vsel %vm634, %v1695, %v1697
      %v1699 = vrot.slane %v1597, 1
      %v1700 = vrot.slane %v1598, 1
      %v1701 = vsel %vm634, %v1699, %v1700
      %v1702 = vrot.slane %v1599, 1
      %v1703 = vsel %vm634, %v1700, %v1702
      %v1704 = vrot.slane %v1600, 1
      %v1705 = vrot.slane %v1601, 1
      %v1706 = vsel %vm634, %v1704, %v1705
      %v1707 = vrot.slane %v1602, 1
      %v1708 = vsel %vm634, %v1705, %v1707
      %v1709 = vrot.slane %v1603, 1
      %v1710 = vrot.slane %v1604, 1
      %v1711 = vsel %vm634, %v1709, %v1710
      %v1712 = vrot.slane %v1605, 1
      %v1713 = vsel %vm634, %v1710, %v1712
      %v1714 = vrot.slane %v1606, 1
      %v1715 = vrot.slane %v1607, 1
      %v1716 = vsel %vm634, %v1714, %v1715
      %v1717 = vrot.slane %v1608, 1
      %v1718 = vsel %vm634, %v1715, %v1717
      %v1719 = vrot.slane %v1609, 1
      %v1720 = vrot.slane %v1610, 1
      %v1721 = vsel %vm634, %v1719, %v1720
      %v1722 = vrot.slane %v1611, 1
      %v1723 = vsel %vm634, %v1720, %v1722
      %v1724 = vrot.slane %v1612, 1
      %v1725 = vrot.slane %v1613, 1
      %v1726 = vsel %vm634, %v1724, %v1725
      %v1727 = vrot.slane %v1614, 1
      %v1728 = vsel %vm634, %v1725, %v1727
      %v1729 = vrot.slane %v1615, 1
      %v1730 = vrot.slane %v1616, 1
      %v1731 = vsel %vm634, %v1729, %v1730
      %v1732 = vrot.slane %v1617, 1
      %v1733 = vsel %vm634, %v1730, %v1732
      %v1734 = vrot.slane %v1618, 1
      %v1735 = vrot.slane %v1619, 1
      %v1736 = vsel %vm634, %v1734, %v1735
      %v1737 = vrot.slane %v1620, 1
      %v1738 = vsel %vm634, %v1735, %v1737
      %v1739 = vrot.slane %v1621, 1
      %v1740 = vrot.slane %v1622, 1
      %v1741 = vsel %vm634, %v1739, %v1740
      %v1742 = vrot.slane %v1623, 1
      %v1743 = vsel %vm634, %v1740, %v1742
      %v1744 = vrot.slane %v1624, 1
      %v1745 = vrot.slane %v1625, 1
      %v1746 = vsel %vm634, %v1744, %v1745
      %v1747 = vrot.slane %v1626, 1
      %v1748 = vsel %vm634, %v1745, %v1747
      %v1749 = vrot.slane %v1627, 1
      %v1750 = vrot.slane %v1628, 1
      %v1751 = vsel %vm634, %v1749, %v1750
      %v1752 = vrot.slane %v1629, 1
      %v1753 = vsel %vm634, %v1750, %v1752
      %v1754 = vrot.slane %v1630, 1
      %v1755 = vrot.slane %v1631, 1
      %v1756 = vsel %vm634, %v1754, %v1755
      %v1757 = vrot.slane %v1632, 1
      %v1758 = vsel %vm634, %v1755, %v1757
      %v1759 = vrot.slane %v1633, 1
      %v1760 = vrot.slane %v1634, 1
      %v1761 = vsel %vm634, %v1759, %v1760
      %v1762 = vrot.slane %v1635, 1
      %v1763 = vsel %vm634, %v1760, %v1762
      %s1764 = scalar_lea.vmem %s1, 4
      %v1765 = vld [vmem:[%s1764] sm:$0x1]
      %v1766 = vunpack.c.l.bf16 %v1765
      %1767 = vset.pattern.permute.xlu0 0
      %1768 = vperm.xlu0 %1767, %v1686
      %v1769 = vpop.permute.xlu0 %1768
      %1771 = vset.pattern.permute.xlu0 0
      %1772 = vperm.xlu0 %1771, %v1688
      %v1773 = vpop.permute.xlu0 %1772
      %1775 = vset.pattern.permute.xlu0 0
      %1776 = vperm.xlu0 %1775, %v1691
      %v1777 = vpop.permute.xlu0 %1776
      %1779 = vset.pattern.permute.xlu0 0
      %1780 = vperm.xlu0 %1779, %v1693
      %v1781 = vpop.permute.xlu0 %1780
      %1783 = vset.pattern.permute.xlu0 0
      %1784 = vperm.xlu0 %1783, %v1696
      %v1785 = vpop.permute.xlu0 %1784
      %1787 = vset.pattern.permute.xlu0 0
      %1788 = vperm.xlu0 %1787, %v1698
      %v1789 = vpop.permute.xlu0 %1788
      %1791 = vset.pattern.permute.xlu0 0
      %1792 = vperm.xlu0 %1791, %v1701
      %v1793 = vpop.permute.xlu0 %1792
      %1795 = vset.pattern.permute.xlu0 0
      %1796 = vperm.xlu0 %1795, %v1703
      %v1797 = vpop.permute.xlu0 %1796
      %1799 = vset.pattern.permute.xlu0 0
      %1800 = vperm.xlu0 %1799, %v1706
      %v1801 = vpop.permute.xlu0 %1800
      %1803 = vset.pattern.permute.xlu0 0
      %1804 = vperm.xlu0 %1803, %v1708
      %v1805 = vpop.permute.xlu0 %1804
      %1807 = vset.pattern.permute.xlu0 0
      %1808 = vperm.xlu0 %1807, %v1711
      %v1809 = vpop.permute.xlu0 %1808
      %1811 = vset.pattern.permute.xlu0 0
      %1812 = vperm.xlu0 %1811, %v1713
      %v1813 = vpop.permute.xlu0 %1812
      %1815 = vset.pattern.permute.xlu0 0
      %1816 = vperm.xlu0 %1815, %v1716
      %v1817 = vpop.permute.xlu0 %1816
      %1819 = vset.pattern.permute.xlu0 0
      %1820 = vperm.xlu0 %1819, %v1718
      %v1821 = vpop.permute.xlu0 %1820
      %1823 = vset.pattern.permute.xlu0 0
      %1824 = vperm.xlu0 %1823, %v1721
      %v1825 = vpop.permute.xlu0 %1824
      %1827 = vset.pattern.permute.xlu0 0
      %1828 = vperm.xlu0 %1827, %v1723
      %v1829 = vpop.permute.xlu0 %1828
      %1831 = vset.pattern.permute.xlu0 0
      %1832 = vperm.xlu0 %1831, %v1726
      %v1833 = vpop.permute.xlu0 %1832
      %1835 = vset.pattern.permute.xlu0 0
      %1836 = vperm.xlu0 %1835, %v1728
      %v1837 = vpop.permute.xlu0 %1836
      %1839 = vset.pattern.permute.xlu0 0
      %1840 = vperm.xlu0 %1839, %v1731
      %v1841 = vpop.permute.xlu0 %1840
      %1843 = vset.pattern.permute.xlu0 0
      %1844 = vperm.xlu0 %1843, %v1733
      %v1845 = vpop.permute.xlu0 %1844
      %1847 = vset.pattern.permute.xlu0 0
      %1848 = vperm.xlu0 %1847, %v1736
      %v1849 = vpop.permute.xlu0 %1848
      %1851 = vset.pattern.permute.xlu0 0
      %1852 = vperm.xlu0 %1851, %v1738
      %v1853 = vpop.permute.xlu0 %1852
      %1855 = vset.pattern.permute.xlu0 0
      %1856 = vperm.xlu0 %1855, %v1741
      %v1857 = vpop.permute.xlu0 %1856
      %1859 = vset.pattern.permute.xlu0 0
      %1860 = vperm.xlu0 %1859, %v1743
      %v1861 = vpop.permute.xlu0 %1860
      %1863 = vset.pattern.permute.xlu0 0
      %1864 = vperm.xlu0 %1863, %v1746
      %v1865 = vpop.permute.xlu0 %1864
      %1867 = vset.pattern.permute.xlu0 0
      %1868 = vperm.xlu0 %1867, %v1748
      %v1869 = vpop.permute.xlu0 %1868
      %1871 = vset.pattern.permute.xlu0 0
      %1872 = vperm.xlu0 %1871, %v1751
      %v1873 = vpop.permute.xlu0 %1872
      %1875 = vset.pattern.permute.xlu0 0
      %1876 = vperm.xlu0 %1875, %v1753
      %v1877 = vpop.permute.xlu0 %1876
      %1879 = vset.pattern.permute.xlu0 0
      %1880 = vperm.xlu0 %1879, %v1756
      %v1881 = vpop.permute.xlu0 %1880
      %1883 = vset.pattern.permute.xlu0 0
      %1884 = vperm.xlu0 %1883, %v1758
      %v1885 = vpop.permute.xlu0 %1884
      %1887 = vset.pattern.permute.xlu0 0
      %1888 = vperm.xlu0 %1887, %v1761
      %v1889 = vpop.permute.xlu0 %1888
      %1891 = vset.pattern.permute.xlu0 0
      %1892 = vperm.xlu0 %1891, %v1763
      %v1893 = vpop.permute.xlu0 %1892
      %v1895 = vlaneseq
      %v1896 = vshrl.u32 %v1895, 7
      %v1897 = vsub.s32 0, %v1896
      %v1898 = vrot.slane %v1766, %v1897
      %v1899 = vmul.f32 %v1769, %v1898
      %v1900 = vmul.f32 %v1773, %v1898
      %v1901 = vmul.f32 %v1777, %v1898
      %v1902 = vmul.f32 %v1781, %v1898
      %v1903 = vmul.f32 %v1785, %v1898
      %v1904 = vmul.f32 %v1789, %v1898
      %v1905 = vmul.f32 %v1793, %v1898
      %v1906 = vmul.f32 %v1797, %v1898
      %v1907 = vmul.f32 %v1801, %v1898
      %v1908 = vmul.f32 %v1805, %v1898
      %v1909 = vmul.f32 %v1809, %v1898
      %v1910 = vmul.f32 %v1813, %v1898
      %v1911 = vmul.f32 %v1817, %v1898
      %v1912 = vmul.f32 %v1821, %v1898
      %v1913 = vmul.f32 %v1825, %v1898
      %v1914 = vmul.f32 %v1829, %v1898
      %v1915 = vmul.f32 %v1833, %v1898
      %v1916 = vmul.f32 %v1837, %v1898
      %v1917 = vmul.f32 %v1841, %v1898
      %v1918 = vmul.f32 %v1845, %v1898
      %v1919 = vmul.f32 %v1849, %v1898
      %v1920 = vmul.f32 %v1853, %v1898
      %v1921 = vmul.f32 %v1857, %v1898
      %v1922 = vmul.f32 %v1861, %v1898
      %v1923 = vmul.f32 %v1865, %v1898
      %v1924 = vmul.f32 %v1869, %v1898
      %v1925 = vmul.f32 %v1873, %v1898
      %v1926 = vmul.f32 %v1877, %v1898
      %v1927 = vmul.f32 %v1881, %v1898
      %v1928 = vmul.f32 %v1885, %v1898
      %v1929 = vmul.f32 %v1889, %v1898
      %v1930 = vmul.f32 %v1893, %v1898
      %v1931 = vadd.f32 %v1508, %v1899
      %v1932 = vadd.f32 %v1509, %v1900
      %v1933 = vadd.f32 %v1510, %v1901
      %v1934 = vadd.f32 %v1511, %v1902
      %v1935 = vadd.f32 %v1512, %v1903
      %v1936 = vadd.f32 %v1513, %v1904
      %v1937 = vadd.f32 %v1514, %v1905
      %v1938 = vadd.f32 %v1515, %v1906
      %v1939 = vadd.f32 %v1516, %v1907
      %v1940 = vadd.f32 %v1517, %v1908
      %v1941 = vadd.f32 %v1518, %v1909
      %v1942 = vadd.f32 %v1519, %v1910
      %v1943 = vadd.f32 %v1520, %v1911
      %v1944 = vadd.f32 %v1521, %v1912
      %v1945 = vadd.f32 %v1522, %v1913
      %v1946 = vadd.f32 %v1523, %v1914
      %v1947 = vadd.f32 %v1524, %v1915
      %v1948 = vadd.f32 %v1525, %v1916
      %v1949 = vadd.f32 %v1526, %v1917
      %v1950 = vadd.f32 %v1527, %v1918
      %v1951 = vadd.f32 %v1528, %v1919
      %v1952 = vadd.f32 %v1529, %v1920
      %v1953 = vadd.f32 %v1530, %v1921
      %v1954 = vadd.f32 %v1531, %v1922
      %v1955 = vadd.f32 %v1532, %v1923
      %v1956 = vadd.f32 %v1533, %v1924
      %v1957 = vadd.f32 %v1534, %v1925
      %v1958 = vadd.f32 %v1535, %v1926
      %v1959 = vadd.f32 %v1536, %v1927
      %v1960 = vadd.f32 %v1537, %v1928
      %v1961 = vadd.f32 %v1538, %v1929
      %v1962 = vadd.f32 %v1539, %v1930
      %v1963 = vld [vmem:[%s1244] sm:$0xe]
      %v1964 = vld [vmem:[%s1244 + $0xc] sm:$0xe]
      %v1965 = vld [vmem:[%s1244 + $0x18] sm:$0xe]
      %v1966 = vld [vmem:[%s1244 + $0x24] sm:$0xe]
      %v1967 = vld [vmem:[%s1244 + $0x30] sm:$0xe]
      %v1968 = vld [vmem:[%s1244 + $0x3c] sm:$0xe]
      %v1969 = vld [vmem:[%s1244 + $0x48] sm:$0xe]
      %v1970 = vld [vmem:[%s1244 + $0x54] sm:$0xe]
      %v1971 = vld [vmem:[%s1244 + $0x60] sm:$0xe]
      %v1972 = vld [vmem:[%s1244 + $0x6c] sm:$0xe]
      %v1973 = vld [vmem:[%s1244 + $0x78] sm:$0xe]
      %v1974 = vld [vmem:[%s1244 + $0x84] sm:$0xe]
      %v1975 = vld [vmem:[%s1244 + $0x90] sm:$0xe]
      %v1976 = vld [vmem:[%s1244 + $0x9c] sm:$0xe]
      %v1977 = vld [vmem:[%s1244 + $0xa8] sm:$0xe]
      %v1978 = vld [vmem:[%s1244 + $0xb4] sm:$0xe]
      %v1979 = vunpack.c.l.bf16 %v1963
      %v1980 = vunpack.c.l.bf16 %v1964
      %v1981 = vunpack.c.l.bf16 %v1965
      %v1982 = vunpack.c.l.bf16 %v1966
      %v1983 = vunpack.c.l.bf16 %v1967
      %v1984 = vunpack.c.l.bf16 %v1968
      %v1985 = vunpack.c.l.bf16 %v1969
      %v1986 = vunpack.c.l.bf16 %v1970
      %v1987 = vunpack.c.l.bf16 %v1971
      %v1988 = vunpack.c.l.bf16 %v1972
      %v1989 = vunpack.c.l.bf16 %v1973
      %v1990 = vunpack.c.l.bf16 %v1974
      %v1991 = vunpack.c.l.bf16 %v1975
      %v1992 = vunpack.c.l.bf16 %v1976
      %v1993 = vunpack.c.l.bf16 %v1977
      %v1994 = vunpack.c.l.bf16 %v1978
      %v2011 = vrot.slane %v1979, 2
      %v2012 = vrot.slane %v1589, 2
      %v2013 = vsel %vm962, %v2011, %v2012
      %v2014 = vrot.slane %v1590, 2
      %v2015 = vsel %vm962, %v2012, %v2014
      %v2016 = vrot.slane %v1980, 2
      %v2017 = vrot.slane %v1592, 2
      %v2018 = vsel %vm962, %v2016, %v2017
      %v2019 = vrot.slane %v1593, 2
      %v2020 = vsel %vm962, %v2017, %v2019
      %v2021 = vrot.slane %v1981, 2
      %v2022 = vrot.slane %v1595, 2
      %v2023 = vsel %vm962, %v2021, %v2022
      %v2024 = vrot.slane %v1596, 2
      %v2025 = vsel %vm962, %v2022, %v2024
      %v2026 = vrot.slane %v1982, 2
      %v2027 = vrot.slane %v1598, 2
      %v2028 = vsel %vm962, %v2026, %v2027
      %v2029 = vrot.slane %v1599, 2
      %v2030 = vsel %vm962, %v2027, %v2029
      %v2031 = vrot.slane %v1983, 2
      %v2032 = vrot.slane %v1601, 2
      %v2033 = vsel %vm962, %v2031, %v2032
      %v2034 = vrot.slane %v1602, 2
      %v2035 = vsel %vm962, %v2032, %v2034
      %v2036 = vrot.slane %v1984, 2
      %v2037 = vrot.slane %v1604, 2
      %v2038 = vsel %vm962, %v2036, %v2037
      %v2039 = vrot.slane %v1605, 2
      %v2040 = vsel %vm962, %v2037, %v2039
      %v2041 = vrot.slane %v1985, 2
      %v2042 = vrot.slane %v1607, 2
      %v2043 = vsel %vm962, %v2041, %v2042
      %v2044 = vrot.slane %v1608, 2
      %v2045 = vsel %vm962, %v2042, %v2044
      %v2046 = vrot.slane %v1986, 2
      %v2047 = vrot.slane %v1610, 2
      %v2048 = vsel %vm962, %v2046, %v2047
      %v2049 = vrot.slane %v1611, 2
      %v2050 = vsel %vm962, %v2047, %v2049
      %v2051 = vrot.slane %v1987, 2
      %v2052 = vrot.slane %v1613, 2
      %v2053 = vsel %vm962, %v2051, %v2052
      %v2054 = vrot.slane %v1614, 2
      %v2055 = vsel %vm962, %v2052, %v2054
      %v2056 = vrot.slane %v1988, 2
      %v2057 = vrot.slane %v1616, 2
      %v2058 = vsel %vm962, %v2056, %v2057
      %v2059 = vrot.slane %v1617, 2
      %v2060 = vsel %vm962, %v2057, %v2059
      %v2061 = vrot.slane %v1989, 2
      %v2062 = vrot.slane %v1619, 2
      %v2063 = vsel %vm962, %v2061, %v2062
      %v2064 = vrot.slane %v1620, 2
      %v2065 = vsel %vm962, %v2062, %v2064
      %v2066 = vrot.slane %v1990, 2
      %v2067 = vrot.slane %v1622, 2
      %v2068 = vsel %vm962, %v2066, %v2067
      %v2069 = vrot.slane %v1623, 2
      %v2070 = vsel %vm962, %v2067, %v2069
      %v2071 = vrot.slane %v1991, 2
      %v2072 = vrot.slane %v1625, 2
      %v2073 = vsel %vm962, %v2071, %v2072
      %v2074 = vrot.slane %v1626, 2
      %v2075 = vsel %vm962, %v2072, %v2074
      %v2076 = vrot.slane %v1992, 2
      %v2077 = vrot.slane %v1628, 2
      %v2078 = vsel %vm962, %v2076, %v2077
      %v2079 = vrot.slane %v1629, 2
      %v2080 = vsel %vm962, %v2077, %v2079
      %v2081 = vrot.slane %v1993, 2
      %v2082 = vrot.slane %v1631, 2
      %v2083 = vsel %vm962, %v2081, %v2082
      %v2084 = vrot.slane %v1632, 2
      %v2085 = vsel %vm962, %v2082, %v2084
      %v2086 = vrot.slane %v1994, 2
      %v2087 = vrot.slane %v1634, 2
      %v2088 = vsel %vm962, %v2086, %v2087
      %v2089 = vrot.slane %v1635, 2
      %v2090 = vsel %vm962, %v2087, %v2089
      %s2091 = scalar_lea.vmem %s1, 5
      %v2092 = vld [vmem:[%s2091] sm:$0x1]
      %v2093 = vunpack.c.l.bf16 %v2092
      %2094 = vset.pattern.permute.xlu0 0
      %2095 = vperm.xlu0 %2094, %v2013
      %v2096 = vpop.permute.xlu0 %2095
      %2098 = vset.pattern.permute.xlu0 0
      %2099 = vperm.xlu0 %2098, %v2015
      %v2100 = vpop.permute.xlu0 %2099
      %2102 = vset.pattern.permute.xlu0 0
      %2103 = vperm.xlu0 %2102, %v2018
      %v2104 = vpop.permute.xlu0 %2103
      %2106 = vset.pattern.permute.xlu0 0
      %2107 = vperm.xlu0 %2106, %v2020
      %v2108 = vpop.permute.xlu0 %2107
      %2110 = vset.pattern.permute.xlu0 0
      %2111 = vperm.xlu0 %2110, %v2023
      %v2112 = vpop.permute.xlu0 %2111
      %2114 = vset.pattern.permute.xlu0 0
      %2115 = vperm.xlu0 %2114, %v2025
      %v2116 = vpop.permute.xlu0 %2115
      %2118 = vset.pattern.permute.xlu0 0
      %2119 = vperm.xlu0 %2118, %v2028
      %v2120 = vpop.permute.xlu0 %2119
      %2122 = vset.pattern.permute.xlu0 0
      %2123 = vperm.xlu0 %2122, %v2030
      %v2124 = vpop.permute.xlu0 %2123
      %2126 = vset.pattern.permute.xlu0 0
      %2127 = vperm.xlu0 %2126, %v2033
      %v2128 = vpop.permute.xlu0 %2127
      %2130 = vset.pattern.permute.xlu0 0
      %2131 = vperm.xlu0 %2130, %v2035
      %v2132 = vpop.permute.xlu0 %2131
      %2134 = vset.pattern.permute.xlu0 0
      %2135 = vperm.xlu0 %2134, %v2038
      %v2136 = vpop.permute.xlu0 %2135
      %2138 = vset.pattern.permute.xlu0 0
      %2139 = vperm.xlu0 %2138, %v2040
      %v2140 = vpop.permute.xlu0 %2139
      %2142 = vset.pattern.permute.xlu0 0
      %2143 = vperm.xlu0 %2142, %v2043
      %v2144 = vpop.permute.xlu0 %2143
      %2146 = vset.pattern.permute.xlu0 0
      %2147 = vperm.xlu0 %2146, %v2045
      %v2148 = vpop.permute.xlu0 %2147
      %2150 = vset.pattern.permute.xlu0 0
      %2151 = vperm.xlu0 %2150, %v2048
      %v2152 = vpop.permute.xlu0 %2151
      %2154 = vset.pattern.permute.xlu0 0
      %2155 = vperm.xlu0 %2154, %v2050
      %v2156 = vpop.permute.xlu0 %2155
      %2158 = vset.pattern.permute.xlu0 0
      %2159 = vperm.xlu0 %2158, %v2053
      %v2160 = vpop.permute.xlu0 %2159
      %2162 = vset.pattern.permute.xlu0 0
      %2163 = vperm.xlu0 %2162, %v2055
      %v2164 = vpop.permute.xlu0 %2163
      %2166 = vset.pattern.permute.xlu0 0
      %2167 = vperm.xlu0 %2166, %v2058
      %v2168 = vpop.permute.xlu0 %2167
      %2170 = vset.pattern.permute.xlu0 0
      %2171 = vperm.xlu0 %2170, %v2060
      %v2172 = vpop.permute.xlu0 %2171
      %2174 = vset.pattern.permute.xlu0 0
      %2175 = vperm.xlu0 %2174, %v2063
      %v2176 = vpop.permute.xlu0 %2175
      %2178 = vset.pattern.permute.xlu0 0
      %2179 = vperm.xlu0 %2178, %v2065
      %v2180 = vpop.permute.xlu0 %2179
      %2182 = vset.pattern.permute.xlu0 0
      %2183 = vperm.xlu0 %2182, %v2068
      %v2184 = vpop.permute.xlu0 %2183
      %2186 = vset.pattern.permute.xlu0 0
      %2187 = vperm.xlu0 %2186, %v2070
      %v2188 = vpop.permute.xlu0 %2187
      %2190 = vset.pattern.permute.xlu0 0
      %2191 = vperm.xlu0 %2190, %v2073
      %v2192 = vpop.permute.xlu0 %2191
      %2194 = vset.pattern.permute.xlu0 0
      %2195 = vperm.xlu0 %2194, %v2075
      %v2196 = vpop.permute.xlu0 %2195
      %2198 = vset.pattern.permute.xlu0 0
      %2199 = vperm.xlu0 %2198, %v2078
      %v2200 = vpop.permute.xlu0 %2199
      %2202 = vset.pattern.permute.xlu0 0
      %2203 = vperm.xlu0 %2202, %v2080
      %v2204 = vpop.permute.xlu0 %2203
      %2206 = vset.pattern.permute.xlu0 0
      %2207 = vperm.xlu0 %2206, %v2083
      %v2208 = vpop.permute.xlu0 %2207
      %2210 = vset.pattern.permute.xlu0 0
      %2211 = vperm.xlu0 %2210, %v2085
      %v2212 = vpop.permute.xlu0 %2211
      %2214 = vset.pattern.permute.xlu0 0
      %2215 = vperm.xlu0 %2214, %v2088
      %v2216 = vpop.permute.xlu0 %2215
      %2218 = vset.pattern.permute.xlu0 0
      %2219 = vperm.xlu0 %2218, %v2090
      %v2220 = vpop.permute.xlu0 %2219
      %v2222 = vlaneseq
      %v2223 = vshrl.u32 %v2222, 7
      %v2224 = vsub.s32 0, %v2223
      %v2225 = vrot.slane %v2093, %v2224
      %v2226 = vmul.f32 %v2096, %v2225
      %v2227 = vmul.f32 %v2100, %v2225
      %v2228 = vmul.f32 %v2104, %v2225
      %v2229 = vmul.f32 %v2108, %v2225
      %v2230 = vmul.f32 %v2112, %v2225
      %v2231 = vmul.f32 %v2116, %v2225
      %v2232 = vmul.f32 %v2120, %v2225
      %v2233 = vmul.f32 %v2124, %v2225
      %v2234 = vmul.f32 %v2128, %v2225
      %v2235 = vmul.f32 %v2132, %v2225
      %v2236 = vmul.f32 %v2136, %v2225
      %v2237 = vmul.f32 %v2140, %v2225
      %v2238 = vmul.f32 %v2144, %v2225
      %v2239 = vmul.f32 %v2148, %v2225
      %v2240 = vmul.f32 %v2152, %v2225
      %v2241 = vmul.f32 %v2156, %v2225
      %v2242 = vmul.f32 %v2160, %v2225
      %v2243 = vmul.f32 %v2164, %v2225
      %v2244 = vmul.f32 %v2168, %v2225
      %v2245 = vmul.f32 %v2172, %v2225
      %v2246 = vmul.f32 %v2176, %v2225
      %v2247 = vmul.f32 %v2180, %v2225
      %v2248 = vmul.f32 %v2184, %v2225
      %v2249 = vmul.f32 %v2188, %v2225
      %v2250 = vmul.f32 %v2192, %v2225
      %v2251 = vmul.f32 %v2196, %v2225
      %v2252 = vmul.f32 %v2200, %v2225
      %v2253 = vmul.f32 %v2204, %v2225
      %v2254 = vmul.f32 %v2208, %v2225
      %v2255 = vmul.f32 %v2212, %v2225
      %v2256 = vmul.f32 %v2216, %v2225
      %v2257 = vmul.f32 %v2220, %v2225
      %v2258 = vadd.f32 %v1931, %v2226
      %v2259 = vadd.f32 %v1932, %v2227
      %v2260 = vadd.f32 %v1933, %v2228
      %v2261 = vadd.f32 %v1934, %v2229
      %v2262 = vadd.f32 %v1935, %v2230
      %v2263 = vadd.f32 %v1936, %v2231
      %v2264 = vadd.f32 %v1937, %v2232
      %v2265 = vadd.f32 %v1938, %v2233
      %v2266 = vadd.f32 %v1939, %v2234
      %v2267 = vadd.f32 %v1940, %v2235
      %v2268 = vadd.f32 %v1941, %v2236
      %v2269 = vadd.f32 %v1942, %v2237
      %v2270 = vadd.f32 %v1943, %v2238
      %v2271 = vadd.f32 %v1944, %v2239
      %v2272 = vadd.f32 %v1945, %v2240
      %v2273 = vadd.f32 %v1946, %v2241
      %v2274 = vadd.f32 %v1947, %v2242
      %v2275 = vadd.f32 %v1948, %v2243
      %v2276 = vadd.f32 %v1949, %v2244
      %v2277 = vadd.f32 %v1950, %v2245
      %v2278 = vadd.f32 %v1951, %v2246
      %v2279 = vadd.f32 %v1952, %v2247
      %v2280 = vadd.f32 %v1953, %v2248
      %v2281 = vadd.f32 %v1954, %v2249
      %v2282 = vadd.f32 %v1955, %v2250
      %v2283 = vadd.f32 %v1956, %v2251
      %v2284 = vadd.f32 %v1957, %v2252
      %v2285 = vadd.f32 %v1958, %v2253
      %v2286 = vadd.f32 %v1959, %v2254
      %v2287 = vadd.f32 %v1960, %v2255
      %v2288 = vadd.f32 %v1961, %v2256
      %v2289 = vadd.f32 %v1962, %v2257
      %s2290 = sadd.s32 6, %s193
      %s2291 = smul.addr %s2290, 4
      %s2292 = scalar_lea.vmem %s183, %s2291
      %v2293 = vld [vmem:[%s2292] sm:$0xf]
      %v2294 = vld [vmem:[%s2292 + $0x4] sm:$0xf]
      %v2295 = vld [vmem:[%s2292 + $0xc] sm:$0xf]
      %v2296 = vld [vmem:[%s2292 + $0x10] sm:$0xf]
      %v2297 = vld [vmem:[%s2292 + $0x18] sm:$0xf]
      %v2298 = vld [vmem:[%s2292 + $0x1c] sm:$0xf]
      %v2299 = vld [vmem:[%s2292 + $0x24] sm:$0xf]
      %v2300 = vld [vmem:[%s2292 + $0x28] sm:$0xf]
      %v2301 = vld [vmem:[%s2292 + $0x30] sm:$0xf]
      %v2302 = vld [vmem:[%s2292 + $0x34] sm:$0xf]
      %v2303 = vld [vmem:[%s2292 + $0x3c] sm:$0xf]
      %v2304 = vld [vmem:[%s2292 + $0x40] sm:$0xf]
      %v2305 = vld [vmem:[%s2292 + $0x48] sm:$0xf]
      %v2306 = vld [vmem:[%s2292 + $0x4c] sm:$0xf]
      %v2307 = vld [vmem:[%s2292 + $0x54] sm:$0xf]
      %v2308 = vld [vmem:[%s2292 + $0x58] sm:$0xf]
      %v2309 = vld [vmem:[%s2292 + $0x60] sm:$0xf]
      %v2310 = vld [vmem:[%s2292 + $0x64] sm:$0xf]
      %v2311 = vld [vmem:[%s2292 + $0x6c] sm:$0xf]
      %v2312 = vld [vmem:[%s2292 + $0x70] sm:$0xf]
      %v2313 = vld [vmem:[%s2292 + $0x78] sm:$0xf]
      %v2314 = vld [vmem:[%s2292 + $0x7c] sm:$0xf]
      %v2315 = vld [vmem:[%s2292 + $0x84] sm:$0xf]
      %v2316 = vld [vmem:[%s2292 + $0x88] sm:$0xf]
      %v2317 = vld [vmem:[%s2292 + $0x90] sm:$0xf]
      %v2318 = vld [vmem:[%s2292 + $0x94] sm:$0xf]
      %v2319 = vld [vmem:[%s2292 + $0x9c] sm:$0xf]
      %v2320 = vld [vmem:[%s2292 + $0xa0] sm:$0xf]
      %v2321 = vld [vmem:[%s2292 + $0xa8] sm:$0xf]
      %v2322 = vld [vmem:[%s2292 + $0xac] sm:$0xf]
      %v2323 = vld [vmem:[%s2292 + $0xb4] sm:$0xf]
      %v2324 = vld [vmem:[%s2292 + $0xb8] sm:$0xf]
      %v2325 = vunpack.c.l.bf16 %v2293
      %v2326 = vunpack.c.l.bf16 %v2294
      %v2327 = vunpack.c.l.bf16 %v2295
      %v2328 = vunpack.c.l.bf16 %v2296
      %v2329 = vunpack.c.l.bf16 %v2297
      %v2330 = vunpack.c.l.bf16 %v2298
      %v2331 = vunpack.c.l.bf16 %v2299
      %v2332 = vunpack.c.l.bf16 %v2300
      %v2333 = vunpack.c.l.bf16 %v2301
      %v2334 = vunpack.c.l.bf16 %v2302
      %v2335 = vunpack.c.l.bf16 %v2303
      %v2336 = vunpack.c.l.bf16 %v2304
      %v2337 = vunpack.c.l.bf16 %v2305
      %v2338 = vunpack.c.l.bf16 %v2306
      %v2339 = vunpack.c.l.bf16 %v2307
      %v2340 = vunpack.c.l.bf16 %v2308
      %v2341 = vunpack.c.l.bf16 %v2309
      %v2342 = vunpack.c.l.bf16 %v2310
      %v2343 = vunpack.c.l.bf16 %v2311
      %v2344 = vunpack.c.l.bf16 %v2312
      %v2345 = vunpack.c.l.bf16 %v2313
      %v2346 = vunpack.c.l.bf16 %v2314
      %v2347 = vunpack.c.l.bf16 %v2315
      %v2348 = vunpack.c.l.bf16 %v2316
      %v2349 = vunpack.c.l.bf16 %v2317
      %v2350 = vunpack.c.l.bf16 %v2318
      %v2351 = vunpack.c.l.bf16 %v2319
      %v2352 = vunpack.c.l.bf16 %v2320
      %v2353 = vunpack.c.l.bf16 %v2321
      %v2354 = vunpack.c.l.bf16 %v2322
      %v2355 = vunpack.c.l.bf16 %v2323
      %v2356 = vunpack.c.l.bf16 %v2324
      %s2357 = scalar_lea.vmem %s1, 6
      %v2358 = vld [vmem:[%s2357] sm:$0x1]
      %v2359 = vunpack.c.l.bf16 %v2358
      %2361 = vset.pattern.permute.xlu0 0
      %2362 = vperm.xlu0 %2361, %v2325
      %v2363 = vpop.permute.xlu0 %2362
      %2366 = vset.pattern.permute.xlu0 0
      %2367 = vperm.xlu0 %2366, %v2326
      %v2368 = vpop.permute.xlu0 %2367
      %2371 = vset.pattern.permute.xlu0 0
      %2372 = vperm.xlu0 %2371, %v2327
      %v2373 = vpop.permute.xlu0 %2372
      %2376 = vset.pattern.permute.xlu0 0
      %2377 = vperm.xlu0 %2376, %v2328
      %v2378 = vpop.permute.xlu0 %2377
      %2381 = vset.pattern.permute.xlu0 0
      %2382 = vperm.xlu0 %2381, %v2329
      %v2383 = vpop.permute.xlu0 %2382
      %2386 = vset.pattern.permute.xlu0 0
      %2387 = vperm.xlu0 %2386, %v2330
      %v2388 = vpop.permute.xlu0 %2387
      %2391 = vset.pattern.permute.xlu0 0
      %2392 = vperm.xlu0 %2391, %v2331
      %v2393 = vpop.permute.xlu0 %2392
      %2396 = vset.pattern.permute.xlu0 0
      %2397 = vperm.xlu0 %2396, %v2332
      %v2398 = vpop.permute.xlu0 %2397
      %2401 = vset.pattern.permute.xlu0 0
      %2402 = vperm.xlu0 %2401, %v2333
      %v2403 = vpop.permute.xlu0 %2402
      %2406 = vset.pattern.permute.xlu0 0
      %2407 = vperm.xlu0 %2406, %v2334
      %v2408 = vpop.permute.xlu0 %2407
      %2411 = vset.pattern.permute.xlu0 0
      %2412 = vperm.xlu0 %2411, %v2335
      %v2413 = vpop.permute.xlu0 %2412
      %2416 = vset.pattern.permute.xlu0 0
      %2417 = vperm.xlu0 %2416, %v2336
      %v2418 = vpop.permute.xlu0 %2417
      %2421 = vset.pattern.permute.xlu0 0
      %2422 = vperm.xlu0 %2421, %v2337
      %v2423 = vpop.permute.xlu0 %2422
      %2426 = vset.pattern.permute.xlu0 0
      %2427 = vperm.xlu0 %2426, %v2338
      %v2428 = vpop.permute.xlu0 %2427
      %2431 = vset.pattern.permute.xlu0 0
      %2432 = vperm.xlu0 %2431, %v2339
      %v2433 = vpop.permute.xlu0 %2432
      %2436 = vset.pattern.permute.xlu0 0
      %2437 = vperm.xlu0 %2436, %v2340
      %v2438 = vpop.permute.xlu0 %2437
      %2441 = vset.pattern.permute.xlu0 0
      %2442 = vperm.xlu0 %2441, %v2341
      %v2443 = vpop.permute.xlu0 %2442
      %2446 = vset.pattern.permute.xlu0 0
      %2447 = vperm.xlu0 %2446, %v2342
      %v2448 = vpop.permute.xlu0 %2447
      %2451 = vset.pattern.permute.xlu0 0
      %2452 = vperm.xlu0 %2451, %v2343
      %v2453 = vpop.permute.xlu0 %2452
      %2456 = vset.pattern.permute.xlu0 0
      %2457 = vperm.xlu0 %2456, %v2344
      %v2458 = vpop.permute.xlu0 %2457
      %2461 = vset.pattern.permute.xlu0 0
      %2462 = vperm.xlu0 %2461, %v2345
      %v2463 = vpop.permute.xlu0 %2462
      %2466 = vset.pattern.permute.xlu0 0
      %2467 = vperm.xlu0 %2466, %v2346
      %v2468 = vpop.permute.xlu0 %2467
      %2471 = vset.pattern.permute.xlu0 0
      %2472 = vperm.xlu0 %2471, %v2347
      %v2473 = vpop.permute.xlu0 %2472
      %2476 = vset.pattern.permute.xlu0 0
      %2477 = vperm.xlu0 %2476, %v2348
      %v2478 = vpop.permute.xlu0 %2477
      %2481 = vset.pattern.permute.xlu0 0
      %2482 = vperm.xlu0 %2481, %v2349
      %v2483 = vpop.permute.xlu0 %2482
      %2486 = vset.pattern.permute.xlu0 0
      %2487 = vperm.xlu0 %2486, %v2350
      %v2488 = vpop.permute.xlu0 %2487
      %2491 = vset.pattern.permute.xlu0 0
      %2492 = vperm.xlu0 %2491, %v2351
      %v2493 = vpop.permute.xlu0 %2492
      %2496 = vset.pattern.permute.xlu0 0
      %2497 = vperm.xlu0 %2496, %v2352
      %v2498 = vpop.permute.xlu0 %2497
      %2501 = vset.pattern.permute.xlu0 0
      %2502 = vperm.xlu0 %2501, %v2353
      %v2503 = vpop.permute.xlu0 %2502
      %2506 = vset.pattern.permute.xlu0 0
      %2507 = vperm.xlu0 %2506, %v2354
      %v2508 = vpop.permute.xlu0 %2507
      %2511 = vset.pattern.permute.xlu0 0
      %2512 = vperm.xlu0 %2511, %v2355
      %v2513 = vpop.permute.xlu0 %2512
      %2516 = vset.pattern.permute.xlu0 0
      %2517 = vperm.xlu0 %2516, %v2356
      %v2518 = vpop.permute.xlu0 %2517
      %v2520 = vlaneseq
      %v2521 = vshrl.u32 %v2520, 7
      %v2522 = vsub.s32 0, %v2521
      %v2523 = vrot.slane %v2359, %v2522
      %v2524 = vmul.f32 %v2363, %v2523
      %v2525 = vmul.f32 %v2368, %v2523
      %v2526 = vmul.f32 %v2373, %v2523
      %v2527 = vmul.f32 %v2378, %v2523
      %v2528 = vmul.f32 %v2383, %v2523
      %v2529 = vmul.f32 %v2388, %v2523
      %v2530 = vmul.f32 %v2393, %v2523
      %v2531 = vmul.f32 %v2398, %v2523
      %v2532 = vmul.f32 %v2403, %v2523
      %v2533 = vmul.f32 %v2408, %v2523
      %v2534 = vmul.f32 %v2413, %v2523
      %v2535 = vmul.f32 %v2418, %v2523
      %v2536 = vmul.f32 %v2423, %v2523
      %v2537 = vmul.f32 %v2428, %v2523
      %v2538 = vmul.f32 %v2433, %v2523
      %v2539 = vmul.f32 %v2438, %v2523
      %v2540 = vmul.f32 %v2443, %v2523
      %v2541 = vmul.f32 %v2448, %v2523
      %v2542 = vmul.f32 %v2453, %v2523
      %v2543 = vmul.f32 %v2458, %v2523
      %v2544 = vmul.f32 %v2463, %v2523
      %v2545 = vmul.f32 %v2468, %v2523
      %v2546 = vmul.f32 %v2473, %v2523
      %v2547 = vmul.f32 %v2478, %v2523
      %v2548 = vmul.f32 %v2483, %v2523
      %v2549 = vmul.f32 %v2488, %v2523
      %v2550 = vmul.f32 %v2493, %v2523
      %v2551 = vmul.f32 %v2498, %v2523
      %v2552 = vmul.f32 %v2503, %v2523
      %v2553 = vmul.f32 %v2508, %v2523
      %v2554 = vmul.f32 %v2513, %v2523
      %v2555 = vmul.f32 %v2518, %v2523
      %v2556 = vadd.f32 %v2258, %v2524
      %v2557 = vadd.f32 %v2259, %v2525
      %v2558 = vadd.f32 %v2260, %v2526
      %v2559 = vadd.f32 %v2261, %v2527
      %v2560 = vadd.f32 %v2262, %v2528
      %v2561 = vadd.f32 %v2263, %v2529
      %v2562 = vadd.f32 %v2264, %v2530
      %v2563 = vadd.f32 %v2265, %v2531
      %v2564 = vadd.f32 %v2266, %v2532
      %v2565 = vadd.f32 %v2267, %v2533
      %v2566 = vadd.f32 %v2268, %v2534
      %v2567 = vadd.f32 %v2269, %v2535
      %v2568 = vadd.f32 %v2270, %v2536
      %v2569 = vadd.f32 %v2271, %v2537
      %v2570 = vadd.f32 %v2272, %v2538
      %v2571 = vadd.f32 %v2273, %v2539
      %v2572 = vadd.f32 %v2274, %v2540
      %v2573 = vadd.f32 %v2275, %v2541
      %v2574 = vadd.f32 %v2276, %v2542
      %v2575 = vadd.f32 %v2277, %v2543
      %v2576 = vadd.f32 %v2278, %v2544
      %v2577 = vadd.f32 %v2279, %v2545
      %v2578 = vadd.f32 %v2280, %v2546
      %v2579 = vadd.f32 %v2281, %v2547
      %v2580 = vadd.f32 %v2282, %v2548
      %v2581 = vadd.f32 %v2283, %v2549
      %v2582 = vadd.f32 %v2284, %v2550
      %v2583 = vadd.f32 %v2285, %v2551
      %v2584 = vadd.f32 %v2286, %v2552
      %v2585 = vadd.f32 %v2287, %v2553
      %v2586 = vadd.f32 %v2288, %v2554
      %v2587 = vadd.f32 %v2289, %v2555
      %v2588 = vld [vmem:[%s2292] sm:$0xf]
      %v2589 = vld [vmem:[%s2292 + $0x4] sm:$0xf]
      %v2590 = vld [vmem:[%s2292 + $0x8] sm:$0x1]
      %v2591 = vld [vmem:[%s2292 + $0xc] sm:$0xf]
      %v2592 = vld [vmem:[%s2292 + $0x10] sm:$0xf]
      %v2593 = vld [vmem:[%s2292 + $0x14] sm:$0x1]
      %v2594 = vld [vmem:[%s2292 + $0x18] sm:$0xf]
      %v2595 = vld [vmem:[%s2292 + $0x1c] sm:$0xf]
      %v2596 = vld [vmem:[%s2292 + $0x20] sm:$0x1]
      %v2597 = vld [vmem:[%s2292 + $0x24] sm:$0xf]
      %v2598 = vld [vmem:[%s2292 + $0x28] sm:$0xf]
      %v2599 = vld [vmem:[%s2292 + $0x2c] sm:$0x1]
      %v2600 = vld [vmem:[%s2292 + $0x30] sm:$0xf]
      %v2601 = vld [vmem:[%s2292 + $0x34] sm:$0xf]
      %v2602 = vld [vmem:[%s2292 + $0x38] sm:$0x1]
      %v2603 = vld [vmem:[%s2292 + $0x3c] sm:$0xf]
      %v2604 = vld [vmem:[%s2292 + $0x40] sm:$0xf]
      %v2605 = vld [vmem:[%s2292 + $0x44] sm:$0x1]
      %v2606 = vld [vmem:[%s2292 + $0x48] sm:$0xf]
      %v2607 = vld [vmem:[%s2292 + $0x4c] sm:$0xf]
      %v2608 = vld [vmem:[%s2292 + $0x50] sm:$0x1]
      %v2609 = vld [vmem:[%s2292 + $0x54] sm:$0xf]
      %v2610 = vld [vmem:[%s2292 + $0x58] sm:$0xf]
      %v2611 = vld [vmem:[%s2292 + $0x5c] sm:$0x1]
      %v2612 = vld [vmem:[%s2292 + $0x60] sm:$0xf]
      %v2613 = vld [vmem:[%s2292 + $0x64] sm:$0xf]
      %v2614 = vld [vmem:[%s2292 + $0x68] sm:$0x1]
      %v2615 = vld [vmem:[%s2292 + $0x6c] sm:$0xf]
      %v2616 = vld [vmem:[%s2292 + $0x70] sm:$0xf]
      %v2617 = vld [vmem:[%s2292 + $0x74] sm:$0x1]
      %v2618 = vld [vmem:[%s2292 + $0x78] sm:$0xf]
      %v2619 = vld [vmem:[%s2292 + $0x7c] sm:$0xf]
      %v2620 = vld [vmem:[%s2292 + $0x80] sm:$0x1]
      %v2621 = vld [vmem:[%s2292 + $0x84] sm:$0xf]
      %v2622 = vld [vmem:[%s2292 + $0x88] sm:$0xf]
      %v2623 = vld [vmem:[%s2292 + $0x8c] sm:$0x1]
      %v2624 = vld [vmem:[%s2292 + $0x90] sm:$0xf]
      %v2625 = vld [vmem:[%s2292 + $0x94] sm:$0xf]
      %v2626 = vld [vmem:[%s2292 + $0x98] sm:$0x1]
      %v2627 = vld [vmem:[%s2292 + $0x9c] sm:$0xf]
      %v2628 = vld [vmem:[%s2292 + $0xa0] sm:$0xf]
      %v2629 = vld [vmem:[%s2292 + $0xa4] sm:$0x1]
      %v2630 = vld [vmem:[%s2292 + $0xa8] sm:$0xf]
      %v2631 = vld [vmem:[%s2292 + $0xac] sm:$0xf]
      %v2632 = vld [vmem:[%s2292 + $0xb0] sm:$0x1]
      %v2633 = vld [vmem:[%s2292 + $0xb4] sm:$0xf]
      %v2634 = vld [vmem:[%s2292 + $0xb8] sm:$0xf]
      %v2635 = vld [vmem:[%s2292 + $0xbc] sm:$0x1]
      %v2636 = vunpack.c.l.bf16 %v2588
      %v2637 = vunpack.c.l.bf16 %v2589
      %v2638 = vunpack.c.l.bf16 %v2590
      %v2639 = vunpack.c.l.bf16 %v2591
      %v2640 = vunpack.c.l.bf16 %v2592
      %v2641 = vunpack.c.l.bf16 %v2593
      %v2642 = vunpack.c.l.bf16 %v2594
      %v2643 = vunpack.c.l.bf16 %v2595
      %v2644 = vunpack.c.l.bf16 %v2596
      %v2645 = vunpack.c.l.bf16 %v2597
      %v2646 = vunpack.c.l.bf16 %v2598
      %v2647 = vunpack.c.l.bf16 %v2599
      %v2648 = vunpack.c.l.bf16 %v2600
      %v2649 = vunpack.c.l.bf16 %v2601
      %v2650 = vunpack.c.l.bf16 %v2602
      %v2651 = vunpack.c.l.bf16 %v2603
      %v2652 = vunpack.c.l.bf16 %v2604
      %v2653 = vunpack.c.l.bf16 %v2605
      %v2654 = vunpack.c.l.bf16 %v2606
      %v2655 = vunpack.c.l.bf16 %v2607
      %v2656 = vunpack.c.l.bf16 %v2608
      %v2657 = vunpack.c.l.bf16 %v2609
      %v2658 = vunpack.c.l.bf16 %v2610
      %v2659 = vunpack.c.l.bf16 %v2611
      %v2660 = vunpack.c.l.bf16 %v2612
      %v2661 = vunpack.c.l.bf16 %v2613
      %v2662 = vunpack.c.l.bf16 %v2614
      %v2663 = vunpack.c.l.bf16 %v2615
      %v2664 = vunpack.c.l.bf16 %v2616
      %v2665 = vunpack.c.l.bf16 %v2617
      %v2666 = vunpack.c.l.bf16 %v2618
      %v2667 = vunpack.c.l.bf16 %v2619
      %v2668 = vunpack.c.l.bf16 %v2620
      %v2669 = vunpack.c.l.bf16 %v2621
      %v2670 = vunpack.c.l.bf16 %v2622
      %v2671 = vunpack.c.l.bf16 %v2623
      %v2672 = vunpack.c.l.bf16 %v2624
      %v2673 = vunpack.c.l.bf16 %v2625
      %v2674 = vunpack.c.l.bf16 %v2626
      %v2675 = vunpack.c.l.bf16 %v2627
      %v2676 = vunpack.c.l.bf16 %v2628
      %v2677 = vunpack.c.l.bf16 %v2629
      %v2678 = vunpack.c.l.bf16 %v2630
      %v2679 = vunpack.c.l.bf16 %v2631
      %v2680 = vunpack.c.l.bf16 %v2632
      %v2681 = vunpack.c.l.bf16 %v2633
      %v2682 = vunpack.c.l.bf16 %v2634
      %v2683 = vunpack.c.l.bf16 %v2635
      %v2732 = vrot.slane %v2636, 1
      %v2733 = vrot.slane %v2637, 1
      %v2734 = vsel %vm634, %v2732, %v2733
      %v2735 = vrot.slane %v2638, 1
      %v2736 = vsel %vm634, %v2733, %v2735
      %v2737 = vrot.slane %v2639, 1
      %v2738 = vrot.slane %v2640, 1
      %v2739 = vsel %vm634, %v2737, %v2738
      %v2740 = vrot.slane %v2641, 1
      %v2741 = vsel %vm634, %v2738, %v2740
      %v2742 = vrot.slane %v2642, 1
      %v2743 = vrot.slane %v2643, 1
      %v2744 = vsel %vm634, %v2742, %v2743
      %v2745 = vrot.slane %v2644, 1
      %v2746 = vsel %vm634, %v2743, %v2745
      %v2747 = vrot.slane %v2645, 1
      %v2748 = vrot.slane %v2646, 1
      %v2749 = vsel %vm634, %v2747, %v2748
      %v2750 = vrot.slane %v2647, 1
      %v2751 = vsel %vm634, %v2748, %v2750
      %v2752 = vrot.slane %v2648, 1
      %v2753 = vrot.slane %v2649, 1
      %v2754 = vsel %vm634, %v2752, %v2753
      %v2755 = vrot.slane %v2650, 1
      %v2756 = vsel %vm634, %v2753, %v2755
      %v2757 = vrot.slane %v2651, 1
      %v2758 = vrot.slane %v2652, 1
      %v2759 = vsel %vm634, %v2757, %v2758
      %v2760 = vrot.slane %v2653, 1
      %v2761 = vsel %vm634, %v2758, %v2760
      %v2762 = vrot.slane %v2654, 1
      %v2763 = vrot.slane %v2655, 1
      %v2764 = vsel %vm634, %v2762, %v2763
      %v2765 = vrot.slane %v2656, 1
      %v2766 = vsel %vm634, %v2763, %v2765
      %v2767 = vrot.slane %v2657, 1
      %v2768 = vrot.slane %v2658, 1
      %v2769 = vsel %vm634, %v2767, %v2768
      %v2770 = vrot.slane %v2659, 1
      %v2771 = vsel %vm634, %v2768, %v2770
      %v2772 = vrot.slane %v2660, 1
      %v2773 = vrot.slane %v2661, 1
      %v2774 = vsel %vm634, %v2772, %v2773
      %v2775 = vrot.slane %v2662, 1
      %v2776 = vsel %vm634, %v2773, %v2775
      %v2777 = vrot.slane %v2663, 1
      %v2778 = vrot.slane %v2664, 1
      %v2779 = vsel %vm634, %v2777, %v2778
      %v2780 = vrot.slane %v2665, 1
      %v2781 = vsel %vm634, %v2778, %v2780
      %v2782 = vrot.slane %v2666, 1
      %v2783 = vrot.slane %v2667, 1
      %v2784 = vsel %vm634, %v2782, %v2783
      %v2785 = vrot.slane %v2668, 1
      %v2786 = vsel %vm634, %v2783, %v2785
      %v2787 = vrot.slane %v2669, 1
      %v2788 = vrot.slane %v2670, 1
      %v2789 = vsel %vm634, %v2787, %v2788
      %v2790 = vrot.slane %v2671, 1
      %v2791 = vsel %vm634, %v2788, %v2790
      %v2792 = vrot.slane %v2672, 1
      %v2793 = vrot.slane %v2673, 1
      %v2794 = vsel %vm634, %v2792, %v2793
      %v2795 = vrot.slane %v2674, 1
      %v2796 = vsel %vm634, %v2793, %v2795
      %v2797 = vrot.slane %v2675, 1
      %v2798 = vrot.slane %v2676, 1
      %v2799 = vsel %vm634, %v2797, %v2798
      %v2800 = vrot.slane %v2677, 1
      %v2801 = vsel %vm634, %v2798, %v2800
      %v2802 = vrot.slane %v2678, 1
      %v2803 = vrot.slane %v2679, 1
      %v2804 = vsel %vm634, %v2802, %v2803
      %v2805 = vrot.slane %v2680, 1
      %v2806 = vsel %vm634, %v2803, %v2805
      %v2807 = vrot.slane %v2681, 1
      %v2808 = vrot.slane %v2682, 1
      %v2809 = vsel %vm634, %v2807, %v2808
      %v2810 = vrot.slane %v2683, 1
      %v2811 = vsel %vm634, %v2808, %v2810
      %s2812 = scalar_lea.vmem %s1, 7
      %v2813 = vld [vmem:[%s2812] sm:$0x1]
      %v2814 = vunpack.c.l.bf16 %v2813
      %2815 = vset.pattern.permute.xlu0 0
      %2816 = vperm.xlu0 %2815, %v2734
      %v2817 = vpop.permute.xlu0 %2816
      %2819 = vset.pattern.permute.xlu0 0
      %2820 = vperm.xlu0 %2819, %v2736
      %v2821 = vpop.permute.xlu0 %2820
      %2823 = vset.pattern.permute.xlu0 0
      %2824 = vperm.xlu0 %2823, %v2739
      %v2825 = vpop.permute.xlu0 %2824
      %2827 = vset.pattern.permute.xlu0 0
      %2828 = vperm.xlu0 %2827, %v2741
      %v2829 = vpop.permute.xlu0 %2828
      %2831 = vset.pattern.permute.xlu0 0
      %2832 = vperm.xlu0 %2831, %v2744
      %v2833 = vpop.permute.xlu0 %2832
      %2835 = vset.pattern.permute.xlu0 0
      %2836 = vperm.xlu0 %2835, %v2746
      %v2837 = vpop.permute.xlu0 %2836
      %2839 = vset.pattern.permute.xlu0 0
      %2840 = vperm.xlu0 %2839, %v2749
      %v2841 = vpop.permute.xlu0 %2840
      %2843 = vset.pattern.permute.xlu0 0
      %2844 = vperm.xlu0 %2843, %v2751
      %v2845 = vpop.permute.xlu0 %2844
      %2847 = vset.pattern.permute.xlu0 0
      %2848 = vperm.xlu0 %2847, %v2754
      %v2849 = vpop.permute.xlu0 %2848
      %2851 = vset.pattern.permute.xlu0 0
      %2852 = vperm.xlu0 %2851, %v2756
      %v2853 = vpop.permute.xlu0 %2852
      %2855 = vset.pattern.permute.xlu0 0
      %2856 = vperm.xlu0 %2855, %v2759
      %v2857 = vpop.permute.xlu0 %2856
      %2859 = vset.pattern.permute.xlu0 0
      %2860 = vperm.xlu0 %2859, %v2761
      %v2861 = vpop.permute.xlu0 %2860
      %2863 = vset.pattern.permute.xlu0 0
      %2864 = vperm.xlu0 %2863, %v2764
      %v2865 = vpop.permute.xlu0 %2864
      %2867 = vset.pattern.permute.xlu0 0
      %2868 = vperm.xlu0 %2867, %v2766
      %v2869 = vpop.permute.xlu0 %2868
      %2871 = vset.pattern.permute.xlu0 0
      %2872 = vperm.xlu0 %2871, %v2769
      %v2873 = vpop.permute.xlu0 %2872
      %2875 = vset.pattern.permute.xlu0 0
      %2876 = vperm.xlu0 %2875, %v2771
      %v2877 = vpop.permute.xlu0 %2876
      %2879 = vset.pattern.permute.xlu0 0
      %2880 = vperm.xlu0 %2879, %v2774
      %v2881 = vpop.permute.xlu0 %2880
      %2883 = vset.pattern.permute.xlu0 0
      %2884 = vperm.xlu0 %2883, %v2776
      %v2885 = vpop.permute.xlu0 %2884
      %2887 = vset.pattern.permute.xlu0 0
      %2888 = vperm.xlu0 %2887, %v2779
      %v2889 = vpop.permute.xlu0 %2888
      %2891 = vset.pattern.permute.xlu0 0
      %2892 = vperm.xlu0 %2891, %v2781
      %v2893 = vpop.permute.xlu0 %2892
      %2895 = vset.pattern.permute.xlu0 0
      %2896 = vperm.xlu0 %2895, %v2784
      %v2897 = vpop.permute.xlu0 %2896
      %2899 = vset.pattern.permute.xlu0 0
      %2900 = vperm.xlu0 %2899, %v2786
      %v2901 = vpop.permute.xlu0 %2900
      %2903 = vset.pattern.permute.xlu0 0
      %2904 = vperm.xlu0 %2903, %v2789
      %v2905 = vpop.permute.xlu0 %2904
      %2907 = vset.pattern.permute.xlu0 0
      %2908 = vperm.xlu0 %2907, %v2791
      %v2909 = vpop.permute.xlu0 %2908
      %2911 = vset.pattern.permute.xlu0 0
      %2912 = vperm.xlu0 %2911, %v2794
      %v2913 = vpop.permute.xlu0 %2912
      %2915 = vset.pattern.permute.xlu0 0
      %2916 = vperm.xlu0 %2915, %v2796
      %v2917 = vpop.permute.xlu0 %2916
      %2919 = vset.pattern.permute.xlu0 0
      %2920 = vperm.xlu0 %2919, %v2799
      %v2921 = vpop.permute.xlu0 %2920
      %2923 = vset.pattern.permute.xlu0 0
      %2924 = vperm.xlu0 %2923, %v2801
      %v2925 = vpop.permute.xlu0 %2924
      %2927 = vset.pattern.permute.xlu0 0
      %2928 = vperm.xlu0 %2927, %v2804
      %v2929 = vpop.permute.xlu0 %2928
      %2931 = vset.pattern.permute.xlu0 0
      %2932 = vperm.xlu0 %2931, %v2806
      %v2933 = vpop.permute.xlu0 %2932
      %2935 = vset.pattern.permute.xlu0 0
      %2936 = vperm.xlu0 %2935, %v2809
      %v2937 = vpop.permute.xlu0 %2936
      %2939 = vset.pattern.permute.xlu0 0
      %2940 = vperm.xlu0 %2939, %v2811
      %v2941 = vpop.permute.xlu0 %2940
      %v2943 = vlaneseq
      %v2944 = vshrl.u32 %v2943, 7
      %v2945 = vsub.s32 0, %v2944
      %v2946 = vrot.slane %v2814, %v2945
      %v2947 = vmul.f32 %v2817, %v2946
      %v2948 = vmul.f32 %v2821, %v2946
      %v2949 = vmul.f32 %v2825, %v2946
      %v2950 = vmul.f32 %v2829, %v2946
      %v2951 = vmul.f32 %v2833, %v2946
      %v2952 = vmul.f32 %v2837, %v2946
      %v2953 = vmul.f32 %v2841, %v2946
      %v2954 = vmul.f32 %v2845, %v2946
      %v2955 = vmul.f32 %v2849, %v2946
      %v2956 = vmul.f32 %v2853, %v2946
      %v2957 = vmul.f32 %v2857, %v2946
      %v2958 = vmul.f32 %v2861, %v2946
      %v2959 = vmul.f32 %v2865, %v2946
      %v2960 = vmul.f32 %v2869, %v2946
      %v2961 = vmul.f32 %v2873, %v2946
      %v2962 = vmul.f32 %v2877, %v2946
      %v2963 = vmul.f32 %v2881, %v2946
      %v2964 = vmul.f32 %v2885, %v2946
      %v2965 = vmul.f32 %v2889, %v2946
      %v2966 = vmul.f32 %v2893, %v2946
      %v2967 = vmul.f32 %v2897, %v2946
      %v2968 = vmul.f32 %v2901, %v2946
      %v2969 = vmul.f32 %v2905, %v2946
      %v2970 = vmul.f32 %v2909, %v2946
      %v2971 = vmul.f32 %v2913, %v2946
      %v2972 = vmul.f32 %v2917, %v2946
      %v2973 = vmul.f32 %v2921, %v2946
      %v2974 = vmul.f32 %v2925, %v2946
      %v2975 = vmul.f32 %v2929, %v2946
      %v2976 = vmul.f32 %v2933, %v2946
      %v2977 = vmul.f32 %v2937, %v2946
      %v2978 = vmul.f32 %v2941, %v2946
      %v2979 = vadd.f32 %v2556, %v2947
      %v2980 = vadd.f32 %v2557, %v2948
      %v2981 = vadd.f32 %v2558, %v2949
      %v2982 = vadd.f32 %v2559, %v2950
      %v2983 = vadd.f32 %v2560, %v2951
      %v2984 = vadd.f32 %v2561, %v2952
      %v2985 = vadd.f32 %v2562, %v2953
      %v2986 = vadd.f32 %v2563, %v2954
      %v2987 = vadd.f32 %v2564, %v2955
      %v2988 = vadd.f32 %v2565, %v2956
      %v2989 = vadd.f32 %v2566, %v2957
      %v2990 = vadd.f32 %v2567, %v2958
      %v2991 = vadd.f32 %v2568, %v2959
      %v2992 = vadd.f32 %v2569, %v2960
      %v2993 = vadd.f32 %v2570, %v2961
      %v2994 = vadd.f32 %v2571, %v2962
      %v2995 = vadd.f32 %v2572, %v2963
      %v2996 = vadd.f32 %v2573, %v2964
      %v2997 = vadd.f32 %v2574, %v2965
      %v2998 = vadd.f32 %v2575, %v2966
      %v2999 = vadd.f32 %v2576, %v2967
      %v3000 = vadd.f32 %v2577, %v2968
      %v3001 = vadd.f32 %v2578, %v2969
      %v3002 = vadd.f32 %v2579, %v2970
      %v3003 = vadd.f32 %v2580, %v2971
      %v3004 = vadd.f32 %v2581, %v2972
      %v3005 = vadd.f32 %v2582, %v2973
      %v3006 = vadd.f32 %v2583, %v2974
      %v3007 = vadd.f32 %v2584, %v2975
      %v3008 = vadd.f32 %v2585, %v2976
      %v3009 = vadd.f32 %v2586, %v2977
      %v3010 = vadd.f32 %v2587, %v2978
      %v3011 = vld [vmem:[%s2292] sm:$0xe]
      %v3012 = vld [vmem:[%s2292 + $0xc] sm:$0xe]
      %v3013 = vld [vmem:[%s2292 + $0x18] sm:$0xe]
      %v3014 = vld [vmem:[%s2292 + $0x24] sm:$0xe]
      %v3015 = vld [vmem:[%s2292 + $0x30] sm:$0xe]
      %v3016 = vld [vmem:[%s2292 + $0x3c] sm:$0xe]
      %v3017 = vld [vmem:[%s2292 + $0x48] sm:$0xe]
      %v3018 = vld [vmem:[%s2292 + $0x54] sm:$0xe]
      %v3019 = vld [vmem:[%s2292 + $0x60] sm:$0xe]
      %v3020 = vld [vmem:[%s2292 + $0x6c] sm:$0xe]
      %v3021 = vld [vmem:[%s2292 + $0x78] sm:$0xe]
      %v3022 = vld [vmem:[%s2292 + $0x84] sm:$0xe]
      %v3023 = vld [vmem:[%s2292 + $0x90] sm:$0xe]
      %v3024 = vld [vmem:[%s2292 + $0x9c] sm:$0xe]
      %v3025 = vld [vmem:[%s2292 + $0xa8] sm:$0xe]
      %v3026 = vld [vmem:[%s2292 + $0xb4] sm:$0xe]
      %v3027 = vunpack.c.l.bf16 %v3011
      %v3028 = vunpack.c.l.bf16 %v3012
      %v3029 = vunpack.c.l.bf16 %v3013
      %v3030 = vunpack.c.l.bf16 %v3014
      %v3031 = vunpack.c.l.bf16 %v3015
      %v3032 = vunpack.c.l.bf16 %v3016
      %v3033 = vunpack.c.l.bf16 %v3017
      %v3034 = vunpack.c.l.bf16 %v3018
      %v3035 = vunpack.c.l.bf16 %v3019
      %v3036 = vunpack.c.l.bf16 %v3020
      %v3037 = vunpack.c.l.bf16 %v3021
      %v3038 = vunpack.c.l.bf16 %v3022
      %v3039 = vunpack.c.l.bf16 %v3023
      %v3040 = vunpack.c.l.bf16 %v3024
      %v3041 = vunpack.c.l.bf16 %v3025
      %v3042 = vunpack.c.l.bf16 %v3026
      %v3059 = vrot.slane %v3027, 2
      %v3060 = vrot.slane %v2637, 2
      %v3061 = vsel %vm962, %v3059, %v3060
      %v3062 = vrot.slane %v2638, 2
      %v3063 = vsel %vm962, %v3060, %v3062
      %v3064 = vrot.slane %v3028, 2
      %v3065 = vrot.slane %v2640, 2
      %v3066 = vsel %vm962, %v3064, %v3065
      %v3067 = vrot.slane %v2641, 2
      %v3068 = vsel %vm962, %v3065, %v3067
      %v3069 = vrot.slane %v3029, 2
      %v3070 = vrot.slane %v2643, 2
      %v3071 = vsel %vm962, %v3069, %v3070
      %v3072 = vrot.slane %v2644, 2
      %v3073 = vsel %vm962, %v3070, %v3072
      %v3074 = vrot.slane %v3030, 2
      %v3075 = vrot.slane %v2646, 2
      %v3076 = vsel %vm962, %v3074, %v3075
      %v3077 = vrot.slane %v2647, 2
      %v3078 = vsel %vm962, %v3075, %v3077
      %v3079 = vrot.slane %v3031, 2
      %v3080 = vrot.slane %v2649, 2
      %v3081 = vsel %vm962, %v3079, %v3080
      %v3082 = vrot.slane %v2650, 2
      %v3083 = vsel %vm962, %v3080, %v3082
      %v3084 = vrot.slane %v3032, 2
      %v3085 = vrot.slane %v2652, 2
      %v3086 = vsel %vm962, %v3084, %v3085
      %v3087 = vrot.slane %v2653, 2
      %v3088 = vsel %vm962, %v3085, %v3087
      %v3089 = vrot.slane %v3033, 2
      %v3090 = vrot.slane %v2655, 2
      %v3091 = vsel %vm962, %v3089, %v3090
      %v3092 = vrot.slane %v2656, 2
      %v3093 = vsel %vm962, %v3090, %v3092
      %v3094 = vrot.slane %v3034, 2
      %v3095 = vrot.slane %v2658, 2
      %v3096 = vsel %vm962, %v3094, %v3095
      %v3097 = vrot.slane %v2659, 2
      %v3098 = vsel %vm962, %v3095, %v3097
      %v3099 = vrot.slane %v3035, 2
      %v3100 = vrot.slane %v2661, 2
      %v3101 = vsel %vm962, %v3099, %v3100
      %v3102 = vrot.slane %v2662, 2
      %v3103 = vsel %vm962, %v3100, %v3102
      %v3104 = vrot.slane %v3036, 2
      %v3105 = vrot.slane %v2664, 2
      %v3106 = vsel %vm962, %v3104, %v3105
      %v3107 = vrot.slane %v2665, 2
      %v3108 = vsel %vm962, %v3105, %v3107
      %v3109 = vrot.slane %v3037, 2
      %v3110 = vrot.slane %v2667, 2
      %v3111 = vsel %vm962, %v3109, %v3110
      %v3112 = vrot.slane %v2668, 2
      %v3113 = vsel %vm962, %v3110, %v3112
      %v3114 = vrot.slane %v3038, 2
      %v3115 = vrot.slane %v2670, 2
      %v3116 = vsel %vm962, %v3114, %v3115
      %v3117 = vrot.slane %v2671, 2
      %v3118 = vsel %vm962, %v3115, %v3117
      %v3119 = vrot.slane %v3039, 2
      %v3120 = vrot.slane %v2673, 2
      %v3121 = vsel %vm962, %v3119, %v3120
      %v3122 = vrot.slane %v2674, 2
      %v3123 = vsel %vm962, %v3120, %v3122
      %v3124 = vrot.slane %v3040, 2
      %v3125 = vrot.slane %v2676, 2
      %v3126 = vsel %vm962, %v3124, %v3125
      %v3127 = vrot.slane %v2677, 2
      %v3128 = vsel %vm962, %v3125, %v3127
      %v3129 = vrot.slane %v3041, 2
      %v3130 = vrot.slane %v2679, 2
      %v3131 = vsel %vm962, %v3129, %v3130
      %v3132 = vrot.slane %v2680, 2
      %v3133 = vsel %vm962, %v3130, %v3132
      %v3134 = vrot.slane %v3042, 2
      %v3135 = vrot.slane %v2682, 2
      %v3136 = vsel %vm962, %v3134, %v3135
      %v3137 = vrot.slane %v2683, 2
      %v3138 = vsel %vm962, %v3135, %v3137
      %s3139 = scalar_lea.vmem %s1, 8
      %v3140 = vld [vmem:[%s3139] sm:$0x1]
      %v3141 = vunpack.c.l.bf16 %v3140
      %3142 = vset.pattern.permute.xlu0 0
      %3143 = vperm.xlu0 %3142, %v3061
      %v3144 = vpop.permute.xlu0 %3143
      %3146 = vset.pattern.permute.xlu0 0
      %3147 = vperm.xlu0 %3146, %v3063
      %v3148 = vpop.permute.xlu0 %3147
      %3150 = vset.pattern.permute.xlu0 0
      %3151 = vperm.xlu0 %3150, %v3066
      %v3152 = vpop.permute.xlu0 %3151
      %3154 = vset.pattern.permute.xlu0 0
      %3155 = vperm.xlu0 %3154, %v3068
      %v3156 = vpop.permute.xlu0 %3155
      %3158 = vset.pattern.permute.xlu0 0
      %3159 = vperm.xlu0 %3158, %v3071
      %v3160 = vpop.permute.xlu0 %3159
      %3162 = vset.pattern.permute.xlu0 0
      %3163 = vperm.xlu0 %3162, %v3073
      %v3164 = vpop.permute.xlu0 %3163
      %3166 = vset.pattern.permute.xlu0 0
      %3167 = vperm.xlu0 %3166, %v3076
      %v3168 = vpop.permute.xlu0 %3167
      %3170 = vset.pattern.permute.xlu0 0
      %3171 = vperm.xlu0 %3170, %v3078
      %v3172 = vpop.permute.xlu0 %3171
      %3174 = vset.pattern.permute.xlu0 0
      %3175 = vperm.xlu0 %3174, %v3081
      %v3176 = vpop.permute.xlu0 %3175
      %3178 = vset.pattern.permute.xlu0 0
      %3179 = vperm.xlu0 %3178, %v3083
      %v3180 = vpop.permute.xlu0 %3179
      %3182 = vset.pattern.permute.xlu0 0
      %3183 = vperm.xlu0 %3182, %v3086
      %v3184 = vpop.permute.xlu0 %3183
      %3186 = vset.pattern.permute.xlu0 0
      %3187 = vperm.xlu0 %3186, %v3088
      %v3188 = vpop.permute.xlu0 %3187
      %3190 = vset.pattern.permute.xlu0 0
      %3191 = vperm.xlu0 %3190, %v3091
      %v3192 = vpop.permute.xlu0 %3191
      %3194 = vset.pattern.permute.xlu0 0
      %3195 = vperm.xlu0 %3194, %v3093
      %v3196 = vpop.permute.xlu0 %3195
      %3198 = vset.pattern.permute.xlu0 0
      %3199 = vperm.xlu0 %3198, %v3096
      %v3200 = vpop.permute.xlu0 %3199
      %3202 = vset.pattern.permute.xlu0 0
      %3203 = vperm.xlu0 %3202, %v3098
      %v3204 = vpop.permute.xlu0 %3203
      %3206 = vset.pattern.permute.xlu0 0
      %3207 = vperm.xlu0 %3206, %v3101
      %v3208 = vpop.permute.xlu0 %3207
      %3210 = vset.pattern.permute.xlu0 0
      %3211 = vperm.xlu0 %3210, %v3103
      %v3212 = vpop.permute.xlu0 %3211
      %3214 = vset.pattern.permute.xlu0 0
      %3215 = vperm.xlu0 %3214, %v3106
      %v3216 = vpop.permute.xlu0 %3215
      %3218 = vset.pattern.permute.xlu0 0
      %3219 = vperm.xlu0 %3218, %v3108
      %v3220 = vpop.permute.xlu0 %3219
      %3222 = vset.pattern.permute.xlu0 0
      %3223 = vperm.xlu0 %3222, %v3111
      %v3224 = vpop.permute.xlu0 %3223
      %3226 = vset.pattern.permute.xlu0 0
      %3227 = vperm.xlu0 %3226, %v3113
      %v3228 = vpop.permute.xlu0 %3227
      %3230 = vset.pattern.permute.xlu0 0
      %3231 = vperm.xlu0 %3230, %v3116
      %v3232 = vpop.permute.xlu0 %3231
      %3234 = vset.pattern.permute.xlu0 0
      %3235 = vperm.xlu0 %3234, %v3118
      %v3236 = vpop.permute.xlu0 %3235
      %3238 = vset.pattern.permute.xlu0 0
      %3239 = vperm.xlu0 %3238, %v3121
      %v3240 = vpop.permute.xlu0 %3239
      %3242 = vset.pattern.permute.xlu0 0
      %3243 = vperm.xlu0 %3242, %v3123
      %v3244 = vpop.permute.xlu0 %3243
      %3246 = vset.pattern.permute.xlu0 0
      %3247 = vperm.xlu0 %3246, %v3126
      %v3248 = vpop.permute.xlu0 %3247
      %3250 = vset.pattern.permute.xlu0 0
      %3251 = vperm.xlu0 %3250, %v3128
      %v3252 = vpop.permute.xlu0 %3251
      %3254 = vset.pattern.permute.xlu0 0
      %3255 = vperm.xlu0 %3254, %v3131
      %v3256 = vpop.permute.xlu0 %3255
      %3258 = vset.pattern.permute.xlu0 0
      %3259 = vperm.xlu0 %3258, %v3133
      %v3260 = vpop.permute.xlu0 %3259
      %3262 = vset.pattern.permute.xlu0 0
      %3263 = vperm.xlu0 %3262, %v3136
      %v3264 = vpop.permute.xlu0 %3263
      %3266 = vset.pattern.permute.xlu0 0
      %3267 = vperm.xlu0 %3266, %v3138
      %v3268 = vpop.permute.xlu0 %3267
      %v3270 = vlaneseq
      %v3271 = vshrl.u32 %v3270, 7
      %v3272 = vsub.s32 0, %v3271
      %v3273 = vrot.slane %v3141, %v3272
      %v3274 = vmul.f32 %v3144, %v3273
      %v3275 = vmul.f32 %v3148, %v3273
      %v3276 = vmul.f32 %v3152, %v3273
      %v3277 = vmul.f32 %v3156, %v3273
      %v3278 = vmul.f32 %v3160, %v3273
      %v3279 = vmul.f32 %v3164, %v3273
      %v3280 = vmul.f32 %v3168, %v3273
      %v3281 = vmul.f32 %v3172, %v3273
      %v3282 = vmul.f32 %v3176, %v3273
      %v3283 = vmul.f32 %v3180, %v3273
      %v3284 = vmul.f32 %v3184, %v3273
      %v3285 = vmul.f32 %v3188, %v3273
      %v3286 = vmul.f32 %v3192, %v3273
      %v3287 = vmul.f32 %v3196, %v3273
      %v3288 = vmul.f32 %v3200, %v3273
      %v3289 = vmul.f32 %v3204, %v3273
      %v3290 = vmul.f32 %v3208, %v3273
      %v3291 = vmul.f32 %v3212, %v3273
      %v3292 = vmul.f32 %v3216, %v3273
      %v3293 = vmul.f32 %v3220, %v3273
      %v3294 = vmul.f32 %v3224, %v3273
      %v3295 = vmul.f32 %v3228, %v3273
      %v3296 = vmul.f32 %v3232, %v3273
      %v3297 = vmul.f32 %v3236, %v3273
      %v3298 = vmul.f32 %v3240, %v3273
      %v3299 = vmul.f32 %v3244, %v3273
      %v3300 = vmul.f32 %v3248, %v3273
      %v3301 = vmul.f32 %v3252, %v3273
      %v3302 = vmul.f32 %v3256, %v3273
      %v3303 = vmul.f32 %v3260, %v3273
      %v3304 = vmul.f32 %v3264, %v3273
      %v3305 = vmul.f32 %v3268, %v3273
      %v3306 = vadd.f32 %v2979, %v3274
      %v3307 = vadd.f32 %v2980, %v3275
      %v3308 = vadd.f32 %v2981, %v3276
      %v3309 = vadd.f32 %v2982, %v3277
      %v3310 = vadd.f32 %v2983, %v3278
      %v3311 = vadd.f32 %v2984, %v3279
      %v3312 = vadd.f32 %v2985, %v3280
      %v3313 = vadd.f32 %v2986, %v3281
      %v3314 = vadd.f32 %v2987, %v3282
      %v3315 = vadd.f32 %v2988, %v3283
      %v3316 = vadd.f32 %v2989, %v3284
      %v3317 = vadd.f32 %v2990, %v3285
      %v3318 = vadd.f32 %v2991, %v3286
      %v3319 = vadd.f32 %v2992, %v3287
      %v3320 = vadd.f32 %v2993, %v3288
      %v3321 = vadd.f32 %v2994, %v3289
      %v3322 = vadd.f32 %v2995, %v3290
      %v3323 = vadd.f32 %v2996, %v3291
      %v3324 = vadd.f32 %v2997, %v3292
      %v3325 = vadd.f32 %v2998, %v3293
      %v3326 = vadd.f32 %v2999, %v3294
      %v3327 = vadd.f32 %v3000, %v3295
      %v3328 = vadd.f32 %v3001, %v3296
      %v3329 = vadd.f32 %v3002, %v3297
      %v3330 = vadd.f32 %v3003, %v3298
      %v3331 = vadd.f32 %v3004, %v3299
      %v3332 = vadd.f32 %v3005, %v3300
      %v3333 = vadd.f32 %v3006, %v3301
      %v3334 = vadd.f32 %v3007, %v3302
      %v3335 = vadd.f32 %v3008, %v3303
      %v3336 = vadd.f32 %v3009, %v3304
      %v3337 = vadd.f32 %v3010, %v3305
      %s3338 = sadd.s32 %s19, 1
      %s3339 = smul.u32 %s3338, 54
      %s3340 = smul.addr %s3339, 4
      %s3341 = scalar_lea.vmem %s183, %s3340
      %v3342 = vld [vmem:[%s3341] sm:$0xf]
      %v3343 = vld [vmem:[%s3341 + $0x4] sm:$0xf]
      %v3344 = vld [vmem:[%s3341 + $0xc] sm:$0xf]
      %v3345 = vld [vmem:[%s3341 + $0x10] sm:$0xf]
      %v3346 = vld [vmem:[%s3341 + $0x18] sm:$0xf]
      %v3347 = vld [vmem:[%s3341 + $0x1c] sm:$0xf]
      %v3348 = vld [vmem:[%s3341 + $0x24] sm:$0xf]
      %v3349 = vld [vmem:[%s3341 + $0x28] sm:$0xf]
      %v3350 = vld [vmem:[%s3341 + $0x30] sm:$0xf]
      %v3351 = vld [vmem:[%s3341 + $0x34] sm:$0xf]
      %v3352 = vld [vmem:[%s3341 + $0x3c] sm:$0xf]
      %v3353 = vld [vmem:[%s3341 + $0x40] sm:$0xf]
      %v3354 = vld [vmem:[%s3341 + $0x48] sm:$0xf]
      %v3355 = vld [vmem:[%s3341 + $0x4c] sm:$0xf]
      %v3356 = vld [vmem:[%s3341 + $0x54] sm:$0xf]
      %v3357 = vld [vmem:[%s3341 + $0x58] sm:$0xf]
      %v3358 = vld [vmem:[%s3341 + $0x60] sm:$0xf]
      %v3359 = vld [vmem:[%s3341 + $0x64] sm:$0xf]
      %v3360 = vld [vmem:[%s3341 + $0x6c] sm:$0xf]
      %v3361 = vld [vmem:[%s3341 + $0x70] sm:$0xf]
      %v3362 = vld [vmem:[%s3341 + $0x78] sm:$0xf]
      %v3363 = vld [vmem:[%s3341 + $0x7c] sm:$0xf]
      %v3364 = vld [vmem:[%s3341 + $0x84] sm:$0xf]
      %v3365 = vld [vmem:[%s3341 + $0x88] sm:$0xf]
      %v3366 = vld [vmem:[%s3341 + $0x90] sm:$0xf]
      %v3367 = vld [vmem:[%s3341 + $0x94] sm:$0xf]
      %v3368 = vld [vmem:[%s3341 + $0x9c] sm:$0xf]
      %v3369 = vld [vmem:[%s3341 + $0xa0] sm:$0xf]
      %v3370 = vld [vmem:[%s3341 + $0xa8] sm:$0xf]
      %v3371 = vld [vmem:[%s3341 + $0xac] sm:$0xf]
      %v3372 = vld [vmem:[%s3341 + $0xb4] sm:$0xf]
      %v3373 = vld [vmem:[%s3341 + $0xb8] sm:$0xf]
      %v3374 = vunpack.c.l.bf16 %v3342
      %v3375 = vunpack.c.l.bf16 %v3343
      %v3376 = vunpack.c.l.bf16 %v3344
      %v3377 = vunpack.c.l.bf16 %v3345
      %v3378 = vunpack.c.l.bf16 %v3346
      %v3379 = vunpack.c.l.bf16 %v3347
      %v3380 = vunpack.c.l.bf16 %v3348
      %v3381 = vunpack.c.l.bf16 %v3349
      %v3382 = vunpack.c.l.bf16 %v3350
      %v3383 = vunpack.c.l.bf16 %v3351
      %v3384 = vunpack.c.l.bf16 %v3352
      %v3385 = vunpack.c.l.bf16 %v3353
      %v3386 = vunpack.c.l.bf16 %v3354
      %v3387 = vunpack.c.l.bf16 %v3355
      %v3388 = vunpack.c.l.bf16 %v3356
      %v3389 = vunpack.c.l.bf16 %v3357
      %v3390 = vunpack.c.l.bf16 %v3358
      %v3391 = vunpack.c.l.bf16 %v3359
      %v3392 = vunpack.c.l.bf16 %v3360
      %v3393 = vunpack.c.l.bf16 %v3361
      %v3394 = vunpack.c.l.bf16 %v3362
      %v3395 = vunpack.c.l.bf16 %v3363
      %v3396 = vunpack.c.l.bf16 %v3364
      %v3397 = vunpack.c.l.bf16 %v3365
      %v3398 = vunpack.c.l.bf16 %v3366
      %v3399 = vunpack.c.l.bf16 %v3367
      %v3400 = vunpack.c.l.bf16 %v3368
      %v3401 = vunpack.c.l.bf16 %v3369
      %v3402 = vunpack.c.l.bf16 %v3370
      %v3403 = vunpack.c.l.bf16 %v3371
      %v3404 = vunpack.c.l.bf16 %v3372
      %v3405 = vunpack.c.l.bf16 %v3373
      %s3406 = scalar_lea.vmem %s1, 9
      %v3407 = vld [vmem:[%s3406] sm:$0x1]
      %v3408 = vunpack.c.l.bf16 %v3407
      %3410 = vset.pattern.permute.xlu0 0
      %3411 = vperm.xlu0 %3410, %v3374
      %v3412 = vpop.permute.xlu0 %3411
      %3415 = vset.pattern.permute.xlu0 0
      %3416 = vperm.xlu0 %3415, %v3375
      %v3417 = vpop.permute.xlu0 %3416
      %3420 = vset.pattern.permute.xlu0 0
      %3421 = vperm.xlu0 %3420, %v3376
      %v3422 = vpop.permute.xlu0 %3421
      %3425 = vset.pattern.permute.xlu0 0
      %3426 = vperm.xlu0 %3425, %v3377
      %v3427 = vpop.permute.xlu0 %3426
      %3430 = vset.pattern.permute.xlu0 0
      %3431 = vperm.xlu0 %3430, %v3378
      %v3432 = vpop.permute.xlu0 %3431
      %3435 = vset.pattern.permute.xlu0 0
      %3436 = vperm.xlu0 %3435, %v3379
      %v3437 = vpop.permute.xlu0 %3436
      %3440 = vset.pattern.permute.xlu0 0
      %3441 = vperm.xlu0 %3440, %v3380
      %v3442 = vpop.permute.xlu0 %3441
      %3445 = vset.pattern.permute.xlu0 0
      %3446 = vperm.xlu0 %3445, %v3381
      %v3447 = vpop.permute.xlu0 %3446
      %3450 = vset.pattern.permute.xlu0 0
      %3451 = vperm.xlu0 %3450, %v3382
      %v3452 = vpop.permute.xlu0 %3451
      %3455 = vset.pattern.permute.xlu0 0
      %3456 = vperm.xlu0 %3455, %v3383
      %v3457 = vpop.permute.xlu0 %3456
      %3460 = vset.pattern.permute.xlu0 0
      %3461 = vperm.xlu0 %3460, %v3384
      %v3462 = vpop.permute.xlu0 %3461
      %3465 = vset.pattern.permute.xlu0 0
      %3466 = vperm.xlu0 %3465, %v3385
      %v3467 = vpop.permute.xlu0 %3466
      %3470 = vset.pattern.permute.xlu0 0
      %3471 = vperm.xlu0 %3470, %v3386
      %v3472 = vpop.permute.xlu0 %3471
      %3475 = vset.pattern.permute.xlu0 0
      %3476 = vperm.xlu0 %3475, %v3387
      %v3477 = vpop.permute.xlu0 %3476
      %3480 = vset.pattern.permute.xlu0 0
      %3481 = vperm.xlu0 %3480, %v3388
      %v3482 = vpop.permute.xlu0 %3481
      %3485 = vset.pattern.permute.xlu0 0
      %3486 = vperm.xlu0 %3485, %v3389
      %v3487 = vpop.permute.xlu0 %3486
      %3490 = vset.pattern.permute.xlu0 0
      %3491 = vperm.xlu0 %3490, %v3390
      %v3492 = vpop.permute.xlu0 %3491
      %3495 = vset.pattern.permute.xlu0 0
      %3496 = vperm.xlu0 %3495, %v3391
      %v3497 = vpop.permute.xlu0 %3496
      %3500 = vset.pattern.permute.xlu0 0
      %3501 = vperm.xlu0 %3500, %v3392
      %v3502 = vpop.permute.xlu0 %3501
      %3505 = vset.pattern.permute.xlu0 0
      %3506 = vperm.xlu0 %3505, %v3393
      %v3507 = vpop.permute.xlu0 %3506
      %3510 = vset.pattern.permute.xlu0 0
      %3511 = vperm.xlu0 %3510, %v3394
      %v3512 = vpop.permute.xlu0 %3511
      %3515 = vset.pattern.permute.xlu0 0
      %3516 = vperm.xlu0 %3515, %v3395
      %v3517 = vpop.permute.xlu0 %3516
      %3520 = vset.pattern.permute.xlu0 0
      %3521 = vperm.xlu0 %3520, %v3396
      %v3522 = vpop.permute.xlu0 %3521
      %3525 = vset.pattern.permute.xlu0 0
      %3526 = vperm.xlu0 %3525, %v3397
      %v3527 = vpop.permute.xlu0 %3526
      %3530 = vset.pattern.permute.xlu0 0
      %3531 = vperm.xlu0 %3530, %v3398
      %v3532 = vpop.permute.xlu0 %3531
      %3535 = vset.pattern.permute.xlu0 0
      %3536 = vperm.xlu0 %3535, %v3399
      %v3537 = vpop.permute.xlu0 %3536
      %3540 = vset.pattern.permute.xlu0 0
      %3541 = vperm.xlu0 %3540, %v3400
      %v3542 = vpop.permute.xlu0 %3541
      %3545 = vset.pattern.permute.xlu0 0
      %3546 = vperm.xlu0 %3545, %v3401
      %v3547 = vpop.permute.xlu0 %3546
      %3550 = vset.pattern.permute.xlu0 0
      %3551 = vperm.xlu0 %3550, %v3402
      %v3552 = vpop.permute.xlu0 %3551
      %3555 = vset.pattern.permute.xlu0 0
      %3556 = vperm.xlu0 %3555, %v3403
      %v3557 = vpop.permute.xlu0 %3556
      %3560 = vset.pattern.permute.xlu0 0
      %3561 = vperm.xlu0 %3560, %v3404
      %v3562 = vpop.permute.xlu0 %3561
      %3565 = vset.pattern.permute.xlu0 0
      %3566 = vperm.xlu0 %3565, %v3405
      %v3567 = vpop.permute.xlu0 %3566
      %v3569 = vlaneseq
      %v3570 = vshrl.u32 %v3569, 7
      %v3571 = vsub.s32 0, %v3570
      %v3572 = vrot.slane %v3408, %v3571
      %v3573 = vmul.f32 %v3412, %v3572
      %v3574 = vmul.f32 %v3417, %v3572
      %v3575 = vmul.f32 %v3422, %v3572
      %v3576 = vmul.f32 %v3427, %v3572
      %v3577 = vmul.f32 %v3432, %v3572
      %v3578 = vmul.f32 %v3437, %v3572
      %v3579 = vmul.f32 %v3442, %v3572
      %v3580 = vmul.f32 %v3447, %v3572
      %v3581 = vmul.f32 %v3452, %v3572
      %v3582 = vmul.f32 %v3457, %v3572
      %v3583 = vmul.f32 %v3462, %v3572
      %v3584 = vmul.f32 %v3467, %v3572
      %v3585 = vmul.f32 %v3472, %v3572
      %v3586 = vmul.f32 %v3477, %v3572
      %v3587 = vmul.f32 %v3482, %v3572
      %v3588 = vmul.f32 %v3487, %v3572
      %v3589 = vmul.f32 %v3492, %v3572
      %v3590 = vmul.f32 %v3497, %v3572
      %v3591 = vmul.f32 %v3502, %v3572
      %v3592 = vmul.f32 %v3507, %v3572
      %v3593 = vmul.f32 %v3512, %v3572
      %v3594 = vmul.f32 %v3517, %v3572
      %v3595 = vmul.f32 %v3522, %v3572
      %v3596 = vmul.f32 %v3527, %v3572
      %v3597 = vmul.f32 %v3532, %v3572
      %v3598 = vmul.f32 %v3537, %v3572
      %v3599 = vmul.f32 %v3542, %v3572
      %v3600 = vmul.f32 %v3547, %v3572
      %v3601 = vmul.f32 %v3552, %v3572
      %v3602 = vmul.f32 %v3557, %v3572
      %v3603 = vmul.f32 %v3562, %v3572
      %v3604 = vmul.f32 %v3567, %v3572
      %v3605 = vadd.f32 %v3306, %v3573
      %v3606 = vadd.f32 %v3307, %v3574
      %v3607 = vadd.f32 %v3308, %v3575
      %v3608 = vadd.f32 %v3309, %v3576
      %v3609 = vadd.f32 %v3310, %v3577
      %v3610 = vadd.f32 %v3311, %v3578
      %v3611 = vadd.f32 %v3312, %v3579
      %v3612 = vadd.f32 %v3313, %v3580
      %v3613 = vadd.f32 %v3314, %v3581
      %v3614 = vadd.f32 %v3315, %v3582
      %v3615 = vadd.f32 %v3316, %v3583
      %v3616 = vadd.f32 %v3317, %v3584
      %v3617 = vadd.f32 %v3318, %v3585
      %v3618 = vadd.f32 %v3319, %v3586
      %v3619 = vadd.f32 %v3320, %v3587
      %v3620 = vadd.f32 %v3321, %v3588
      %v3621 = vadd.f32 %v3322, %v3589
      %v3622 = vadd.f32 %v3323, %v3590
      %v3623 = vadd.f32 %v3324, %v3591
      %v3624 = vadd.f32 %v3325, %v3592
      %v3625 = vadd.f32 %v3326, %v3593
      %v3626 = vadd.f32 %v3327, %v3594
      %v3627 = vadd.f32 %v3328, %v3595
      %v3628 = vadd.f32 %v3329, %v3596
      %v3629 = vadd.f32 %v3330, %v3597
      %v3630 = vadd.f32 %v3331, %v3598
      %v3631 = vadd.f32 %v3332, %v3599
      %v3632 = vadd.f32 %v3333, %v3600
      %v3633 = vadd.f32 %v3334, %v3601
      %v3634 = vadd.f32 %v3335, %v3602
      %v3635 = vadd.f32 %v3336, %v3603
      %v3636 = vadd.f32 %v3337, %v3604
      %v3637 = vld [vmem:[%s3341] sm:$0xf]
      %v3638 = vld [vmem:[%s3341 + $0x4] sm:$0xf]
      %v3639 = vld [vmem:[%s3341 + $0x8] sm:$0x1]
      %v3640 = vld [vmem:[%s3341 + $0xc] sm:$0xf]
      %v3641 = vld [vmem:[%s3341 + $0x10] sm:$0xf]
      %v3642 = vld [vmem:[%s3341 + $0x14] sm:$0x1]
      %v3643 = vld [vmem:[%s3341 + $0x18] sm:$0xf]
      %v3644 = vld [vmem:[%s3341 + $0x1c] sm:$0xf]
      %v3645 = vld [vmem:[%s3341 + $0x20] sm:$0x1]
      %v3646 = vld [vmem:[%s3341 + $0x24] sm:$0xf]
      %v3647 = vld [vmem:[%s3341 + $0x28] sm:$0xf]
      %v3648 = vld [vmem:[%s3341 + $0x2c] sm:$0x1]
      %v3649 = vld [vmem:[%s3341 + $0x30] sm:$0xf]
      %v3650 = vld [vmem:[%s3341 + $0x34] sm:$0xf]
      %v3651 = vld [vmem:[%s3341 + $0x38] sm:$0x1]
      %v3652 = vld [vmem:[%s3341 + $0x3c] sm:$0xf]
      %v3653 = vld [vmem:[%s3341 + $0x40] sm:$0xf]
      %v3654 = vld [vmem:[%s3341 + $0x44] sm:$0x1]
      %v3655 = vld [vmem:[%s3341 + $0x48] sm:$0xf]
      %v3656 = vld [vmem:[%s3341 + $0x4c] sm:$0xf]
      %v3657 = vld [vmem:[%s3341 + $0x50] sm:$0x1]
      %v3658 = vld [vmem:[%s3341 + $0x54] sm:$0xf]
      %v3659 = vld [vmem:[%s3341 + $0x58] sm:$0xf]
      %v3660 = vld [vmem:[%s3341 + $0x5c] sm:$0x1]
      %v3661 = vld [vmem:[%s3341 + $0x60] sm:$0xf]
      %v3662 = vld [vmem:[%s3341 + $0x64] sm:$0xf]
      %v3663 = vld [vmem:[%s3341 + $0x68] sm:$0x1]
      %v3664 = vld [vmem:[%s3341 + $0x6c] sm:$0xf]
      %v3665 = vld [vmem:[%s3341 + $0x70] sm:$0xf]
      %v3666 = vld [vmem:[%s3341 + $0x74] sm:$0x1]
      %v3667 = vld [vmem:[%s3341 + $0x78] sm:$0xf]
      %v3668 = vld [vmem:[%s3341 + $0x7c] sm:$0xf]
      %v3669 = vld [vmem:[%s3341 + $0x80] sm:$0x1]
      %v3670 = vld [vmem:[%s3341 + $0x84] sm:$0xf]
      %v3671 = vld [vmem:[%s3341 + $0x88] sm:$0xf]
      %v3672 = vld [vmem:[%s3341 + $0x8c] sm:$0x1]
      %v3673 = vld [vmem:[%s3341 + $0x90] sm:$0xf]
      %v3674 = vld [vmem:[%s3341 + $0x94] sm:$0xf]
      %v3675 = vld [vmem:[%s3341 + $0x98] sm:$0x1]
      %v3676 = vld [vmem:[%s3341 + $0x9c] sm:$0xf]
      %v3677 = vld [vmem:[%s3341 + $0xa0] sm:$0xf]
      %v3678 = vld [vmem:[%s3341 + $0xa4] sm:$0x1]
      %v3679 = vld [vmem:[%s3341 + $0xa8] sm:$0xf]
      %v3680 = vld [vmem:[%s3341 + $0xac] sm:$0xf]
      %v3681 = vld [vmem:[%s3341 + $0xb0] sm:$0x1]
      %v3682 = vld [vmem:[%s3341 + $0xb4] sm:$0xf]
      %v3683 = vld [vmem:[%s3341 + $0xb8] sm:$0xf]
      %v3684 = vld [vmem:[%s3341 + $0xbc] sm:$0x1]
      %v3685 = vunpack.c.l.bf16 %v3637
      %v3686 = vunpack.c.l.bf16 %v3638
      %v3687 = vunpack.c.l.bf16 %v3639
      %v3688 = vunpack.c.l.bf16 %v3640
      %v3689 = vunpack.c.l.bf16 %v3641
      %v3690 = vunpack.c.l.bf16 %v3642
      %v3691 = vunpack.c.l.bf16 %v3643
      %v3692 = vunpack.c.l.bf16 %v3644
      %v3693 = vunpack.c.l.bf16 %v3645
      %v3694 = vunpack.c.l.bf16 %v3646
      %v3695 = vunpack.c.l.bf16 %v3647
      %v3696 = vunpack.c.l.bf16 %v3648
      %v3697 = vunpack.c.l.bf16 %v3649
      %v3698 = vunpack.c.l.bf16 %v3650
      %v3699 = vunpack.c.l.bf16 %v3651
      %v3700 = vunpack.c.l.bf16 %v3652
      %v3701 = vunpack.c.l.bf16 %v3653
      %v3702 = vunpack.c.l.bf16 %v3654
      %v3703 = vunpack.c.l.bf16 %v3655
      %v3704 = vunpack.c.l.bf16 %v3656
      %v3705 = vunpack.c.l.bf16 %v3657
      %v3706 = vunpack.c.l.bf16 %v3658
      %v3707 = vunpack.c.l.bf16 %v3659
      %v3708 = vunpack.c.l.bf16 %v3660
      %v3709 = vunpack.c.l.bf16 %v3661
      %v3710 = vunpack.c.l.bf16 %v3662
      %v3711 = vunpack.c.l.bf16 %v3663
      %v3712 = vunpack.c.l.bf16 %v3664
      %v3713 = vunpack.c.l.bf16 %v3665
      %v3714 = vunpack.c.l.bf16 %v3666
      %v3715 = vunpack.c.l.bf16 %v3667
      %v3716 = vunpack.c.l.bf16 %v3668
      %v3717 = vunpack.c.l.bf16 %v3669
      %v3718 = vunpack.c.l.bf16 %v3670
      %v3719 = vunpack.c.l.bf16 %v3671
      %v3720 = vunpack.c.l.bf16 %v3672
      %v3721 = vunpack.c.l.bf16 %v3673
      %v3722 = vunpack.c.l.bf16 %v3674
      %v3723 = vunpack.c.l.bf16 %v3675
      %v3724 = vunpack.c.l.bf16 %v3676
      %v3725 = vunpack.c.l.bf16 %v3677
      %v3726 = vunpack.c.l.bf16 %v3678
      %v3727 = vunpack.c.l.bf16 %v3679
      %v3728 = vunpack.c.l.bf16 %v3680
      %v3729 = vunpack.c.l.bf16 %v3681
      %v3730 = vunpack.c.l.bf16 %v3682
      %v3731 = vunpack.c.l.bf16 %v3683
      %v3732 = vunpack.c.l.bf16 %v3684
      %v3781 = vrot.slane %v3685, 1
      %v3782 = vrot.slane %v3686, 1
      %v3783 = vsel %vm634, %v3781, %v3782
      %v3784 = vrot.slane %v3687, 1
      %v3785 = vsel %vm634, %v3782, %v3784
      %v3786 = vrot.slane %v3688, 1
      %v3787 = vrot.slane %v3689, 1
      %v3788 = vsel %vm634, %v3786, %v3787
      %v3789 = vrot.slane %v3690, 1
      %v3790 = vsel %vm634, %v3787, %v3789
      %v3791 = vrot.slane %v3691, 1
      %v3792 = vrot.slane %v3692, 1
      %v3793 = vsel %vm634, %v3791, %v3792
      %v3794 = vrot.slane %v3693, 1
      %v3795 = vsel %vm634, %v3792, %v3794
      %v3796 = vrot.slane %v3694, 1
      %v3797 = vrot.slane %v3695, 1
      %v3798 = vsel %vm634, %v3796, %v3797
      %v3799 = vrot.slane %v3696, 1
      %v3800 = vsel %vm634, %v3797, %v3799
      %v3801 = vrot.slane %v3697, 1
      %v3802 = vrot.slane %v3698, 1
      %v3803 = vsel %vm634, %v3801, %v3802
      %v3804 = vrot.slane %v3699, 1
      %v3805 = vsel %vm634, %v3802, %v3804
      %v3806 = vrot.slane %v3700, 1
      %v3807 = vrot.slane %v3701, 1
      %v3808 = vsel %vm634, %v3806, %v3807
      %v3809 = vrot.slane %v3702, 1
      %v3810 = vsel %vm634, %v3807, %v3809
      %v3811 = vrot.slane %v3703, 1
      %v3812 = vrot.slane %v3704, 1
      %v3813 = vsel %vm634, %v3811, %v3812
      %v3814 = vrot.slane %v3705, 1
      %v3815 = vsel %vm634, %v3812, %v3814
      %v3816 = vrot.slane %v3706, 1
      %v3817 = vrot.slane %v3707, 1
      %v3818 = vsel %vm634, %v3816, %v3817
      %v3819 = vrot.slane %v3708, 1
      %v3820 = vsel %vm634, %v3817, %v3819
      %v3821 = vrot.slane %v3709, 1
      %v3822 = vrot.slane %v3710, 1
      %v3823 = vsel %vm634, %v3821, %v3822
      %v3824 = vrot.slane %v3711, 1
      %v3825 = vsel %vm634, %v3822, %v3824
      %v3826 = vrot.slane %v3712, 1
      %v3827 = vrot.slane %v3713, 1
      %v3828 = vsel %vm634, %v3826, %v3827
      %v3829 = vrot.slane %v3714, 1
      %v3830 = vsel %vm634, %v3827, %v3829
      %v3831 = vrot.slane %v3715, 1
      %v3832 = vrot.slane %v3716, 1
      %v3833 = vsel %vm634, %v3831, %v3832
      %v3834 = vrot.slane %v3717, 1
      %v3835 = vsel %vm634, %v3832, %v3834
      %v3836 = vrot.slane %v3718, 1
      %v3837 = vrot.slane %v3719, 1
      %v3838 = vsel %vm634, %v3836, %v3837
      %v3839 = vrot.slane %v3720, 1
      %v3840 = vsel %vm634, %v3837, %v3839
      %v3841 = vrot.slane %v3721, 1
      %v3842 = vrot.slane %v3722, 1
      %v3843 = vsel %vm634, %v3841, %v3842
      %v3844 = vrot.slane %v3723, 1
      %v3845 = vsel %vm634, %v3842, %v3844
      %v3846 = vrot.slane %v3724, 1
      %v3847 = vrot.slane %v3725, 1
      %v3848 = vsel %vm634, %v3846, %v3847
      %v3849 = vrot.slane %v3726, 1
      %v3850 = vsel %vm634, %v3847, %v3849
      %v3851 = vrot.slane %v3727, 1
      %v3852 = vrot.slane %v3728, 1
      %v3853 = vsel %vm634, %v3851, %v3852
      %v3854 = vrot.slane %v3729, 1
      %v3855 = vsel %vm634, %v3852, %v3854
      %v3856 = vrot.slane %v3730, 1
      %v3857 = vrot.slane %v3731, 1
      %v3858 = vsel %vm634, %v3856, %v3857
      %v3859 = vrot.slane %v3732, 1
      %v3860 = vsel %vm634, %v3857, %v3859
      %s3861 = scalar_lea.vmem %s1, 10
      %v3862 = vld [vmem:[%s3861] sm:$0x1]
      %v3863 = vunpack.c.l.bf16 %v3862
      %3864 = vset.pattern.permute.xlu0 0
      %3865 = vperm.xlu0 %3864, %v3783
      %v3866 = vpop.permute.xlu0 %3865
      %3868 = vset.pattern.permute.xlu0 0
      %3869 = vperm.xlu0 %3868, %v3785
      %v3870 = vpop.permute.xlu0 %3869
      %3872 = vset.pattern.permute.xlu0 0
      %3873 = vperm.xlu0 %3872, %v3788
      %v3874 = vpop.permute.xlu0 %3873
      %3876 = vset.pattern.permute.xlu0 0
      %3877 = vperm.xlu0 %3876, %v3790
      %v3878 = vpop.permute.xlu0 %3877
      %3880 = vset.pattern.permute.xlu0 0
      %3881 = vperm.xlu0 %3880, %v3793
      %v3882 = vpop.permute.xlu0 %3881
      %3884 = vset.pattern.permute.xlu0 0
      %3885 = vperm.xlu0 %3884, %v3795
      %v3886 = vpop.permute.xlu0 %3885
      %3888 = vset.pattern.permute.xlu0 0
      %3889 = vperm.xlu0 %3888, %v3798
      %v3890 = vpop.permute.xlu0 %3889
      %3892 = vset.pattern.permute.xlu0 0
      %3893 = vperm.xlu0 %3892, %v3800
      %v3894 = vpop.permute.xlu0 %3893
      %3896 = vset.pattern.permute.xlu0 0
      %3897 = vperm.xlu0 %3896, %v3803
      %v3898 = vpop.permute.xlu0 %3897
      %3900 = vset.pattern.permute.xlu0 0
      %3901 = vperm.xlu0 %3900, %v3805
      %v3902 = vpop.permute.xlu0 %3901
      %3904 = vset.pattern.permute.xlu0 0
      %3905 = vperm.xlu0 %3904, %v3808
      %v3906 = vpop.permute.xlu0 %3905
      %3908 = vset.pattern.permute.xlu0 0
      %3909 = vperm.xlu0 %3908, %v3810
      %v3910 = vpop.permute.xlu0 %3909
      %3912 = vset.pattern.permute.xlu0 0
      %3913 = vperm.xlu0 %3912, %v3813
      %v3914 = vpop.permute.xlu0 %3913
      %3916 = vset.pattern.permute.xlu0 0
      %3917 = vperm.xlu0 %3916, %v3815
      %v3918 = vpop.permute.xlu0 %3917
      %3920 = vset.pattern.permute.xlu0 0
      %3921 = vperm.xlu0 %3920, %v3818
      %v3922 = vpop.permute.xlu0 %3921
      %3924 = vset.pattern.permute.xlu0 0
      %3925 = vperm.xlu0 %3924, %v3820
      %v3926 = vpop.permute.xlu0 %3925
      %3928 = vset.pattern.permute.xlu0 0
      %3929 = vperm.xlu0 %3928, %v3823
      %v3930 = vpop.permute.xlu0 %3929
      %3932 = vset.pattern.permute.xlu0 0
      %3933 = vperm.xlu0 %3932, %v3825
      %v3934 = vpop.permute.xlu0 %3933
      %3936 = vset.pattern.permute.xlu0 0
      %3937 = vperm.xlu0 %3936, %v3828
      %v3938 = vpop.permute.xlu0 %3937
      %3940 = vset.pattern.permute.xlu0 0
      %3941 = vperm.xlu0 %3940, %v3830
      %v3942 = vpop.permute.xlu0 %3941
      %3944 = vset.pattern.permute.xlu0 0
      %3945 = vperm.xlu0 %3944, %v3833
      %v3946 = vpop.permute.xlu0 %3945
      %3948 = vset.pattern.permute.xlu0 0
      %3949 = vperm.xlu0 %3948, %v3835
      %v3950 = vpop.permute.xlu0 %3949
      %3952 = vset.pattern.permute.xlu0 0
      %3953 = vperm.xlu0 %3952, %v3838
      %v3954 = vpop.permute.xlu0 %3953
      %3956 = vset.pattern.permute.xlu0 0
      %3957 = vperm.xlu0 %3956, %v3840
      %v3958 = vpop.permute.xlu0 %3957
      %3960 = vset.pattern.permute.xlu0 0
      %3961 = vperm.xlu0 %3960, %v3843
      %v3962 = vpop.permute.xlu0 %3961
      %3964 = vset.pattern.permute.xlu0 0
      %3965 = vperm.xlu0 %3964, %v3845
      %v3966 = vpop.permute.xlu0 %3965
      %3968 = vset.pattern.permute.xlu0 0
      %3969 = vperm.xlu0 %3968, %v3848
      %v3970 = vpop.permute.xlu0 %3969
      %3972 = vset.pattern.permute.xlu0 0
      %3973 = vperm.xlu0 %3972, %v3850
      %v3974 = vpop.permute.xlu0 %3973
      %3976 = vset.pattern.permute.xlu0 0
      %3977 = vperm.xlu0 %3976, %v3853
      %v3978 = vpop.permute.xlu0 %3977
      %3980 = vset.pattern.permute.xlu0 0
      %3981 = vperm.xlu0 %3980, %v3855
      %v3982 = vpop.permute.xlu0 %3981
      %3984 = vset.pattern.permute.xlu0 0
      %3985 = vperm.xlu0 %3984, %v3858
      %v3986 = vpop.permute.xlu0 %3985
      %3988 = vset.pattern.permute.xlu0 0
      %3989 = vperm.xlu0 %3988, %v3860
      %v3990 = vpop.permute.xlu0 %3989
      %v3992 = vlaneseq
      %v3993 = vshrl.u32 %v3992, 7
      %v3994 = vsub.s32 0, %v3993
      %v3995 = vrot.slane %v3863, %v3994
      %v3996 = vmul.f32 %v3866, %v3995
      %v3997 = vmul.f32 %v3870, %v3995
      %v3998 = vmul.f32 %v3874, %v3995
      %v3999 = vmul.f32 %v3878, %v3995
      %v4000 = vmul.f32 %v3882, %v3995
      %v4001 = vmul.f32 %v3886, %v3995
      %v4002 = vmul.f32 %v3890, %v3995
      %v4003 = vmul.f32 %v3894, %v3995
      %v4004 = vmul.f32 %v3898, %v3995
      %v4005 = vmul.f32 %v3902, %v3995
      %v4006 = vmul.f32 %v3906, %v3995
      %v4007 = vmul.f32 %v3910, %v3995
      %v4008 = vmul.f32 %v3914, %v3995
      %v4009 = vmul.f32 %v3918, %v3995
      %v4010 = vmul.f32 %v3922, %v3995
      %v4011 = vmul.f32 %v3926, %v3995
      %v4012 = vmul.f32 %v3930, %v3995
      %v4013 = vmul.f32 %v3934, %v3995
      %v4014 = vmul.f32 %v3938, %v3995
      %v4015 = vmul.f32 %v3942, %v3995
      %v4016 = vmul.f32 %v3946, %v3995
      %v4017 = vmul.f32 %v3950, %v3995
      %v4018 = vmul.f32 %v3954, %v3995
      %v4019 = vmul.f32 %v3958, %v3995
      %v4020 = vmul.f32 %v3962, %v3995
      %v4021 = vmul.f32 %v3966, %v3995
      %v4022 = vmul.f32 %v3970, %v3995
      %v4023 = vmul.f32 %v3974, %v3995
      %v4024 = vmul.f32 %v3978, %v3995
      %v4025 = vmul.f32 %v3982, %v3995
      %v4026 = vmul.f32 %v3986, %v3995
      %v4027 = vmul.f32 %v3990, %v3995
      %v4028 = vadd.f32 %v3605, %v3996
      %v4029 = vadd.f32 %v3606, %v3997
      %v4030 = vadd.f32 %v3607, %v3998
      %v4031 = vadd.f32 %v3608, %v3999
      %v4032 = vadd.f32 %v3609, %v4000
      %v4033 = vadd.f32 %v3610, %v4001
      %v4034 = vadd.f32 %v3611, %v4002
      %v4035 = vadd.f32 %v3612, %v4003
      %v4036 = vadd.f32 %v3613, %v4004
      %v4037 = vadd.f32 %v3614, %v4005
      %v4038 = vadd.f32 %v3615, %v4006
      %v4039 = vadd.f32 %v3616, %v4007
      %v4040 = vadd.f32 %v3617, %v4008
      %v4041 = vadd.f32 %v3618, %v4009
      %v4042 = vadd.f32 %v3619, %v4010
      %v4043 = vadd.f32 %v3620, %v4011
      %v4044 = vadd.f32 %v3621, %v4012
      %v4045 = vadd.f32 %v3622, %v4013
      %v4046 = vadd.f32 %v3623, %v4014
      %v4047 = vadd.f32 %v3624, %v4015
      %v4048 = vadd.f32 %v3625, %v4016
      %v4049 = vadd.f32 %v3626, %v4017
      %v4050 = vadd.f32 %v3627, %v4018
      %v4051 = vadd.f32 %v3628, %v4019
      %v4052 = vadd.f32 %v3629, %v4020
      %v4053 = vadd.f32 %v3630, %v4021
      %v4054 = vadd.f32 %v3631, %v4022
      %v4055 = vadd.f32 %v3632, %v4023
      %v4056 = vadd.f32 %v3633, %v4024
      %v4057 = vadd.f32 %v3634, %v4025
      %v4058 = vadd.f32 %v3635, %v4026
      %v4059 = vadd.f32 %v3636, %v4027
      %v4060 = vld [vmem:[%s3341] sm:$0xe]
      %v4061 = vld [vmem:[%s3341 + $0xc] sm:$0xe]
      %v4062 = vld [vmem:[%s3341 + $0x18] sm:$0xe]
      %v4063 = vld [vmem:[%s3341 + $0x24] sm:$0xe]
      %v4064 = vld [vmem:[%s3341 + $0x30] sm:$0xe]
      %v4065 = vld [vmem:[%s3341 + $0x3c] sm:$0xe]
      %v4066 = vld [vmem:[%s3341 + $0x48] sm:$0xe]
      %v4067 = vld [vmem:[%s3341 + $0x54] sm:$0xe]
      %v4068 = vld [vmem:[%s3341 + $0x60] sm:$0xe]
      %v4069 = vld [vmem:[%s3341 + $0x6c] sm:$0xe]
      %v4070 = vld [vmem:[%s3341 + $0x78] sm:$0xe]
      %v4071 = vld [vmem:[%s3341 + $0x84] sm:$0xe]
      %v4072 = vld [vmem:[%s3341 + $0x90] sm:$0xe]
      %v4073 = vld [vmem:[%s3341 + $0x9c] sm:$0xe]
      %v4074 = vld [vmem:[%s3341 + $0xa8] sm:$0xe]
      %v4075 = vld [vmem:[%s3341 + $0xb4] sm:$0xe]
      %v4076 = vunpack.c.l.bf16 %v4060
      %v4077 = vunpack.c.l.bf16 %v4061
      %v4078 = vunpack.c.l.bf16 %v4062
      %v4079 = vunpack.c.l.bf16 %v4063
      %v4080 = vunpack.c.l.bf16 %v4064
      %v4081 = vunpack.c.l.bf16 %v4065
      %v4082 = vunpack.c.l.bf16 %v4066
      %v4083 = vunpack.c.l.bf16 %v4067
      %v4084 = vunpack.c.l.bf16 %v4068
      %v4085 = vunpack.c.l.bf16 %v4069
      %v4086 = vunpack.c.l.bf16 %v4070
      %v4087 = vunpack.c.l.bf16 %v4071
      %v4088 = vunpack.c.l.bf16 %v4072
      %v4089 = vunpack.c.l.bf16 %v4073
      %v4090 = vunpack.c.l.bf16 %v4074
      %v4091 = vunpack.c.l.bf16 %v4075
      %v4108 = vrot.slane %v4076, 2
      %v4109 = vrot.slane %v3686, 2
      %v4110 = vsel %vm962, %v4108, %v4109
      %v4111 = vrot.slane %v3687, 2
      %v4112 = vsel %vm962, %v4109, %v4111
      %v4113 = vrot.slane %v4077, 2
      %v4114 = vrot.slane %v3689, 2
      %v4115 = vsel %vm962, %v4113, %v4114
      %v4116 = vrot.slane %v3690, 2
      %v4117 = vsel %vm962, %v4114, %v4116
      %v4118 = vrot.slane %v4078, 2
      %v4119 = vrot.slane %v3692, 2
      %v4120 = vsel %vm962, %v4118, %v4119
      %v4121 = vrot.slane %v3693, 2
      %v4122 = vsel %vm962, %v4119, %v4121
      %v4123 = vrot.slane %v4079, 2
      %v4124 = vrot.slane %v3695, 2
      %v4125 = vsel %vm962, %v4123, %v4124
      %v4126 = vrot.slane %v3696, 2
      %v4127 = vsel %vm962, %v4124, %v4126
      %v4128 = vrot.slane %v4080, 2
      %v4129 = vrot.slane %v3698, 2
      %v4130 = vsel %vm962, %v4128, %v4129
      %v4131 = vrot.slane %v3699, 2
      %v4132 = vsel %vm962, %v4129, %v4131
      %v4133 = vrot.slane %v4081, 2
      %v4134 = vrot.slane %v3701, 2
      %v4135 = vsel %vm962, %v4133, %v4134
      %v4136 = vrot.slane %v3702, 2
      %v4137 = vsel %vm962, %v4134, %v4136
      %v4138 = vrot.slane %v4082, 2
      %v4139 = vrot.slane %v3704, 2
      %v4140 = vsel %vm962, %v4138, %v4139
      %v4141 = vrot.slane %v3705, 2
      %v4142 = vsel %vm962, %v4139, %v4141
      %v4143 = vrot.slane %v4083, 2
      %v4144 = vrot.slane %v3707, 2
      %v4145 = vsel %vm962, %v4143, %v4144
      %v4146 = vrot.slane %v3708, 2
      %v4147 = vsel %vm962, %v4144, %v4146
      %v4148 = vrot.slane %v4084, 2
      %v4149 = vrot.slane %v3710, 2
      %v4150 = vsel %vm962, %v4148, %v4149
      %v4151 = vrot.slane %v3711, 2
      %v4152 = vsel %vm962, %v4149, %v4151
      %v4153 = vrot.slane %v4085, 2
      %v4154 = vrot.slane %v3713, 2
      %v4155 = vsel %vm962, %v4153, %v4154
      %v4156 = vrot.slane %v3714, 2
      %v4157 = vsel %vm962, %v4154, %v4156
      %v4158 = vrot.slane %v4086, 2
      %v4159 = vrot.slane %v3716, 2
      %v4160 = vsel %vm962, %v4158, %v4159
      %v4161 = vrot.slane %v3717, 2
      %v4162 = vsel %vm962, %v4159, %v4161
      %v4163 = vrot.slane %v4087, 2
      %v4164 = vrot.slane %v3719, 2
      %v4165 = vsel %vm962, %v4163, %v4164
      %v4166 = vrot.slane %v3720, 2
      %v4167 = vsel %vm962, %v4164, %v4166
      %v4168 = vrot.slane %v4088, 2
      %v4169 = vrot.slane %v3722, 2
      %v4170 = vsel %vm962, %v4168, %v4169
      %v4171 = vrot.slane %v3723, 2
      %v4172 = vsel %vm962, %v4169, %v4171
      %v4173 = vrot.slane %v4089, 2
      %v4174 = vrot.slane %v3725, 2
      %v4175 = vsel %vm962, %v4173, %v4174
      %v4176 = vrot.slane %v3726, 2
      %v4177 = vsel %vm962, %v4174, %v4176
      %v4178 = vrot.slane %v4090, 2
      %v4179 = vrot.slane %v3728, 2
      %v4180 = vsel %vm962, %v4178, %v4179
      %v4181 = vrot.slane %v3729, 2
      %v4182 = vsel %vm962, %v4179, %v4181
      %v4183 = vrot.slane %v4091, 2
      %v4184 = vrot.slane %v3731, 2
      %v4185 = vsel %vm962, %v4183, %v4184
      %v4186 = vrot.slane %v3732, 2
      %v4187 = vsel %vm962, %v4184, %v4186
      %s4188 = scalar_lea.vmem %s1, 11
      %v4189 = vld [vmem:[%s4188] sm:$0x1]
      %v4190 = vunpack.c.l.bf16 %v4189
      %4191 = vset.pattern.permute.xlu0 0
      %4192 = vperm.xlu0 %4191, %v4110
      %v4193 = vpop.permute.xlu0 %4192
      %4195 = vset.pattern.permute.xlu0 0
      %4196 = vperm.xlu0 %4195, %v4112
      %v4197 = vpop.permute.xlu0 %4196
      %4199 = vset.pattern.permute.xlu0 0
      %4200 = vperm.xlu0 %4199, %v4115
      %v4201 = vpop.permute.xlu0 %4200
      %4203 = vset.pattern.permute.xlu0 0
      %4204 = vperm.xlu0 %4203, %v4117
      %v4205 = vpop.permute.xlu0 %4204
      %4207 = vset.pattern.permute.xlu0 0
      %4208 = vperm.xlu0 %4207, %v4120
      %v4209 = vpop.permute.xlu0 %4208
      %4211 = vset.pattern.permute.xlu0 0
      %4212 = vperm.xlu0 %4211, %v4122
      %v4213 = vpop.permute.xlu0 %4212
      %4215 = vset.pattern.permute.xlu0 0
      %4216 = vperm.xlu0 %4215, %v4125
      %v4217 = vpop.permute.xlu0 %4216
      %4219 = vset.pattern.permute.xlu0 0
      %4220 = vperm.xlu0 %4219, %v4127
      %v4221 = vpop.permute.xlu0 %4220
      %4223 = vset.pattern.permute.xlu0 0
      %4224 = vperm.xlu0 %4223, %v4130
      %v4225 = vpop.permute.xlu0 %4224
      %4227 = vset.pattern.permute.xlu0 0
      %4228 = vperm.xlu0 %4227, %v4132
      %v4229 = vpop.permute.xlu0 %4228
      %4231 = vset.pattern.permute.xlu0 0
      %4232 = vperm.xlu0 %4231, %v4135
      %v4233 = vpop.permute.xlu0 %4232
      %4235 = vset.pattern.permute.xlu0 0
      %4236 = vperm.xlu0 %4235, %v4137
      %v4237 = vpop.permute.xlu0 %4236
      %4239 = vset.pattern.permute.xlu0 0
      %4240 = vperm.xlu0 %4239, %v4140
      %v4241 = vpop.permute.xlu0 %4240
      %4243 = vset.pattern.permute.xlu0 0
      %4244 = vperm.xlu0 %4243, %v4142
      %v4245 = vpop.permute.xlu0 %4244
      %4247 = vset.pattern.permute.xlu0 0
      %4248 = vperm.xlu0 %4247, %v4145
      %v4249 = vpop.permute.xlu0 %4248
      %4251 = vset.pattern.permute.xlu0 0
      %4252 = vperm.xlu0 %4251, %v4147
      %v4253 = vpop.permute.xlu0 %4252
      %4255 = vset.pattern.permute.xlu0 0
      %4256 = vperm.xlu0 %4255, %v4150
      %v4257 = vpop.permute.xlu0 %4256
      %4259 = vset.pattern.permute.xlu0 0
      %4260 = vperm.xlu0 %4259, %v4152
      %v4261 = vpop.permute.xlu0 %4260
      %4263 = vset.pattern.permute.xlu0 0
      %4264 = vperm.xlu0 %4263, %v4155
      %v4265 = vpop.permute.xlu0 %4264
      %4267 = vset.pattern.permute.xlu0 0
      %4268 = vperm.xlu0 %4267, %v4157
      %v4269 = vpop.permute.xlu0 %4268
      %4271 = vset.pattern.permute.xlu0 0
      %4272 = vperm.xlu0 %4271, %v4160
      %v4273 = vpop.permute.xlu0 %4272
      %4275 = vset.pattern.permute.xlu0 0
      %4276 = vperm.xlu0 %4275, %v4162
      %v4277 = vpop.permute.xlu0 %4276
      %4279 = vset.pattern.permute.xlu0 0
      %4280 = vperm.xlu0 %4279, %v4165
      %v4281 = vpop.permute.xlu0 %4280
      %4283 = vset.pattern.permute.xlu0 0
      %4284 = vperm.xlu0 %4283, %v4167
      %v4285 = vpop.permute.xlu0 %4284
      %4287 = vset.pattern.permute.xlu0 0
      %4288 = vperm.xlu0 %4287, %v4170
      %v4289 = vpop.permute.xlu0 %4288
      %4291 = vset.pattern.permute.xlu0 0
      %4292 = vperm.xlu0 %4291, %v4172
      %v4293 = vpop.permute.xlu0 %4292
      %4295 = vset.pattern.permute.xlu0 0
      %4296 = vperm.xlu0 %4295, %v4175
      %v4297 = vpop.permute.xlu0 %4296
      %4299 = vset.pattern.permute.xlu0 0
      %4300 = vperm.xlu0 %4299, %v4177
      %v4301 = vpop.permute.xlu0 %4300
      %4303 = vset.pattern.permute.xlu0 0
      %4304 = vperm.xlu0 %4303, %v4180
      %v4305 = vpop.permute.xlu0 %4304
      %4307 = vset.pattern.permute.xlu0 0
      %4308 = vperm.xlu0 %4307, %v4182
      %v4309 = vpop.permute.xlu0 %4308
      %4311 = vset.pattern.permute.xlu0 0
      %4312 = vperm.xlu0 %4311, %v4185
      %v4313 = vpop.permute.xlu0 %4312
      %4315 = vset.pattern.permute.xlu0 0
      %4316 = vperm.xlu0 %4315, %v4187
      %v4317 = vpop.permute.xlu0 %4316
      %v4319 = vlaneseq
      %v4320 = vshrl.u32 %v4319, 7
      %v4321 = vsub.s32 0, %v4320
      %v4322 = vrot.slane %v4190, %v4321
      %v4323 = vmul.f32 %v4193, %v4322
      %v4324 = vmul.f32 %v4197, %v4322
      %v4325 = vmul.f32 %v4201, %v4322
      %v4326 = vmul.f32 %v4205, %v4322
      %v4327 = vmul.f32 %v4209, %v4322
      %v4328 = vmul.f32 %v4213, %v4322
      %v4329 = vmul.f32 %v4217, %v4322
      %v4330 = vmul.f32 %v4221, %v4322
      %v4331 = vmul.f32 %v4225, %v4322
      %v4332 = vmul.f32 %v4229, %v4322
      %v4333 = vmul.f32 %v4233, %v4322
      %v4334 = vmul.f32 %v4237, %v4322
      %v4335 = vmul.f32 %v4241, %v4322
      %v4336 = vmul.f32 %v4245, %v4322
      %v4337 = vmul.f32 %v4249, %v4322
      %v4338 = vmul.f32 %v4253, %v4322
      %v4339 = vmul.f32 %v4257, %v4322
      %v4340 = vmul.f32 %v4261, %v4322
      %v4341 = vmul.f32 %v4265, %v4322
      %v4342 = vmul.f32 %v4269, %v4322
      %v4343 = vmul.f32 %v4273, %v4322
      %v4344 = vmul.f32 %v4277, %v4322
      %v4345 = vmul.f32 %v4281, %v4322
      %v4346 = vmul.f32 %v4285, %v4322
      %v4347 = vmul.f32 %v4289, %v4322
      %v4348 = vmul.f32 %v4293, %v4322
      %v4349 = vmul.f32 %v4297, %v4322
      %v4350 = vmul.f32 %v4301, %v4322
      %v4351 = vmul.f32 %v4305, %v4322
      %v4352 = vmul.f32 %v4309, %v4322
      %v4353 = vmul.f32 %v4313, %v4322
      %v4354 = vmul.f32 %v4317, %v4322
      %v4355 = vadd.f32 %v4028, %v4323
      %v4356 = vadd.f32 %v4029, %v4324
      %v4357 = vadd.f32 %v4030, %v4325
      %v4358 = vadd.f32 %v4031, %v4326
      %v4359 = vadd.f32 %v4032, %v4327
      %v4360 = vadd.f32 %v4033, %v4328
      %v4361 = vadd.f32 %v4034, %v4329
      %v4362 = vadd.f32 %v4035, %v4330
      %v4363 = vadd.f32 %v4036, %v4331
      %v4364 = vadd.f32 %v4037, %v4332
      %v4365 = vadd.f32 %v4038, %v4333
      %v4366 = vadd.f32 %v4039, %v4334
      %v4367 = vadd.f32 %v4040, %v4335
      %v4368 = vadd.f32 %v4041, %v4336
      %v4369 = vadd.f32 %v4042, %v4337
      %v4370 = vadd.f32 %v4043, %v4338
      %v4371 = vadd.f32 %v4044, %v4339
      %v4372 = vadd.f32 %v4045, %v4340
      %v4373 = vadd.f32 %v4046, %v4341
      %v4374 = vadd.f32 %v4047, %v4342
      %v4375 = vadd.f32 %v4048, %v4343
      %v4376 = vadd.f32 %v4049, %v4344
      %v4377 = vadd.f32 %v4050, %v4345
      %v4378 = vadd.f32 %v4051, %v4346
      %v4379 = vadd.f32 %v4052, %v4347
      %v4380 = vadd.f32 %v4053, %v4348
      %v4381 = vadd.f32 %v4054, %v4349
      %v4382 = vadd.f32 %v4055, %v4350
      %v4383 = vadd.f32 %v4056, %v4351
      %v4384 = vadd.f32 %v4057, %v4352
      %v4385 = vadd.f32 %v4058, %v4353
      %v4386 = vadd.f32 %v4059, %v4354
      %s4387 = sadd.s32 3, %s3339
      %s4388 = smul.addr %s4387, 4
      %s4389 = scalar_lea.vmem %s183, %s4388
      %v4390 = vld [vmem:[%s4389] sm:$0xf]
      %v4391 = vld [vmem:[%s4389 + $0x4] sm:$0xf]
      %v4392 = vld [vmem:[%s4389 + $0xc] sm:$0xf]
      %v4393 = vld [vmem:[%s4389 + $0x10] sm:$0xf]
      %v4394 = vld [vmem:[%s4389 + $0x18] sm:$0xf]
      %v4395 = vld [vmem:[%s4389 + $0x1c] sm:$0xf]
      %v4396 = vld [vmem:[%s4389 + $0x24] sm:$0xf]
      %v4397 = vld [vmem:[%s4389 + $0x28] sm:$0xf]
      %v4398 = vld [vmem:[%s4389 + $0x30] sm:$0xf]
      %v4399 = vld [vmem:[%s4389 + $0x34] sm:$0xf]
      %v4400 = vld [vmem:[%s4389 + $0x3c] sm:$0xf]
      %v4401 = vld [vmem:[%s4389 + $0x40] sm:$0xf]
      %v4402 = vld [vmem:[%s4389 + $0x48] sm:$0xf]
      %v4403 = vld [vmem:[%s4389 + $0x4c] sm:$0xf]
      %v4404 = vld [vmem:[%s4389 + $0x54] sm:$0xf]
      %v4405 = vld [vmem:[%s4389 + $0x58] sm:$0xf]
      %v4406 = vld [vmem:[%s4389 + $0x60] sm:$0xf]
      %v4407 = vld [vmem:[%s4389 + $0x64] sm:$0xf]
      %v4408 = vld [vmem:[%s4389 + $0x6c] sm:$0xf]
      %v4409 = vld [vmem:[%s4389 + $0x70] sm:$0xf]
      %v4410 = vld [vmem:[%s4389 + $0x78] sm:$0xf]
      %v4411 = vld [vmem:[%s4389 + $0x7c] sm:$0xf]
      %v4412 = vld [vmem:[%s4389 + $0x84] sm:$0xf]
      %v4413 = vld [vmem:[%s4389 + $0x88] sm:$0xf]
      %v4414 = vld [vmem:[%s4389 + $0x90] sm:$0xf]
      %v4415 = vld [vmem:[%s4389 + $0x94] sm:$0xf]
      %v4416 = vld [vmem:[%s4389 + $0x9c] sm:$0xf]
      %v4417 = vld [vmem:[%s4389 + $0xa0] sm:$0xf]
      %v4418 = vld [vmem:[%s4389 + $0xa8] sm:$0xf]
      %v4419 = vld [vmem:[%s4389 + $0xac] sm:$0xf]
      %v4420 = vld [vmem:[%s4389 + $0xb4] sm:$0xf]
      %v4421 = vld [vmem:[%s4389 + $0xb8] sm:$0xf]
      %v4422 = vunpack.c.l.bf16 %v4390
      %v4423 = vunpack.c.l.bf16 %v4391
      %v4424 = vunpack.c.l.bf16 %v4392
      %v4425 = vunpack.c.l.bf16 %v4393
      %v4426 = vunpack.c.l.bf16 %v4394
      %v4427 = vunpack.c.l.bf16 %v4395
      %v4428 = vunpack.c.l.bf16 %v4396
      %v4429 = vunpack.c.l.bf16 %v4397
      %v4430 = vunpack.c.l.bf16 %v4398
      %v4431 = vunpack.c.l.bf16 %v4399
      %v4432 = vunpack.c.l.bf16 %v4400
      %v4433 = vunpack.c.l.bf16 %v4401
      %v4434 = vunpack.c.l.bf16 %v4402
      %v4435 = vunpack.c.l.bf16 %v4403
      %v4436 = vunpack.c.l.bf16 %v4404
      %v4437 = vunpack.c.l.bf16 %v4405
      %v4438 = vunpack.c.l.bf16 %v4406
      %v4439 = vunpack.c.l.bf16 %v4407
      %v4440 = vunpack.c.l.bf16 %v4408
      %v4441 = vunpack.c.l.bf16 %v4409
      %v4442 = vunpack.c.l.bf16 %v4410
      %v4443 = vunpack.c.l.bf16 %v4411
      %v4444 = vunpack.c.l.bf16 %v4412
      %v4445 = vunpack.c.l.bf16 %v4413
      %v4446 = vunpack.c.l.bf16 %v4414
      %v4447 = vunpack.c.l.bf16 %v4415
      %v4448 = vunpack.c.l.bf16 %v4416
      %v4449 = vunpack.c.l.bf16 %v4417
      %v4450 = vunpack.c.l.bf16 %v4418
      %v4451 = vunpack.c.l.bf16 %v4419
      %v4452 = vunpack.c.l.bf16 %v4420
      %v4453 = vunpack.c.l.bf16 %v4421
      %s4454 = scalar_lea.vmem %s1, 12
      %v4455 = vld [vmem:[%s4454] sm:$0x1]
      %v4456 = vunpack.c.l.bf16 %v4455
      %4458 = vset.pattern.permute.xlu0 0
      %4459 = vperm.xlu0 %4458, %v4422
      %v4460 = vpop.permute.xlu0 %4459
      %4463 = vset.pattern.permute.xlu0 0
      %4464 = vperm.xlu0 %4463, %v4423
      %v4465 = vpop.permute.xlu0 %4464
      %4468 = vset.pattern.permute.xlu0 0
      %4469 = vperm.xlu0 %4468, %v4424
      %v4470 = vpop.permute.xlu0 %4469
      %4473 = vset.pattern.permute.xlu0 0
      %4474 = vperm.xlu0 %4473, %v4425
      %v4475 = vpop.permute.xlu0 %4474
      %4478 = vset.pattern.permute.xlu0 0
      %4479 = vperm.xlu0 %4478, %v4426
      %v4480 = vpop.permute.xlu0 %4479
      %4483 = vset.pattern.permute.xlu0 0
      %4484 = vperm.xlu0 %4483, %v4427
      %v4485 = vpop.permute.xlu0 %4484
      %4488 = vset.pattern.permute.xlu0 0
      %4489 = vperm.xlu0 %4488, %v4428
      %v4490 = vpop.permute.xlu0 %4489
      %4493 = vset.pattern.permute.xlu0 0
      %4494 = vperm.xlu0 %4493, %v4429
      %v4495 = vpop.permute.xlu0 %4494
      %4498 = vset.pattern.permute.xlu0 0
      %4499 = vperm.xlu0 %4498, %v4430
      %v4500 = vpop.permute.xlu0 %4499
      %4503 = vset.pattern.permute.xlu0 0
      %4504 = vperm.xlu0 %4503, %v4431
      %v4505 = vpop.permute.xlu0 %4504
      %4508 = vset.pattern.permute.xlu0 0
      %4509 = vperm.xlu0 %4508, %v4432
      %v4510 = vpop.permute.xlu0 %4509
      %4513 = vset.pattern.permute.xlu0 0
      %4514 = vperm.xlu0 %4513, %v4433
      %v4515 = vpop.permute.xlu0 %4514
      %4518 = vset.pattern.permute.xlu0 0
      %4519 = vperm.xlu0 %4518, %v4434
      %v4520 = vpop.permute.xlu0 %4519
      %4523 = vset.pattern.permute.xlu0 0
      %4524 = vperm.xlu0 %4523, %v4435
      %v4525 = vpop.permute.xlu0 %4524
      %4528 = vset.pattern.permute.xlu0 0
      %4529 = vperm.xlu0 %4528, %v4436
      %v4530 = vpop.permute.xlu0 %4529
      %4533 = vset.pattern.permute.xlu0 0
      %4534 = vperm.xlu0 %4533, %v4437
      %v4535 = vpop.permute.xlu0 %4534
      %4538 = vset.pattern.permute.xlu0 0
      %4539 = vperm.xlu0 %4538, %v4438
      %v4540 = vpop.permute.xlu0 %4539
      %4543 = vset.pattern.permute.xlu0 0
      %4544 = vperm.xlu0 %4543, %v4439
      %v4545 = vpop.permute.xlu0 %4544
      %4548 = vset.pattern.permute.xlu0 0
      %4549 = vperm.xlu0 %4548, %v4440
      %v4550 = vpop.permute.xlu0 %4549
      %4553 = vset.pattern.permute.xlu0 0
      %4554 = vperm.xlu0 %4553, %v4441
      %v4555 = vpop.permute.xlu0 %4554
      %4558 = vset.pattern.permute.xlu0 0
      %4559 = vperm.xlu0 %4558, %v4442
      %v4560 = vpop.permute.xlu0 %4559
      %4563 = vset.pattern.permute.xlu0 0
      %4564 = vperm.xlu0 %4563, %v4443
      %v4565 = vpop.permute.xlu0 %4564
      %4568 = vset.pattern.permute.xlu0 0
      %4569 = vperm.xlu0 %4568, %v4444
      %v4570 = vpop.permute.xlu0 %4569
      %4573 = vset.pattern.permute.xlu0 0
      %4574 = vperm.xlu0 %4573, %v4445
      %v4575 = vpop.permute.xlu0 %4574
      %4578 = vset.pattern.permute.xlu0 0
      %4579 = vperm.xlu0 %4578, %v4446
      %v4580 = vpop.permute.xlu0 %4579
      %4583 = vset.pattern.permute.xlu0 0
      %4584 = vperm.xlu0 %4583, %v4447
      %v4585 = vpop.permute.xlu0 %4584
      %4588 = vset.pattern.permute.xlu0 0
      %4589 = vperm.xlu0 %4588, %v4448
      %v4590 = vpop.permute.xlu0 %4589
      %4593 = vset.pattern.permute.xlu0 0
      %4594 = vperm.xlu0 %4593, %v4449
      %v4595 = vpop.permute.xlu0 %4594
      %4598 = vset.pattern.permute.xlu0 0
      %4599 = vperm.xlu0 %4598, %v4450
      %v4600 = vpop.permute.xlu0 %4599
      %4603 = vset.pattern.permute.xlu0 0
      %4604 = vperm.xlu0 %4603, %v4451
      %v4605 = vpop.permute.xlu0 %4604
      %4608 = vset.pattern.permute.xlu0 0
      %4609 = vperm.xlu0 %4608, %v4452
      %v4610 = vpop.permute.xlu0 %4609
      %4613 = vset.pattern.permute.xlu0 0
      %4614 = vperm.xlu0 %4613, %v4453
      %v4615 = vpop.permute.xlu0 %4614
      %v4617 = vlaneseq
      %v4618 = vshrl.u32 %v4617, 7
      %v4619 = vsub.s32 0, %v4618
      %v4620 = vrot.slane %v4456, %v4619
      %v4621 = vmul.f32 %v4460, %v4620
      %v4622 = vmul.f32 %v4465, %v4620
      %v4623 = vmul.f32 %v4470, %v4620
      %v4624 = vmul.f32 %v4475, %v4620
      %v4625 = vmul.f32 %v4480, %v4620
      %v4626 = vmul.f32 %v4485, %v4620
      %v4627 = vmul.f32 %v4490, %v4620
      %v4628 = vmul.f32 %v4495, %v4620
      %v4629 = vmul.f32 %v4500, %v4620
      %v4630 = vmul.f32 %v4505, %v4620
      %v4631 = vmul.f32 %v4510, %v4620
      %v4632 = vmul.f32 %v4515, %v4620
      %v4633 = vmul.f32 %v4520, %v4620
      %v4634 = vmul.f32 %v4525, %v4620
      %v4635 = vmul.f32 %v4530, %v4620
      %v4636 = vmul.f32 %v4535, %v4620
      %v4637 = vmul.f32 %v4540, %v4620
      %v4638 = vmul.f32 %v4545, %v4620
      %v4639 = vmul.f32 %v4550, %v4620
      %v4640 = vmul.f32 %v4555, %v4620
      %v4641 = vmul.f32 %v4560, %v4620
      %v4642 = vmul.f32 %v4565, %v4620
      %v4643 = vmul.f32 %v4570, %v4620
      %v4644 = vmul.f32 %v4575, %v4620
      %v4645 = vmul.f32 %v4580, %v4620
      %v4646 = vmul.f32 %v4585, %v4620
      %v4647 = vmul.f32 %v4590, %v4620
      %v4648 = vmul.f32 %v4595, %v4620
      %v4649 = vmul.f32 %v4600, %v4620
      %v4650 = vmul.f32 %v4605, %v4620
      %v4651 = vmul.f32 %v4610, %v4620
      %v4652 = vmul.f32 %v4615, %v4620
      %v4653 = vadd.f32 %v4355, %v4621
      %v4654 = vadd.f32 %v4356, %v4622
      %v4655 = vadd.f32 %v4357, %v4623
      %v4656 = vadd.f32 %v4358, %v4624
      %v4657 = vadd.f32 %v4359, %v4625
      %v4658 = vadd.f32 %v4360, %v4626
      %v4659 = vadd.f32 %v4361, %v4627
      %v4660 = vadd.f32 %v4362, %v4628
      %v4661 = vadd.f32 %v4363, %v4629
      %v4662 = vadd.f32 %v4364, %v4630
      %v4663 = vadd.f32 %v4365, %v4631
      %v4664 = vadd.f32 %v4366, %v4632
      %v4665 = vadd.f32 %v4367, %v4633
      %v4666 = vadd.f32 %v4368, %v4634
      %v4667 = vadd.f32 %v4369, %v4635
      %v4668 = vadd.f32 %v4370, %v4636
      %v4669 = vadd.f32 %v4371, %v4637
      %v4670 = vadd.f32 %v4372, %v4638
      %v4671 = vadd.f32 %v4373, %v4639
      %v4672 = vadd.f32 %v4374, %v4640
      %v4673 = vadd.f32 %v4375, %v4641
      %v4674 = vadd.f32 %v4376, %v4642
      %v4675 = vadd.f32 %v4377, %v4643
      %v4676 = vadd.f32 %v4378, %v4644
      %v4677 = vadd.f32 %v4379, %v4645
      %v4678 = vadd.f32 %v4380, %v4646
      %v4679 = vadd.f32 %v4381, %v4647
      %v4680 = vadd.f32 %v4382, %v4648
      %v4681 = vadd.f32 %v4383, %v4649
      %v4682 = vadd.f32 %v4384, %v4650
      %v4683 = vadd.f32 %v4385, %v4651
      %v4684 = vadd.f32 %v4386, %v4652
      %v4685 = vld [vmem:[%s4389] sm:$0xf]
      %v4686 = vld [vmem:[%s4389 + $0x4] sm:$0xf]
      %v4687 = vld [vmem:[%s4389 + $0x8] sm:$0x1]
      %v4688 = vld [vmem:[%s4389 + $0xc] sm:$0xf]
      %v4689 = vld [vmem:[%s4389 + $0x10] sm:$0xf]
      %v4690 = vld [vmem:[%s4389 + $0x14] sm:$0x1]
      %v4691 = vld [vmem:[%s4389 + $0x18] sm:$0xf]
      %v4692 = vld [vmem:[%s4389 + $0x1c] sm:$0xf]
      %v4693 = vld [vmem:[%s4389 + $0x20] sm:$0x1]
      %v4694 = vld [vmem:[%s4389 + $0x24] sm:$0xf]
      %v4695 = vld [vmem:[%s4389 + $0x28] sm:$0xf]
      %v4696 = vld [vmem:[%s4389 + $0x2c] sm:$0x1]
      %v4697 = vld [vmem:[%s4389 + $0x30] sm:$0xf]
      %v4698 = vld [vmem:[%s4389 + $0x34] sm:$0xf]
      %v4699 = vld [vmem:[%s4389 + $0x38] sm:$0x1]
      %v4700 = vld [vmem:[%s4389 + $0x3c] sm:$0xf]
      %v4701 = vld [vmem:[%s4389 + $0x40] sm:$0xf]
      %v4702 = vld [vmem:[%s4389 + $0x44] sm:$0x1]
      %v4703 = vld [vmem:[%s4389 + $0x48] sm:$0xf]
      %v4704 = vld [vmem:[%s4389 + $0x4c] sm:$0xf]
      %v4705 = vld [vmem:[%s4389 + $0x50] sm:$0x1]
      %v4706 = vld [vmem:[%s4389 + $0x54] sm:$0xf]
      %v4707 = vld [vmem:[%s4389 + $0x58] sm:$0xf]
      %v4708 = vld [vmem:[%s4389 + $0x5c] sm:$0x1]
      %v4709 = vld [vmem:[%s4389 + $0x60] sm:$0xf]
      %v4710 = vld [vmem:[%s4389 + $0x64] sm:$0xf]
      %v4711 = vld [vmem:[%s4389 + $0x68] sm:$0x1]
      %v4712 = vld [vmem:[%s4389 + $0x6c] sm:$0xf]
      %v4713 = vld [vmem:[%s4389 + $0x70] sm:$0xf]
      %v4714 = vld [vmem:[%s4389 + $0x74] sm:$0x1]
      %v4715 = vld [vmem:[%s4389 + $0x78] sm:$0xf]
      %v4716 = vld [vmem:[%s4389 + $0x7c] sm:$0xf]
      %v4717 = vld [vmem:[%s4389 + $0x80] sm:$0x1]
      %v4718 = vld [vmem:[%s4389 + $0x84] sm:$0xf]
      %v4719 = vld [vmem:[%s4389 + $0x88] sm:$0xf]
      %v4720 = vld [vmem:[%s4389 + $0x8c] sm:$0x1]
      %v4721 = vld [vmem:[%s4389 + $0x90] sm:$0xf]
      %v4722 = vld [vmem:[%s4389 + $0x94] sm:$0xf]
      %v4723 = vld [vmem:[%s4389 + $0x98] sm:$0x1]
      %v4724 = vld [vmem:[%s4389 + $0x9c] sm:$0xf]
      %v4725 = vld [vmem:[%s4389 + $0xa0] sm:$0xf]
      %v4726 = vld [vmem:[%s4389 + $0xa4] sm:$0x1]
      %v4727 = vld [vmem:[%s4389 + $0xa8] sm:$0xf]
      %v4728 = vld [vmem:[%s4389 + $0xac] sm:$0xf]
      %v4729 = vld [vmem:[%s4389 + $0xb0] sm:$0x1]
      %v4730 = vld [vmem:[%s4389 + $0xb4] sm:$0xf]
      %v4731 = vld [vmem:[%s4389 + $0xb8] sm:$0xf]
      %v4732 = vld [vmem:[%s4389 + $0xbc] sm:$0x1]
      %v4733 = vunpack.c.l.bf16 %v4685
      %v4734 = vunpack.c.l.bf16 %v4686
      %v4735 = vunpack.c.l.bf16 %v4687
      %v4736 = vunpack.c.l.bf16 %v4688
      %v4737 = vunpack.c.l.bf16 %v4689
      %v4738 = vunpack.c.l.bf16 %v4690
      %v4739 = vunpack.c.l.bf16 %v4691
      %v4740 = vunpack.c.l.bf16 %v4692
      %v4741 = vunpack.c.l.bf16 %v4693
      %v4742 = vunpack.c.l.bf16 %v4694
      %v4743 = vunpack.c.l.bf16 %v4695
      %v4744 = vunpack.c.l.bf16 %v4696
      %v4745 = vunpack.c.l.bf16 %v4697
      %v4746 = vunpack.c.l.bf16 %v4698
      %v4747 = vunpack.c.l.bf16 %v4699
      %v4748 = vunpack.c.l.bf16 %v4700
      %v4749 = vunpack.c.l.bf16 %v4701
      %v4750 = vunpack.c.l.bf16 %v4702
      %v4751 = vunpack.c.l.bf16 %v4703
      %v4752 = vunpack.c.l.bf16 %v4704
      %v4753 = vunpack.c.l.bf16 %v4705
      %v4754 = vunpack.c.l.bf16 %v4706
      %v4755 = vunpack.c.l.bf16 %v4707
      %v4756 = vunpack.c.l.bf16 %v4708
      %v4757 = vunpack.c.l.bf16 %v4709
      %v4758 = vunpack.c.l.bf16 %v4710
      %v4759 = vunpack.c.l.bf16 %v4711
      %v4760 = vunpack.c.l.bf16 %v4712
      %v4761 = vunpack.c.l.bf16 %v4713
      %v4762 = vunpack.c.l.bf16 %v4714
      %v4763 = vunpack.c.l.bf16 %v4715
      %v4764 = vunpack.c.l.bf16 %v4716
      %v4765 = vunpack.c.l.bf16 %v4717
      %v4766 = vunpack.c.l.bf16 %v4718
      %v4767 = vunpack.c.l.bf16 %v4719
      %v4768 = vunpack.c.l.bf16 %v4720
      %v4769 = vunpack.c.l.bf16 %v4721
      %v4770 = vunpack.c.l.bf16 %v4722
      %v4771 = vunpack.c.l.bf16 %v4723
      %v4772 = vunpack.c.l.bf16 %v4724
      %v4773 = vunpack.c.l.bf16 %v4725
      %v4774 = vunpack.c.l.bf16 %v4726
      %v4775 = vunpack.c.l.bf16 %v4727
      %v4776 = vunpack.c.l.bf16 %v4728
      %v4777 = vunpack.c.l.bf16 %v4729
      %v4778 = vunpack.c.l.bf16 %v4730
      %v4779 = vunpack.c.l.bf16 %v4731
      %v4780 = vunpack.c.l.bf16 %v4732
      %v4829 = vrot.slane %v4733, 1
      %v4830 = vrot.slane %v4734, 1
      %v4831 = vsel %vm634, %v4829, %v4830
      %v4832 = vrot.slane %v4735, 1
      %v4833 = vsel %vm634, %v4830, %v4832
      %v4834 = vrot.slane %v4736, 1
      %v4835 = vrot.slane %v4737, 1
      %v4836 = vsel %vm634, %v4834, %v4835
      %v4837 = vrot.slane %v4738, 1
      %v4838 = vsel %vm634, %v4835, %v4837
      %v4839 = vrot.slane %v4739, 1
      %v4840 = vrot.slane %v4740, 1
      %v4841 = vsel %vm634, %v4839, %v4840
      %v4842 = vrot.slane %v4741, 1
      %v4843 = vsel %vm634, %v4840, %v4842
      %v4844 = vrot.slane %v4742, 1
      %v4845 = vrot.slane %v4743, 1
      %v4846 = vsel %vm634, %v4844, %v4845
      %v4847 = vrot.slane %v4744, 1
      %v4848 = vsel %vm634, %v4845, %v4847
      %v4849 = vrot.slane %v4745, 1
      %v4850 = vrot.slane %v4746, 1
      %v4851 = vsel %vm634, %v4849, %v4850
      %v4852 = vrot.slane %v4747, 1
      %v4853 = vsel %vm634, %v4850, %v4852
      %v4854 = vrot.slane %v4748, 1
      %v4855 = vrot.slane %v4749, 1
      %v4856 = vsel %vm634, %v4854, %v4855
      %v4857 = vrot.slane %v4750, 1
      %v4858 = vsel %vm634, %v4855, %v4857
      %v4859 = vrot.slane %v4751, 1
      %v4860 = vrot.slane %v4752, 1
      %v4861 = vsel %vm634, %v4859, %v4860
      %v4862 = vrot.slane %v4753, 1
      %v4863 = vsel %vm634, %v4860, %v4862
      %v4864 = vrot.slane %v4754, 1
      %v4865 = vrot.slane %v4755, 1
      %v4866 = vsel %vm634, %v4864, %v4865
      %v4867 = vrot.slane %v4756, 1
      %v4868 = vsel %vm634, %v4865, %v4867
      %v4869 = vrot.slane %v4757, 1
      %v4870 = vrot.slane %v4758, 1
      %v4871 = vsel %vm634, %v4869, %v4870
      %v4872 = vrot.slane %v4759, 1
      %v4873 = vsel %vm634, %v4870, %v4872
      %v4874 = vrot.slane %v4760, 1
      %v4875 = vrot.slane %v4761, 1
      %v4876 = vsel %vm634, %v4874, %v4875
      %v4877 = vrot.slane %v4762, 1
      %v4878 = vsel %vm634, %v4875, %v4877
      %v4879 = vrot.slane %v4763, 1
      %v4880 = vrot.slane %v4764, 1
      %v4881 = vsel %vm634, %v4879, %v4880
      %v4882 = vrot.slane %v4765, 1
      %v4883 = vsel %vm634, %v4880, %v4882
      %v4884 = vrot.slane %v4766, 1
      %v4885 = vrot.slane %v4767, 1
      %v4886 = vsel %vm634, %v4884, %v4885
      %v4887 = vrot.slane %v4768, 1
      %v4888 = vsel %vm634, %v4885, %v4887
      %v4889 = vrot.slane %v4769, 1
      %v4890 = vrot.slane %v4770, 1
      %v4891 = vsel %vm634, %v4889, %v4890
      %v4892 = vrot.slane %v4771, 1
      %v4893 = vsel %vm634, %v4890, %v4892
      %v4894 = vrot.slane %v4772, 1
      %v4895 = vrot.slane %v4773, 1
      %v4896 = vsel %vm634, %v4894, %v4895
      %v4897 = vrot.slane %v4774, 1
      %v4898 = vsel %vm634, %v4895, %v4897
      %v4899 = vrot.slane %v4775, 1
      %v4900 = vrot.slane %v4776, 1
      %v4901 = vsel %vm634, %v4899, %v4900
      %v4902 = vrot.slane %v4777, 1
      %v4903 = vsel %vm634, %v4900, %v4902
      %v4904 = vrot.slane %v4778, 1
      %v4905 = vrot.slane %v4779, 1
      %v4906 = vsel %vm634, %v4904, %v4905
      %v4907 = vrot.slane %v4780, 1
      %v4908 = vsel %vm634, %v4905, %v4907
      %s4909 = scalar_lea.vmem %s1, 13
      %v4910 = vld [vmem:[%s4909] sm:$0x1]
      %v4911 = vunpack.c.l.bf16 %v4910
      %4912 = vset.pattern.permute.xlu0 0
      %4913 = vperm.xlu0 %4912, %v4831
      %v4914 = vpop.permute.xlu0 %4913
      %4916 = vset.pattern.permute.xlu0 0
      %4917 = vperm.xlu0 %4916, %v4833
      %v4918 = vpop.permute.xlu0 %4917
      %4920 = vset.pattern.permute.xlu0 0
      %4921 = vperm.xlu0 %4920, %v4836
      %v4922 = vpop.permute.xlu0 %4921
      %4924 = vset.pattern.permute.xlu0 0
      %4925 = vperm.xlu0 %4924, %v4838
      %v4926 = vpop.permute.xlu0 %4925
      %4928 = vset.pattern.permute.xlu0 0
      %4929 = vperm.xlu0 %4928, %v4841
      %v4930 = vpop.permute.xlu0 %4929
      %4932 = vset.pattern.permute.xlu0 0
      %4933 = vperm.xlu0 %4932, %v4843
      %v4934 = vpop.permute.xlu0 %4933
      %4936 = vset.pattern.permute.xlu0 0
      %4937 = vperm.xlu0 %4936, %v4846
      %v4938 = vpop.permute.xlu0 %4937
      %4940 = vset.pattern.permute.xlu0 0
      %4941 = vperm.xlu0 %4940, %v4848
      %v4942 = vpop.permute.xlu0 %4941
      %4944 = vset.pattern.permute.xlu0 0
      %4945 = vperm.xlu0 %4944, %v4851
      %v4946 = vpop.permute.xlu0 %4945
      %4948 = vset.pattern.permute.xlu0 0
      %4949 = vperm.xlu0 %4948, %v4853
      %v4950 = vpop.permute.xlu0 %4949
      %4952 = vset.pattern.permute.xlu0 0
      %4953 = vperm.xlu0 %4952, %v4856
      %v4954 = vpop.permute.xlu0 %4953
      %4956 = vset.pattern.permute.xlu0 0
      %4957 = vperm.xlu0 %4956, %v4858
      %v4958 = vpop.permute.xlu0 %4957
      %4960 = vset.pattern.permute.xlu0 0
      %4961 = vperm.xlu0 %4960, %v4861
      %v4962 = vpop.permute.xlu0 %4961
      %4964 = vset.pattern.permute.xlu0 0
      %4965 = vperm.xlu0 %4964, %v4863
      %v4966 = vpop.permute.xlu0 %4965
      %4968 = vset.pattern.permute.xlu0 0
      %4969 = vperm.xlu0 %4968, %v4866
      %v4970 = vpop.permute.xlu0 %4969
      %4972 = vset.pattern.permute.xlu0 0
      %4973 = vperm.xlu0 %4972, %v4868
      %v4974 = vpop.permute.xlu0 %4973
      %4976 = vset.pattern.permute.xlu0 0
      %4977 = vperm.xlu0 %4976, %v4871
      %v4978 = vpop.permute.xlu0 %4977
      %4980 = vset.pattern.permute.xlu0 0
      %4981 = vperm.xlu0 %4980, %v4873
      %v4982 = vpop.permute.xlu0 %4981
      %4984 = vset.pattern.permute.xlu0 0
      %4985 = vperm.xlu0 %4984, %v4876
      %v4986 = vpop.permute.xlu0 %4985
      %4988 = vset.pattern.permute.xlu0 0
      %4989 = vperm.xlu0 %4988, %v4878
      %v4990 = vpop.permute.xlu0 %4989
      %4992 = vset.pattern.permute.xlu0 0
      %4993 = vperm.xlu0 %4992, %v4881
      %v4994 = vpop.permute.xlu0 %4993
      %4996 = vset.pattern.permute.xlu0 0
      %4997 = vperm.xlu0 %4996, %v4883
      %v4998 = vpop.permute.xlu0 %4997
      %5000 = vset.pattern.permute.xlu0 0
      %5001 = vperm.xlu0 %5000, %v4886
      %v5002 = vpop.permute.xlu0 %5001
      %5004 = vset.pattern.permute.xlu0 0
      %5005 = vperm.xlu0 %5004, %v4888
      %v5006 = vpop.permute.xlu0 %5005
      %5008 = vset.pattern.permute.xlu0 0
      %5009 = vperm.xlu0 %5008, %v4891
      %v5010 = vpop.permute.xlu0 %5009
      %5012 = vset.pattern.permute.xlu0 0
      %5013 = vperm.xlu0 %5012, %v4893
      %v5014 = vpop.permute.xlu0 %5013
      %5016 = vset.pattern.permute.xlu0 0
      %5017 = vperm.xlu0 %5016, %v4896
      %v5018 = vpop.permute.xlu0 %5017
      %5020 = vset.pattern.permute.xlu0 0
      %5021 = vperm.xlu0 %5020, %v4898
      %v5022 = vpop.permute.xlu0 %5021
      %5024 = vset.pattern.permute.xlu0 0
      %5025 = vperm.xlu0 %5024, %v4901
      %v5026 = vpop.permute.xlu0 %5025
      %5028 = vset.pattern.permute.xlu0 0
      %5029 = vperm.xlu0 %5028, %v4903
      %v5030 = vpop.permute.xlu0 %5029
      %5032 = vset.pattern.permute.xlu0 0
      %5033 = vperm.xlu0 %5032, %v4906
      %v5034 = vpop.permute.xlu0 %5033
      %5036 = vset.pattern.permute.xlu0 0
      %5037 = vperm.xlu0 %5036, %v4908
      %v5038 = vpop.permute.xlu0 %5037
      %v5040 = vlaneseq
      %v5041 = vshrl.u32 %v5040, 7
      %v5042 = vsub.s32 0, %v5041
      %v5043 = vrot.slane %v4911, %v5042
      %v5044 = vmul.f32 %v4914, %v5043
      %v5045 = vmul.f32 %v4918, %v5043
      %v5046 = vmul.f32 %v4922, %v5043
      %v5047 = vmul.f32 %v4926, %v5043
      %v5048 = vmul.f32 %v4930, %v5043
      %v5049 = vmul.f32 %v4934, %v5043
      %v5050 = vmul.f32 %v4938, %v5043
      %v5051 = vmul.f32 %v4942, %v5043
      %v5052 = vmul.f32 %v4946, %v5043
      %v5053 = vmul.f32 %v4950, %v5043
      %v5054 = vmul.f32 %v4954, %v5043
      %v5055 = vmul.f32 %v4958, %v5043
      %v5056 = vmul.f32 %v4962, %v5043
      %v5057 = vmul.f32 %v4966, %v5043
      %v5058 = vmul.f32 %v4970, %v5043
      %v5059 = vmul.f32 %v4974, %v5043
      %v5060 = vmul.f32 %v4978, %v5043
      %v5061 = vmul.f32 %v4982, %v5043
      %v5062 = vmul.f32 %v4986, %v5043
      %v5063 = vmul.f32 %v4990, %v5043
      %v5064 = vmul.f32 %v4994, %v5043
      %v5065 = vmul.f32 %v4998, %v5043
      %v5066 = vmul.f32 %v5002, %v5043
      %v5067 = vmul.f32 %v5006, %v5043
      %v5068 = vmul.f32 %v5010, %v5043
      %v5069 = vmul.f32 %v5014, %v5043
      %v5070 = vmul.f32 %v5018, %v5043
      %v5071 = vmul.f32 %v5022, %v5043
      %v5072 = vmul.f32 %v5026, %v5043
      %v5073 = vmul.f32 %v5030, %v5043
      %v5074 = vmul.f32 %v5034, %v5043
      %v5075 = vmul.f32 %v5038, %v5043
      %v5076 = vadd.f32 %v4653, %v5044
      %v5077 = vadd.f32 %v4654, %v5045
      %v5078 = vadd.f32 %v4655, %v5046
      %v5079 = vadd.f32 %v4656, %v5047
      %v5080 = vadd.f32 %v4657, %v5048
      %v5081 = vadd.f32 %v4658, %v5049
      %v5082 = vadd.f32 %v4659, %v5050
      %v5083 = vadd.f32 %v4660, %v5051
      %v5084 = vadd.f32 %v4661, %v5052
      %v5085 = vadd.f32 %v4662, %v5053
      %v5086 = vadd.f32 %v4663, %v5054
      %v5087 = vadd.f32 %v4664, %v5055
      %v5088 = vadd.f32 %v4665, %v5056
      %v5089 = vadd.f32 %v4666, %v5057
      %v5090 = vadd.f32 %v4667, %v5058
      %v5091 = vadd.f32 %v4668, %v5059
      %v5092 = vadd.f32 %v4669, %v5060
      %v5093 = vadd.f32 %v4670, %v5061
      %v5094 = vadd.f32 %v4671, %v5062
      %v5095 = vadd.f32 %v4672, %v5063
      %v5096 = vadd.f32 %v4673, %v5064
      %v5097 = vadd.f32 %v4674, %v5065
      %v5098 = vadd.f32 %v4675, %v5066
      %v5099 = vadd.f32 %v4676, %v5067
      %v5100 = vadd.f32 %v4677, %v5068
      %v5101 = vadd.f32 %v4678, %v5069
      %v5102 = vadd.f32 %v4679, %v5070
      %v5103 = vadd.f32 %v4680, %v5071
      %v5104 = vadd.f32 %v4681, %v5072
      %v5105 = vadd.f32 %v4682, %v5073
      %v5106 = vadd.f32 %v4683, %v5074
      %v5107 = vadd.f32 %v4684, %v5075
      %v5108 = vld [vmem:[%s4389] sm:$0xe]
      %v5109 = vld [vmem:[%s4389 + $0xc] sm:$0xe]
      %v5110 = vld [vmem:[%s4389 + $0x18] sm:$0xe]
      %v5111 = vld [vmem:[%s4389 + $0x24] sm:$0xe]
      %v5112 = vld [vmem:[%s4389 + $0x30] sm:$0xe]
      %v5113 = vld [vmem:[%s4389 + $0x3c] sm:$0xe]
      %v5114 = vld [vmem:[%s4389 + $0x48] sm:$0xe]
      %v5115 = vld [vmem:[%s4389 + $0x54] sm:$0xe]
      %v5116 = vld [vmem:[%s4389 + $0x60] sm:$0xe]
      %v5117 = vld [vmem:[%s4389 + $0x6c] sm:$0xe]
      %v5118 = vld [vmem:[%s4389 + $0x78] sm:$0xe]
      %v5119 = vld [vmem:[%s4389 + $0x84] sm:$0xe]
      %v5120 = vld [vmem:[%s4389 + $0x90] sm:$0xe]
      %v5121 = vld [vmem:[%s4389 + $0x9c] sm:$0xe]
      %v5122 = vld [vmem:[%s4389 + $0xa8] sm:$0xe]
      %v5123 = vld [vmem:[%s4389 + $0xb4] sm:$0xe]
      %v5124 = vunpack.c.l.bf16 %v5108
      %v5125 = vunpack.c.l.bf16 %v5109
      %v5126 = vunpack.c.l.bf16 %v5110
      %v5127 = vunpack.c.l.bf16 %v5111
      %v5128 = vunpack.c.l.bf16 %v5112
      %v5129 = vunpack.c.l.bf16 %v5113
      %v5130 = vunpack.c.l.bf16 %v5114
      %v5131 = vunpack.c.l.bf16 %v5115
      %v5132 = vunpack.c.l.bf16 %v5116
      %v5133 = vunpack.c.l.bf16 %v5117
      %v5134 = vunpack.c.l.bf16 %v5118
      %v5135 = vunpack.c.l.bf16 %v5119
      %v5136 = vunpack.c.l.bf16 %v5120
      %v5137 = vunpack.c.l.bf16 %v5121
      %v5138 = vunpack.c.l.bf16 %v5122
      %v5139 = vunpack.c.l.bf16 %v5123
      %v5156 = vrot.slane %v5124, 2
      %v5157 = vrot.slane %v4734, 2
      %v5158 = vsel %vm962, %v5156, %v5157
      %v5159 = vrot.slane %v4735, 2
      %v5160 = vsel %vm962, %v5157, %v5159
      %v5161 = vrot.slane %v5125, 2
      %v5162 = vrot.slane %v4737, 2
      %v5163 = vsel %vm962, %v5161, %v5162
      %v5164 = vrot.slane %v4738, 2
      %v5165 = vsel %vm962, %v5162, %v5164
      %v5166 = vrot.slane %v5126, 2
      %v5167 = vrot.slane %v4740, 2
      %v5168 = vsel %vm962, %v5166, %v5167
      %v5169 = vrot.slane %v4741, 2
      %v5170 = vsel %vm962, %v5167, %v5169
      %v5171 = vrot.slane %v5127, 2
      %v5172 = vrot.slane %v4743, 2
      %v5173 = vsel %vm962, %v5171, %v5172
      %v5174 = vrot.slane %v4744, 2
      %v5175 = vsel %vm962, %v5172, %v5174
      %v5176 = vrot.slane %v5128, 2
      %v5177 = vrot.slane %v4746, 2
      %v5178 = vsel %vm962, %v5176, %v5177
      %v5179 = vrot.slane %v4747, 2
      %v5180 = vsel %vm962, %v5177, %v5179
      %v5181 = vrot.slane %v5129, 2
      %v5182 = vrot.slane %v4749, 2
      %v5183 = vsel %vm962, %v5181, %v5182
      %v5184 = vrot.slane %v4750, 2
      %v5185 = vsel %vm962, %v5182, %v5184
      %v5186 = vrot.slane %v5130, 2
      %v5187 = vrot.slane %v4752, 2
      %v5188 = vsel %vm962, %v5186, %v5187
      %v5189 = vrot.slane %v4753, 2
      %v5190 = vsel %vm962, %v5187, %v5189
      %v5191 = vrot.slane %v5131, 2
      %v5192 = vrot.slane %v4755, 2
      %v5193 = vsel %vm962, %v5191, %v5192
      %v5194 = vrot.slane %v4756, 2
      %v5195 = vsel %vm962, %v5192, %v5194
      %v5196 = vrot.slane %v5132, 2
      %v5197 = vrot.slane %v4758, 2
      %v5198 = vsel %vm962, %v5196, %v5197
      %v5199 = vrot.slane %v4759, 2
      %v5200 = vsel %vm962, %v5197, %v5199
      %v5201 = vrot.slane %v5133, 2
      %v5202 = vrot.slane %v4761, 2
      %v5203 = vsel %vm962, %v5201, %v5202
      %v5204 = vrot.slane %v4762, 2
      %v5205 = vsel %vm962, %v5202, %v5204
      %v5206 = vrot.slane %v5134, 2
      %v5207 = vrot.slane %v4764, 2
      %v5208 = vsel %vm962, %v5206, %v5207
      %v5209 = vrot.slane %v4765, 2
      %v5210 = vsel %vm962, %v5207, %v5209
      %v5211 = vrot.slane %v5135, 2
      %v5212 = vrot.slane %v4767, 2
      %v5213 = vsel %vm962, %v5211, %v5212
      %v5214 = vrot.slane %v4768, 2
      %v5215 = vsel %vm962, %v5212, %v5214
      %v5216 = vrot.slane %v5136, 2
      %v5217 = vrot.slane %v4770, 2
      %v5218 = vsel %vm962, %v5216, %v5217
      %v5219 = vrot.slane %v4771, 2
      %v5220 = vsel %vm962, %v5217, %v5219
      %v5221 = vrot.slane %v5137, 2
      %v5222 = vrot.slane %v4773, 2
      %v5223 = vsel %vm962, %v5221, %v5222
      %v5224 = vrot.slane %v4774, 2
      %v5225 = vsel %vm962, %v5222, %v5224
      %v5226 = vrot.slane %v5138, 2
      %v5227 = vrot.slane %v4776, 2
      %v5228 = vsel %vm962, %v5226, %v5227
      %v5229 = vrot.slane %v4777, 2
      %v5230 = vsel %vm962, %v5227, %v5229
      %v5231 = vrot.slane %v5139, 2
      %v5232 = vrot.slane %v4779, 2
      %v5233 = vsel %vm962, %v5231, %v5232
      %v5234 = vrot.slane %v4780, 2
      %v5235 = vsel %vm962, %v5232, %v5234
      %s5236 = scalar_lea.vmem %s1, 14
      %v5237 = vld [vmem:[%s5236] sm:$0x1]
      %v5238 = vunpack.c.l.bf16 %v5237
      %5239 = vset.pattern.permute.xlu0 0
      %5240 = vperm.xlu0 %5239, %v5158
      %v5241 = vpop.permute.xlu0 %5240
      %5243 = vset.pattern.permute.xlu0 0
      %5244 = vperm.xlu0 %5243, %v5160
      %v5245 = vpop.permute.xlu0 %5244
      %5247 = vset.pattern.permute.xlu0 0
      %5248 = vperm.xlu0 %5247, %v5163
      %v5249 = vpop.permute.xlu0 %5248
      %5251 = vset.pattern.permute.xlu0 0
      %5252 = vperm.xlu0 %5251, %v5165
      %v5253 = vpop.permute.xlu0 %5252
      %5255 = vset.pattern.permute.xlu0 0
      %5256 = vperm.xlu0 %5255, %v5168
      %v5257 = vpop.permute.xlu0 %5256
      %5259 = vset.pattern.permute.xlu0 0
      %5260 = vperm.xlu0 %5259, %v5170
      %v5261 = vpop.permute.xlu0 %5260
      %5263 = vset.pattern.permute.xlu0 0
      %5264 = vperm.xlu0 %5263, %v5173
      %v5265 = vpop.permute.xlu0 %5264
      %5267 = vset.pattern.permute.xlu0 0
      %5268 = vperm.xlu0 %5267, %v5175
      %v5269 = vpop.permute.xlu0 %5268
      %5271 = vset.pattern.permute.xlu0 0
      %5272 = vperm.xlu0 %5271, %v5178
      %v5273 = vpop.permute.xlu0 %5272
      %5275 = vset.pattern.permute.xlu0 0
      %5276 = vperm.xlu0 %5275, %v5180
      %v5277 = vpop.permute.xlu0 %5276
      %5279 = vset.pattern.permute.xlu0 0
      %5280 = vperm.xlu0 %5279, %v5183
      %v5281 = vpop.permute.xlu0 %5280
      %5283 = vset.pattern.permute.xlu0 0
      %5284 = vperm.xlu0 %5283, %v5185
      %v5285 = vpop.permute.xlu0 %5284
      %5287 = vset.pattern.permute.xlu0 0
      %5288 = vperm.xlu0 %5287, %v5188
      %v5289 = vpop.permute.xlu0 %5288
      %5291 = vset.pattern.permute.xlu0 0
      %5292 = vperm.xlu0 %5291, %v5190
      %v5293 = vpop.permute.xlu0 %5292
      %5295 = vset.pattern.permute.xlu0 0
      %5296 = vperm.xlu0 %5295, %v5193
      %v5297 = vpop.permute.xlu0 %5296
      %5299 = vset.pattern.permute.xlu0 0
      %5300 = vperm.xlu0 %5299, %v5195
      %v5301 = vpop.permute.xlu0 %5300
      %5303 = vset.pattern.permute.xlu0 0
      %5304 = vperm.xlu0 %5303, %v5198
      %v5305 = vpop.permute.xlu0 %5304
      %5307 = vset.pattern.permute.xlu0 0
      %5308 = vperm.xlu0 %5307, %v5200
      %v5309 = vpop.permute.xlu0 %5308
      %5311 = vset.pattern.permute.xlu0 0
      %5312 = vperm.xlu0 %5311, %v5203
      %v5313 = vpop.permute.xlu0 %5312
      %5315 = vset.pattern.permute.xlu0 0
      %5316 = vperm.xlu0 %5315, %v5205
      %v5317 = vpop.permute.xlu0 %5316
      %5319 = vset.pattern.permute.xlu0 0
      %5320 = vperm.xlu0 %5319, %v5208
      %v5321 = vpop.permute.xlu0 %5320
      %5323 = vset.pattern.permute.xlu0 0
      %5324 = vperm.xlu0 %5323, %v5210
      %v5325 = vpop.permute.xlu0 %5324
      %5327 = vset.pattern.permute.xlu0 0
      %5328 = vperm.xlu0 %5327, %v5213
      %v5329 = vpop.permute.xlu0 %5328
      %5331 = vset.pattern.permute.xlu0 0
      %5332 = vperm.xlu0 %5331, %v5215
      %v5333 = vpop.permute.xlu0 %5332
      %5335 = vset.pattern.permute.xlu0 0
      %5336 = vperm.xlu0 %5335, %v5218
      %v5337 = vpop.permute.xlu0 %5336
      %5339 = vset.pattern.permute.xlu0 0
      %5340 = vperm.xlu0 %5339, %v5220
      %v5341 = vpop.permute.xlu0 %5340
      %5343 = vset.pattern.permute.xlu0 0
      %5344 = vperm.xlu0 %5343, %v5223
      %v5345 = vpop.permute.xlu0 %5344
      %5347 = vset.pattern.permute.xlu0 0
      %5348 = vperm.xlu0 %5347, %v5225
      %v5349 = vpop.permute.xlu0 %5348
      %5351 = vset.pattern.permute.xlu0 0
      %5352 = vperm.xlu0 %5351, %v5228
      %v5353 = vpop.permute.xlu0 %5352
      %5355 = vset.pattern.permute.xlu0 0
      %5356 = vperm.xlu0 %5355, %v5230
      %v5357 = vpop.permute.xlu0 %5356
      %5359 = vset.pattern.permute.xlu0 0
      %5360 = vperm.xlu0 %5359, %v5233
      %v5361 = vpop.permute.xlu0 %5360
      %5363 = vset.pattern.permute.xlu0 0
      %5364 = vperm.xlu0 %5363, %v5235
      %v5365 = vpop.permute.xlu0 %5364
      %v5367 = vlaneseq
      %v5368 = vshrl.u32 %v5367, 7
      %v5369 = vsub.s32 0, %v5368
      %v5370 = vrot.slane %v5238, %v5369
      %v5371 = vmul.f32 %v5241, %v5370
      %v5372 = vmul.f32 %v5245, %v5370
      %v5373 = vmul.f32 %v5249, %v5370
      %v5374 = vmul.f32 %v5253, %v5370
      %v5375 = vmul.f32 %v5257, %v5370
      %v5376 = vmul.f32 %v5261, %v5370
      %v5377 = vmul.f32 %v5265, %v5370
      %v5378 = vmul.f32 %v5269, %v5370
      %v5379 = vmul.f32 %v5273, %v5370
      %v5380 = vmul.f32 %v5277, %v5370
      %v5381 = vmul.f32 %v5281, %v5370
      %v5382 = vmul.f32 %v5285, %v5370
      %v5383 = vmul.f32 %v5289, %v5370
      %v5384 = vmul.f32 %v5293, %v5370
      %v5385 = vmul.f32 %v5297, %v5370
      %v5386 = vmul.f32 %v5301, %v5370
      %v5387 = vmul.f32 %v5305, %v5370
      %v5388 = vmul.f32 %v5309, %v5370
      %v5389 = vmul.f32 %v5313, %v5370
      %v5390 = vmul.f32 %v5317, %v5370
      %v5391 = vmul.f32 %v5321, %v5370
      %v5392 = vmul.f32 %v5325, %v5370
      %v5393 = vmul.f32 %v5329, %v5370
      %v5394 = vmul.f32 %v5333, %v5370
      %v5395 = vmul.f32 %v5337, %v5370
      %v5396 = vmul.f32 %v5341, %v5370
      %v5397 = vmul.f32 %v5345, %v5370
      %v5398 = vmul.f32 %v5349, %v5370
      %v5399 = vmul.f32 %v5353, %v5370
      %v5400 = vmul.f32 %v5357, %v5370
      %v5401 = vmul.f32 %v5361, %v5370
      %v5402 = vmul.f32 %v5365, %v5370
      %v5403 = vadd.f32 %v5076, %v5371
      %v5404 = vadd.f32 %v5077, %v5372
      %v5405 = vadd.f32 %v5078, %v5373
      %v5406 = vadd.f32 %v5079, %v5374
      %v5407 = vadd.f32 %v5080, %v5375
      %v5408 = vadd.f32 %v5081, %v5376
      %v5409 = vadd.f32 %v5082, %v5377
      %v5410 = vadd.f32 %v5083, %v5378
      %v5411 = vadd.f32 %v5084, %v5379
      %v5412 = vadd.f32 %v5085, %v5380
      %v5413 = vadd.f32 %v5086, %v5381
      %v5414 = vadd.f32 %v5087, %v5382
      %v5415 = vadd.f32 %v5088, %v5383
      %v5416 = vadd.f32 %v5089, %v5384
      %v5417 = vadd.f32 %v5090, %v5385
      %v5418 = vadd.f32 %v5091, %v5386
      %v5419 = vadd.f32 %v5092, %v5387
      %v5420 = vadd.f32 %v5093, %v5388
      %v5421 = vadd.f32 %v5094, %v5389
      %v5422 = vadd.f32 %v5095, %v5390
      %v5423 = vadd.f32 %v5096, %v5391
      %v5424 = vadd.f32 %v5097, %v5392
      %v5425 = vadd.f32 %v5098, %v5393
      %v5426 = vadd.f32 %v5099, %v5394
      %v5427 = vadd.f32 %v5100, %v5395
      %v5428 = vadd.f32 %v5101, %v5396
      %v5429 = vadd.f32 %v5102, %v5397
      %v5430 = vadd.f32 %v5103, %v5398
      %v5431 = vadd.f32 %v5104, %v5399
      %v5432 = vadd.f32 %v5105, %v5400
      %v5433 = vadd.f32 %v5106, %v5401
      %v5434 = vadd.f32 %v5107, %v5402
      %s5435 = sadd.s32 6, %s3339
      %s5436 = smul.addr %s5435, 4
      %s5437 = scalar_lea.vmem %s183, %s5436
      %v5438 = vld [vmem:[%s5437] sm:$0xf]
      %v5439 = vld [vmem:[%s5437 + $0x4] sm:$0xf]
      %v5440 = vld [vmem:[%s5437 + $0xc] sm:$0xf]
      %v5441 = vld [vmem:[%s5437 + $0x10] sm:$0xf]
      %v5442 = vld [vmem:[%s5437 + $0x18] sm:$0xf]
      %v5443 = vld [vmem:[%s5437 + $0x1c] sm:$0xf]
      %v5444 = vld [vmem:[%s5437 + $0x24] sm:$0xf]
      %v5445 = vld [vmem:[%s5437 + $0x28] sm:$0xf]
      %v5446 = vld [vmem:[%s5437 + $0x30] sm:$0xf]
      %v5447 = vld [vmem:[%s5437 + $0x34] sm:$0xf]
      %v5448 = vld [vmem:[%s5437 + $0x3c] sm:$0xf]
      %v5449 = vld [vmem:[%s5437 + $0x40] sm:$0xf]
      %v5450 = vld [vmem:[%s5437 + $0x48] sm:$0xf]
      %v5451 = vld [vmem:[%s5437 + $0x4c] sm:$0xf]
      %v5452 = vld [vmem:[%s5437 + $0x54] sm:$0xf]
      %v5453 = vld [vmem:[%s5437 + $0x58] sm:$0xf]
      %v5454 = vld [vmem:[%s5437 + $0x60] sm:$0xf]
      %v5455 = vld [vmem:[%s5437 + $0x64] sm:$0xf]
      %v5456 = vld [vmem:[%s5437 + $0x6c] sm:$0xf]
      %v5457 = vld [vmem:[%s5437 + $0x70] sm:$0xf]
      %v5458 = vld [vmem:[%s5437 + $0x78] sm:$0xf]
      %v5459 = vld [vmem:[%s5437 + $0x7c] sm:$0xf]
      %v5460 = vld [vmem:[%s5437 + $0x84] sm:$0xf]
      %v5461 = vld [vmem:[%s5437 + $0x88] sm:$0xf]
      %v5462 = vld [vmem:[%s5437 + $0x90] sm:$0xf]
      %v5463 = vld [vmem:[%s5437 + $0x94] sm:$0xf]
      %v5464 = vld [vmem:[%s5437 + $0x9c] sm:$0xf]
      %v5465 = vld [vmem:[%s5437 + $0xa0] sm:$0xf]
      %v5466 = vld [vmem:[%s5437 + $0xa8] sm:$0xf]
      %v5467 = vld [vmem:[%s5437 + $0xac] sm:$0xf]
      %v5468 = vld [vmem:[%s5437 + $0xb4] sm:$0xf]
      %v5469 = vld [vmem:[%s5437 + $0xb8] sm:$0xf]
      %v5470 = vunpack.c.l.bf16 %v5438
      %v5471 = vunpack.c.l.bf16 %v5439
      %v5472 = vunpack.c.l.bf16 %v5440
      %v5473 = vunpack.c.l.bf16 %v5441
      %v5474 = vunpack.c.l.bf16 %v5442
      %v5475 = vunpack.c.l.bf16 %v5443
      %v5476 = vunpack.c.l.bf16 %v5444
      %v5477 = vunpack.c.l.bf16 %v5445
      %v5478 = vunpack.c.l.bf16 %v5446
      %v5479 = vunpack.c.l.bf16 %v5447
      %v5480 = vunpack.c.l.bf16 %v5448
      %v5481 = vunpack.c.l.bf16 %v5449
      %v5482 = vunpack.c.l.bf16 %v5450
      %v5483 = vunpack.c.l.bf16 %v5451
      %v5484 = vunpack.c.l.bf16 %v5452
      %v5485 = vunpack.c.l.bf16 %v5453
      %v5486 = vunpack.c.l.bf16 %v5454
      %v5487 = vunpack.c.l.bf16 %v5455
      %v5488 = vunpack.c.l.bf16 %v5456
      %v5489 = vunpack.c.l.bf16 %v5457
      %v5490 = vunpack.c.l.bf16 %v5458
      %v5491 = vunpack.c.l.bf16 %v5459
      %v5492 = vunpack.c.l.bf16 %v5460
      %v5493 = vunpack.c.l.bf16 %v5461
      %v5494 = vunpack.c.l.bf16 %v5462
      %v5495 = vunpack.c.l.bf16 %v5463
      %v5496 = vunpack.c.l.bf16 %v5464
      %v5497 = vunpack.c.l.bf16 %v5465
      %v5498 = vunpack.c.l.bf16 %v5466
      %v5499 = vunpack.c.l.bf16 %v5467
      %v5500 = vunpack.c.l.bf16 %v5468
      %v5501 = vunpack.c.l.bf16 %v5469
      %s5502 = scalar_lea.vmem %s1, 15
      %v5503 = vld [vmem:[%s5502] sm:$0x1]
      %v5504 = vunpack.c.l.bf16 %v5503
      %5506 = vset.pattern.permute.xlu0 0
      %5507 = vperm.xlu0 %5506, %v5470
      %v5508 = vpop.permute.xlu0 %5507
      %5511 = vset.pattern.permute.xlu0 0
      %5512 = vperm.xlu0 %5511, %v5471
      %v5513 = vpop.permute.xlu0 %5512
      %5516 = vset.pattern.permute.xlu0 0
      %5517 = vperm.xlu0 %5516, %v5472
      %v5518 = vpop.permute.xlu0 %5517
      %5521 = vset.pattern.permute.xlu0 0
      %5522 = vperm.xlu0 %5521, %v5473
      %v5523 = vpop.permute.xlu0 %5522
      %5526 = vset.pattern.permute.xlu0 0
      %5527 = vperm.xlu0 %5526, %v5474
      %v5528 = vpop.permute.xlu0 %5527
      %5531 = vset.pattern.permute.xlu0 0
      %5532 = vperm.xlu0 %5531, %v5475
      %v5533 = vpop.permute.xlu0 %5532
      %5536 = vset.pattern.permute.xlu0 0
      %5537 = vperm.xlu0 %5536, %v5476
      %v5538 = vpop.permute.xlu0 %5537
      %5541 = vset.pattern.permute.xlu0 0
      %5542 = vperm.xlu0 %5541, %v5477
      %v5543 = vpop.permute.xlu0 %5542
      %5546 = vset.pattern.permute.xlu0 0
      %5547 = vperm.xlu0 %5546, %v5478
      %v5548 = vpop.permute.xlu0 %5547
      %5551 = vset.pattern.permute.xlu0 0
      %5552 = vperm.xlu0 %5551, %v5479
      %v5553 = vpop.permute.xlu0 %5552
      %5556 = vset.pattern.permute.xlu0 0
      %5557 = vperm.xlu0 %5556, %v5480
      %v5558 = vpop.permute.xlu0 %5557
      %5561 = vset.pattern.permute.xlu0 0
      %5562 = vperm.xlu0 %5561, %v5481
      %v5563 = vpop.permute.xlu0 %5562
      %5566 = vset.pattern.permute.xlu0 0
      %5567 = vperm.xlu0 %5566, %v5482
      %v5568 = vpop.permute.xlu0 %5567
      %5571 = vset.pattern.permute.xlu0 0
      %5572 = vperm.xlu0 %5571, %v5483
      %v5573 = vpop.permute.xlu0 %5572
      %5576 = vset.pattern.permute.xlu0 0
      %5577 = vperm.xlu0 %5576, %v5484
      %v5578 = vpop.permute.xlu0 %5577
      %5581 = vset.pattern.permute.xlu0 0
      %5582 = vperm.xlu0 %5581, %v5485
      %v5583 = vpop.permute.xlu0 %5582
      %5586 = vset.pattern.permute.xlu0 0
      %5587 = vperm.xlu0 %5586, %v5486
      %v5588 = vpop.permute.xlu0 %5587
      %5591 = vset.pattern.permute.xlu0 0
      %5592 = vperm.xlu0 %5591, %v5487
      %v5593 = vpop.permute.xlu0 %5592
      %5596 = vset.pattern.permute.xlu0 0
      %5597 = vperm.xlu0 %5596, %v5488
      %v5598 = vpop.permute.xlu0 %5597
      %5601 = vset.pattern.permute.xlu0 0
      %5602 = vperm.xlu0 %5601, %v5489
      %v5603 = vpop.permute.xlu0 %5602
      %5606 = vset.pattern.permute.xlu0 0
      %5607 = vperm.xlu0 %5606, %v5490
      %v5608 = vpop.permute.xlu0 %5607
      %5611 = vset.pattern.permute.xlu0 0
      %5612 = vperm.xlu0 %5611, %v5491
      %v5613 = vpop.permute.xlu0 %5612
      %5616 = vset.pattern.permute.xlu0 0
      %5617 = vperm.xlu0 %5616, %v5492
      %v5618 = vpop.permute.xlu0 %5617
      %5621 = vset.pattern.permute.xlu0 0
      %5622 = vperm.xlu0 %5621, %v5493
      %v5623 = vpop.permute.xlu0 %5622
      %5626 = vset.pattern.permute.xlu0 0
      %5627 = vperm.xlu0 %5626, %v5494
      %v5628 = vpop.permute.xlu0 %5627
      %5631 = vset.pattern.permute.xlu0 0
      %5632 = vperm.xlu0 %5631, %v5495
      %v5633 = vpop.permute.xlu0 %5632
      %5636 = vset.pattern.permute.xlu0 0
      %5637 = vperm.xlu0 %5636, %v5496
      %v5638 = vpop.permute.xlu0 %5637
      %5641 = vset.pattern.permute.xlu0 0
      %5642 = vperm.xlu0 %5641, %v5497
      %v5643 = vpop.permute.xlu0 %5642
      %5646 = vset.pattern.permute.xlu0 0
      %5647 = vperm.xlu0 %5646, %v5498
      %v5648 = vpop.permute.xlu0 %5647
      %5651 = vset.pattern.permute.xlu0 0
      %5652 = vperm.xlu0 %5651, %v5499
      %v5653 = vpop.permute.xlu0 %5652
      %5656 = vset.pattern.permute.xlu0 0
      %5657 = vperm.xlu0 %5656, %v5500
      %v5658 = vpop.permute.xlu0 %5657
      %5661 = vset.pattern.permute.xlu0 0
      %5662 = vperm.xlu0 %5661, %v5501
      %v5663 = vpop.permute.xlu0 %5662
      %v5665 = vlaneseq
      %v5666 = vshrl.u32 %v5665, 7
      %v5667 = vsub.s32 0, %v5666
      %v5668 = vrot.slane %v5504, %v5667
      %v5669 = vmul.f32 %v5508, %v5668
      %v5670 = vmul.f32 %v5513, %v5668
      %v5671 = vmul.f32 %v5518, %v5668
      %v5672 = vmul.f32 %v5523, %v5668
      %v5673 = vmul.f32 %v5528, %v5668
      %v5674 = vmul.f32 %v5533, %v5668
      %v5675 = vmul.f32 %v5538, %v5668
      %v5676 = vmul.f32 %v5543, %v5668
      %v5677 = vmul.f32 %v5548, %v5668
      %v5678 = vmul.f32 %v5553, %v5668
      %v5679 = vmul.f32 %v5558, %v5668
      %v5680 = vmul.f32 %v5563, %v5668
      %v5681 = vmul.f32 %v5568, %v5668
      %v5682 = vmul.f32 %v5573, %v5668
      %v5683 = vmul.f32 %v5578, %v5668
      %v5684 = vmul.f32 %v5583, %v5668
      %v5685 = vmul.f32 %v5588, %v5668
      %v5686 = vmul.f32 %v5593, %v5668
      %v5687 = vmul.f32 %v5598, %v5668
      %v5688 = vmul.f32 %v5603, %v5668
      %v5689 = vmul.f32 %v5608, %v5668
      %v5690 = vmul.f32 %v5613, %v5668
      %v5691 = vmul.f32 %v5618, %v5668
      %v5692 = vmul.f32 %v5623, %v5668
      %v5693 = vmul.f32 %v5628, %v5668
      %v5694 = vmul.f32 %v5633, %v5668
      %v5695 = vmul.f32 %v5638, %v5668
      %v5696 = vmul.f32 %v5643, %v5668
      %v5697 = vmul.f32 %v5648, %v5668
      %v5698 = vmul.f32 %v5653, %v5668
      %v5699 = vmul.f32 %v5658, %v5668
      %v5700 = vmul.f32 %v5663, %v5668
      %v5701 = vadd.f32 %v5403, %v5669
      %v5702 = vadd.f32 %v5404, %v5670
      %v5703 = vadd.f32 %v5405, %v5671
      %v5704 = vadd.f32 %v5406, %v5672
      %v5705 = vadd.f32 %v5407, %v5673
      %v5706 = vadd.f32 %v5408, %v5674
      %v5707 = vadd.f32 %v5409, %v5675
      %v5708 = vadd.f32 %v5410, %v5676
      %v5709 = vadd.f32 %v5411, %v5677
      %v5710 = vadd.f32 %v5412, %v5678
      %v5711 = vadd.f32 %v5413, %v5679
      %v5712 = vadd.f32 %v5414, %v5680
      %v5713 = vadd.f32 %v5415, %v5681
      %v5714 = vadd.f32 %v5416, %v5682
      %v5715 = vadd.f32 %v5417, %v5683
      %v5716 = vadd.f32 %v5418, %v5684
      %v5717 = vadd.f32 %v5419, %v5685
      %v5718 = vadd.f32 %v5420, %v5686
      %v5719 = vadd.f32 %v5421, %v5687
      %v5720 = vadd.f32 %v5422, %v5688
      %v5721 = vadd.f32 %v5423, %v5689
      %v5722 = vadd.f32 %v5424, %v5690
      %v5723 = vadd.f32 %v5425, %v5691
      %v5724 = vadd.f32 %v5426, %v5692
      %v5725 = vadd.f32 %v5427, %v5693
      %v5726 = vadd.f32 %v5428, %v5694
      %v5727 = vadd.f32 %v5429, %v5695
      %v5728 = vadd.f32 %v5430, %v5696
      %v5729 = vadd.f32 %v5431, %v5697
      %v5730 = vadd.f32 %v5432, %v5698
      %v5731 = vadd.f32 %v5433, %v5699
      %v5732 = vadd.f32 %v5434, %v5700
      %v5733 = vld [vmem:[%s5437] sm:$0xf]
      %v5734 = vld [vmem:[%s5437 + $0x4] sm:$0xf]
      %v5735 = vld [vmem:[%s5437 + $0x8] sm:$0x1]
      %v5736 = vld [vmem:[%s5437 + $0xc] sm:$0xf]
      %v5737 = vld [vmem:[%s5437 + $0x10] sm:$0xf]
      %v5738 = vld [vmem:[%s5437 + $0x14] sm:$0x1]
      %v5739 = vld [vmem:[%s5437 + $0x18] sm:$0xf]
      %v5740 = vld [vmem:[%s5437 + $0x1c] sm:$0xf]
      %v5741 = vld [vmem:[%s5437 + $0x20] sm:$0x1]
      %v5742 = vld [vmem:[%s5437 + $0x24] sm:$0xf]
      %v5743 = vld [vmem:[%s5437 + $0x28] sm:$0xf]
      %v5744 = vld [vmem:[%s5437 + $0x2c] sm:$0x1]
      %v5745 = vld [vmem:[%s5437 + $0x30] sm:$0xf]
      %v5746 = vld [vmem:[%s5437 + $0x34] sm:$0xf]
      %v5747 = vld [vmem:[%s5437 + $0x38] sm:$0x1]
      %v5748 = vld [vmem:[%s5437 + $0x3c] sm:$0xf]
      %v5749 = vld [vmem:[%s5437 + $0x40] sm:$0xf]
      %v5750 = vld [vmem:[%s5437 + $0x44] sm:$0x1]
      %v5751 = vld [vmem:[%s5437 + $0x48] sm:$0xf]
      %v5752 = vld [vmem:[%s5437 + $0x4c] sm:$0xf]
      %v5753 = vld [vmem:[%s5437 + $0x50] sm:$0x1]
      %v5754 = vld [vmem:[%s5437 + $0x54] sm:$0xf]
      %v5755 = vld [vmem:[%s5437 + $0x58] sm:$0xf]
      %v5756 = vld [vmem:[%s5437 + $0x5c] sm:$0x1]
      %v5757 = vld [vmem:[%s5437 + $0x60] sm:$0xf]
      %v5758 = vld [vmem:[%s5437 + $0x64] sm:$0xf]
      %v5759 = vld [vmem:[%s5437 + $0x68] sm:$0x1]
      %v5760 = vld [vmem:[%s5437 + $0x6c] sm:$0xf]
      %v5761 = vld [vmem:[%s5437 + $0x70] sm:$0xf]
      %v5762 = vld [vmem:[%s5437 + $0x74] sm:$0x1]
      %v5763 = vld [vmem:[%s5437 + $0x78] sm:$0xf]
      %v5764 = vld [vmem:[%s5437 + $0x7c] sm:$0xf]
      %v5765 = vld [vmem:[%s5437 + $0x80] sm:$0x1]
      %v5766 = vld [vmem:[%s5437 + $0x84] sm:$0xf]
      %v5767 = vld [vmem:[%s5437 + $0x88] sm:$0xf]
      %v5768 = vld [vmem:[%s5437 + $0x8c] sm:$0x1]
      %v5769 = vld [vmem:[%s5437 + $0x90] sm:$0xf]
      %v5770 = vld [vmem:[%s5437 + $0x94] sm:$0xf]
      %v5771 = vld [vmem:[%s5437 + $0x98] sm:$0x1]
      %v5772 = vld [vmem:[%s5437 + $0x9c] sm:$0xf]
      %v5773 = vld [vmem:[%s5437 + $0xa0] sm:$0xf]
      %v5774 = vld [vmem:[%s5437 + $0xa4] sm:$0x1]
      %v5775 = vld [vmem:[%s5437 + $0xa8] sm:$0xf]
      %v5776 = vld [vmem:[%s5437 + $0xac] sm:$0xf]
      %v5777 = vld [vmem:[%s5437 + $0xb0] sm:$0x1]
      %v5778 = vld [vmem:[%s5437 + $0xb4] sm:$0xf]
      %v5779 = vld [vmem:[%s5437 + $0xb8] sm:$0xf]
      %v5780 = vld [vmem:[%s5437 + $0xbc] sm:$0x1]
      %v5781 = vunpack.c.l.bf16 %v5733
      %v5782 = vunpack.c.l.bf16 %v5734
      %v5783 = vunpack.c.l.bf16 %v5735
      %v5784 = vunpack.c.l.bf16 %v5736
      %v5785 = vunpack.c.l.bf16 %v5737
      %v5786 = vunpack.c.l.bf16 %v5738
      %v5787 = vunpack.c.l.bf16 %v5739
      %v5788 = vunpack.c.l.bf16 %v5740
      %v5789 = vunpack.c.l.bf16 %v5741
      %v5790 = vunpack.c.l.bf16 %v5742
      %v5791 = vunpack.c.l.bf16 %v5743
      %v5792 = vunpack.c.l.bf16 %v5744
      %v5793 = vunpack.c.l.bf16 %v5745
      %v5794 = vunpack.c.l.bf16 %v5746
      %v5795 = vunpack.c.l.bf16 %v5747
      %v5796 = vunpack.c.l.bf16 %v5748
      %v5797 = vunpack.c.l.bf16 %v5749
      %v5798 = vunpack.c.l.bf16 %v5750
      %v5799 = vunpack.c.l.bf16 %v5751
      %v5800 = vunpack.c.l.bf16 %v5752
      %v5801 = vunpack.c.l.bf16 %v5753
      %v5802 = vunpack.c.l.bf16 %v5754
      %v5803 = vunpack.c.l.bf16 %v5755
      %v5804 = vunpack.c.l.bf16 %v5756
      %v5805 = vunpack.c.l.bf16 %v5757
      %v5806 = vunpack.c.l.bf16 %v5758
      %v5807 = vunpack.c.l.bf16 %v5759
      %v5808 = vunpack.c.l.bf16 %v5760
      %v5809 = vunpack.c.l.bf16 %v5761
      %v5810 = vunpack.c.l.bf16 %v5762
      %v5811 = vunpack.c.l.bf16 %v5763
      %v5812 = vunpack.c.l.bf16 %v5764
      %v5813 = vunpack.c.l.bf16 %v5765
      %v5814 = vunpack.c.l.bf16 %v5766
      %v5815 = vunpack.c.l.bf16 %v5767
      %v5816 = vunpack.c.l.bf16 %v5768
      %v5817 = vunpack.c.l.bf16 %v5769
      %v5818 = vunpack.c.l.bf16 %v5770
      %v5819 = vunpack.c.l.bf16 %v5771
      %v5820 = vunpack.c.l.bf16 %v5772
      %v5821 = vunpack.c.l.bf16 %v5773
      %v5822 = vunpack.c.l.bf16 %v5774
      %v5823 = vunpack.c.l.bf16 %v5775
      %v5824 = vunpack.c.l.bf16 %v5776
      %v5825 = vunpack.c.l.bf16 %v5777
      %v5826 = vunpack.c.l.bf16 %v5778
      %v5827 = vunpack.c.l.bf16 %v5779
      %v5828 = vunpack.c.l.bf16 %v5780
      %v5877 = vrot.slane %v5781, 1
      %v5878 = vrot.slane %v5782, 1
      %v5879 = vsel %vm634, %v5877, %v5878
      %v5880 = vrot.slane %v5783, 1
      %v5881 = vsel %vm634, %v5878, %v5880
      %v5882 = vrot.slane %v5784, 1
      %v5883 = vrot.slane %v5785, 1
      %v5884 = vsel %vm634, %v5882, %v5883
      %v5885 = vrot.slane %v5786, 1
      %v5886 = vsel %vm634, %v5883, %v5885
      %v5887 = vrot.slane %v5787, 1
      %v5888 = vrot.slane %v5788, 1
      %v5889 = vsel %vm634, %v5887, %v5888
      %v5890 = vrot.slane %v5789, 1
      %v5891 = vsel %vm634, %v5888, %v5890
      %v5892 = vrot.slane %v5790, 1
      %v5893 = vrot.slane %v5791, 1
      %v5894 = vsel %vm634, %v5892, %v5893
      %v5895 = vrot.slane %v5792, 1
      %v5896 = vsel %vm634, %v5893, %v5895
      %v5897 = vrot.slane %v5793, 1
      %v5898 = vrot.slane %v5794, 1
      %v5899 = vsel %vm634, %v5897, %v5898
      %v5900 = vrot.slane %v5795, 1
      %v5901 = vsel %vm634, %v5898, %v5900
      %v5902 = vrot.slane %v5796, 1
      %v5903 = vrot.slane %v5797, 1
      %v5904 = vsel %vm634, %v5902, %v5903
      %v5905 = vrot.slane %v5798, 1
      %v5906 = vsel %vm634, %v5903, %v5905
      %v5907 = vrot.slane %v5799, 1
      %v5908 = vrot.slane %v5800, 1
      %v5909 = vsel %vm634, %v5907, %v5908
      %v5910 = vrot.slane %v5801, 1
      %v5911 = vsel %vm634, %v5908, %v5910
      %v5912 = vrot.slane %v5802, 1
      %v5913 = vrot.slane %v5803, 1
      %v5914 = vsel %vm634, %v5912, %v5913
      %v5915 = vrot.slane %v5804, 1
      %v5916 = vsel %vm634, %v5913, %v5915
      %v5917 = vrot.slane %v5805, 1
      %v5918 = vrot.slane %v5806, 1
      %v5919 = vsel %vm634, %v5917, %v5918
      %v5920 = vrot.slane %v5807, 1
      %v5921 = vsel %vm634, %v5918, %v5920
      %v5922 = vrot.slane %v5808, 1
      %v5923 = vrot.slane %v5809, 1
      %v5924 = vsel %vm634, %v5922, %v5923
      %v5925 = vrot.slane %v5810, 1
      %v5926 = vsel %vm634, %v5923, %v5925
      %v5927 = vrot.slane %v5811, 1
      %v5928 = vrot.slane %v5812, 1
      %v5929 = vsel %vm634, %v5927, %v5928
      %v5930 = vrot.slane %v5813, 1
      %v5931 = vsel %vm634, %v5928, %v5930
      %v5932 = vrot.slane %v5814, 1
      %v5933 = vrot.slane %v5815, 1
      %v5934 = vsel %vm634, %v5932, %v5933
      %v5935 = vrot.slane %v5816, 1
      %v5936 = vsel %vm634, %v5933, %v5935
      %v5937 = vrot.slane %v5817, 1
      %v5938 = vrot.slane %v5818, 1
      %v5939 = vsel %vm634, %v5937, %v5938
      %v5940 = vrot.slane %v5819, 1
      %v5941 = vsel %vm634, %v5938, %v5940
      %v5942 = vrot.slane %v5820, 1
      %v5943 = vrot.slane %v5821, 1
      %v5944 = vsel %vm634, %v5942, %v5943
      %v5945 = vrot.slane %v5822, 1
      %v5946 = vsel %vm634, %v5943, %v5945
      %v5947 = vrot.slane %v5823, 1
      %v5948 = vrot.slane %v5824, 1
      %v5949 = vsel %vm634, %v5947, %v5948
      %v5950 = vrot.slane %v5825, 1
      %v5951 = vsel %vm634, %v5948, %v5950
      %v5952 = vrot.slane %v5826, 1
      %v5953 = vrot.slane %v5827, 1
      %v5954 = vsel %vm634, %v5952, %v5953
      %v5955 = vrot.slane %v5828, 1
      %v5956 = vsel %vm634, %v5953, %v5955
      %s5957 = scalar_lea.vmem %s1, 16
      %v5958 = vld [vmem:[%s5957] sm:$0x1]
      %v5959 = vunpack.c.l.bf16 %v5958
      %5960 = vset.pattern.permute.xlu0 0
      %5961 = vperm.xlu0 %5960, %v5879
      %v5962 = vpop.permute.xlu0 %5961
      %5964 = vset.pattern.permute.xlu0 0
      %5965 = vperm.xlu0 %5964, %v5881
      %v5966 = vpop.permute.xlu0 %5965
      %5968 = vset.pattern.permute.xlu0 0
      %5969 = vperm.xlu0 %5968, %v5884
      %v5970 = vpop.permute.xlu0 %5969
      %5972 = vset.pattern.permute.xlu0 0
      %5973 = vperm.xlu0 %5972, %v5886
      %v5974 = vpop.permute.xlu0 %5973
      %5976 = vset.pattern.permute.xlu0 0
      %5977 = vperm.xlu0 %5976, %v5889
      %v5978 = vpop.permute.xlu0 %5977
      %5980 = vset.pattern.permute.xlu0 0
      %5981 = vperm.xlu0 %5980, %v5891
      %v5982 = vpop.permute.xlu0 %5981
      %5984 = vset.pattern.permute.xlu0 0
      %5985 = vperm.xlu0 %5984, %v5894
      %v5986 = vpop.permute.xlu0 %5985
      %5988 = vset.pattern.permute.xlu0 0
      %5989 = vperm.xlu0 %5988, %v5896
      %v5990 = vpop.permute.xlu0 %5989
      %5992 = vset.pattern.permute.xlu0 0
      %5993 = vperm.xlu0 %5992, %v5899
      %v5994 = vpop.permute.xlu0 %5993
      %5996 = vset.pattern.permute.xlu0 0
      %5997 = vperm.xlu0 %5996, %v5901
      %v5998 = vpop.permute.xlu0 %5997
      %6000 = vset.pattern.permute.xlu0 0
      %6001 = vperm.xlu0 %6000, %v5904
      %v6002 = vpop.permute.xlu0 %6001
      %6004 = vset.pattern.permute.xlu0 0
      %6005 = vperm.xlu0 %6004, %v5906
      %v6006 = vpop.permute.xlu0 %6005
      %6008 = vset.pattern.permute.xlu0 0
      %6009 = vperm.xlu0 %6008, %v5909
      %v6010 = vpop.permute.xlu0 %6009
      %6012 = vset.pattern.permute.xlu0 0
      %6013 = vperm.xlu0 %6012, %v5911
      %v6014 = vpop.permute.xlu0 %6013
      %6016 = vset.pattern.permute.xlu0 0
      %6017 = vperm.xlu0 %6016, %v5914
      %v6018 = vpop.permute.xlu0 %6017
      %6020 = vset.pattern.permute.xlu0 0
      %6021 = vperm.xlu0 %6020, %v5916
      %v6022 = vpop.permute.xlu0 %6021
      %6024 = vset.pattern.permute.xlu0 0
      %6025 = vperm.xlu0 %6024, %v5919
      %v6026 = vpop.permute.xlu0 %6025
      %6028 = vset.pattern.permute.xlu0 0
      %6029 = vperm.xlu0 %6028, %v5921
      %v6030 = vpop.permute.xlu0 %6029
      %6032 = vset.pattern.permute.xlu0 0
      %6033 = vperm.xlu0 %6032, %v5924
      %v6034 = vpop.permute.xlu0 %6033
      %6036 = vset.pattern.permute.xlu0 0
      %6037 = vperm.xlu0 %6036, %v5926
      %v6038 = vpop.permute.xlu0 %6037
      %6040 = vset.pattern.permute.xlu0 0
      %6041 = vperm.xlu0 %6040, %v5929
      %v6042 = vpop.permute.xlu0 %6041
      %6044 = vset.pattern.permute.xlu0 0
      %6045 = vperm.xlu0 %6044, %v5931
      %v6046 = vpop.permute.xlu0 %6045
      %6048 = vset.pattern.permute.xlu0 0
      %6049 = vperm.xlu0 %6048, %v5934
      %v6050 = vpop.permute.xlu0 %6049
      %6052 = vset.pattern.permute.xlu0 0
      %6053 = vperm.xlu0 %6052, %v5936
      %v6054 = vpop.permute.xlu0 %6053
      %6056 = vset.pattern.permute.xlu0 0
      %6057 = vperm.xlu0 %6056, %v5939
      %v6058 = vpop.permute.xlu0 %6057
      %6060 = vset.pattern.permute.xlu0 0
      %6061 = vperm.xlu0 %6060, %v5941
      %v6062 = vpop.permute.xlu0 %6061
      %6064 = vset.pattern.permute.xlu0 0
      %6065 = vperm.xlu0 %6064, %v5944
      %v6066 = vpop.permute.xlu0 %6065
      %6068 = vset.pattern.permute.xlu0 0
      %6069 = vperm.xlu0 %6068, %v5946
      %v6070 = vpop.permute.xlu0 %6069
      %6072 = vset.pattern.permute.xlu0 0
      %6073 = vperm.xlu0 %6072, %v5949
      %v6074 = vpop.permute.xlu0 %6073
      %6076 = vset.pattern.permute.xlu0 0
      %6077 = vperm.xlu0 %6076, %v5951
      %v6078 = vpop.permute.xlu0 %6077
      %6080 = vset.pattern.permute.xlu0 0
      %6081 = vperm.xlu0 %6080, %v5954
      %v6082 = vpop.permute.xlu0 %6081
      %6084 = vset.pattern.permute.xlu0 0
      %6085 = vperm.xlu0 %6084, %v5956
      %v6086 = vpop.permute.xlu0 %6085
      %v6088 = vlaneseq
      %v6089 = vshrl.u32 %v6088, 7
      %v6090 = vsub.s32 0, %v6089
      %v6091 = vrot.slane %v5959, %v6090
      %v6092 = vmul.f32 %v5962, %v6091
      %v6093 = vmul.f32 %v5966, %v6091
      %v6094 = vmul.f32 %v5970, %v6091
      %v6095 = vmul.f32 %v5974, %v6091
      %v6096 = vmul.f32 %v5978, %v6091
      %v6097 = vmul.f32 %v5982, %v6091
      %v6098 = vmul.f32 %v5986, %v6091
      %v6099 = vmul.f32 %v5990, %v6091
      %v6100 = vmul.f32 %v5994, %v6091
      %v6101 = vmul.f32 %v5998, %v6091
      %v6102 = vmul.f32 %v6002, %v6091
      %v6103 = vmul.f32 %v6006, %v6091
      %v6104 = vmul.f32 %v6010, %v6091
      %v6105 = vmul.f32 %v6014, %v6091
      %v6106 = vmul.f32 %v6018, %v6091
      %v6107 = vmul.f32 %v6022, %v6091
      %v6108 = vmul.f32 %v6026, %v6091
      %v6109 = vmul.f32 %v6030, %v6091
      %v6110 = vmul.f32 %v6034, %v6091
      %v6111 = vmul.f32 %v6038, %v6091
      %v6112 = vmul.f32 %v6042, %v6091
      %v6113 = vmul.f32 %v6046, %v6091
      %v6114 = vmul.f32 %v6050, %v6091
      %v6115 = vmul.f32 %v6054, %v6091
      %v6116 = vmul.f32 %v6058, %v6091
      %v6117 = vmul.f32 %v6062, %v6091
      %v6118 = vmul.f32 %v6066, %v6091
      %v6119 = vmul.f32 %v6070, %v6091
      %v6120 = vmul.f32 %v6074, %v6091
      %v6121 = vmul.f32 %v6078, %v6091
      %v6122 = vmul.f32 %v6082, %v6091
      %v6123 = vmul.f32 %v6086, %v6091
      %v6124 = vadd.f32 %v5701, %v6092
      %v6125 = vadd.f32 %v5702, %v6093
      %v6126 = vadd.f32 %v5703, %v6094
      %v6127 = vadd.f32 %v5704, %v6095
      %v6128 = vadd.f32 %v5705, %v6096
      %v6129 = vadd.f32 %v5706, %v6097
      %v6130 = vadd.f32 %v5707, %v6098
      %v6131 = vadd.f32 %v5708, %v6099
      %v6132 = vadd.f32 %v5709, %v6100
      %v6133 = vadd.f32 %v5710, %v6101
      %v6134 = vadd.f32 %v5711, %v6102
      %v6135 = vadd.f32 %v5712, %v6103
      %v6136 = vadd.f32 %v5713, %v6104
      %v6137 = vadd.f32 %v5714, %v6105
      %v6138 = vadd.f32 %v5715, %v6106
      %v6139 = vadd.f32 %v5716, %v6107
      %v6140 = vadd.f32 %v5717, %v6108
      %v6141 = vadd.f32 %v5718, %v6109
      %v6142 = vadd.f32 %v5719, %v6110
      %v6143 = vadd.f32 %v5720, %v6111
      %v6144 = vadd.f32 %v5721, %v6112
      %v6145 = vadd.f32 %v5722, %v6113
      %v6146 = vadd.f32 %v5723, %v6114
      %v6147 = vadd.f32 %v5724, %v6115
      %v6148 = vadd.f32 %v5725, %v6116
      %v6149 = vadd.f32 %v5726, %v6117
      %v6150 = vadd.f32 %v5727, %v6118
      %v6151 = vadd.f32 %v5728, %v6119
      %v6152 = vadd.f32 %v5729, %v6120
      %v6153 = vadd.f32 %v5730, %v6121
      %v6154 = vadd.f32 %v5731, %v6122
      %v6155 = vadd.f32 %v5732, %v6123
      %v6156 = vld [vmem:[%s5437] sm:$0xe]
      %v6157 = vld [vmem:[%s5437 + $0xc] sm:$0xe]
      %v6158 = vld [vmem:[%s5437 + $0x18] sm:$0xe]
      %v6159 = vld [vmem:[%s5437 + $0x24] sm:$0xe]
      %v6160 = vld [vmem:[%s5437 + $0x30] sm:$0xe]
      %v6161 = vld [vmem:[%s5437 + $0x3c] sm:$0xe]
      %v6162 = vld [vmem:[%s5437 + $0x48] sm:$0xe]
      %v6163 = vld [vmem:[%s5437 + $0x54] sm:$0xe]
      %v6164 = vld [vmem:[%s5437 + $0x60] sm:$0xe]
      %v6165 = vld [vmem:[%s5437 + $0x6c] sm:$0xe]
      %v6166 = vld [vmem:[%s5437 + $0x78] sm:$0xe]
      %v6167 = vld [vmem:[%s5437 + $0x84] sm:$0xe]
      %v6168 = vld [vmem:[%s5437 + $0x90] sm:$0xe]
      %v6169 = vld [vmem:[%s5437 + $0x9c] sm:$0xe]
      %v6170 = vld [vmem:[%s5437 + $0xa8] sm:$0xe]
      %v6171 = vld [vmem:[%s5437 + $0xb4] sm:$0xe]
      %v6172 = vunpack.c.l.bf16 %v6156
      %v6173 = vunpack.c.l.bf16 %v6157
      %v6174 = vunpack.c.l.bf16 %v6158
      %v6175 = vunpack.c.l.bf16 %v6159
      %v6176 = vunpack.c.l.bf16 %v6160
      %v6177 = vunpack.c.l.bf16 %v6161
      %v6178 = vunpack.c.l.bf16 %v6162
      %v6179 = vunpack.c.l.bf16 %v6163
      %v6180 = vunpack.c.l.bf16 %v6164
      %v6181 = vunpack.c.l.bf16 %v6165
      %v6182 = vunpack.c.l.bf16 %v6166
      %v6183 = vunpack.c.l.bf16 %v6167
      %v6184 = vunpack.c.l.bf16 %v6168
      %v6185 = vunpack.c.l.bf16 %v6169
      %v6186 = vunpack.c.l.bf16 %v6170
      %v6187 = vunpack.c.l.bf16 %v6171
      %v6204 = vrot.slane %v6172, 2
      %v6205 = vrot.slane %v5782, 2
      %v6206 = vsel %vm962, %v6204, %v6205
      %v6207 = vrot.slane %v5783, 2
      %v6208 = vsel %vm962, %v6205, %v6207
      %v6209 = vrot.slane %v6173, 2
      %v6210 = vrot.slane %v5785, 2
      %v6211 = vsel %vm962, %v6209, %v6210
      %v6212 = vrot.slane %v5786, 2
      %v6213 = vsel %vm962, %v6210, %v6212
      %v6214 = vrot.slane %v6174, 2
      %v6215 = vrot.slane %v5788, 2
      %v6216 = vsel %vm962, %v6214, %v6215
      %v6217 = vrot.slane %v5789, 2
      %v6218 = vsel %vm962, %v6215, %v6217
      %v6219 = vrot.slane %v6175, 2
      %v6220 = vrot.slane %v5791, 2
      %v6221 = vsel %vm962, %v6219, %v6220
      %v6222 = vrot.slane %v5792, 2
      %v6223 = vsel %vm962, %v6220, %v6222
      %v6224 = vrot.slane %v6176, 2
      %v6225 = vrot.slane %v5794, 2
      %v6226 = vsel %vm962, %v6224, %v6225
      %v6227 = vrot.slane %v5795, 2
      %v6228 = vsel %vm962, %v6225, %v6227
      %v6229 = vrot.slane %v6177, 2
      %v6230 = vrot.slane %v5797, 2
      %v6231 = vsel %vm962, %v6229, %v6230
      %v6232 = vrot.slane %v5798, 2
      %v6233 = vsel %vm962, %v6230, %v6232
      %v6234 = vrot.slane %v6178, 2
      %v6235 = vrot.slane %v5800, 2
      %v6236 = vsel %vm962, %v6234, %v6235
      %v6237 = vrot.slane %v5801, 2
      %v6238 = vsel %vm962, %v6235, %v6237
      %v6239 = vrot.slane %v6179, 2
      %v6240 = vrot.slane %v5803, 2
      %v6241 = vsel %vm962, %v6239, %v6240
      %v6242 = vrot.slane %v5804, 2
      %v6243 = vsel %vm962, %v6240, %v6242
      %v6244 = vrot.slane %v6180, 2
      %v6245 = vrot.slane %v5806, 2
      %v6246 = vsel %vm962, %v6244, %v6245
      %v6247 = vrot.slane %v5807, 2
      %v6248 = vsel %vm962, %v6245, %v6247
      %v6249 = vrot.slane %v6181, 2
      %v6250 = vrot.slane %v5809, 2
      %v6251 = vsel %vm962, %v6249, %v6250
      %v6252 = vrot.slane %v5810, 2
      %v6253 = vsel %vm962, %v6250, %v6252
      %v6254 = vrot.slane %v6182, 2
      %v6255 = vrot.slane %v5812, 2
      %v6256 = vsel %vm962, %v6254, %v6255
      %v6257 = vrot.slane %v5813, 2
      %v6258 = vsel %vm962, %v6255, %v6257
      %v6259 = vrot.slane %v6183, 2
      %v6260 = vrot.slane %v5815, 2
      %v6261 = vsel %vm962, %v6259, %v6260
      %v6262 = vrot.slane %v5816, 2
      %v6263 = vsel %vm962, %v6260, %v6262
      %v6264 = vrot.slane %v6184, 2
      %v6265 = vrot.slane %v5818, 2
      %v6266 = vsel %vm962, %v6264, %v6265
      %v6267 = vrot.slane %v5819, 2
      %v6268 = vsel %vm962, %v6265, %v6267
      %v6269 = vrot.slane %v6185, 2
      %v6270 = vrot.slane %v5821, 2
      %v6271 = vsel %vm962, %v6269, %v6270
      %v6272 = vrot.slane %v5822, 2
      %v6273 = vsel %vm962, %v6270, %v6272
      %v6274 = vrot.slane %v6186, 2
      %v6275 = vrot.slane %v5824, 2
      %v6276 = vsel %vm962, %v6274, %v6275
      %v6277 = vrot.slane %v5825, 2
      %v6278 = vsel %vm962, %v6275, %v6277
      %v6279 = vrot.slane %v6187, 2
      %v6280 = vrot.slane %v5827, 2
      %v6281 = vsel %vm962, %v6279, %v6280
      %v6282 = vrot.slane %v5828, 2
      %v6283 = vsel %vm962, %v6280, %v6282
      %s6284 = scalar_lea.vmem %s1, 17
      %v6285 = vld [vmem:[%s6284] sm:$0x1]
      %v6286 = vunpack.c.l.bf16 %v6285
      %6287 = vset.pattern.permute.xlu0 0
      %6288 = vperm.xlu0 %6287, %v6206
      %v6289 = vpop.permute.xlu0 %6288
      %6291 = vset.pattern.permute.xlu0 0
      %6292 = vperm.xlu0 %6291, %v6208
      %v6293 = vpop.permute.xlu0 %6292
      %6295 = vset.pattern.permute.xlu0 0
      %6296 = vperm.xlu0 %6295, %v6211
      %v6297 = vpop.permute.xlu0 %6296
      %6299 = vset.pattern.permute.xlu0 0
      %6300 = vperm.xlu0 %6299, %v6213
      %v6301 = vpop.permute.xlu0 %6300
      %6303 = vset.pattern.permute.xlu0 0
      %6304 = vperm.xlu0 %6303, %v6216
      %v6305 = vpop.permute.xlu0 %6304
      %6307 = vset.pattern.permute.xlu0 0
      %6308 = vperm.xlu0 %6307, %v6218
      %v6309 = vpop.permute.xlu0 %6308
      %6311 = vset.pattern.permute.xlu0 0
      %6312 = vperm.xlu0 %6311, %v6221
      %v6313 = vpop.permute.xlu0 %6312
      %6315 = vset.pattern.permute.xlu0 0
      %6316 = vperm.xlu0 %6315, %v6223
      %v6317 = vpop.permute.xlu0 %6316
      %6319 = vset.pattern.permute.xlu0 0
      %6320 = vperm.xlu0 %6319, %v6226
      %v6321 = vpop.permute.xlu0 %6320
      %6323 = vset.pattern.permute.xlu0 0
      %6324 = vperm.xlu0 %6323, %v6228
      %v6325 = vpop.permute.xlu0 %6324
      %6327 = vset.pattern.permute.xlu0 0
      %6328 = vperm.xlu0 %6327, %v6231
      %v6329 = vpop.permute.xlu0 %6328
      %6331 = vset.pattern.permute.xlu0 0
      %6332 = vperm.xlu0 %6331, %v6233
      %v6333 = vpop.permute.xlu0 %6332
      %6335 = vset.pattern.permute.xlu0 0
      %6336 = vperm.xlu0 %6335, %v6236
      %v6337 = vpop.permute.xlu0 %6336
      %6339 = vset.pattern.permute.xlu0 0
      %6340 = vperm.xlu0 %6339, %v6238
      %v6341 = vpop.permute.xlu0 %6340
      %6343 = vset.pattern.permute.xlu0 0
      %6344 = vperm.xlu0 %6343, %v6241
      %v6345 = vpop.permute.xlu0 %6344
      %6347 = vset.pattern.permute.xlu0 0
      %6348 = vperm.xlu0 %6347, %v6243
      %v6349 = vpop.permute.xlu0 %6348
      %6351 = vset.pattern.permute.xlu0 0
      %6352 = vperm.xlu0 %6351, %v6246
      %v6353 = vpop.permute.xlu0 %6352
      %6355 = vset.pattern.permute.xlu0 0
      %6356 = vperm.xlu0 %6355, %v6248
      %v6357 = vpop.permute.xlu0 %6356
      %6359 = vset.pattern.permute.xlu0 0
      %6360 = vperm.xlu0 %6359, %v6251
      %v6361 = vpop.permute.xlu0 %6360
      %6363 = vset.pattern.permute.xlu0 0
      %6364 = vperm.xlu0 %6363, %v6253
      %v6365 = vpop.permute.xlu0 %6364
      %6367 = vset.pattern.permute.xlu0 0
      %6368 = vperm.xlu0 %6367, %v6256
      %v6369 = vpop.permute.xlu0 %6368
      %6371 = vset.pattern.permute.xlu0 0
      %6372 = vperm.xlu0 %6371, %v6258
      %v6373 = vpop.permute.xlu0 %6372
      %6375 = vset.pattern.permute.xlu0 0
      %6376 = vperm.xlu0 %6375, %v6261
      %v6377 = vpop.permute.xlu0 %6376
      %6379 = vset.pattern.permute.xlu0 0
      %6380 = vperm.xlu0 %6379, %v6263
      %v6381 = vpop.permute.xlu0 %6380
      %6383 = vset.pattern.permute.xlu0 0
      %6384 = vperm.xlu0 %6383, %v6266
      %v6385 = vpop.permute.xlu0 %6384
      %6387 = vset.pattern.permute.xlu0 0
      %6388 = vperm.xlu0 %6387, %v6268
      %v6389 = vpop.permute.xlu0 %6388
      %6391 = vset.pattern.permute.xlu0 0
      %6392 = vperm.xlu0 %6391, %v6271
      %v6393 = vpop.permute.xlu0 %6392
      %6395 = vset.pattern.permute.xlu0 0
      %6396 = vperm.xlu0 %6395, %v6273
      %v6397 = vpop.permute.xlu0 %6396
      %6399 = vset.pattern.permute.xlu0 0
      %6400 = vperm.xlu0 %6399, %v6276
      %v6401 = vpop.permute.xlu0 %6400
      %6403 = vset.pattern.permute.xlu0 0
      %6404 = vperm.xlu0 %6403, %v6278
      %v6405 = vpop.permute.xlu0 %6404
      %6407 = vset.pattern.permute.xlu0 0
      %6408 = vperm.xlu0 %6407, %v6281
      %v6409 = vpop.permute.xlu0 %6408
      %6411 = vset.pattern.permute.xlu0 0
      %6412 = vperm.xlu0 %6411, %v6283
      %v6413 = vpop.permute.xlu0 %6412
      %v6415 = vlaneseq
      %v6416 = vshrl.u32 %v6415, 7
      %v6417 = vsub.s32 0, %v6416
      %v6418 = vrot.slane %v6286, %v6417
      %v6419 = vmul.f32 %v6289, %v6418
      %v6420 = vmul.f32 %v6293, %v6418
      %v6421 = vmul.f32 %v6297, %v6418
      %v6422 = vmul.f32 %v6301, %v6418
      %v6423 = vmul.f32 %v6305, %v6418
      %v6424 = vmul.f32 %v6309, %v6418
      %v6425 = vmul.f32 %v6313, %v6418
      %v6426 = vmul.f32 %v6317, %v6418
      %v6427 = vmul.f32 %v6321, %v6418
      %v6428 = vmul.f32 %v6325, %v6418
      %v6429 = vmul.f32 %v6329, %v6418
      %v6430 = vmul.f32 %v6333, %v6418
      %v6431 = vmul.f32 %v6337, %v6418
      %v6432 = vmul.f32 %v6341, %v6418
      %v6433 = vmul.f32 %v6345, %v6418
      %v6434 = vmul.f32 %v6349, %v6418
      %v6435 = vmul.f32 %v6353, %v6418
      %v6436 = vmul.f32 %v6357, %v6418
      %v6437 = vmul.f32 %v6361, %v6418
      %v6438 = vmul.f32 %v6365, %v6418
      %v6439 = vmul.f32 %v6369, %v6418
      %v6440 = vmul.f32 %v6373, %v6418
      %v6441 = vmul.f32 %v6377, %v6418
      %v6442 = vmul.f32 %v6381, %v6418
      %v6443 = vmul.f32 %v6385, %v6418
      %v6444 = vmul.f32 %v6389, %v6418
      %v6445 = vmul.f32 %v6393, %v6418
      %v6446 = vmul.f32 %v6397, %v6418
      %v6447 = vmul.f32 %v6401, %v6418
      %v6448 = vmul.f32 %v6405, %v6418
      %v6449 = vmul.f32 %v6409, %v6418
      %v6450 = vmul.f32 %v6413, %v6418
      %v6451 = vadd.f32 %v6124, %v6419
      %v6452 = vadd.f32 %v6125, %v6420
      %v6453 = vadd.f32 %v6126, %v6421
      %v6454 = vadd.f32 %v6127, %v6422
      %v6455 = vadd.f32 %v6128, %v6423
      %v6456 = vadd.f32 %v6129, %v6424
      %v6457 = vadd.f32 %v6130, %v6425
      %v6458 = vadd.f32 %v6131, %v6426
      %v6459 = vadd.f32 %v6132, %v6427
      %v6460 = vadd.f32 %v6133, %v6428
      %v6461 = vadd.f32 %v6134, %v6429
      %v6462 = vadd.f32 %v6135, %v6430
      %v6463 = vadd.f32 %v6136, %v6431
      %v6464 = vadd.f32 %v6137, %v6432
      %v6465 = vadd.f32 %v6138, %v6433
      %v6466 = vadd.f32 %v6139, %v6434
      %v6467 = vadd.f32 %v6140, %v6435
      %v6468 = vadd.f32 %v6141, %v6436
      %v6469 = vadd.f32 %v6142, %v6437
      %v6470 = vadd.f32 %v6143, %v6438
      %v6471 = vadd.f32 %v6144, %v6439
      %v6472 = vadd.f32 %v6145, %v6440
      %v6473 = vadd.f32 %v6146, %v6441
      %v6474 = vadd.f32 %v6147, %v6442
      %v6475 = vadd.f32 %v6148, %v6443
      %v6476 = vadd.f32 %v6149, %v6444
      %v6477 = vadd.f32 %v6150, %v6445
      %v6478 = vadd.f32 %v6151, %v6446
      %v6479 = vadd.f32 %v6152, %v6447
      %v6480 = vadd.f32 %v6153, %v6448
      %v6481 = vadd.f32 %v6154, %v6449
      %v6482 = vadd.f32 %v6155, %v6450
      %s6483 = sadd.s32 %s19, 2
      %s6484 = smul.u32 %s6483, 54
      %s6485 = smul.addr %s6484, 4
      %s6486 = scalar_lea.vmem %s183, %s6485
      %v6487 = vld [vmem:[%s6486] sm:$0xf]
      %v6488 = vld [vmem:[%s6486 + $0x4] sm:$0xf]
      %v6489 = vld [vmem:[%s6486 + $0xc] sm:$0xf]
      %v6490 = vld [vmem:[%s6486 + $0x10] sm:$0xf]
      %v6491 = vld [vmem:[%s6486 + $0x18] sm:$0xf]
      %v6492 = vld [vmem:[%s6486 + $0x1c] sm:$0xf]
      %v6493 = vld [vmem:[%s6486 + $0x24] sm:$0xf]
      %v6494 = vld [vmem:[%s6486 + $0x28] sm:$0xf]
      %v6495 = vld [vmem:[%s6486 + $0x30] sm:$0xf]
      %v6496 = vld [vmem:[%s6486 + $0x34] sm:$0xf]
      %v6497 = vld [vmem:[%s6486 + $0x3c] sm:$0xf]
      %v6498 = vld [vmem:[%s6486 + $0x40] sm:$0xf]
      %v6499 = vld [vmem:[%s6486 + $0x48] sm:$0xf]
      %v6500 = vld [vmem:[%s6486 + $0x4c] sm:$0xf]
      %v6501 = vld [vmem:[%s6486 + $0x54] sm:$0xf]
      %v6502 = vld [vmem:[%s6486 + $0x58] sm:$0xf]
      %v6503 = vld [vmem:[%s6486 + $0x60] sm:$0xf]
      %v6504 = vld [vmem:[%s6486 + $0x64] sm:$0xf]
      %v6505 = vld [vmem:[%s6486 + $0x6c] sm:$0xf]
      %v6506 = vld [vmem:[%s6486 + $0x70] sm:$0xf]
      %v6507 = vld [vmem:[%s6486 + $0x78] sm:$0xf]
      %v6508 = vld [vmem:[%s6486 + $0x7c] sm:$0xf]
      %v6509 = vld [vmem:[%s6486 + $0x84] sm:$0xf]
      %v6510 = vld [vmem:[%s6486 + $0x88] sm:$0xf]
      %v6511 = vld [vmem:[%s6486 + $0x90] sm:$0xf]
      %v6512 = vld [vmem:[%s6486 + $0x94] sm:$0xf]
      %v6513 = vld [vmem:[%s6486 + $0x9c] sm:$0xf]
      %v6514 = vld [vmem:[%s6486 + $0xa0] sm:$0xf]
      %v6515 = vld [vmem:[%s6486 + $0xa8] sm:$0xf]
      %v6516 = vld [vmem:[%s6486 + $0xac] sm:$0xf]
      %v6517 = vld [vmem:[%s6486 + $0xb4] sm:$0xf]
      %v6518 = vld [vmem:[%s6486 + $0xb8] sm:$0xf]
      %v6519 = vunpack.c.l.bf16 %v6487
      %v6520 = vunpack.c.l.bf16 %v6488
      %v6521 = vunpack.c.l.bf16 %v6489
      %v6522 = vunpack.c.l.bf16 %v6490
      %v6523 = vunpack.c.l.bf16 %v6491
      %v6524 = vunpack.c.l.bf16 %v6492
      %v6525 = vunpack.c.l.bf16 %v6493
      %v6526 = vunpack.c.l.bf16 %v6494
      %v6527 = vunpack.c.l.bf16 %v6495
      %v6528 = vunpack.c.l.bf16 %v6496
      %v6529 = vunpack.c.l.bf16 %v6497
      %v6530 = vunpack.c.l.bf16 %v6498
      %v6531 = vunpack.c.l.bf16 %v6499
      %v6532 = vunpack.c.l.bf16 %v6500
      %v6533 = vunpack.c.l.bf16 %v6501
      %v6534 = vunpack.c.l.bf16 %v6502
      %v6535 = vunpack.c.l.bf16 %v6503
      %v6536 = vunpack.c.l.bf16 %v6504
      %v6537 = vunpack.c.l.bf16 %v6505
      %v6538 = vunpack.c.l.bf16 %v6506
      %v6539 = vunpack.c.l.bf16 %v6507
      %v6540 = vunpack.c.l.bf16 %v6508
      %v6541 = vunpack.c.l.bf16 %v6509
      %v6542 = vunpack.c.l.bf16 %v6510
      %v6543 = vunpack.c.l.bf16 %v6511
      %v6544 = vunpack.c.l.bf16 %v6512
      %v6545 = vunpack.c.l.bf16 %v6513
      %v6546 = vunpack.c.l.bf16 %v6514
      %v6547 = vunpack.c.l.bf16 %v6515
      %v6548 = vunpack.c.l.bf16 %v6516
      %v6549 = vunpack.c.l.bf16 %v6517
      %v6550 = vunpack.c.l.bf16 %v6518
      %s6551 = scalar_lea.vmem %s1, 18
      %v6552 = vld [vmem:[%s6551] sm:$0x1]
      %v6553 = vunpack.c.l.bf16 %v6552
      %6555 = vset.pattern.permute.xlu0 0
      %6556 = vperm.xlu0 %6555, %v6519
      %v6557 = vpop.permute.xlu0 %6556
      %6560 = vset.pattern.permute.xlu0 0
      %6561 = vperm.xlu0 %6560, %v6520
      %v6562 = vpop.permute.xlu0 %6561
      %6565 = vset.pattern.permute.xlu0 0
      %6566 = vperm.xlu0 %6565, %v6521
      %v6567 = vpop.permute.xlu0 %6566
      %6570 = vset.pattern.permute.xlu0 0
      %6571 = vperm.xlu0 %6570, %v6522
      %v6572 = vpop.permute.xlu0 %6571
      %6575 = vset.pattern.permute.xlu0 0
      %6576 = vperm.xlu0 %6575, %v6523
      %v6577 = vpop.permute.xlu0 %6576
      %6580 = vset.pattern.permute.xlu0 0
      %6581 = vperm.xlu0 %6580, %v6524
      %v6582 = vpop.permute.xlu0 %6581
      %6585 = vset.pattern.permute.xlu0 0
      %6586 = vperm.xlu0 %6585, %v6525
      %v6587 = vpop.permute.xlu0 %6586
      %6590 = vset.pattern.permute.xlu0 0
      %6591 = vperm.xlu0 %6590, %v6526
      %v6592 = vpop.permute.xlu0 %6591
      %6595 = vset.pattern.permute.xlu0 0
      %6596 = vperm.xlu0 %6595, %v6527
      %v6597 = vpop.permute.xlu0 %6596
      %6600 = vset.pattern.permute.xlu0 0
      %6601 = vperm.xlu0 %6600, %v6528
      %v6602 = vpop.permute.xlu0 %6601
      %6605 = vset.pattern.permute.xlu0 0
      %6606 = vperm.xlu0 %6605, %v6529
      %v6607 = vpop.permute.xlu0 %6606
      %6610 = vset.pattern.permute.xlu0 0
      %6611 = vperm.xlu0 %6610, %v6530
      %v6612 = vpop.permute.xlu0 %6611
      %6615 = vset.pattern.permute.xlu0 0
      %6616 = vperm.xlu0 %6615, %v6531
      %v6617 = vpop.permute.xlu0 %6616
      %6620 = vset.pattern.permute.xlu0 0
      %6621 = vperm.xlu0 %6620, %v6532
      %v6622 = vpop.permute.xlu0 %6621
      %6625 = vset.pattern.permute.xlu0 0
      %6626 = vperm.xlu0 %6625, %v6533
      %v6627 = vpop.permute.xlu0 %6626
      %6630 = vset.pattern.permute.xlu0 0
      %6631 = vperm.xlu0 %6630, %v6534
      %v6632 = vpop.permute.xlu0 %6631
      %6635 = vset.pattern.permute.xlu0 0
      %6636 = vperm.xlu0 %6635, %v6535
      %v6637 = vpop.permute.xlu0 %6636
      %6640 = vset.pattern.permute.xlu0 0
      %6641 = vperm.xlu0 %6640, %v6536
      %v6642 = vpop.permute.xlu0 %6641
      %6645 = vset.pattern.permute.xlu0 0
      %6646 = vperm.xlu0 %6645, %v6537
      %v6647 = vpop.permute.xlu0 %6646
      %6650 = vset.pattern.permute.xlu0 0
      %6651 = vperm.xlu0 %6650, %v6538
      %v6652 = vpop.permute.xlu0 %6651
      %6655 = vset.pattern.permute.xlu0 0
      %6656 = vperm.xlu0 %6655, %v6539
      %v6657 = vpop.permute.xlu0 %6656
      %6660 = vset.pattern.permute.xlu0 0
      %6661 = vperm.xlu0 %6660, %v6540
      %v6662 = vpop.permute.xlu0 %6661
      %6665 = vset.pattern.permute.xlu0 0
      %6666 = vperm.xlu0 %6665, %v6541
      %v6667 = vpop.permute.xlu0 %6666
      %6670 = vset.pattern.permute.xlu0 0
      %6671 = vperm.xlu0 %6670, %v6542
      %v6672 = vpop.permute.xlu0 %6671
      %6675 = vset.pattern.permute.xlu0 0
      %6676 = vperm.xlu0 %6675, %v6543
      %v6677 = vpop.permute.xlu0 %6676
      %6680 = vset.pattern.permute.xlu0 0
      %6681 = vperm.xlu0 %6680, %v6544
      %v6682 = vpop.permute.xlu0 %6681
      %6685 = vset.pattern.permute.xlu0 0
      %6686 = vperm.xlu0 %6685, %v6545
      %v6687 = vpop.permute.xlu0 %6686
      %6690 = vset.pattern.permute.xlu0 0
      %6691 = vperm.xlu0 %6690, %v6546
      %v6692 = vpop.permute.xlu0 %6691
      %6695 = vset.pattern.permute.xlu0 0
      %6696 = vperm.xlu0 %6695, %v6547
      %v6697 = vpop.permute.xlu0 %6696
      %6700 = vset.pattern.permute.xlu0 0
      %6701 = vperm.xlu0 %6700, %v6548
      %v6702 = vpop.permute.xlu0 %6701
      %6705 = vset.pattern.permute.xlu0 0
      %6706 = vperm.xlu0 %6705, %v6549
      %v6707 = vpop.permute.xlu0 %6706
      %6710 = vset.pattern.permute.xlu0 0
      %6711 = vperm.xlu0 %6710, %v6550
      %v6712 = vpop.permute.xlu0 %6711
      %v6714 = vlaneseq
      %v6715 = vshrl.u32 %v6714, 7
      %v6716 = vsub.s32 0, %v6715
      %v6717 = vrot.slane %v6553, %v6716
      %v6718 = vmul.f32 %v6557, %v6717
      %v6719 = vmul.f32 %v6562, %v6717
      %v6720 = vmul.f32 %v6567, %v6717
      %v6721 = vmul.f32 %v6572, %v6717
      %v6722 = vmul.f32 %v6577, %v6717
      %v6723 = vmul.f32 %v6582, %v6717
      %v6724 = vmul.f32 %v6587, %v6717
      %v6725 = vmul.f32 %v6592, %v6717
      %v6726 = vmul.f32 %v6597, %v6717
      %v6727 = vmul.f32 %v6602, %v6717
      %v6728 = vmul.f32 %v6607, %v6717
      %v6729 = vmul.f32 %v6612, %v6717
      %v6730 = vmul.f32 %v6617, %v6717
      %v6731 = vmul.f32 %v6622, %v6717
      %v6732 = vmul.f32 %v6627, %v6717
      %v6733 = vmul.f32 %v6632, %v6717
      %v6734 = vmul.f32 %v6637, %v6717
      %v6735 = vmul.f32 %v6642, %v6717
      %v6736 = vmul.f32 %v6647, %v6717
      %v6737 = vmul.f32 %v6652, %v6717
      %v6738 = vmul.f32 %v6657, %v6717
      %v6739 = vmul.f32 %v6662, %v6717
      %v6740 = vmul.f32 %v6667, %v6717
      %v6741 = vmul.f32 %v6672, %v6717
      %v6742 = vmul.f32 %v6677, %v6717
      %v6743 = vmul.f32 %v6682, %v6717
      %v6744 = vmul.f32 %v6687, %v6717
      %v6745 = vmul.f32 %v6692, %v6717
      %v6746 = vmul.f32 %v6697, %v6717
      %v6747 = vmul.f32 %v6702, %v6717
      %v6748 = vmul.f32 %v6707, %v6717
      %v6749 = vmul.f32 %v6712, %v6717
      %v6750 = vadd.f32 %v6451, %v6718
      %v6751 = vadd.f32 %v6452, %v6719
      %v6752 = vadd.f32 %v6453, %v6720
      %v6753 = vadd.f32 %v6454, %v6721
      %v6754 = vadd.f32 %v6455, %v6722
      %v6755 = vadd.f32 %v6456, %v6723
      %v6756 = vadd.f32 %v6457, %v6724
      %v6757 = vadd.f32 %v6458, %v6725
      %v6758 = vadd.f32 %v6459, %v6726
      %v6759 = vadd.f32 %v6460, %v6727
      %v6760 = vadd.f32 %v6461, %v6728
      %v6761 = vadd.f32 %v6462, %v6729
      %v6762 = vadd.f32 %v6463, %v6730
      %v6763 = vadd.f32 %v6464, %v6731
      %v6764 = vadd.f32 %v6465, %v6732
      %v6765 = vadd.f32 %v6466, %v6733
      %v6766 = vadd.f32 %v6467, %v6734
      %v6767 = vadd.f32 %v6468, %v6735
      %v6768 = vadd.f32 %v6469, %v6736
      %v6769 = vadd.f32 %v6470, %v6737
      %v6770 = vadd.f32 %v6471, %v6738
      %v6771 = vadd.f32 %v6472, %v6739
      %v6772 = vadd.f32 %v6473, %v6740
      %v6773 = vadd.f32 %v6474, %v6741
      %v6774 = vadd.f32 %v6475, %v6742
      %v6775 = vadd.f32 %v6476, %v6743
      %v6776 = vadd.f32 %v6477, %v6744
      %v6777 = vadd.f32 %v6478, %v6745
      %v6778 = vadd.f32 %v6479, %v6746
      %v6779 = vadd.f32 %v6480, %v6747
      %v6780 = vadd.f32 %v6481, %v6748
      %v6781 = vadd.f32 %v6482, %v6749
      %v6782 = vld [vmem:[%s6486] sm:$0xf]
      %v6783 = vld [vmem:[%s6486 + $0x4] sm:$0xf]
      %v6784 = vld [vmem:[%s6486 + $0x8] sm:$0x1]
      %v6785 = vld [vmem:[%s6486 + $0xc] sm:$0xf]
      %v6786 = vld [vmem:[%s6486 + $0x10] sm:$0xf]
      %v6787 = vld [vmem:[%s6486 + $0x14] sm:$0x1]
      %v6788 = vld [vmem:[%s6486 + $0x18] sm:$0xf]
      %v6789 = vld [vmem:[%s6486 + $0x1c] sm:$0xf]
      %v6790 = vld [vmem:[%s6486 + $0x20] sm:$0x1]
      %v6791 = vld [vmem:[%s6486 + $0x24] sm:$0xf]
      %v6792 = vld [vmem:[%s6486 + $0x28] sm:$0xf]
      %v6793 = vld [vmem:[%s6486 + $0x2c] sm:$0x1]
      %v6794 = vld [vmem:[%s6486 + $0x30] sm:$0xf]
      %v6795 = vld [vmem:[%s6486 + $0x34] sm:$0xf]
      %v6796 = vld [vmem:[%s6486 + $0x38] sm:$0x1]
      %v6797 = vld [vmem:[%s6486 + $0x3c] sm:$0xf]
      %v6798 = vld [vmem:[%s6486 + $0x40] sm:$0xf]
      %v6799 = vld [vmem:[%s6486 + $0x44] sm:$0x1]
      %v6800 = vld [vmem:[%s6486 + $0x48] sm:$0xf]
      %v6801 = vld [vmem:[%s6486 + $0x4c] sm:$0xf]
      %v6802 = vld [vmem:[%s6486 + $0x50] sm:$0x1]
      %v6803 = vld [vmem:[%s6486 + $0x54] sm:$0xf]
      %v6804 = vld [vmem:[%s6486 + $0x58] sm:$0xf]
      %v6805 = vld [vmem:[%s6486 + $0x5c] sm:$0x1]
      %v6806 = vld [vmem:[%s6486 + $0x60] sm:$0xf]
      %v6807 = vld [vmem:[%s6486 + $0x64] sm:$0xf]
      %v6808 = vld [vmem:[%s6486 + $0x68] sm:$0x1]
      %v6809 = vld [vmem:[%s6486 + $0x6c] sm:$0xf]
      %v6810 = vld [vmem:[%s6486 + $0x70] sm:$0xf]
      %v6811 = vld [vmem:[%s6486 + $0x74] sm:$0x1]
      %v6812 = vld [vmem:[%s6486 + $0x78] sm:$0xf]
      %v6813 = vld [vmem:[%s6486 + $0x7c] sm:$0xf]
      %v6814 = vld [vmem:[%s6486 + $0x80] sm:$0x1]
      %v6815 = vld [vmem:[%s6486 + $0x84] sm:$0xf]
      %v6816 = vld [vmem:[%s6486 + $0x88] sm:$0xf]
      %v6817 = vld [vmem:[%s6486 + $0x8c] sm:$0x1]
      %v6818 = vld [vmem:[%s6486 + $0x90] sm:$0xf]
      %v6819 = vld [vmem:[%s6486 + $0x94] sm:$0xf]
      %v6820 = vld [vmem:[%s6486 + $0x98] sm:$0x1]
      %v6821 = vld [vmem:[%s6486 + $0x9c] sm:$0xf]
      %v6822 = vld [vmem:[%s6486 + $0xa0] sm:$0xf]
      %v6823 = vld [vmem:[%s6486 + $0xa4] sm:$0x1]
      %v6824 = vld [vmem:[%s6486 + $0xa8] sm:$0xf]
      %v6825 = vld [vmem:[%s6486 + $0xac] sm:$0xf]
      %v6826 = vld [vmem:[%s6486 + $0xb0] sm:$0x1]
      %v6827 = vld [vmem:[%s6486 + $0xb4] sm:$0xf]
      %v6828 = vld [vmem:[%s6486 + $0xb8] sm:$0xf]
      %v6829 = vld [vmem:[%s6486 + $0xbc] sm:$0x1]
      %v6830 = vunpack.c.l.bf16 %v6782
      %v6831 = vunpack.c.l.bf16 %v6783
      %v6832 = vunpack.c.l.bf16 %v6784
      %v6833 = vunpack.c.l.bf16 %v6785
      %v6834 = vunpack.c.l.bf16 %v6786
      %v6835 = vunpack.c.l.bf16 %v6787
      %v6836 = vunpack.c.l.bf16 %v6788
      %v6837 = vunpack.c.l.bf16 %v6789
      %v6838 = vunpack.c.l.bf16 %v6790
      %v6839 = vunpack.c.l.bf16 %v6791
      %v6840 = vunpack.c.l.bf16 %v6792
      %v6841 = vunpack.c.l.bf16 %v6793
      %v6842 = vunpack.c.l.bf16 %v6794
      %v6843 = vunpack.c.l.bf16 %v6795
      %v6844 = vunpack.c.l.bf16 %v6796
      %v6845 = vunpack.c.l.bf16 %v6797
      %v6846 = vunpack.c.l.bf16 %v6798
      %v6847 = vunpack.c.l.bf16 %v6799
      %v6848 = vunpack.c.l.bf16 %v6800
      %v6849 = vunpack.c.l.bf16 %v6801
      %v6850 = vunpack.c.l.bf16 %v6802
      %v6851 = vunpack.c.l.bf16 %v6803
      %v6852 = vunpack.c.l.bf16 %v6804
      %v6853 = vunpack.c.l.bf16 %v6805
      %v6854 = vunpack.c.l.bf16 %v6806
      %v6855 = vunpack.c.l.bf16 %v6807
      %v6856 = vunpack.c.l.bf16 %v6808
      %v6857 = vunpack.c.l.bf16 %v6809
      %v6858 = vunpack.c.l.bf16 %v6810
      %v6859 = vunpack.c.l.bf16 %v6811
      %v6860 = vunpack.c.l.bf16 %v6812
      %v6861 = vunpack.c.l.bf16 %v6813
      %v6862 = vunpack.c.l.bf16 %v6814
      %v6863 = vunpack.c.l.bf16 %v6815
      %v6864 = vunpack.c.l.bf16 %v6816
      %v6865 = vunpack.c.l.bf16 %v6817
      %v6866 = vunpack.c.l.bf16 %v6818
      %v6867 = vunpack.c.l.bf16 %v6819
      %v6868 = vunpack.c.l.bf16 %v6820
      %v6869 = vunpack.c.l.bf16 %v6821
      %v6870 = vunpack.c.l.bf16 %v6822
      %v6871 = vunpack.c.l.bf16 %v6823
      %v6872 = vunpack.c.l.bf16 %v6824
      %v6873 = vunpack.c.l.bf16 %v6825
      %v6874 = vunpack.c.l.bf16 %v6826
      %v6875 = vunpack.c.l.bf16 %v6827
      %v6876 = vunpack.c.l.bf16 %v6828
      %v6877 = vunpack.c.l.bf16 %v6829
      %v6926 = vrot.slane %v6830, 1
      %v6927 = vrot.slane %v6831, 1
      %v6928 = vsel %vm634, %v6926, %v6927
      %v6929 = vrot.slane %v6832, 1
      %v6930 = vsel %vm634, %v6927, %v6929
      %v6931 = vrot.slane %v6833, 1
      %v6932 = vrot.slane %v6834, 1
      %v6933 = vsel %vm634, %v6931, %v6932
      %v6934 = vrot.slane %v6835, 1
      %v6935 = vsel %vm634, %v6932, %v6934
      %v6936 = vrot.slane %v6836, 1
      %v6937 = vrot.slane %v6837, 1
      %v6938 = vsel %vm634, %v6936, %v6937
      %v6939 = vrot.slane %v6838, 1
      %v6940 = vsel %vm634, %v6937, %v6939
      %v6941 = vrot.slane %v6839, 1
      %v6942 = vrot.slane %v6840, 1
      %v6943 = vsel %vm634, %v6941, %v6942
      %v6944 = vrot.slane %v6841, 1
      %v6945 = vsel %vm634, %v6942, %v6944
      %v6946 = vrot.slane %v6842, 1
      %v6947 = vrot.slane %v6843, 1
      %v6948 = vsel %vm634, %v6946, %v6947
      %v6949 = vrot.slane %v6844, 1
      %v6950 = vsel %vm634, %v6947, %v6949
      %v6951 = vrot.slane %v6845, 1
      %v6952 = vrot.slane %v6846, 1
      %v6953 = vsel %vm634, %v6951, %v6952
      %v6954 = vrot.slane %v6847, 1
      %v6955 = vsel %vm634, %v6952, %v6954
      %v6956 = vrot.slane %v6848, 1
      %v6957 = vrot.slane %v6849, 1
      %v6958 = vsel %vm634, %v6956, %v6957
      %v6959 = vrot.slane %v6850, 1
      %v6960 = vsel %vm634, %v6957, %v6959
      %v6961 = vrot.slane %v6851, 1
      %v6962 = vrot.slane %v6852, 1
      %v6963 = vsel %vm634, %v6961, %v6962
      %v6964 = vrot.slane %v6853, 1
      %v6965 = vsel %vm634, %v6962, %v6964
      %v6966 = vrot.slane %v6854, 1
      %v6967 = vrot.slane %v6855, 1
      %v6968 = vsel %vm634, %v6966, %v6967
      %v6969 = vrot.slane %v6856, 1
      %v6970 = vsel %vm634, %v6967, %v6969
      %v6971 = vrot.slane %v6857, 1
      %v6972 = vrot.slane %v6858, 1
      %v6973 = vsel %vm634, %v6971, %v6972
      %v6974 = vrot.slane %v6859, 1
      %v6975 = vsel %vm634, %v6972, %v6974
      %v6976 = vrot.slane %v6860, 1
      %v6977 = vrot.slane %v6861, 1
      %v6978 = vsel %vm634, %v6976, %v6977
      %v6979 = vrot.slane %v6862, 1
      %v6980 = vsel %vm634, %v6977, %v6979
      %v6981 = vrot.slane %v6863, 1
      %v6982 = vrot.slane %v6864, 1
      %v6983 = vsel %vm634, %v6981, %v6982
      %v6984 = vrot.slane %v6865, 1
      %v6985 = vsel %vm634, %v6982, %v6984
      %v6986 = vrot.slane %v6866, 1
      %v6987 = vrot.slane %v6867, 1
      %v6988 = vsel %vm634, %v6986, %v6987
      %v6989 = vrot.slane %v6868, 1
      %v6990 = vsel %vm634, %v6987, %v6989
      %v6991 = vrot.slane %v6869, 1
      %v6992 = vrot.slane %v6870, 1
      %v6993 = vsel %vm634, %v6991, %v6992
      %v6994 = vrot.slane %v6871, 1
      %v6995 = vsel %vm634, %v6992, %v6994
      %v6996 = vrot.slane %v6872, 1
      %v6997 = vrot.slane %v6873, 1
      %v6998 = vsel %vm634, %v6996, %v6997
      %v6999 = vrot.slane %v6874, 1
      %v7000 = vsel %vm634, %v6997, %v6999
      %v7001 = vrot.slane %v6875, 1
      %v7002 = vrot.slane %v6876, 1
      %v7003 = vsel %vm634, %v7001, %v7002
      %v7004 = vrot.slane %v6877, 1
      %v7005 = vsel %vm634, %v7002, %v7004
      %s7006 = scalar_lea.vmem %s1, 19
      %v7007 = vld [vmem:[%s7006] sm:$0x1]
      %v7008 = vunpack.c.l.bf16 %v7007
      %7009 = vset.pattern.permute.xlu0 0
      %7010 = vperm.xlu0 %7009, %v6928
      %v7011 = vpop.permute.xlu0 %7010
      %7013 = vset.pattern.permute.xlu0 0
      %7014 = vperm.xlu0 %7013, %v6930
      %v7015 = vpop.permute.xlu0 %7014
      %7017 = vset.pattern.permute.xlu0 0
      %7018 = vperm.xlu0 %7017, %v6933
      %v7019 = vpop.permute.xlu0 %7018
      %7021 = vset.pattern.permute.xlu0 0
      %7022 = vperm.xlu0 %7021, %v6935
      %v7023 = vpop.permute.xlu0 %7022
      %7025 = vset.pattern.permute.xlu0 0
      %7026 = vperm.xlu0 %7025, %v6938
      %v7027 = vpop.permute.xlu0 %7026
      %7029 = vset.pattern.permute.xlu0 0
      %7030 = vperm.xlu0 %7029, %v6940
      %v7031 = vpop.permute.xlu0 %7030
      %7033 = vset.pattern.permute.xlu0 0
      %7034 = vperm.xlu0 %7033, %v6943
      %v7035 = vpop.permute.xlu0 %7034
      %7037 = vset.pattern.permute.xlu0 0
      %7038 = vperm.xlu0 %7037, %v6945
      %v7039 = vpop.permute.xlu0 %7038
      %7041 = vset.pattern.permute.xlu0 0
      %7042 = vperm.xlu0 %7041, %v6948
      %v7043 = vpop.permute.xlu0 %7042
      %7045 = vset.pattern.permute.xlu0 0
      %7046 = vperm.xlu0 %7045, %v6950
      %v7047 = vpop.permute.xlu0 %7046
      %7049 = vset.pattern.permute.xlu0 0
      %7050 = vperm.xlu0 %7049, %v6953
      %v7051 = vpop.permute.xlu0 %7050
      %7053 = vset.pattern.permute.xlu0 0
      %7054 = vperm.xlu0 %7053, %v6955
      %v7055 = vpop.permute.xlu0 %7054
      %7057 = vset.pattern.permute.xlu0 0
      %7058 = vperm.xlu0 %7057, %v6958
      %v7059 = vpop.permute.xlu0 %7058
      %7061 = vset.pattern.permute.xlu0 0
      %7062 = vperm.xlu0 %7061, %v6960
      %v7063 = vpop.permute.xlu0 %7062
      %7065 = vset.pattern.permute.xlu0 0
      %7066 = vperm.xlu0 %7065, %v6963
      %v7067 = vpop.permute.xlu0 %7066
      %7069 = vset.pattern.permute.xlu0 0
      %7070 = vperm.xlu0 %7069, %v6965
      %v7071 = vpop.permute.xlu0 %7070
      %7073 = vset.pattern.permute.xlu0 0
      %7074 = vperm.xlu0 %7073, %v6968
      %v7075 = vpop.permute.xlu0 %7074
      %7077 = vset.pattern.permute.xlu0 0
      %7078 = vperm.xlu0 %7077, %v6970
      %v7079 = vpop.permute.xlu0 %7078
      %7081 = vset.pattern.permute.xlu0 0
      %7082 = vperm.xlu0 %7081, %v6973
      %v7083 = vpop.permute.xlu0 %7082
      %7085 = vset.pattern.permute.xlu0 0
      %7086 = vperm.xlu0 %7085, %v6975
      %v7087 = vpop.permute.xlu0 %7086
      %7089 = vset.pattern.permute.xlu0 0
      %7090 = vperm.xlu0 %7089, %v6978
      %v7091 = vpop.permute.xlu0 %7090
      %7093 = vset.pattern.permute.xlu0 0
      %7094 = vperm.xlu0 %7093, %v6980
      %v7095 = vpop.permute.xlu0 %7094
      %7097 = vset.pattern.permute.xlu0 0
      %7098 = vperm.xlu0 %7097, %v6983
      %v7099 = vpop.permute.xlu0 %7098
      %7101 = vset.pattern.permute.xlu0 0
      %7102 = vperm.xlu0 %7101, %v6985
      %v7103 = vpop.permute.xlu0 %7102
      %7105 = vset.pattern.permute.xlu0 0
      %7106 = vperm.xlu0 %7105, %v6988
      %v7107 = vpop.permute.xlu0 %7106
      %7109 = vset.pattern.permute.xlu0 0
      %7110 = vperm.xlu0 %7109, %v6990
      %v7111 = vpop.permute.xlu0 %7110
      %7113 = vset.pattern.permute.xlu0 0
      %7114 = vperm.xlu0 %7113, %v6993
      %v7115 = vpop.permute.xlu0 %7114
      %7117 = vset.pattern.permute.xlu0 0
      %7118 = vperm.xlu0 %7117, %v6995
      %v7119 = vpop.permute.xlu0 %7118
      %7121 = vset.pattern.permute.xlu0 0
      %7122 = vperm.xlu0 %7121, %v6998
      %v7123 = vpop.permute.xlu0 %7122
      %7125 = vset.pattern.permute.xlu0 0
      %7126 = vperm.xlu0 %7125, %v7000
      %v7127 = vpop.permute.xlu0 %7126
      %7129 = vset.pattern.permute.xlu0 0
      %7130 = vperm.xlu0 %7129, %v7003
      %v7131 = vpop.permute.xlu0 %7130
      %7133 = vset.pattern.permute.xlu0 0
      %7134 = vperm.xlu0 %7133, %v7005
      %v7135 = vpop.permute.xlu0 %7134
      %v7137 = vlaneseq
      %v7138 = vshrl.u32 %v7137, 7
      %v7139 = vsub.s32 0, %v7138
      %v7140 = vrot.slane %v7008, %v7139
      %v7141 = vmul.f32 %v7011, %v7140
      %v7142 = vmul.f32 %v7015, %v7140
      %v7143 = vmul.f32 %v7019, %v7140
      %v7144 = vmul.f32 %v7023, %v7140
      %v7145 = vmul.f32 %v7027, %v7140
      %v7146 = vmul.f32 %v7031, %v7140
      %v7147 = vmul.f32 %v7035, %v7140
      %v7148 = vmul.f32 %v7039, %v7140
      %v7149 = vmul.f32 %v7043, %v7140
      %v7150 = vmul.f32 %v7047, %v7140
      %v7151 = vmul.f32 %v7051, %v7140
      %v7152 = vmul.f32 %v7055, %v7140
      %v7153 = vmul.f32 %v7059, %v7140
      %v7154 = vmul.f32 %v7063, %v7140
      %v7155 = vmul.f32 %v7067, %v7140
      %v7156 = vmul.f32 %v7071, %v7140
      %v7157 = vmul.f32 %v7075, %v7140
      %v7158 = vmul.f32 %v7079, %v7140
      %v7159 = vmul.f32 %v7083, %v7140
      %v7160 = vmul.f32 %v7087, %v7140
      %v7161 = vmul.f32 %v7091, %v7140
      %v7162 = vmul.f32 %v7095, %v7140
      %v7163 = vmul.f32 %v7099, %v7140
      %v7164 = vmul.f32 %v7103, %v7140
      %v7165 = vmul.f32 %v7107, %v7140
      %v7166 = vmul.f32 %v7111, %v7140
      %v7167 = vmul.f32 %v7115, %v7140
      %v7168 = vmul.f32 %v7119, %v7140
      %v7169 = vmul.f32 %v7123, %v7140
      %v7170 = vmul.f32 %v7127, %v7140
      %v7171 = vmul.f32 %v7131, %v7140
      %v7172 = vmul.f32 %v7135, %v7140
      %v7173 = vadd.f32 %v6750, %v7141
      %v7174 = vadd.f32 %v6751, %v7142
      %v7175 = vadd.f32 %v6752, %v7143
      %v7176 = vadd.f32 %v6753, %v7144
      %v7177 = vadd.f32 %v6754, %v7145
      %v7178 = vadd.f32 %v6755, %v7146
      %v7179 = vadd.f32 %v6756, %v7147
      %v7180 = vadd.f32 %v6757, %v7148
      %v7181 = vadd.f32 %v6758, %v7149
      %v7182 = vadd.f32 %v6759, %v7150
      %v7183 = vadd.f32 %v6760, %v7151
      %v7184 = vadd.f32 %v6761, %v7152
      %v7185 = vadd.f32 %v6762, %v7153
      %v7186 = vadd.f32 %v6763, %v7154
      %v7187 = vadd.f32 %v6764, %v7155
      %v7188 = vadd.f32 %v6765, %v7156
      %v7189 = vadd.f32 %v6766, %v7157
      %v7190 = vadd.f32 %v6767, %v7158
      %v7191 = vadd.f32 %v6768, %v7159
      %v7192 = vadd.f32 %v6769, %v7160
      %v7193 = vadd.f32 %v6770, %v7161
      %v7194 = vadd.f32 %v6771, %v7162
      %v7195 = vadd.f32 %v6772, %v7163
      %v7196 = vadd.f32 %v6773, %v7164
      %v7197 = vadd.f32 %v6774, %v7165
      %v7198 = vadd.f32 %v6775, %v7166
      %v7199 = vadd.f32 %v6776, %v7167
      %v7200 = vadd.f32 %v6777, %v7168
      %v7201 = vadd.f32 %v6778, %v7169
      %v7202 = vadd.f32 %v6779, %v7170
      %v7203 = vadd.f32 %v6780, %v7171
      %v7204 = vadd.f32 %v6781, %v7172
      %v7205 = vld [vmem:[%s6486] sm:$0xe]
      %v7206 = vld [vmem:[%s6486 + $0xc] sm:$0xe]
      %v7207 = vld [vmem:[%s6486 + $0x18] sm:$0xe]
      %v7208 = vld [vmem:[%s6486 + $0x24] sm:$0xe]
      %v7209 = vld [vmem:[%s6486 + $0x30] sm:$0xe]
      %v7210 = vld [vmem:[%s6486 + $0x3c] sm:$0xe]
      %v7211 = vld [vmem:[%s6486 + $0x48] sm:$0xe]
      %v7212 = vld [vmem:[%s6486 + $0x54] sm:$0xe]
      %v7213 = vld [vmem:[%s6486 + $0x60] sm:$0xe]
      %v7214 = vld [vmem:[%s6486 + $0x6c] sm:$0xe]
      %v7215 = vld [vmem:[%s6486 + $0x78] sm:$0xe]
      %v7216 = vld [vmem:[%s6486 + $0x84] sm:$0xe]
      %v7217 = vld [vmem:[%s6486 + $0x90] sm:$0xe]
      %v7218 = vld [vmem:[%s6486 + $0x9c] sm:$0xe]
      %v7219 = vld [vmem:[%s6486 + $0xa8] sm:$0xe]
      %v7220 = vld [vmem:[%s6486 + $0xb4] sm:$0xe]
      %v7221 = vunpack.c.l.bf16 %v7205
      %v7222 = vunpack.c.l.bf16 %v7206
      %v7223 = vunpack.c.l.bf16 %v7207
      %v7224 = vunpack.c.l.bf16 %v7208
      %v7225 = vunpack.c.l.bf16 %v7209
      %v7226 = vunpack.c.l.bf16 %v7210
      %v7227 = vunpack.c.l.bf16 %v7211
      %v7228 = vunpack.c.l.bf16 %v7212
      %v7229 = vunpack.c.l.bf16 %v7213
      %v7230 = vunpack.c.l.bf16 %v7214
      %v7231 = vunpack.c.l.bf16 %v7215
      %v7232 = vunpack.c.l.bf16 %v7216
      %v7233 = vunpack.c.l.bf16 %v7217
      %v7234 = vunpack.c.l.bf16 %v7218
      %v7235 = vunpack.c.l.bf16 %v7219
      %v7236 = vunpack.c.l.bf16 %v7220
      %v7253 = vrot.slane %v7221, 2
      %v7254 = vrot.slane %v6831, 2
      %v7255 = vsel %vm962, %v7253, %v7254
      %v7256 = vrot.slane %v6832, 2
      %v7257 = vsel %vm962, %v7254, %v7256
      %v7258 = vrot.slane %v7222, 2
      %v7259 = vrot.slane %v6834, 2
      %v7260 = vsel %vm962, %v7258, %v7259
      %v7261 = vrot.slane %v6835, 2
      %v7262 = vsel %vm962, %v7259, %v7261
      %v7263 = vrot.slane %v7223, 2
      %v7264 = vrot.slane %v6837, 2
      %v7265 = vsel %vm962, %v7263, %v7264
      %v7266 = vrot.slane %v6838, 2
      %v7267 = vsel %vm962, %v7264, %v7266
      %v7268 = vrot.slane %v7224, 2
      %v7269 = vrot.slane %v6840, 2
      %v7270 = vsel %vm962, %v7268, %v7269
      %v7271 = vrot.slane %v6841, 2
      %v7272 = vsel %vm962, %v7269, %v7271
      %v7273 = vrot.slane %v7225, 2
      %v7274 = vrot.slane %v6843, 2
      %v7275 = vsel %vm962, %v7273, %v7274
      %v7276 = vrot.slane %v6844, 2
      %v7277 = vsel %vm962, %v7274, %v7276
      %v7278 = vrot.slane %v7226, 2
      %v7279 = vrot.slane %v6846, 2
      %v7280 = vsel %vm962, %v7278, %v7279
      %v7281 = vrot.slane %v6847, 2
      %v7282 = vsel %vm962, %v7279, %v7281
      %v7283 = vrot.slane %v7227, 2
      %v7284 = vrot.slane %v6849, 2
      %v7285 = vsel %vm962, %v7283, %v7284
      %v7286 = vrot.slane %v6850, 2
      %v7287 = vsel %vm962, %v7284, %v7286
      %v7288 = vrot.slane %v7228, 2
      %v7289 = vrot.slane %v6852, 2
      %v7290 = vsel %vm962, %v7288, %v7289
      %v7291 = vrot.slane %v6853, 2
      %v7292 = vsel %vm962, %v7289, %v7291
      %v7293 = vrot.slane %v7229, 2
      %v7294 = vrot.slane %v6855, 2
      %v7295 = vsel %vm962, %v7293, %v7294
      %v7296 = vrot.slane %v6856, 2
      %v7297 = vsel %vm962, %v7294, %v7296
      %v7298 = vrot.slane %v7230, 2
      %v7299 = vrot.slane %v6858, 2
      %v7300 = vsel %vm962, %v7298, %v7299
      %v7301 = vrot.slane %v6859, 2
      %v7302 = vsel %vm962, %v7299, %v7301
      %v7303 = vrot.slane %v7231, 2
      %v7304 = vrot.slane %v6861, 2
      %v7305 = vsel %vm962, %v7303, %v7304
      %v7306 = vrot.slane %v6862, 2
      %v7307 = vsel %vm962, %v7304, %v7306
      %v7308 = vrot.slane %v7232, 2
      %v7309 = vrot.slane %v6864, 2
      %v7310 = vsel %vm962, %v7308, %v7309
      %v7311 = vrot.slane %v6865, 2
      %v7312 = vsel %vm962, %v7309, %v7311
      %v7313 = vrot.slane %v7233, 2
      %v7314 = vrot.slane %v6867, 2
      %v7315 = vsel %vm962, %v7313, %v7314
      %v7316 = vrot.slane %v6868, 2
      %v7317 = vsel %vm962, %v7314, %v7316
      %v7318 = vrot.slane %v7234, 2
      %v7319 = vrot.slane %v6870, 2
      %v7320 = vsel %vm962, %v7318, %v7319
      %v7321 = vrot.slane %v6871, 2
      %v7322 = vsel %vm962, %v7319, %v7321
      %v7323 = vrot.slane %v7235, 2
      %v7324 = vrot.slane %v6873, 2
      %v7325 = vsel %vm962, %v7323, %v7324
      %v7326 = vrot.slane %v6874, 2
      %v7327 = vsel %vm962, %v7324, %v7326
      %v7328 = vrot.slane %v7236, 2
      %v7329 = vrot.slane %v6876, 2
      %v7330 = vsel %vm962, %v7328, %v7329
      %v7331 = vrot.slane %v6877, 2
      %v7332 = vsel %vm962, %v7329, %v7331
      %s7333 = scalar_lea.vmem %s1, 20
      %v7334 = vld [vmem:[%s7333] sm:$0x1]
      %v7335 = vunpack.c.l.bf16 %v7334
      %7336 = vset.pattern.permute.xlu0 0
      %7337 = vperm.xlu0 %7336, %v7255
      %v7338 = vpop.permute.xlu0 %7337
      %7340 = vset.pattern.permute.xlu0 0
      %7341 = vperm.xlu0 %7340, %v7257
      %v7342 = vpop.permute.xlu0 %7341
      %7344 = vset.pattern.permute.xlu0 0
      %7345 = vperm.xlu0 %7344, %v7260
      %v7346 = vpop.permute.xlu0 %7345
      %7348 = vset.pattern.permute.xlu0 0
      %7349 = vperm.xlu0 %7348, %v7262
      %v7350 = vpop.permute.xlu0 %7349
      %7352 = vset.pattern.permute.xlu0 0
      %7353 = vperm.xlu0 %7352, %v7265
      %v7354 = vpop.permute.xlu0 %7353
      %7356 = vset.pattern.permute.xlu0 0
      %7357 = vperm.xlu0 %7356, %v7267
      %v7358 = vpop.permute.xlu0 %7357
      %7360 = vset.pattern.permute.xlu0 0
      %7361 = vperm.xlu0 %7360, %v7270
      %v7362 = vpop.permute.xlu0 %7361
      %7364 = vset.pattern.permute.xlu0 0
      %7365 = vperm.xlu0 %7364, %v7272
      %v7366 = vpop.permute.xlu0 %7365
      %7368 = vset.pattern.permute.xlu0 0
      %7369 = vperm.xlu0 %7368, %v7275
      %v7370 = vpop.permute.xlu0 %7369
      %7372 = vset.pattern.permute.xlu0 0
      %7373 = vperm.xlu0 %7372, %v7277
      %v7374 = vpop.permute.xlu0 %7373
      %7376 = vset.pattern.permute.xlu0 0
      %7377 = vperm.xlu0 %7376, %v7280
      %v7378 = vpop.permute.xlu0 %7377
      %7380 = vset.pattern.permute.xlu0 0
      %7381 = vperm.xlu0 %7380, %v7282
      %v7382 = vpop.permute.xlu0 %7381
      %7384 = vset.pattern.permute.xlu0 0
      %7385 = vperm.xlu0 %7384, %v7285
      %v7386 = vpop.permute.xlu0 %7385
      %7388 = vset.pattern.permute.xlu0 0
      %7389 = vperm.xlu0 %7388, %v7287
      %v7390 = vpop.permute.xlu0 %7389
      %7392 = vset.pattern.permute.xlu0 0
      %7393 = vperm.xlu0 %7392, %v7290
      %v7394 = vpop.permute.xlu0 %7393
      %7396 = vset.pattern.permute.xlu0 0
      %7397 = vperm.xlu0 %7396, %v7292
      %v7398 = vpop.permute.xlu0 %7397
      %7400 = vset.pattern.permute.xlu0 0
      %7401 = vperm.xlu0 %7400, %v7295
      %v7402 = vpop.permute.xlu0 %7401
      %7404 = vset.pattern.permute.xlu0 0
      %7405 = vperm.xlu0 %7404, %v7297
      %v7406 = vpop.permute.xlu0 %7405
      %7408 = vset.pattern.permute.xlu0 0
      %7409 = vperm.xlu0 %7408, %v7300
      %v7410 = vpop.permute.xlu0 %7409
      %7412 = vset.pattern.permute.xlu0 0
      %7413 = vperm.xlu0 %7412, %v7302
      %v7414 = vpop.permute.xlu0 %7413
      %7416 = vset.pattern.permute.xlu0 0
      %7417 = vperm.xlu0 %7416, %v7305
      %v7418 = vpop.permute.xlu0 %7417
      %7420 = vset.pattern.permute.xlu0 0
      %7421 = vperm.xlu0 %7420, %v7307
      %v7422 = vpop.permute.xlu0 %7421
      %7424 = vset.pattern.permute.xlu0 0
      %7425 = vperm.xlu0 %7424, %v7310
      %v7426 = vpop.permute.xlu0 %7425
      %7428 = vset.pattern.permute.xlu0 0
      %7429 = vperm.xlu0 %7428, %v7312
      %v7430 = vpop.permute.xlu0 %7429
      %7432 = vset.pattern.permute.xlu0 0
      %7433 = vperm.xlu0 %7432, %v7315
      %v7434 = vpop.permute.xlu0 %7433
      %7436 = vset.pattern.permute.xlu0 0
      %7437 = vperm.xlu0 %7436, %v7317
      %v7438 = vpop.permute.xlu0 %7437
      %7440 = vset.pattern.permute.xlu0 0
      %7441 = vperm.xlu0 %7440, %v7320
      %v7442 = vpop.permute.xlu0 %7441
      %7444 = vset.pattern.permute.xlu0 0
      %7445 = vperm.xlu0 %7444, %v7322
      %v7446 = vpop.permute.xlu0 %7445
      %7448 = vset.pattern.permute.xlu0 0
      %7449 = vperm.xlu0 %7448, %v7325
      %v7450 = vpop.permute.xlu0 %7449
      %7452 = vset.pattern.permute.xlu0 0
      %7453 = vperm.xlu0 %7452, %v7327
      %v7454 = vpop.permute.xlu0 %7453
      %7456 = vset.pattern.permute.xlu0 0
      %7457 = vperm.xlu0 %7456, %v7330
      %v7458 = vpop.permute.xlu0 %7457
      %7460 = vset.pattern.permute.xlu0 0
      %7461 = vperm.xlu0 %7460, %v7332
      %v7462 = vpop.permute.xlu0 %7461
      %v7464 = vlaneseq
      %v7465 = vshrl.u32 %v7464, 7
      %v7466 = vsub.s32 0, %v7465
      %v7467 = vrot.slane %v7335, %v7466
      %v7468 = vmul.f32 %v7338, %v7467
      %v7469 = vmul.f32 %v7342, %v7467
      %v7470 = vmul.f32 %v7346, %v7467
      %v7471 = vmul.f32 %v7350, %v7467
      %v7472 = vmul.f32 %v7354, %v7467
      %v7473 = vmul.f32 %v7358, %v7467
      %v7474 = vmul.f32 %v7362, %v7467
      %v7475 = vmul.f32 %v7366, %v7467
      %v7476 = vmul.f32 %v7370, %v7467
      %v7477 = vmul.f32 %v7374, %v7467
      %v7478 = vmul.f32 %v7378, %v7467
      %v7479 = vmul.f32 %v7382, %v7467
      %v7480 = vmul.f32 %v7386, %v7467
      %v7481 = vmul.f32 %v7390, %v7467
      %v7482 = vmul.f32 %v7394, %v7467
      %v7483 = vmul.f32 %v7398, %v7467
      %v7484 = vmul.f32 %v7402, %v7467
      %v7485 = vmul.f32 %v7406, %v7467
      %v7486 = vmul.f32 %v7410, %v7467
      %v7487 = vmul.f32 %v7414, %v7467
      %v7488 = vmul.f32 %v7418, %v7467
      %v7489 = vmul.f32 %v7422, %v7467
      %v7490 = vmul.f32 %v7426, %v7467
      %v7491 = vmul.f32 %v7430, %v7467
      %v7492 = vmul.f32 %v7434, %v7467
      %v7493 = vmul.f32 %v7438, %v7467
      %v7494 = vmul.f32 %v7442, %v7467
      %v7495 = vmul.f32 %v7446, %v7467
      %v7496 = vmul.f32 %v7450, %v7467
      %v7497 = vmul.f32 %v7454, %v7467
      %v7498 = vmul.f32 %v7458, %v7467
      %v7499 = vmul.f32 %v7462, %v7467
      %v7500 = vadd.f32 %v7173, %v7468
      %v7501 = vadd.f32 %v7174, %v7469
      %v7502 = vadd.f32 %v7175, %v7470
      %v7503 = vadd.f32 %v7176, %v7471
      %v7504 = vadd.f32 %v7177, %v7472
      %v7505 = vadd.f32 %v7178, %v7473
      %v7506 = vadd.f32 %v7179, %v7474
      %v7507 = vadd.f32 %v7180, %v7475
      %v7508 = vadd.f32 %v7181, %v7476
      %v7509 = vadd.f32 %v7182, %v7477
      %v7510 = vadd.f32 %v7183, %v7478
      %v7511 = vadd.f32 %v7184, %v7479
      %v7512 = vadd.f32 %v7185, %v7480
      %v7513 = vadd.f32 %v7186, %v7481
      %v7514 = vadd.f32 %v7187, %v7482
      %v7515 = vadd.f32 %v7188, %v7483
      %v7516 = vadd.f32 %v7189, %v7484
      %v7517 = vadd.f32 %v7190, %v7485
      %v7518 = vadd.f32 %v7191, %v7486
      %v7519 = vadd.f32 %v7192, %v7487
      %v7520 = vadd.f32 %v7193, %v7488
      %v7521 = vadd.f32 %v7194, %v7489
      %v7522 = vadd.f32 %v7195, %v7490
      %v7523 = vadd.f32 %v7196, %v7491
      %v7524 = vadd.f32 %v7197, %v7492
      %v7525 = vadd.f32 %v7198, %v7493
      %v7526 = vadd.f32 %v7199, %v7494
      %v7527 = vadd.f32 %v7200, %v7495
      %v7528 = vadd.f32 %v7201, %v7496
      %v7529 = vadd.f32 %v7202, %v7497
      %v7530 = vadd.f32 %v7203, %v7498
      %v7531 = vadd.f32 %v7204, %v7499
      %s7532 = sadd.s32 3, %s6484
      %s7533 = smul.addr %s7532, 4
      %s7534 = scalar_lea.vmem %s183, %s7533
      %v7535 = vld [vmem:[%s7534] sm:$0xf]
      %v7536 = vld [vmem:[%s7534 + $0x4] sm:$0xf]
      %v7537 = vld [vmem:[%s7534 + $0xc] sm:$0xf]
      %v7538 = vld [vmem:[%s7534 + $0x10] sm:$0xf]
      %v7539 = vld [vmem:[%s7534 + $0x18] sm:$0xf]
      %v7540 = vld [vmem:[%s7534 + $0x1c] sm:$0xf]
      %v7541 = vld [vmem:[%s7534 + $0x24] sm:$0xf]
      %v7542 = vld [vmem:[%s7534 + $0x28] sm:$0xf]
      %v7543 = vld [vmem:[%s7534 + $0x30] sm:$0xf]
      %v7544 = vld [vmem:[%s7534 + $0x34] sm:$0xf]
      %v7545 = vld [vmem:[%s7534 + $0x3c] sm:$0xf]
      %v7546 = vld [vmem:[%s7534 + $0x40] sm:$0xf]
      %v7547 = vld [vmem:[%s7534 + $0x48] sm:$0xf]
      %v7548 = vld [vmem:[%s7534 + $0x4c] sm:$0xf]
      %v7549 = vld [vmem:[%s7534 + $0x54] sm:$0xf]
      %v7550 = vld [vmem:[%s7534 + $0x58] sm:$0xf]
      %v7551 = vld [vmem:[%s7534 + $0x60] sm:$0xf]
      %v7552 = vld [vmem:[%s7534 + $0x64] sm:$0xf]
      %v7553 = vld [vmem:[%s7534 + $0x6c] sm:$0xf]
      %v7554 = vld [vmem:[%s7534 + $0x70] sm:$0xf]
      %v7555 = vld [vmem:[%s7534 + $0x78] sm:$0xf]
      %v7556 = vld [vmem:[%s7534 + $0x7c] sm:$0xf]
      %v7557 = vld [vmem:[%s7534 + $0x84] sm:$0xf]
      %v7558 = vld [vmem:[%s7534 + $0x88] sm:$0xf]
      %v7559 = vld [vmem:[%s7534 + $0x90] sm:$0xf]
      %v7560 = vld [vmem:[%s7534 + $0x94] sm:$0xf]
      %v7561 = vld [vmem:[%s7534 + $0x9c] sm:$0xf]
      %v7562 = vld [vmem:[%s7534 + $0xa0] sm:$0xf]
      %v7563 = vld [vmem:[%s7534 + $0xa8] sm:$0xf]
      %v7564 = vld [vmem:[%s7534 + $0xac] sm:$0xf]
      %v7565 = vld [vmem:[%s7534 + $0xb4] sm:$0xf]
      %v7566 = vld [vmem:[%s7534 + $0xb8] sm:$0xf]
      %v7567 = vunpack.c.l.bf16 %v7535
      %v7568 = vunpack.c.l.bf16 %v7536
      %v7569 = vunpack.c.l.bf16 %v7537
      %v7570 = vunpack.c.l.bf16 %v7538
      %v7571 = vunpack.c.l.bf16 %v7539
      %v7572 = vunpack.c.l.bf16 %v7540
      %v7573 = vunpack.c.l.bf16 %v7541
      %v7574 = vunpack.c.l.bf16 %v7542
      %v7575 = vunpack.c.l.bf16 %v7543
      %v7576 = vunpack.c.l.bf16 %v7544
      %v7577 = vunpack.c.l.bf16 %v7545
      %v7578 = vunpack.c.l.bf16 %v7546
      %v7579 = vunpack.c.l.bf16 %v7547
      %v7580 = vunpack.c.l.bf16 %v7548
      %v7581 = vunpack.c.l.bf16 %v7549
      %v7582 = vunpack.c.l.bf16 %v7550
      %v7583 = vunpack.c.l.bf16 %v7551
      %v7584 = vunpack.c.l.bf16 %v7552
      %v7585 = vunpack.c.l.bf16 %v7553
      %v7586 = vunpack.c.l.bf16 %v7554
      %v7587 = vunpack.c.l.bf16 %v7555
      %v7588 = vunpack.c.l.bf16 %v7556
      %v7589 = vunpack.c.l.bf16 %v7557
      %v7590 = vunpack.c.l.bf16 %v7558
      %v7591 = vunpack.c.l.bf16 %v7559
      %v7592 = vunpack.c.l.bf16 %v7560
      %v7593 = vunpack.c.l.bf16 %v7561
      %v7594 = vunpack.c.l.bf16 %v7562
      %v7595 = vunpack.c.l.bf16 %v7563
      %v7596 = vunpack.c.l.bf16 %v7564
      %v7597 = vunpack.c.l.bf16 %v7565
      %v7598 = vunpack.c.l.bf16 %v7566
      %s7599 = scalar_lea.vmem %s1, 21
      %v7600 = vld [vmem:[%s7599] sm:$0x1]
      %v7601 = vunpack.c.l.bf16 %v7600
      %7603 = vset.pattern.permute.xlu0 0
      %7604 = vperm.xlu0 %7603, %v7567
      %v7605 = vpop.permute.xlu0 %7604
      %7608 = vset.pattern.permute.xlu0 0
      %7609 = vperm.xlu0 %7608, %v7568
      %v7610 = vpop.permute.xlu0 %7609
      %7613 = vset.pattern.permute.xlu0 0
      %7614 = vperm.xlu0 %7613, %v7569
      %v7615 = vpop.permute.xlu0 %7614
      %7618 = vset.pattern.permute.xlu0 0
      %7619 = vperm.xlu0 %7618, %v7570
      %v7620 = vpop.permute.xlu0 %7619
      %7623 = vset.pattern.permute.xlu0 0
      %7624 = vperm.xlu0 %7623, %v7571
      %v7625 = vpop.permute.xlu0 %7624
      %7628 = vset.pattern.permute.xlu0 0
      %7629 = vperm.xlu0 %7628, %v7572
      %v7630 = vpop.permute.xlu0 %7629
      %7633 = vset.pattern.permute.xlu0 0
      %7634 = vperm.xlu0 %7633, %v7573
      %v7635 = vpop.permute.xlu0 %7634
      %7638 = vset.pattern.permute.xlu0 0
      %7639 = vperm.xlu0 %7638, %v7574
      %v7640 = vpop.permute.xlu0 %7639
      %7643 = vset.pattern.permute.xlu0 0
      %7644 = vperm.xlu0 %7643, %v7575
      %v7645 = vpop.permute.xlu0 %7644
      %7648 = vset.pattern.permute.xlu0 0
      %7649 = vperm.xlu0 %7648, %v7576
      %v7650 = vpop.permute.xlu0 %7649
      %7653 = vset.pattern.permute.xlu0 0
      %7654 = vperm.xlu0 %7653, %v7577
      %v7655 = vpop.permute.xlu0 %7654
      %7658 = vset.pattern.permute.xlu0 0
      %7659 = vperm.xlu0 %7658, %v7578
      %v7660 = vpop.permute.xlu0 %7659
      %7663 = vset.pattern.permute.xlu0 0
      %7664 = vperm.xlu0 %7663, %v7579
      %v7665 = vpop.permute.xlu0 %7664
      %7668 = vset.pattern.permute.xlu0 0
      %7669 = vperm.xlu0 %7668, %v7580
      %v7670 = vpop.permute.xlu0 %7669
      %7673 = vset.pattern.permute.xlu0 0
      %7674 = vperm.xlu0 %7673, %v7581
      %v7675 = vpop.permute.xlu0 %7674
      %7678 = vset.pattern.permute.xlu0 0
      %7679 = vperm.xlu0 %7678, %v7582
      %v7680 = vpop.permute.xlu0 %7679
      %7683 = vset.pattern.permute.xlu0 0
      %7684 = vperm.xlu0 %7683, %v7583
      %v7685 = vpop.permute.xlu0 %7684
      %7688 = vset.pattern.permute.xlu0 0
      %7689 = vperm.xlu0 %7688, %v7584
      %v7690 = vpop.permute.xlu0 %7689
      %7693 = vset.pattern.permute.xlu0 0
      %7694 = vperm.xlu0 %7693, %v7585
      %v7695 = vpop.permute.xlu0 %7694
      %7698 = vset.pattern.permute.xlu0 0
      %7699 = vperm.xlu0 %7698, %v7586
      %v7700 = vpop.permute.xlu0 %7699
      %7703 = vset.pattern.permute.xlu0 0
      %7704 = vperm.xlu0 %7703, %v7587
      %v7705 = vpop.permute.xlu0 %7704
      %7708 = vset.pattern.permute.xlu0 0
      %7709 = vperm.xlu0 %7708, %v7588
      %v7710 = vpop.permute.xlu0 %7709
      %7713 = vset.pattern.permute.xlu0 0
      %7714 = vperm.xlu0 %7713, %v7589
      %v7715 = vpop.permute.xlu0 %7714
      %7718 = vset.pattern.permute.xlu0 0
      %7719 = vperm.xlu0 %7718, %v7590
      %v7720 = vpop.permute.xlu0 %7719
      %7723 = vset.pattern.permute.xlu0 0
      %7724 = vperm.xlu0 %7723, %v7591
      %v7725 = vpop.permute.xlu0 %7724
      %7728 = vset.pattern.permute.xlu0 0
      %7729 = vperm.xlu0 %7728, %v7592
      %v7730 = vpop.permute.xlu0 %7729
      %7733 = vset.pattern.permute.xlu0 0
      %7734 = vperm.xlu0 %7733, %v7593
      %v7735 = vpop.permute.xlu0 %7734
      %7738 = vset.pattern.permute.xlu0 0
      %7739 = vperm.xlu0 %7738, %v7594
      %v7740 = vpop.permute.xlu0 %7739
      %7743 = vset.pattern.permute.xlu0 0
      %7744 = vperm.xlu0 %7743, %v7595
      %v7745 = vpop.permute.xlu0 %7744
      %7748 = vset.pattern.permute.xlu0 0
      %7749 = vperm.xlu0 %7748, %v7596
      %v7750 = vpop.permute.xlu0 %7749
      %7753 = vset.pattern.permute.xlu0 0
      %7754 = vperm.xlu0 %7753, %v7597
      %v7755 = vpop.permute.xlu0 %7754
      %7758 = vset.pattern.permute.xlu0 0
      %7759 = vperm.xlu0 %7758, %v7598
      %v7760 = vpop.permute.xlu0 %7759
      %v7762 = vlaneseq
      %v7763 = vshrl.u32 %v7762, 7
      %v7764 = vsub.s32 0, %v7763
      %v7765 = vrot.slane %v7601, %v7764
      %v7766 = vmul.f32 %v7605, %v7765
      %v7767 = vmul.f32 %v7610, %v7765
      %v7768 = vmul.f32 %v7615, %v7765
      %v7769 = vmul.f32 %v7620, %v7765
      %v7770 = vmul.f32 %v7625, %v7765
      %v7771 = vmul.f32 %v7630, %v7765
      %v7772 = vmul.f32 %v7635, %v7765
      %v7773 = vmul.f32 %v7640, %v7765
      %v7774 = vmul.f32 %v7645, %v7765
      %v7775 = vmul.f32 %v7650, %v7765
      %v7776 = vmul.f32 %v7655, %v7765
      %v7777 = vmul.f32 %v7660, %v7765
      %v7778 = vmul.f32 %v7665, %v7765
      %v7779 = vmul.f32 %v7670, %v7765
      %v7780 = vmul.f32 %v7675, %v7765
      %v7781 = vmul.f32 %v7680, %v7765
      %v7782 = vmul.f32 %v7685, %v7765
      %v7783 = vmul.f32 %v7690, %v7765
      %v7784 = vmul.f32 %v7695, %v7765
      %v7785 = vmul.f32 %v7700, %v7765
      %v7786 = vmul.f32 %v7705, %v7765
      %v7787 = vmul.f32 %v7710, %v7765
      %v7788 = vmul.f32 %v7715, %v7765
      %v7789 = vmul.f32 %v7720, %v7765
      %v7790 = vmul.f32 %v7725, %v7765
      %v7791 = vmul.f32 %v7730, %v7765
      %v7792 = vmul.f32 %v7735, %v7765
      %v7793 = vmul.f32 %v7740, %v7765
      %v7794 = vmul.f32 %v7745, %v7765
      %v7795 = vmul.f32 %v7750, %v7765
      %v7796 = vmul.f32 %v7755, %v7765
      %v7797 = vmul.f32 %v7760, %v7765
      %v7798 = vadd.f32 %v7500, %v7766
      %v7799 = vadd.f32 %v7501, %v7767
      %v7800 = vadd.f32 %v7502, %v7768
      %v7801 = vadd.f32 %v7503, %v7769
      %v7802 = vadd.f32 %v7504, %v7770
      %v7803 = vadd.f32 %v7505, %v7771
      %v7804 = vadd.f32 %v7506, %v7772
      %v7805 = vadd.f32 %v7507, %v7773
      %v7806 = vadd.f32 %v7508, %v7774
      %v7807 = vadd.f32 %v7509, %v7775
      %v7808 = vadd.f32 %v7510, %v7776
      %v7809 = vadd.f32 %v7511, %v7777
      %v7810 = vadd.f32 %v7512, %v7778
      %v7811 = vadd.f32 %v7513, %v7779
      %v7812 = vadd.f32 %v7514, %v7780
      %v7813 = vadd.f32 %v7515, %v7781
      %v7814 = vadd.f32 %v7516, %v7782
      %v7815 = vadd.f32 %v7517, %v7783
      %v7816 = vadd.f32 %v7518, %v7784
      %v7817 = vadd.f32 %v7519, %v7785
      %v7818 = vadd.f32 %v7520, %v7786
      %v7819 = vadd.f32 %v7521, %v7787
      %v7820 = vadd.f32 %v7522, %v7788
      %v7821 = vadd.f32 %v7523, %v7789
      %v7822 = vadd.f32 %v7524, %v7790
      %v7823 = vadd.f32 %v7525, %v7791
      %v7824 = vadd.f32 %v7526, %v7792
      %v7825 = vadd.f32 %v7527, %v7793
      %v7826 = vadd.f32 %v7528, %v7794
      %v7827 = vadd.f32 %v7529, %v7795
      %v7828 = vadd.f32 %v7530, %v7796
      %v7829 = vadd.f32 %v7531, %v7797
      %v7830 = vld [vmem:[%s7534] sm:$0xf]
      %v7831 = vld [vmem:[%s7534 + $0x4] sm:$0xf]
      %v7832 = vld [vmem:[%s7534 + $0x8] sm:$0x1]
      %v7833 = vld [vmem:[%s7534 + $0xc] sm:$0xf]
      %v7834 = vld [vmem:[%s7534 + $0x10] sm:$0xf]
      %v7835 = vld [vmem:[%s7534 + $0x14] sm:$0x1]
      %v7836 = vld [vmem:[%s7534 + $0x18] sm:$0xf]
      %v7837 = vld [vmem:[%s7534 + $0x1c] sm:$0xf]
      %v7838 = vld [vmem:[%s7534 + $0x20] sm:$0x1]
      %v7839 = vld [vmem:[%s7534 + $0x24] sm:$0xf]
      %v7840 = vld [vmem:[%s7534 + $0x28] sm:$0xf]
      %v7841 = vld [vmem:[%s7534 + $0x2c] sm:$0x1]
      %v7842 = vld [vmem:[%s7534 + $0x30] sm:$0xf]
      %v7843 = vld [vmem:[%s7534 + $0x34] sm:$0xf]
      %v7844 = vld [vmem:[%s7534 + $0x38] sm:$0x1]
      %v7845 = vld [vmem:[%s7534 + $0x3c] sm:$0xf]
      %v7846 = vld [vmem:[%s7534 + $0x40] sm:$0xf]
      %v7847 = vld [vmem:[%s7534 + $0x44] sm:$0x1]
      %v7848 = vld [vmem:[%s7534 + $0x48] sm:$0xf]
      %v7849 = vld [vmem:[%s7534 + $0x4c] sm:$0xf]
      %v7850 = vld [vmem:[%s7534 + $0x50] sm:$0x1]
      %v7851 = vld [vmem:[%s7534 + $0x54] sm:$0xf]
      %v7852 = vld [vmem:[%s7534 + $0x58] sm:$0xf]
      %v7853 = vld [vmem:[%s7534 + $0x5c] sm:$0x1]
      %v7854 = vld [vmem:[%s7534 + $0x60] sm:$0xf]
      %v7855 = vld [vmem:[%s7534 + $0x64] sm:$0xf]
      %v7856 = vld [vmem:[%s7534 + $0x68] sm:$0x1]
      %v7857 = vld [vmem:[%s7534 + $0x6c] sm:$0xf]
      %v7858 = vld [vmem:[%s7534 + $0x70] sm:$0xf]
      %v7859 = vld [vmem:[%s7534 + $0x74] sm:$0x1]
      %v7860 = vld [vmem:[%s7534 + $0x78] sm:$0xf]
      %v7861 = vld [vmem:[%s7534 + $0x7c] sm:$0xf]
      %v7862 = vld [vmem:[%s7534 + $0x80] sm:$0x1]
      %v7863 = vld [vmem:[%s7534 + $0x84] sm:$0xf]
      %v7864 = vld [vmem:[%s7534 + $0x88] sm:$0xf]
      %v7865 = vld [vmem:[%s7534 + $0x8c] sm:$0x1]
      %v7866 = vld [vmem:[%s7534 + $0x90] sm:$0xf]
      %v7867 = vld [vmem:[%s7534 + $0x94] sm:$0xf]
      %v7868 = vld [vmem:[%s7534 + $0x98] sm:$0x1]
      %v7869 = vld [vmem:[%s7534 + $0x9c] sm:$0xf]
      %v7870 = vld [vmem:[%s7534 + $0xa0] sm:$0xf]
      %v7871 = vld [vmem:[%s7534 + $0xa4] sm:$0x1]
      %v7872 = vld [vmem:[%s7534 + $0xa8] sm:$0xf]
      %v7873 = vld [vmem:[%s7534 + $0xac] sm:$0xf]
      %v7874 = vld [vmem:[%s7534 + $0xb0] sm:$0x1]
      %v7875 = vld [vmem:[%s7534 + $0xb4] sm:$0xf]
      %v7876 = vld [vmem:[%s7534 + $0xb8] sm:$0xf]
      %v7877 = vld [vmem:[%s7534 + $0xbc] sm:$0x1]
      %v7878 = vunpack.c.l.bf16 %v7830
      %v7879 = vunpack.c.l.bf16 %v7831
      %v7880 = vunpack.c.l.bf16 %v7832
      %v7881 = vunpack.c.l.bf16 %v7833
      %v7882 = vunpack.c.l.bf16 %v7834
      %v7883 = vunpack.c.l.bf16 %v7835
      %v7884 = vunpack.c.l.bf16 %v7836
      %v7885 = vunpack.c.l.bf16 %v7837
      %v7886 = vunpack.c.l.bf16 %v7838
      %v7887 = vunpack.c.l.bf16 %v7839
      %v7888 = vunpack.c.l.bf16 %v7840
      %v7889 = vunpack.c.l.bf16 %v7841
      %v7890 = vunpack.c.l.bf16 %v7842
      %v7891 = vunpack.c.l.bf16 %v7843
      %v7892 = vunpack.c.l.bf16 %v7844
      %v7893 = vunpack.c.l.bf16 %v7845
      %v7894 = vunpack.c.l.bf16 %v7846
      %v7895 = vunpack.c.l.bf16 %v7847
      %v7896 = vunpack.c.l.bf16 %v7848
      %v7897 = vunpack.c.l.bf16 %v7849
      %v7898 = vunpack.c.l.bf16 %v7850
      %v7899 = vunpack.c.l.bf16 %v7851
      %v7900 = vunpack.c.l.bf16 %v7852
      %v7901 = vunpack.c.l.bf16 %v7853
      %v7902 = vunpack.c.l.bf16 %v7854
      %v7903 = vunpack.c.l.bf16 %v7855
      %v7904 = vunpack.c.l.bf16 %v7856
      %v7905 = vunpack.c.l.bf16 %v7857
      %v7906 = vunpack.c.l.bf16 %v7858
      %v7907 = vunpack.c.l.bf16 %v7859
      %v7908 = vunpack.c.l.bf16 %v7860
      %v7909 = vunpack.c.l.bf16 %v7861
      %v7910 = vunpack.c.l.bf16 %v7862
      %v7911 = vunpack.c.l.bf16 %v7863
      %v7912 = vunpack.c.l.bf16 %v7864
      %v7913 = vunpack.c.l.bf16 %v7865
      %v7914 = vunpack.c.l.bf16 %v7866
      %v7915 = vunpack.c.l.bf16 %v7867
      %v7916 = vunpack.c.l.bf16 %v7868
      %v7917 = vunpack.c.l.bf16 %v7869
      %v7918 = vunpack.c.l.bf16 %v7870
      %v7919 = vunpack.c.l.bf16 %v7871
      %v7920 = vunpack.c.l.bf16 %v7872
      %v7921 = vunpack.c.l.bf16 %v7873
      %v7922 = vunpack.c.l.bf16 %v7874
      %v7923 = vunpack.c.l.bf16 %v7875
      %v7924 = vunpack.c.l.bf16 %v7876
      %v7925 = vunpack.c.l.bf16 %v7877
      %v7974 = vrot.slane %v7878, 1
      %v7975 = vrot.slane %v7879, 1
      %v7976 = vsel %vm634, %v7974, %v7975
      %v7977 = vrot.slane %v7880, 1
      %v7978 = vsel %vm634, %v7975, %v7977
      %v7979 = vrot.slane %v7881, 1
      %v7980 = vrot.slane %v7882, 1
      %v7981 = vsel %vm634, %v7979, %v7980
      %v7982 = vrot.slane %v7883, 1
      %v7983 = vsel %vm634, %v7980, %v7982
      %v7984 = vrot.slane %v7884, 1
      %v7985 = vrot.slane %v7885, 1
      %v7986 = vsel %vm634, %v7984, %v7985
      %v7987 = vrot.slane %v7886, 1
      %v7988 = vsel %vm634, %v7985, %v7987
      %v7989 = vrot.slane %v7887, 1
      %v7990 = vrot.slane %v7888, 1
      %v7991 = vsel %vm634, %v7989, %v7990
      %v7992 = vrot.slane %v7889, 1
      %v7993 = vsel %vm634, %v7990, %v7992
      %v7994 = vrot.slane %v7890, 1
      %v7995 = vrot.slane %v7891, 1
      %v7996 = vsel %vm634, %v7994, %v7995
      %v7997 = vrot.slane %v7892, 1
      %v7998 = vsel %vm634, %v7995, %v7997
      %v7999 = vrot.slane %v7893, 1
      %v8000 = vrot.slane %v7894, 1
      %v8001 = vsel %vm634, %v7999, %v8000
      %v8002 = vrot.slane %v7895, 1
      %v8003 = vsel %vm634, %v8000, %v8002
      %v8004 = vrot.slane %v7896, 1
      %v8005 = vrot.slane %v7897, 1
      %v8006 = vsel %vm634, %v8004, %v8005
      %v8007 = vrot.slane %v7898, 1
      %v8008 = vsel %vm634, %v8005, %v8007
      %v8009 = vrot.slane %v7899, 1
      %v8010 = vrot.slane %v7900, 1
      %v8011 = vsel %vm634, %v8009, %v8010
      %v8012 = vrot.slane %v7901, 1
      %v8013 = vsel %vm634, %v8010, %v8012
      %v8014 = vrot.slane %v7902, 1
      %v8015 = vrot.slane %v7903, 1
      %v8016 = vsel %vm634, %v8014, %v8015
      %v8017 = vrot.slane %v7904, 1
      %v8018 = vsel %vm634, %v8015, %v8017
      %v8019 = vrot.slane %v7905, 1
      %v8020 = vrot.slane %v7906, 1
      %v8021 = vsel %vm634, %v8019, %v8020
      %v8022 = vrot.slane %v7907, 1
      %v8023 = vsel %vm634, %v8020, %v8022
      %v8024 = vrot.slane %v7908, 1
      %v8025 = vrot.slane %v7909, 1
      %v8026 = vsel %vm634, %v8024, %v8025
      %v8027 = vrot.slane %v7910, 1
      %v8028 = vsel %vm634, %v8025, %v8027
      %v8029 = vrot.slane %v7911, 1
      %v8030 = vrot.slane %v7912, 1
      %v8031 = vsel %vm634, %v8029, %v8030
      %v8032 = vrot.slane %v7913, 1
      %v8033 = vsel %vm634, %v8030, %v8032
      %v8034 = vrot.slane %v7914, 1
      %v8035 = vrot.slane %v7915, 1
      %v8036 = vsel %vm634, %v8034, %v8035
      %v8037 = vrot.slane %v7916, 1
      %v8038 = vsel %vm634, %v8035, %v8037
      %v8039 = vrot.slane %v7917, 1
      %v8040 = vrot.slane %v7918, 1
      %v8041 = vsel %vm634, %v8039, %v8040
      %v8042 = vrot.slane %v7919, 1
      %v8043 = vsel %vm634, %v8040, %v8042
      %v8044 = vrot.slane %v7920, 1
      %v8045 = vrot.slane %v7921, 1
      %v8046 = vsel %vm634, %v8044, %v8045
      %v8047 = vrot.slane %v7922, 1
      %v8048 = vsel %vm634, %v8045, %v8047
      %v8049 = vrot.slane %v7923, 1
      %v8050 = vrot.slane %v7924, 1
      %v8051 = vsel %vm634, %v8049, %v8050
      %v8052 = vrot.slane %v7925, 1
      %v8053 = vsel %vm634, %v8050, %v8052
      %s8054 = scalar_lea.vmem %s1, 22
      %v8055 = vld [vmem:[%s8054] sm:$0x1]
      %v8056 = vunpack.c.l.bf16 %v8055
      %8057 = vset.pattern.permute.xlu0 0
      %8058 = vperm.xlu0 %8057, %v7976
      %v8059 = vpop.permute.xlu0 %8058
      %8061 = vset.pattern.permute.xlu0 0
      %8062 = vperm.xlu0 %8061, %v7978
      %v8063 = vpop.permute.xlu0 %8062
      %8065 = vset.pattern.permute.xlu0 0
      %8066 = vperm.xlu0 %8065, %v7981
      %v8067 = vpop.permute.xlu0 %8066
      %8069 = vset.pattern.permute.xlu0 0
      %8070 = vperm.xlu0 %8069, %v7983
      %v8071 = vpop.permute.xlu0 %8070
      %8073 = vset.pattern.permute.xlu0 0
      %8074 = vperm.xlu0 %8073, %v7986
      %v8075 = vpop.permute.xlu0 %8074
      %8077 = vset.pattern.permute.xlu0 0
      %8078 = vperm.xlu0 %8077, %v7988
      %v8079 = vpop.permute.xlu0 %8078
      %8081 = vset.pattern.permute.xlu0 0
      %8082 = vperm.xlu0 %8081, %v7991
      %v8083 = vpop.permute.xlu0 %8082
      %8085 = vset.pattern.permute.xlu0 0
      %8086 = vperm.xlu0 %8085, %v7993
      %v8087 = vpop.permute.xlu0 %8086
      %8089 = vset.pattern.permute.xlu0 0
      %8090 = vperm.xlu0 %8089, %v7996
      %v8091 = vpop.permute.xlu0 %8090
      %8093 = vset.pattern.permute.xlu0 0
      %8094 = vperm.xlu0 %8093, %v7998
      %v8095 = vpop.permute.xlu0 %8094
      %8097 = vset.pattern.permute.xlu0 0
      %8098 = vperm.xlu0 %8097, %v8001
      %v8099 = vpop.permute.xlu0 %8098
      %8101 = vset.pattern.permute.xlu0 0
      %8102 = vperm.xlu0 %8101, %v8003
      %v8103 = vpop.permute.xlu0 %8102
      %8105 = vset.pattern.permute.xlu0 0
      %8106 = vperm.xlu0 %8105, %v8006
      %v8107 = vpop.permute.xlu0 %8106
      %8109 = vset.pattern.permute.xlu0 0
      %8110 = vperm.xlu0 %8109, %v8008
      %v8111 = vpop.permute.xlu0 %8110
      %8113 = vset.pattern.permute.xlu0 0
      %8114 = vperm.xlu0 %8113, %v8011
      %v8115 = vpop.permute.xlu0 %8114
      %8117 = vset.pattern.permute.xlu0 0
      %8118 = vperm.xlu0 %8117, %v8013
      %v8119 = vpop.permute.xlu0 %8118
      %8121 = vset.pattern.permute.xlu0 0
      %8122 = vperm.xlu0 %8121, %v8016
      %v8123 = vpop.permute.xlu0 %8122
      %8125 = vset.pattern.permute.xlu0 0
      %8126 = vperm.xlu0 %8125, %v8018
      %v8127 = vpop.permute.xlu0 %8126
      %8129 = vset.pattern.permute.xlu0 0
      %8130 = vperm.xlu0 %8129, %v8021
      %v8131 = vpop.permute.xlu0 %8130
      %8133 = vset.pattern.permute.xlu0 0
      %8134 = vperm.xlu0 %8133, %v8023
      %v8135 = vpop.permute.xlu0 %8134
      %8137 = vset.pattern.permute.xlu0 0
      %8138 = vperm.xlu0 %8137, %v8026
      %v8139 = vpop.permute.xlu0 %8138
      %8141 = vset.pattern.permute.xlu0 0
      %8142 = vperm.xlu0 %8141, %v8028
      %v8143 = vpop.permute.xlu0 %8142
      %8145 = vset.pattern.permute.xlu0 0
      %8146 = vperm.xlu0 %8145, %v8031
      %v8147 = vpop.permute.xlu0 %8146
      %8149 = vset.pattern.permute.xlu0 0
      %8150 = vperm.xlu0 %8149, %v8033
      %v8151 = vpop.permute.xlu0 %8150
      %8153 = vset.pattern.permute.xlu0 0
      %8154 = vperm.xlu0 %8153, %v8036
      %v8155 = vpop.permute.xlu0 %8154
      %8157 = vset.pattern.permute.xlu0 0
      %8158 = vperm.xlu0 %8157, %v8038
      %v8159 = vpop.permute.xlu0 %8158
      %8161 = vset.pattern.permute.xlu0 0
      %8162 = vperm.xlu0 %8161, %v8041
      %v8163 = vpop.permute.xlu0 %8162
      %8165 = vset.pattern.permute.xlu0 0
      %8166 = vperm.xlu0 %8165, %v8043
      %v8167 = vpop.permute.xlu0 %8166
      %8169 = vset.pattern.permute.xlu0 0
      %8170 = vperm.xlu0 %8169, %v8046
      %v8171 = vpop.permute.xlu0 %8170
      %8173 = vset.pattern.permute.xlu0 0
      %8174 = vperm.xlu0 %8173, %v8048
      %v8175 = vpop.permute.xlu0 %8174
      %8177 = vset.pattern.permute.xlu0 0
      %8178 = vperm.xlu0 %8177, %v8051
      %v8179 = vpop.permute.xlu0 %8178
      %8181 = vset.pattern.permute.xlu0 0
      %8182 = vperm.xlu0 %8181, %v8053
      %v8183 = vpop.permute.xlu0 %8182
      %v8185 = vlaneseq
      %v8186 = vshrl.u32 %v8185, 7
      %v8187 = vsub.s32 0, %v8186
      %v8188 = vrot.slane %v8056, %v8187
      %v8189 = vmul.f32 %v8059, %v8188
      %v8190 = vmul.f32 %v8063, %v8188
      %v8191 = vmul.f32 %v8067, %v8188
      %v8192 = vmul.f32 %v8071, %v8188
      %v8193 = vmul.f32 %v8075, %v8188
      %v8194 = vmul.f32 %v8079, %v8188
      %v8195 = vmul.f32 %v8083, %v8188
      %v8196 = vmul.f32 %v8087, %v8188
      %v8197 = vmul.f32 %v8091, %v8188
      %v8198 = vmul.f32 %v8095, %v8188
      %v8199 = vmul.f32 %v8099, %v8188
      %v8200 = vmul.f32 %v8103, %v8188
      %v8201 = vmul.f32 %v8107, %v8188
      %v8202 = vmul.f32 %v8111, %v8188
      %v8203 = vmul.f32 %v8115, %v8188
      %v8204 = vmul.f32 %v8119, %v8188
      %v8205 = vmul.f32 %v8123, %v8188
      %v8206 = vmul.f32 %v8127, %v8188
      %v8207 = vmul.f32 %v8131, %v8188
      %v8208 = vmul.f32 %v8135, %v8188
      %v8209 = vmul.f32 %v8139, %v8188
      %v8210 = vmul.f32 %v8143, %v8188
      %v8211 = vmul.f32 %v8147, %v8188
      %v8212 = vmul.f32 %v8151, %v8188
      %v8213 = vmul.f32 %v8155, %v8188
      %v8214 = vmul.f32 %v8159, %v8188
      %v8215 = vmul.f32 %v8163, %v8188
      %v8216 = vmul.f32 %v8167, %v8188
      %v8217 = vmul.f32 %v8171, %v8188
      %v8218 = vmul.f32 %v8175, %v8188
      %v8219 = vmul.f32 %v8179, %v8188
      %v8220 = vmul.f32 %v8183, %v8188
      %v8221 = vadd.f32 %v7798, %v8189
      %v8222 = vadd.f32 %v7799, %v8190
      %v8223 = vadd.f32 %v7800, %v8191
      %v8224 = vadd.f32 %v7801, %v8192
      %v8225 = vadd.f32 %v7802, %v8193
      %v8226 = vadd.f32 %v7803, %v8194
      %v8227 = vadd.f32 %v7804, %v8195
      %v8228 = vadd.f32 %v7805, %v8196
      %v8229 = vadd.f32 %v7806, %v8197
      %v8230 = vadd.f32 %v7807, %v8198
      %v8231 = vadd.f32 %v7808, %v8199
      %v8232 = vadd.f32 %v7809, %v8200
      %v8233 = vadd.f32 %v7810, %v8201
      %v8234 = vadd.f32 %v7811, %v8202
      %v8235 = vadd.f32 %v7812, %v8203
      %v8236 = vadd.f32 %v7813, %v8204
      %v8237 = vadd.f32 %v7814, %v8205
      %v8238 = vadd.f32 %v7815, %v8206
      %v8239 = vadd.f32 %v7816, %v8207
      %v8240 = vadd.f32 %v7817, %v8208
      %v8241 = vadd.f32 %v7818, %v8209
      %v8242 = vadd.f32 %v7819, %v8210
      %v8243 = vadd.f32 %v7820, %v8211
      %v8244 = vadd.f32 %v7821, %v8212
      %v8245 = vadd.f32 %v7822, %v8213
      %v8246 = vadd.f32 %v7823, %v8214
      %v8247 = vadd.f32 %v7824, %v8215
      %v8248 = vadd.f32 %v7825, %v8216
      %v8249 = vadd.f32 %v7826, %v8217
      %v8250 = vadd.f32 %v7827, %v8218
      %v8251 = vadd.f32 %v7828, %v8219
      %v8252 = vadd.f32 %v7829, %v8220
      %v8253 = vld [vmem:[%s7534] sm:$0xe]
      %v8254 = vld [vmem:[%s7534 + $0xc] sm:$0xe]
      %v8255 = vld [vmem:[%s7534 + $0x18] sm:$0xe]
      %v8256 = vld [vmem:[%s7534 + $0x24] sm:$0xe]
      %v8257 = vld [vmem:[%s7534 + $0x30] sm:$0xe]
      %v8258 = vld [vmem:[%s7534 + $0x3c] sm:$0xe]
      %v8259 = vld [vmem:[%s7534 + $0x48] sm:$0xe]
      %v8260 = vld [vmem:[%s7534 + $0x54] sm:$0xe]
      %v8261 = vld [vmem:[%s7534 + $0x60] sm:$0xe]
      %v8262 = vld [vmem:[%s7534 + $0x6c] sm:$0xe]
      %v8263 = vld [vmem:[%s7534 + $0x78] sm:$0xe]
      %v8264 = vld [vmem:[%s7534 + $0x84] sm:$0xe]
      %v8265 = vld [vmem:[%s7534 + $0x90] sm:$0xe]
      %v8266 = vld [vmem:[%s7534 + $0x9c] sm:$0xe]
      %v8267 = vld [vmem:[%s7534 + $0xa8] sm:$0xe]
      %v8268 = vld [vmem:[%s7534 + $0xb4] sm:$0xe]
      %v8269 = vunpack.c.l.bf16 %v8253
      %v8270 = vunpack.c.l.bf16 %v8254
      %v8271 = vunpack.c.l.bf16 %v8255
      %v8272 = vunpack.c.l.bf16 %v8256
      %v8273 = vunpack.c.l.bf16 %v8257
      %v8274 = vunpack.c.l.bf16 %v8258
      %v8275 = vunpack.c.l.bf16 %v8259
      %v8276 = vunpack.c.l.bf16 %v8260
      %v8277 = vunpack.c.l.bf16 %v8261
      %v8278 = vunpack.c.l.bf16 %v8262
      %v8279 = vunpack.c.l.bf16 %v8263
      %v8280 = vunpack.c.l.bf16 %v8264
      %v8281 = vunpack.c.l.bf16 %v8265
      %v8282 = vunpack.c.l.bf16 %v8266
      %v8283 = vunpack.c.l.bf16 %v8267
      %v8284 = vunpack.c.l.bf16 %v8268
      %v8301 = vrot.slane %v8269, 2
      %v8302 = vrot.slane %v7879, 2
      %v8303 = vsel %vm962, %v8301, %v8302
      %v8304 = vrot.slane %v7880, 2
      %v8305 = vsel %vm962, %v8302, %v8304
      %v8306 = vrot.slane %v8270, 2
      %v8307 = vrot.slane %v7882, 2
      %v8308 = vsel %vm962, %v8306, %v8307
      %v8309 = vrot.slane %v7883, 2
      %v8310 = vsel %vm962, %v8307, %v8309
      %v8311 = vrot.slane %v8271, 2
      %v8312 = vrot.slane %v7885, 2
      %v8313 = vsel %vm962, %v8311, %v8312
      %v8314 = vrot.slane %v7886, 2
      %v8315 = vsel %vm962, %v8312, %v8314
      %v8316 = vrot.slane %v8272, 2
      %v8317 = vrot.slane %v7888, 2
      %v8318 = vsel %vm962, %v8316, %v8317
      %v8319 = vrot.slane %v7889, 2
      %v8320 = vsel %vm962, %v8317, %v8319
      %v8321 = vrot.slane %v8273, 2
      %v8322 = vrot.slane %v7891, 2
      %v8323 = vsel %vm962, %v8321, %v8322
      %v8324 = vrot.slane %v7892, 2
      %v8325 = vsel %vm962, %v8322, %v8324
      %v8326 = vrot.slane %v8274, 2
      %v8327 = vrot.slane %v7894, 2
      %v8328 = vsel %vm962, %v8326, %v8327
      %v8329 = vrot.slane %v7895, 2
      %v8330 = vsel %vm962, %v8327, %v8329
      %v8331 = vrot.slane %v8275, 2
      %v8332 = vrot.slane %v7897, 2
      %v8333 = vsel %vm962, %v8331, %v8332
      %v8334 = vrot.slane %v7898, 2
      %v8335 = vsel %vm962, %v8332, %v8334
      %v8336 = vrot.slane %v8276, 2
      %v8337 = vrot.slane %v7900, 2
      %v8338 = vsel %vm962, %v8336, %v8337
      %v8339 = vrot.slane %v7901, 2
      %v8340 = vsel %vm962, %v8337, %v8339
      %v8341 = vrot.slane %v8277, 2
      %v8342 = vrot.slane %v7903, 2
      %v8343 = vsel %vm962, %v8341, %v8342
      %v8344 = vrot.slane %v7904, 2
      %v8345 = vsel %vm962, %v8342, %v8344
      %v8346 = vrot.slane %v8278, 2
      %v8347 = vrot.slane %v7906, 2
      %v8348 = vsel %vm962, %v8346, %v8347
      %v8349 = vrot.slane %v7907, 2
      %v8350 = vsel %vm962, %v8347, %v8349
      %v8351 = vrot.slane %v8279, 2
      %v8352 = vrot.slane %v7909, 2
      %v8353 = vsel %vm962, %v8351, %v8352
      %v8354 = vrot.slane %v7910, 2
      %v8355 = vsel %vm962, %v8352, %v8354
      %v8356 = vrot.slane %v8280, 2
      %v8357 = vrot.slane %v7912, 2
      %v8358 = vsel %vm962, %v8356, %v8357
      %v8359 = vrot.slane %v7913, 2
      %v8360 = vsel %vm962, %v8357, %v8359
      %v8361 = vrot.slane %v8281, 2
      %v8362 = vrot.slane %v7915, 2
      %v8363 = vsel %vm962, %v8361, %v8362
      %v8364 = vrot.slane %v7916, 2
      %v8365 = vsel %vm962, %v8362, %v8364
      %v8366 = vrot.slane %v8282, 2
      %v8367 = vrot.slane %v7918, 2
      %v8368 = vsel %vm962, %v8366, %v8367
      %v8369 = vrot.slane %v7919, 2
      %v8370 = vsel %vm962, %v8367, %v8369
      %v8371 = vrot.slane %v8283, 2
      %v8372 = vrot.slane %v7921, 2
      %v8373 = vsel %vm962, %v8371, %v8372
      %v8374 = vrot.slane %v7922, 2
      %v8375 = vsel %vm962, %v8372, %v8374
      %v8376 = vrot.slane %v8284, 2
      %v8377 = vrot.slane %v7924, 2
      %v8378 = vsel %vm962, %v8376, %v8377
      %v8379 = vrot.slane %v7925, 2
      %v8380 = vsel %vm962, %v8377, %v8379
      %s8381 = scalar_lea.vmem %s1, 23
      %v8382 = vld [vmem:[%s8381] sm:$0x1]
      %v8383 = vunpack.c.l.bf16 %v8382
      %8384 = vset.pattern.permute.xlu0 0
      %8385 = vperm.xlu0 %8384, %v8303
      %v8386 = vpop.permute.xlu0 %8385
      %8388 = vset.pattern.permute.xlu0 0
      %8389 = vperm.xlu0 %8388, %v8305
      %v8390 = vpop.permute.xlu0 %8389
      %8392 = vset.pattern.permute.xlu0 0
      %8393 = vperm.xlu0 %8392, %v8308
      %v8394 = vpop.permute.xlu0 %8393
      %8396 = vset.pattern.permute.xlu0 0
      %8397 = vperm.xlu0 %8396, %v8310
      %v8398 = vpop.permute.xlu0 %8397
      %8400 = vset.pattern.permute.xlu0 0
      %8401 = vperm.xlu0 %8400, %v8313
      %v8402 = vpop.permute.xlu0 %8401
      %8404 = vset.pattern.permute.xlu0 0
      %8405 = vperm.xlu0 %8404, %v8315
      %v8406 = vpop.permute.xlu0 %8405
      %8408 = vset.pattern.permute.xlu0 0
      %8409 = vperm.xlu0 %8408, %v8318
      %v8410 = vpop.permute.xlu0 %8409
      %8412 = vset.pattern.permute.xlu0 0
      %8413 = vperm.xlu0 %8412, %v8320
      %v8414 = vpop.permute.xlu0 %8413
      %8416 = vset.pattern.permute.xlu0 0
      %8417 = vperm.xlu0 %8416, %v8323
      %v8418 = vpop.permute.xlu0 %8417
      %8420 = vset.pattern.permute.xlu0 0
      %8421 = vperm.xlu0 %8420, %v8325
      %v8422 = vpop.permute.xlu0 %8421
      %8424 = vset.pattern.permute.xlu0 0
      %8425 = vperm.xlu0 %8424, %v8328
      %v8426 = vpop.permute.xlu0 %8425
      %8428 = vset.pattern.permute.xlu0 0
      %8429 = vperm.xlu0 %8428, %v8330
      %v8430 = vpop.permute.xlu0 %8429
      %8432 = vset.pattern.permute.xlu0 0
      %8433 = vperm.xlu0 %8432, %v8333
      %v8434 = vpop.permute.xlu0 %8433
      %8436 = vset.pattern.permute.xlu0 0
      %8437 = vperm.xlu0 %8436, %v8335
      %v8438 = vpop.permute.xlu0 %8437
      %8440 = vset.pattern.permute.xlu0 0
      %8441 = vperm.xlu0 %8440, %v8338
      %v8442 = vpop.permute.xlu0 %8441
      %8444 = vset.pattern.permute.xlu0 0
      %8445 = vperm.xlu0 %8444, %v8340
      %v8446 = vpop.permute.xlu0 %8445
      %8448 = vset.pattern.permute.xlu0 0
      %8449 = vperm.xlu0 %8448, %v8343
      %v8450 = vpop.permute.xlu0 %8449
      %8452 = vset.pattern.permute.xlu0 0
      %8453 = vperm.xlu0 %8452, %v8345
      %v8454 = vpop.permute.xlu0 %8453
      %8456 = vset.pattern.permute.xlu0 0
      %8457 = vperm.xlu0 %8456, %v8348
      %v8458 = vpop.permute.xlu0 %8457
      %8460 = vset.pattern.permute.xlu0 0
      %8461 = vperm.xlu0 %8460, %v8350
      %v8462 = vpop.permute.xlu0 %8461
      %8464 = vset.pattern.permute.xlu0 0
      %8465 = vperm.xlu0 %8464, %v8353
      %v8466 = vpop.permute.xlu0 %8465
      %8468 = vset.pattern.permute.xlu0 0
      %8469 = vperm.xlu0 %8468, %v8355
      %v8470 = vpop.permute.xlu0 %8469
      %8472 = vset.pattern.permute.xlu0 0
      %8473 = vperm.xlu0 %8472, %v8358
      %v8474 = vpop.permute.xlu0 %8473
      %8476 = vset.pattern.permute.xlu0 0
      %8477 = vperm.xlu0 %8476, %v8360
      %v8478 = vpop.permute.xlu0 %8477
      %8480 = vset.pattern.permute.xlu0 0
      %8481 = vperm.xlu0 %8480, %v8363
      %v8482 = vpop.permute.xlu0 %8481
      %8484 = vset.pattern.permute.xlu0 0
      %8485 = vperm.xlu0 %8484, %v8365
      %v8486 = vpop.permute.xlu0 %8485
      %8488 = vset.pattern.permute.xlu0 0
      %8489 = vperm.xlu0 %8488, %v8368
      %v8490 = vpop.permute.xlu0 %8489
      %8492 = vset.pattern.permute.xlu0 0
      %8493 = vperm.xlu0 %8492, %v8370
      %v8494 = vpop.permute.xlu0 %8493
      %8496 = vset.pattern.permute.xlu0 0
      %8497 = vperm.xlu0 %8496, %v8373
      %v8498 = vpop.permute.xlu0 %8497
      %8500 = vset.pattern.permute.xlu0 0
      %8501 = vperm.xlu0 %8500, %v8375
      %v8502 = vpop.permute.xlu0 %8501
      %8504 = vset.pattern.permute.xlu0 0
      %8505 = vperm.xlu0 %8504, %v8378
      %v8506 = vpop.permute.xlu0 %8505
      %8508 = vset.pattern.permute.xlu0 0
      %8509 = vperm.xlu0 %8508, %v8380
      %v8510 = vpop.permute.xlu0 %8509
      %v8512 = vlaneseq
      %v8513 = vshrl.u32 %v8512, 7
      %v8514 = vsub.s32 0, %v8513
      %v8515 = vrot.slane %v8383, %v8514
      %v8516 = vmul.f32 %v8386, %v8515
      %v8517 = vmul.f32 %v8390, %v8515
      %v8518 = vmul.f32 %v8394, %v8515
      %v8519 = vmul.f32 %v8398, %v8515
      %v8520 = vmul.f32 %v8402, %v8515
      %v8521 = vmul.f32 %v8406, %v8515
      %v8522 = vmul.f32 %v8410, %v8515
      %v8523 = vmul.f32 %v8414, %v8515
      %v8524 = vmul.f32 %v8418, %v8515
      %v8525 = vmul.f32 %v8422, %v8515
      %v8526 = vmul.f32 %v8426, %v8515
      %v8527 = vmul.f32 %v8430, %v8515
      %v8528 = vmul.f32 %v8434, %v8515
      %v8529 = vmul.f32 %v8438, %v8515
      %v8530 = vmul.f32 %v8442, %v8515
      %v8531 = vmul.f32 %v8446, %v8515
      %v8532 = vmul.f32 %v8450, %v8515
      %v8533 = vmul.f32 %v8454, %v8515
      %v8534 = vmul.f32 %v8458, %v8515
      %v8535 = vmul.f32 %v8462, %v8515
      %v8536 = vmul.f32 %v8466, %v8515
      %v8537 = vmul.f32 %v8470, %v8515
      %v8538 = vmul.f32 %v8474, %v8515
      %v8539 = vmul.f32 %v8478, %v8515
      %v8540 = vmul.f32 %v8482, %v8515
      %v8541 = vmul.f32 %v8486, %v8515
      %v8542 = vmul.f32 %v8490, %v8515
      %v8543 = vmul.f32 %v8494, %v8515
      %v8544 = vmul.f32 %v8498, %v8515
      %v8545 = vmul.f32 %v8502, %v8515
      %v8546 = vmul.f32 %v8506, %v8515
      %v8547 = vmul.f32 %v8510, %v8515
      %v8548 = vadd.f32 %v8221, %v8516
      %v8549 = vadd.f32 %v8222, %v8517
      %v8550 = vadd.f32 %v8223, %v8518
      %v8551 = vadd.f32 %v8224, %v8519
      %v8552 = vadd.f32 %v8225, %v8520
      %v8553 = vadd.f32 %v8226, %v8521
      %v8554 = vadd.f32 %v8227, %v8522
      %v8555 = vadd.f32 %v8228, %v8523
      %v8556 = vadd.f32 %v8229, %v8524
      %v8557 = vadd.f32 %v8230, %v8525
      %v8558 = vadd.f32 %v8231, %v8526
      %v8559 = vadd.f32 %v8232, %v8527
      %v8560 = vadd.f32 %v8233, %v8528
      %v8561 = vadd.f32 %v8234, %v8529
      %v8562 = vadd.f32 %v8235, %v8530
      %v8563 = vadd.f32 %v8236, %v8531
      %v8564 = vadd.f32 %v8237, %v8532
      %v8565 = vadd.f32 %v8238, %v8533
      %v8566 = vadd.f32 %v8239, %v8534
      %v8567 = vadd.f32 %v8240, %v8535
      %v8568 = vadd.f32 %v8241, %v8536
      %v8569 = vadd.f32 %v8242, %v8537
      %v8570 = vadd.f32 %v8243, %v8538
      %v8571 = vadd.f32 %v8244, %v8539
      %v8572 = vadd.f32 %v8245, %v8540
      %v8573 = vadd.f32 %v8246, %v8541
      %v8574 = vadd.f32 %v8247, %v8542
      %v8575 = vadd.f32 %v8248, %v8543
      %v8576 = vadd.f32 %v8249, %v8544
      %v8577 = vadd.f32 %v8250, %v8545
      %v8578 = vadd.f32 %v8251, %v8546
      %v8579 = vadd.f32 %v8252, %v8547
      %s8580 = sadd.s32 6, %s6484
      %s8581 = smul.addr %s8580, 4
      %s8582 = scalar_lea.vmem %s183, %s8581
      %v8583 = vld [vmem:[%s8582] sm:$0xf]
      %v8584 = vld [vmem:[%s8582 + $0x4] sm:$0xf]
      %v8585 = vld [vmem:[%s8582 + $0xc] sm:$0xf]
      %v8586 = vld [vmem:[%s8582 + $0x10] sm:$0xf]
      %v8587 = vld [vmem:[%s8582 + $0x18] sm:$0xf]
      %v8588 = vld [vmem:[%s8582 + $0x1c] sm:$0xf]
      %v8589 = vld [vmem:[%s8582 + $0x24] sm:$0xf]
      %v8590 = vld [vmem:[%s8582 + $0x28] sm:$0xf]
      %v8591 = vld [vmem:[%s8582 + $0x30] sm:$0xf]
      %v8592 = vld [vmem:[%s8582 + $0x34] sm:$0xf]
      %v8593 = vld [vmem:[%s8582 + $0x3c] sm:$0xf]
      %v8594 = vld [vmem:[%s8582 + $0x40] sm:$0xf]
      %v8595 = vld [vmem:[%s8582 + $0x48] sm:$0xf]
      %v8596 = vld [vmem:[%s8582 + $0x4c] sm:$0xf]
      %v8597 = vld [vmem:[%s8582 + $0x54] sm:$0xf]
      %v8598 = vld [vmem:[%s8582 + $0x58] sm:$0xf]
      %v8599 = vld [vmem:[%s8582 + $0x60] sm:$0xf]
      %v8600 = vld [vmem:[%s8582 + $0x64] sm:$0xf]
      %v8601 = vld [vmem:[%s8582 + $0x6c] sm:$0xf]
      %v8602 = vld [vmem:[%s8582 + $0x70] sm:$0xf]
      %v8603 = vld [vmem:[%s8582 + $0x78] sm:$0xf]
      %v8604 = vld [vmem:[%s8582 + $0x7c] sm:$0xf]
      %v8605 = vld [vmem:[%s8582 + $0x84] sm:$0xf]
      %v8606 = vld [vmem:[%s8582 + $0x88] sm:$0xf]
      %v8607 = vld [vmem:[%s8582 + $0x90] sm:$0xf]
      %v8608 = vld [vmem:[%s8582 + $0x94] sm:$0xf]
      %v8609 = vld [vmem:[%s8582 + $0x9c] sm:$0xf]
      %v8610 = vld [vmem:[%s8582 + $0xa0] sm:$0xf]
      %v8611 = vld [vmem:[%s8582 + $0xa8] sm:$0xf]
      %v8612 = vld [vmem:[%s8582 + $0xac] sm:$0xf]
      %v8613 = vld [vmem:[%s8582 + $0xb4] sm:$0xf]
      %v8614 = vld [vmem:[%s8582 + $0xb8] sm:$0xf]
      %v8615 = vunpack.c.l.bf16 %v8583
      %v8616 = vunpack.c.l.bf16 %v8584
      %v8617 = vunpack.c.l.bf16 %v8585
      %v8618 = vunpack.c.l.bf16 %v8586
      %v8619 = vunpack.c.l.bf16 %v8587
      %v8620 = vunpack.c.l.bf16 %v8588
      %v8621 = vunpack.c.l.bf16 %v8589
      %v8622 = vunpack.c.l.bf16 %v8590
      %v8623 = vunpack.c.l.bf16 %v8591
      %v8624 = vunpack.c.l.bf16 %v8592
      %v8625 = vunpack.c.l.bf16 %v8593
      %v8626 = vunpack.c.l.bf16 %v8594
      %v8627 = vunpack.c.l.bf16 %v8595
      %v8628 = vunpack.c.l.bf16 %v8596
      %v8629 = vunpack.c.l.bf16 %v8597
      %v8630 = vunpack.c.l.bf16 %v8598
      %v8631 = vunpack.c.l.bf16 %v8599
      %v8632 = vunpack.c.l.bf16 %v8600
      %v8633 = vunpack.c.l.bf16 %v8601
      %v8634 = vunpack.c.l.bf16 %v8602
      %v8635 = vunpack.c.l.bf16 %v8603
      %v8636 = vunpack.c.l.bf16 %v8604
      %v8637 = vunpack.c.l.bf16 %v8605
      %v8638 = vunpack.c.l.bf16 %v8606
      %v8639 = vunpack.c.l.bf16 %v8607
      %v8640 = vunpack.c.l.bf16 %v8608
      %v8641 = vunpack.c.l.bf16 %v8609
      %v8642 = vunpack.c.l.bf16 %v8610
      %v8643 = vunpack.c.l.bf16 %v8611
      %v8644 = vunpack.c.l.bf16 %v8612
      %v8645 = vunpack.c.l.bf16 %v8613
      %v8646 = vunpack.c.l.bf16 %v8614
      %s8647 = scalar_lea.vmem %s1, 24
      %v8648 = vld [vmem:[%s8647] sm:$0x1]
      %v8649 = vunpack.c.l.bf16 %v8648
      %8651 = vset.pattern.permute.xlu0 0
      %8652 = vperm.xlu0 %8651, %v8615
      %v8653 = vpop.permute.xlu0 %8652
      %8656 = vset.pattern.permute.xlu0 0
      %8657 = vperm.xlu0 %8656, %v8616
      %v8658 = vpop.permute.xlu0 %8657
      %8661 = vset.pattern.permute.xlu0 0
      %8662 = vperm.xlu0 %8661, %v8617
      %v8663 = vpop.permute.xlu0 %8662
      %8666 = vset.pattern.permute.xlu0 0
      %8667 = vperm.xlu0 %8666, %v8618
      %v8668 = vpop.permute.xlu0 %8667
      %8671 = vset.pattern.permute.xlu0 0
      %8672 = vperm.xlu0 %8671, %v8619
      %v8673 = vpop.permute.xlu0 %8672
      %8676 = vset.pattern.permute.xlu0 0
      %8677 = vperm.xlu0 %8676, %v8620
      %v8678 = vpop.permute.xlu0 %8677
      %8681 = vset.pattern.permute.xlu0 0
      %8682 = vperm.xlu0 %8681, %v8621
      %v8683 = vpop.permute.xlu0 %8682
      %8686 = vset.pattern.permute.xlu0 0
      %8687 = vperm.xlu0 %8686, %v8622
      %v8688 = vpop.permute.xlu0 %8687
      %8691 = vset.pattern.permute.xlu0 0
      %8692 = vperm.xlu0 %8691, %v8623
      %v8693 = vpop.permute.xlu0 %8692
      %8696 = vset.pattern.permute.xlu0 0
      %8697 = vperm.xlu0 %8696, %v8624
      %v8698 = vpop.permute.xlu0 %8697
      %8701 = vset.pattern.permute.xlu0 0
      %8702 = vperm.xlu0 %8701, %v8625
      %v8703 = vpop.permute.xlu0 %8702
      %8706 = vset.pattern.permute.xlu0 0
      %8707 = vperm.xlu0 %8706, %v8626
      %v8708 = vpop.permute.xlu0 %8707
      %8711 = vset.pattern.permute.xlu0 0
      %8712 = vperm.xlu0 %8711, %v8627
      %v8713 = vpop.permute.xlu0 %8712
      %8716 = vset.pattern.permute.xlu0 0
      %8717 = vperm.xlu0 %8716, %v8628
      %v8718 = vpop.permute.xlu0 %8717
      %8721 = vset.pattern.permute.xlu0 0
      %8722 = vperm.xlu0 %8721, %v8629
      %v8723 = vpop.permute.xlu0 %8722
      %8726 = vset.pattern.permute.xlu0 0
      %8727 = vperm.xlu0 %8726, %v8630
      %v8728 = vpop.permute.xlu0 %8727
      %8731 = vset.pattern.permute.xlu0 0
      %8732 = vperm.xlu0 %8731, %v8631
      %v8733 = vpop.permute.xlu0 %8732
      %8736 = vset.pattern.permute.xlu0 0
      %8737 = vperm.xlu0 %8736, %v8632
      %v8738 = vpop.permute.xlu0 %8737
      %8741 = vset.pattern.permute.xlu0 0
      %8742 = vperm.xlu0 %8741, %v8633
      %v8743 = vpop.permute.xlu0 %8742
      %8746 = vset.pattern.permute.xlu0 0
      %8747 = vperm.xlu0 %8746, %v8634
      %v8748 = vpop.permute.xlu0 %8747
      %8751 = vset.pattern.permute.xlu0 0
      %8752 = vperm.xlu0 %8751, %v8635
      %v8753 = vpop.permute.xlu0 %8752
      %8756 = vset.pattern.permute.xlu0 0
      %8757 = vperm.xlu0 %8756, %v8636
      %v8758 = vpop.permute.xlu0 %8757
      %8761 = vset.pattern.permute.xlu0 0
      %8762 = vperm.xlu0 %8761, %v8637
      %v8763 = vpop.permute.xlu0 %8762
      %8766 = vset.pattern.permute.xlu0 0
      %8767 = vperm.xlu0 %8766, %v8638
      %v8768 = vpop.permute.xlu0 %8767
      %8771 = vset.pattern.permute.xlu0 0
      %8772 = vperm.xlu0 %8771, %v8639
      %v8773 = vpop.permute.xlu0 %8772
      %8776 = vset.pattern.permute.xlu0 0
      %8777 = vperm.xlu0 %8776, %v8640
      %v8778 = vpop.permute.xlu0 %8777
      %8781 = vset.pattern.permute.xlu0 0
      %8782 = vperm.xlu0 %8781, %v8641
      %v8783 = vpop.permute.xlu0 %8782
      %8786 = vset.pattern.permute.xlu0 0
      %8787 = vperm.xlu0 %8786, %v8642
      %v8788 = vpop.permute.xlu0 %8787
      %8791 = vset.pattern.permute.xlu0 0
      %8792 = vperm.xlu0 %8791, %v8643
      %v8793 = vpop.permute.xlu0 %8792
      %8796 = vset.pattern.permute.xlu0 0
      %8797 = vperm.xlu0 %8796, %v8644
      %v8798 = vpop.permute.xlu0 %8797
      %8801 = vset.pattern.permute.xlu0 0
      %8802 = vperm.xlu0 %8801, %v8645
      %v8803 = vpop.permute.xlu0 %8802
      %8806 = vset.pattern.permute.xlu0 0
      %8807 = vperm.xlu0 %8806, %v8646
      %v8808 = vpop.permute.xlu0 %8807
      %v8810 = vlaneseq
      %v8811 = vshrl.u32 %v8810, 7
      %v8812 = vsub.s32 0, %v8811
      %v8813 = vrot.slane %v8649, %v8812
      %v8814 = vmul.f32 %v8653, %v8813
      %v8815 = vmul.f32 %v8658, %v8813
      %v8816 = vmul.f32 %v8663, %v8813
      %v8817 = vmul.f32 %v8668, %v8813
      %v8818 = vmul.f32 %v8673, %v8813
      %v8819 = vmul.f32 %v8678, %v8813
      %v8820 = vmul.f32 %v8683, %v8813
      %v8821 = vmul.f32 %v8688, %v8813
      %v8822 = vmul.f32 %v8693, %v8813
      %v8823 = vmul.f32 %v8698, %v8813
      %v8824 = vmul.f32 %v8703, %v8813
      %v8825 = vmul.f32 %v8708, %v8813
      %v8826 = vmul.f32 %v8713, %v8813
      %v8827 = vmul.f32 %v8718, %v8813
      %v8828 = vmul.f32 %v8723, %v8813
      %v8829 = vmul.f32 %v8728, %v8813
      %v8830 = vmul.f32 %v8733, %v8813
      %v8831 = vmul.f32 %v8738, %v8813
      %v8832 = vmul.f32 %v8743, %v8813
      %v8833 = vmul.f32 %v8748, %v8813
      %v8834 = vmul.f32 %v8753, %v8813
      %v8835 = vmul.f32 %v8758, %v8813
      %v8836 = vmul.f32 %v8763, %v8813
      %v8837 = vmul.f32 %v8768, %v8813
      %v8838 = vmul.f32 %v8773, %v8813
      %v8839 = vmul.f32 %v8778, %v8813
      %v8840 = vmul.f32 %v8783, %v8813
      %v8841 = vmul.f32 %v8788, %v8813
      %v8842 = vmul.f32 %v8793, %v8813
      %v8843 = vmul.f32 %v8798, %v8813
      %v8844 = vmul.f32 %v8803, %v8813
      %v8845 = vmul.f32 %v8808, %v8813
      %v8846 = vadd.f32 %v8548, %v8814
      %v8847 = vadd.f32 %v8549, %v8815
      %v8848 = vadd.f32 %v8550, %v8816
      %v8849 = vadd.f32 %v8551, %v8817
      %v8850 = vadd.f32 %v8552, %v8818
      %v8851 = vadd.f32 %v8553, %v8819
      %v8852 = vadd.f32 %v8554, %v8820
      %v8853 = vadd.f32 %v8555, %v8821
      %v8854 = vadd.f32 %v8556, %v8822
      %v8855 = vadd.f32 %v8557, %v8823
      %v8856 = vadd.f32 %v8558, %v8824
      %v8857 = vadd.f32 %v8559, %v8825
      %v8858 = vadd.f32 %v8560, %v8826
      %v8859 = vadd.f32 %v8561, %v8827
      %v8860 = vadd.f32 %v8562, %v8828
      %v8861 = vadd.f32 %v8563, %v8829
      %v8862 = vadd.f32 %v8564, %v8830
      %v8863 = vadd.f32 %v8565, %v8831
      %v8864 = vadd.f32 %v8566, %v8832
      %v8865 = vadd.f32 %v8567, %v8833
      %v8866 = vadd.f32 %v8568, %v8834
      %v8867 = vadd.f32 %v8569, %v8835
      %v8868 = vadd.f32 %v8570, %v8836
      %v8869 = vadd.f32 %v8571, %v8837
      %v8870 = vadd.f32 %v8572, %v8838
      %v8871 = vadd.f32 %v8573, %v8839
      %v8872 = vadd.f32 %v8574, %v8840
      %v8873 = vadd.f32 %v8575, %v8841
      %v8874 = vadd.f32 %v8576, %v8842
      %v8875 = vadd.f32 %v8577, %v8843
      %v8876 = vadd.f32 %v8578, %v8844
      %v8877 = vadd.f32 %v8579, %v8845
      %v8878 = vld [vmem:[%s8582] sm:$0xf]
      %v8879 = vld [vmem:[%s8582 + $0x4] sm:$0xf]
      %v8880 = vld [vmem:[%s8582 + $0x8] sm:$0x1]
      %v8881 = vld [vmem:[%s8582 + $0xc] sm:$0xf]
      %v8882 = vld [vmem:[%s8582 + $0x10] sm:$0xf]
      %v8883 = vld [vmem:[%s8582 + $0x14] sm:$0x1]
      %v8884 = vld [vmem:[%s8582 + $0x18] sm:$0xf]
      %v8885 = vld [vmem:[%s8582 + $0x1c] sm:$0xf]
      %v8886 = vld [vmem:[%s8582 + $0x20] sm:$0x1]
      %v8887 = vld [vmem:[%s8582 + $0x24] sm:$0xf]
      %v8888 = vld [vmem:[%s8582 + $0x28] sm:$0xf]
      %v8889 = vld [vmem:[%s8582 + $0x2c] sm:$0x1]
      %v8890 = vld [vmem:[%s8582 + $0x30] sm:$0xf]
      %v8891 = vld [vmem:[%s8582 + $0x34] sm:$0xf]
      %v8892 = vld [vmem:[%s8582 + $0x38] sm:$0x1]
      %v8893 = vld [vmem:[%s8582 + $0x3c] sm:$0xf]
      %v8894 = vld [vmem:[%s8582 + $0x40] sm:$0xf]
      %v8895 = vld [vmem:[%s8582 + $0x44] sm:$0x1]
      %v8896 = vld [vmem:[%s8582 + $0x48] sm:$0xf]
      %v8897 = vld [vmem:[%s8582 + $0x4c] sm:$0xf]
      %v8898 = vld [vmem:[%s8582 + $0x50] sm:$0x1]
      %v8899 = vld [vmem:[%s8582 + $0x54] sm:$0xf]
      %v8900 = vld [vmem:[%s8582 + $0x58] sm:$0xf]
      %v8901 = vld [vmem:[%s8582 + $0x5c] sm:$0x1]
      %v8902 = vld [vmem:[%s8582 + $0x60] sm:$0xf]
      %v8903 = vld [vmem:[%s8582 + $0x64] sm:$0xf]
      %v8904 = vld [vmem:[%s8582 + $0x68] sm:$0x1]
      %v8905 = vld [vmem:[%s8582 + $0x6c] sm:$0xf]
      %v8906 = vld [vmem:[%s8582 + $0x70] sm:$0xf]
      %v8907 = vld [vmem:[%s8582 + $0x74] sm:$0x1]
      %v8908 = vld [vmem:[%s8582 + $0x78] sm:$0xf]
      %v8909 = vld [vmem:[%s8582 + $0x7c] sm:$0xf]
      %v8910 = vld [vmem:[%s8582 + $0x80] sm:$0x1]
      %v8911 = vld [vmem:[%s8582 + $0x84] sm:$0xf]
      %v8912 = vld [vmem:[%s8582 + $0x88] sm:$0xf]
      %v8913 = vld [vmem:[%s8582 + $0x8c] sm:$0x1]
      %v8914 = vld [vmem:[%s8582 + $0x90] sm:$0xf]
      %v8915 = vld [vmem:[%s8582 + $0x94] sm:$0xf]
      %v8916 = vld [vmem:[%s8582 + $0x98] sm:$0x1]
      %v8917 = vld [vmem:[%s8582 + $0x9c] sm:$0xf]
      %v8918 = vld [vmem:[%s8582 + $0xa0] sm:$0xf]
      %v8919 = vld [vmem:[%s8582 + $0xa4] sm:$0x1]
      %v8920 = vld [vmem:[%s8582 + $0xa8] sm:$0xf]
      %v8921 = vld [vmem:[%s8582 + $0xac] sm:$0xf]
      %v8922 = vld [vmem:[%s8582 + $0xb0] sm:$0x1]
      %v8923 = vld [vmem:[%s8582 + $0xb4] sm:$0xf]
      %v8924 = vld [vmem:[%s8582 + $0xb8] sm:$0xf]
      %v8925 = vld [vmem:[%s8582 + $0xbc] sm:$0x1]
      %v8926 = vunpack.c.l.bf16 %v8878
      %v8927 = vunpack.c.l.bf16 %v8879
      %v8928 = vunpack.c.l.bf16 %v8880
      %v8929 = vunpack.c.l.bf16 %v8881
      %v8930 = vunpack.c.l.bf16 %v8882
      %v8931 = vunpack.c.l.bf16 %v8883
      %v8932 = vunpack.c.l.bf16 %v8884
      %v8933 = vunpack.c.l.bf16 %v8885
      %v8934 = vunpack.c.l.bf16 %v8886
      %v8935 = vunpack.c.l.bf16 %v8887
      %v8936 = vunpack.c.l.bf16 %v8888
      %v8937 = vunpack.c.l.bf16 %v8889
      %v8938 = vunpack.c.l.bf16 %v8890
      %v8939 = vunpack.c.l.bf16 %v8891
      %v8940 = vunpack.c.l.bf16 %v8892
      %v8941 = vunpack.c.l.bf16 %v8893
      %v8942 = vunpack.c.l.bf16 %v8894
      %v8943 = vunpack.c.l.bf16 %v8895
      %v8944 = vunpack.c.l.bf16 %v8896
      %v8945 = vunpack.c.l.bf16 %v8897
      %v8946 = vunpack.c.l.bf16 %v8898
      %v8947 = vunpack.c.l.bf16 %v8899
      %v8948 = vunpack.c.l.bf16 %v8900
      %v8949 = vunpack.c.l.bf16 %v8901
      %v8950 = vunpack.c.l.bf16 %v8902
      %v8951 = vunpack.c.l.bf16 %v8903
      %v8952 = vunpack.c.l.bf16 %v8904
      %v8953 = vunpack.c.l.bf16 %v8905
      %v8954 = vunpack.c.l.bf16 %v8906
      %v8955 = vunpack.c.l.bf16 %v8907
      %v8956 = vunpack.c.l.bf16 %v8908
      %v8957 = vunpack.c.l.bf16 %v8909
      %v8958 = vunpack.c.l.bf16 %v8910
      %v8959 = vunpack.c.l.bf16 %v8911
      %v8960 = vunpack.c.l.bf16 %v8912
      %v8961 = vunpack.c.l.bf16 %v8913
      %v8962 = vunpack.c.l.bf16 %v8914
      %v8963 = vunpack.c.l.bf16 %v8915
      %v8964 = vunpack.c.l.bf16 %v8916
      %v8965 = vunpack.c.l.bf16 %v8917
      %v8966 = vunpack.c.l.bf16 %v8918
      %v8967 = vunpack.c.l.bf16 %v8919
      %v8968 = vunpack.c.l.bf16 %v8920
      %v8969 = vunpack.c.l.bf16 %v8921
      %v8970 = vunpack.c.l.bf16 %v8922
      %v8971 = vunpack.c.l.bf16 %v8923
      %v8972 = vunpack.c.l.bf16 %v8924
      %v8973 = vunpack.c.l.bf16 %v8925
      %v9022 = vrot.slane %v8926, 1
      %v9023 = vrot.slane %v8927, 1
      %v9024 = vsel %vm634, %v9022, %v9023
      %v9025 = vrot.slane %v8928, 1
      %v9026 = vsel %vm634, %v9023, %v9025
      %v9027 = vrot.slane %v8929, 1
      %v9028 = vrot.slane %v8930, 1
      %v9029 = vsel %vm634, %v9027, %v9028
      %v9030 = vrot.slane %v8931, 1
      %v9031 = vsel %vm634, %v9028, %v9030
      %v9032 = vrot.slane %v8932, 1
      %v9033 = vrot.slane %v8933, 1
      %v9034 = vsel %vm634, %v9032, %v9033
      %v9035 = vrot.slane %v8934, 1
      %v9036 = vsel %vm634, %v9033, %v9035
      %v9037 = vrot.slane %v8935, 1
      %v9038 = vrot.slane %v8936, 1
      %v9039 = vsel %vm634, %v9037, %v9038
      %v9040 = vrot.slane %v8937, 1
      %v9041 = vsel %vm634, %v9038, %v9040
      %v9042 = vrot.slane %v8938, 1
      %v9043 = vrot.slane %v8939, 1
      %v9044 = vsel %vm634, %v9042, %v9043
      %v9045 = vrot.slane %v8940, 1
      %v9046 = vsel %vm634, %v9043, %v9045
      %v9047 = vrot.slane %v8941, 1
      %v9048 = vrot.slane %v8942, 1
      %v9049 = vsel %vm634, %v9047, %v9048
      %v9050 = vrot.slane %v8943, 1
      %v9051 = vsel %vm634, %v9048, %v9050
      %v9052 = vrot.slane %v8944, 1
      %v9053 = vrot.slane %v8945, 1
      %v9054 = vsel %vm634, %v9052, %v9053
      %v9055 = vrot.slane %v8946, 1
      %v9056 = vsel %vm634, %v9053, %v9055
      %v9057 = vrot.slane %v8947, 1
      %v9058 = vrot.slane %v8948, 1
      %v9059 = vsel %vm634, %v9057, %v9058
      %v9060 = vrot.slane %v8949, 1
      %v9061 = vsel %vm634, %v9058, %v9060
      %v9062 = vrot.slane %v8950, 1
      %v9063 = vrot.slane %v8951, 1
      %v9064 = vsel %vm634, %v9062, %v9063
      %v9065 = vrot.slane %v8952, 1
      %v9066 = vsel %vm634, %v9063, %v9065
      %v9067 = vrot.slane %v8953, 1
      %v9068 = vrot.slane %v8954, 1
      %v9069 = vsel %vm634, %v9067, %v9068
      %v9070 = vrot.slane %v8955, 1
      %v9071 = vsel %vm634, %v9068, %v9070
      %v9072 = vrot.slane %v8956, 1
      %v9073 = vrot.slane %v8957, 1
      %v9074 = vsel %vm634, %v9072, %v9073
      %v9075 = vrot.slane %v8958, 1
      %v9076 = vsel %vm634, %v9073, %v9075
      %v9077 = vrot.slane %v8959, 1
      %v9078 = vrot.slane %v8960, 1
      %v9079 = vsel %vm634, %v9077, %v9078
      %v9080 = vrot.slane %v8961, 1
      %v9081 = vsel %vm634, %v9078, %v9080
      %v9082 = vrot.slane %v8962, 1
      %v9083 = vrot.slane %v8963, 1
      %v9084 = vsel %vm634, %v9082, %v9083
      %v9085 = vrot.slane %v8964, 1
      %v9086 = vsel %vm634, %v9083, %v9085
      %v9087 = vrot.slane %v8965, 1
      %v9088 = vrot.slane %v8966, 1
      %v9089 = vsel %vm634, %v9087, %v9088
      %v9090 = vrot.slane %v8967, 1
      %v9091 = vsel %vm634, %v9088, %v9090
      %v9092 = vrot.slane %v8968, 1
      %v9093 = vrot.slane %v8969, 1
      %v9094 = vsel %vm634, %v9092, %v9093
      %v9095 = vrot.slane %v8970, 1
      %v9096 = vsel %vm634, %v9093, %v9095
      %v9097 = vrot.slane %v8971, 1
      %v9098 = vrot.slane %v8972, 1
      %v9099 = vsel %vm634, %v9097, %v9098
      %v9100 = vrot.slane %v8973, 1
      %v9101 = vsel %vm634, %v9098, %v9100
      %s9102 = scalar_lea.vmem %s1, 25
      %v9103 = vld [vmem:[%s9102] sm:$0x1]
      %v9104 = vunpack.c.l.bf16 %v9103
      %9105 = vset.pattern.permute.xlu0 0
      %9106 = vperm.xlu0 %9105, %v9024
      %v9107 = vpop.permute.xlu0 %9106
      %9109 = vset.pattern.permute.xlu0 0
      %9110 = vperm.xlu0 %9109, %v9026
      %v9111 = vpop.permute.xlu0 %9110
      %9113 = vset.pattern.permute.xlu0 0
      %9114 = vperm.xlu0 %9113, %v9029
      %v9115 = vpop.permute.xlu0 %9114
      %9117 = vset.pattern.permute.xlu0 0
      %9118 = vperm.xlu0 %9117, %v9031
      %v9119 = vpop.permute.xlu0 %9118
      %9121 = vset.pattern.permute.xlu0 0
      %9122 = vperm.xlu0 %9121, %v9034
      %v9123 = vpop.permute.xlu0 %9122
      %9125 = vset.pattern.permute.xlu0 0
      %9126 = vperm.xlu0 %9125, %v9036
      %v9127 = vpop.permute.xlu0 %9126
      %9129 = vset.pattern.permute.xlu0 0
      %9130 = vperm.xlu0 %9129, %v9039
      %v9131 = vpop.permute.xlu0 %9130
      %9133 = vset.pattern.permute.xlu0 0
      %9134 = vperm.xlu0 %9133, %v9041
      %v9135 = vpop.permute.xlu0 %9134
      %9137 = vset.pattern.permute.xlu0 0
      %9138 = vperm.xlu0 %9137, %v9044
      %v9139 = vpop.permute.xlu0 %9138
      %9141 = vset.pattern.permute.xlu0 0
      %9142 = vperm.xlu0 %9141, %v9046
      %v9143 = vpop.permute.xlu0 %9142
      %9145 = vset.pattern.permute.xlu0 0
      %9146 = vperm.xlu0 %9145, %v9049
      %v9147 = vpop.permute.xlu0 %9146
      %9149 = vset.pattern.permute.xlu0 0
      %9150 = vperm.xlu0 %9149, %v9051
      %v9151 = vpop.permute.xlu0 %9150
      %9153 = vset.pattern.permute.xlu0 0
      %9154 = vperm.xlu0 %9153, %v9054
      %v9155 = vpop.permute.xlu0 %9154
      %9157 = vset.pattern.permute.xlu0 0
      %9158 = vperm.xlu0 %9157, %v9056
      %v9159 = vpop.permute.xlu0 %9158
      %9161 = vset.pattern.permute.xlu0 0
      %9162 = vperm.xlu0 %9161, %v9059
      %v9163 = vpop.permute.xlu0 %9162
      %9165 = vset.pattern.permute.xlu0 0
      %9166 = vperm.xlu0 %9165, %v9061
      %v9167 = vpop.permute.xlu0 %9166
      %9169 = vset.pattern.permute.xlu0 0
      %9170 = vperm.xlu0 %9169, %v9064
      %v9171 = vpop.permute.xlu0 %9170
      %9173 = vset.pattern.permute.xlu0 0
      %9174 = vperm.xlu0 %9173, %v9066
      %v9175 = vpop.permute.xlu0 %9174
      %9177 = vset.pattern.permute.xlu0 0
      %9178 = vperm.xlu0 %9177, %v9069
      %v9179 = vpop.permute.xlu0 %9178
      %9181 = vset.pattern.permute.xlu0 0
      %9182 = vperm.xlu0 %9181, %v9071
      %v9183 = vpop.permute.xlu0 %9182
      %9185 = vset.pattern.permute.xlu0 0
      %9186 = vperm.xlu0 %9185, %v9074
      %v9187 = vpop.permute.xlu0 %9186
      %9189 = vset.pattern.permute.xlu0 0
      %9190 = vperm.xlu0 %9189, %v9076
      %v9191 = vpop.permute.xlu0 %9190
      %9193 = vset.pattern.permute.xlu0 0
      %9194 = vperm.xlu0 %9193, %v9079
      %v9195 = vpop.permute.xlu0 %9194
      %9197 = vset.pattern.permute.xlu0 0
      %9198 = vperm.xlu0 %9197, %v9081
      %v9199 = vpop.permute.xlu0 %9198
      %9201 = vset.pattern.permute.xlu0 0
      %9202 = vperm.xlu0 %9201, %v9084
      %v9203 = vpop.permute.xlu0 %9202
      %9205 = vset.pattern.permute.xlu0 0
      %9206 = vperm.xlu0 %9205, %v9086
      %v9207 = vpop.permute.xlu0 %9206
      %9209 = vset.pattern.permute.xlu0 0
      %9210 = vperm.xlu0 %9209, %v9089
      %v9211 = vpop.permute.xlu0 %9210
      %9213 = vset.pattern.permute.xlu0 0
      %9214 = vperm.xlu0 %9213, %v9091
      %v9215 = vpop.permute.xlu0 %9214
      %9217 = vset.pattern.permute.xlu0 0
      %9218 = vperm.xlu0 %9217, %v9094
      %v9219 = vpop.permute.xlu0 %9218
      %9221 = vset.pattern.permute.xlu0 0
      %9222 = vperm.xlu0 %9221, %v9096
      %v9223 = vpop.permute.xlu0 %9222
      %9225 = vset.pattern.permute.xlu0 0
      %9226 = vperm.xlu0 %9225, %v9099
      %v9227 = vpop.permute.xlu0 %9226
      %9229 = vset.pattern.permute.xlu0 0
      %9230 = vperm.xlu0 %9229, %v9101
      %v9231 = vpop.permute.xlu0 %9230
      %v9233 = vlaneseq
      %v9234 = vshrl.u32 %v9233, 7
      %v9235 = vsub.s32 0, %v9234
      %v9236 = vrot.slane %v9104, %v9235
      %v9237 = vmul.f32 %v9107, %v9236
      %v9238 = vmul.f32 %v9111, %v9236
      %v9239 = vmul.f32 %v9115, %v9236
      %v9240 = vmul.f32 %v9119, %v9236
      %v9241 = vmul.f32 %v9123, %v9236
      %v9242 = vmul.f32 %v9127, %v9236
      %v9243 = vmul.f32 %v9131, %v9236
      %v9244 = vmul.f32 %v9135, %v9236
      %v9245 = vmul.f32 %v9139, %v9236
      %v9246 = vmul.f32 %v9143, %v9236
      %v9247 = vmul.f32 %v9147, %v9236
      %v9248 = vmul.f32 %v9151, %v9236
      %v9249 = vmul.f32 %v9155, %v9236
      %v9250 = vmul.f32 %v9159, %v9236
      %v9251 = vmul.f32 %v9163, %v9236
      %v9252 = vmul.f32 %v9167, %v9236
      %v9253 = vmul.f32 %v9171, %v9236
      %v9254 = vmul.f32 %v9175, %v9236
      %v9255 = vmul.f32 %v9179, %v9236
      %v9256 = vmul.f32 %v9183, %v9236
      %v9257 = vmul.f32 %v9187, %v9236
      %v9258 = vmul.f32 %v9191, %v9236
      %v9259 = vmul.f32 %v9195, %v9236
      %v9260 = vmul.f32 %v9199, %v9236
      %v9261 = vmul.f32 %v9203, %v9236
      %v9262 = vmul.f32 %v9207, %v9236
      %v9263 = vmul.f32 %v9211, %v9236
      %v9264 = vmul.f32 %v9215, %v9236
      %v9265 = vmul.f32 %v9219, %v9236
      %v9266 = vmul.f32 %v9223, %v9236
      %v9267 = vmul.f32 %v9227, %v9236
      %v9268 = vmul.f32 %v9231, %v9236
      %v9269 = vadd.f32 %v8846, %v9237
      %v9270 = vadd.f32 %v8847, %v9238
      %v9271 = vadd.f32 %v8848, %v9239
      %v9272 = vadd.f32 %v8849, %v9240
      %v9273 = vadd.f32 %v8850, %v9241
      %v9274 = vadd.f32 %v8851, %v9242
      %v9275 = vadd.f32 %v8852, %v9243
      %v9276 = vadd.f32 %v8853, %v9244
      %v9277 = vadd.f32 %v8854, %v9245
      %v9278 = vadd.f32 %v8855, %v9246
      %v9279 = vadd.f32 %v8856, %v9247
      %v9280 = vadd.f32 %v8857, %v9248
      %v9281 = vadd.f32 %v8858, %v9249
      %v9282 = vadd.f32 %v8859, %v9250
      %v9283 = vadd.f32 %v8860, %v9251
      %v9284 = vadd.f32 %v8861, %v9252
      %v9285 = vadd.f32 %v8862, %v9253
      %v9286 = vadd.f32 %v8863, %v9254
      %v9287 = vadd.f32 %v8864, %v9255
      %v9288 = vadd.f32 %v8865, %v9256
      %v9289 = vadd.f32 %v8866, %v9257
      %v9290 = vadd.f32 %v8867, %v9258
      %v9291 = vadd.f32 %v8868, %v9259
      %v9292 = vadd.f32 %v8869, %v9260
      %v9293 = vadd.f32 %v8870, %v9261
      %v9294 = vadd.f32 %v8871, %v9262
      %v9295 = vadd.f32 %v8872, %v9263
      %v9296 = vadd.f32 %v8873, %v9264
      %v9297 = vadd.f32 %v8874, %v9265
      %v9298 = vadd.f32 %v8875, %v9266
      %v9299 = vadd.f32 %v8876, %v9267
      %v9300 = vadd.f32 %v8877, %v9268
      %v9301 = vld [vmem:[%s8582] sm:$0xe]
      %v9302 = vld [vmem:[%s8582 + $0xc] sm:$0xe]
      %v9303 = vld [vmem:[%s8582 + $0x18] sm:$0xe]
      %v9304 = vld [vmem:[%s8582 + $0x24] sm:$0xe]
      %v9305 = vld [vmem:[%s8582 + $0x30] sm:$0xe]
      %v9306 = vld [vmem:[%s8582 + $0x3c] sm:$0xe]
      %v9307 = vld [vmem:[%s8582 + $0x48] sm:$0xe]
      %v9308 = vld [vmem:[%s8582 + $0x54] sm:$0xe]
      %v9309 = vld [vmem:[%s8582 + $0x60] sm:$0xe]
      %v9310 = vld [vmem:[%s8582 + $0x6c] sm:$0xe]
      %v9311 = vld [vmem:[%s8582 + $0x78] sm:$0xe]
      %v9312 = vld [vmem:[%s8582 + $0x84] sm:$0xe]
      %v9313 = vld [vmem:[%s8582 + $0x90] sm:$0xe]
      %v9314 = vld [vmem:[%s8582 + $0x9c] sm:$0xe]
      %v9315 = vld [vmem:[%s8582 + $0xa8] sm:$0xe]
      %v9316 = vld [vmem:[%s8582 + $0xb4] sm:$0xe]
      %v9317 = vunpack.c.l.bf16 %v9301
      %v9318 = vunpack.c.l.bf16 %v9302
      %v9319 = vunpack.c.l.bf16 %v9303
      %v9320 = vunpack.c.l.bf16 %v9304
      %v9321 = vunpack.c.l.bf16 %v9305
      %v9322 = vunpack.c.l.bf16 %v9306
      %v9323 = vunpack.c.l.bf16 %v9307
      %v9324 = vunpack.c.l.bf16 %v9308
      %v9325 = vunpack.c.l.bf16 %v9309
      %v9326 = vunpack.c.l.bf16 %v9310
      %v9327 = vunpack.c.l.bf16 %v9311
      %v9328 = vunpack.c.l.bf16 %v9312
      %v9329 = vunpack.c.l.bf16 %v9313
      %v9330 = vunpack.c.l.bf16 %v9314
      %v9331 = vunpack.c.l.bf16 %v9315
      %v9332 = vunpack.c.l.bf16 %v9316
      %v9349 = vrot.slane %v9317, 2
      %v9350 = vrot.slane %v8927, 2
      %v9351 = vsel %vm962, %v9349, %v9350
      %v9352 = vrot.slane %v8928, 2
      %v9353 = vsel %vm962, %v9350, %v9352
      %v9354 = vrot.slane %v9318, 2
      %v9355 = vrot.slane %v8930, 2
      %v9356 = vsel %vm962, %v9354, %v9355
      %v9357 = vrot.slane %v8931, 2
      %v9358 = vsel %vm962, %v9355, %v9357
      %v9359 = vrot.slane %v9319, 2
      %v9360 = vrot.slane %v8933, 2
      %v9361 = vsel %vm962, %v9359, %v9360
      %v9362 = vrot.slane %v8934, 2
      %v9363 = vsel %vm962, %v9360, %v9362
      %v9364 = vrot.slane %v9320, 2
      %v9365 = vrot.slane %v8936, 2
      %v9366 = vsel %vm962, %v9364, %v9365
      %v9367 = vrot.slane %v8937, 2
      %v9368 = vsel %vm962, %v9365, %v9367
      %v9369 = vrot.slane %v9321, 2
      %v9370 = vrot.slane %v8939, 2
      %v9371 = vsel %vm962, %v9369, %v9370
      %v9372 = vrot.slane %v8940, 2
      %v9373 = vsel %vm962, %v9370, %v9372
      %v9374 = vrot.slane %v9322, 2
      %v9375 = vrot.slane %v8942, 2
      %v9376 = vsel %vm962, %v9374, %v9375
      %v9377 = vrot.slane %v8943, 2
      %v9378 = vsel %vm962, %v9375, %v9377
      %v9379 = vrot.slane %v9323, 2
      %v9380 = vrot.slane %v8945, 2
      %v9381 = vsel %vm962, %v9379, %v9380
      %v9382 = vrot.slane %v8946, 2
      %v9383 = vsel %vm962, %v9380, %v9382
      %v9384 = vrot.slane %v9324, 2
      %v9385 = vrot.slane %v8948, 2
      %v9386 = vsel %vm962, %v9384, %v9385
      %v9387 = vrot.slane %v8949, 2
      %v9388 = vsel %vm962, %v9385, %v9387
      %v9389 = vrot.slane %v9325, 2
      %v9390 = vrot.slane %v8951, 2
      %v9391 = vsel %vm962, %v9389, %v9390
      %v9392 = vrot.slane %v8952, 2
      %v9393 = vsel %vm962, %v9390, %v9392
      %v9394 = vrot.slane %v9326, 2
      %v9395 = vrot.slane %v8954, 2
      %v9396 = vsel %vm962, %v9394, %v9395
      %v9397 = vrot.slane %v8955, 2
      %v9398 = vsel %vm962, %v9395, %v9397
      %v9399 = vrot.slane %v9327, 2
      %v9400 = vrot.slane %v8957, 2
      %v9401 = vsel %vm962, %v9399, %v9400
      %v9402 = vrot.slane %v8958, 2
      %v9403 = vsel %vm962, %v9400, %v9402
      %v9404 = vrot.slane %v9328, 2
      %v9405 = vrot.slane %v8960, 2
      %v9406 = vsel %vm962, %v9404, %v9405
      %v9407 = vrot.slane %v8961, 2
      %v9408 = vsel %vm962, %v9405, %v9407
      %v9409 = vrot.slane %v9329, 2
      %v9410 = vrot.slane %v8963, 2
      %v9411 = vsel %vm962, %v9409, %v9410
      %v9412 = vrot.slane %v8964, 2
      %v9413 = vsel %vm962, %v9410, %v9412
      %v9414 = vrot.slane %v9330, 2
      %v9415 = vrot.slane %v8966, 2
      %v9416 = vsel %vm962, %v9414, %v9415
      %v9417 = vrot.slane %v8967, 2
      %v9418 = vsel %vm962, %v9415, %v9417
      %v9419 = vrot.slane %v9331, 2
      %v9420 = vrot.slane %v8969, 2
      %v9421 = vsel %vm962, %v9419, %v9420
      %v9422 = vrot.slane %v8970, 2
      %v9423 = vsel %vm962, %v9420, %v9422
      %v9424 = vrot.slane %v9332, 2
      %v9425 = vrot.slane %v8972, 2
      %v9426 = vsel %vm962, %v9424, %v9425
      %v9427 = vrot.slane %v8973, 2
      %v9428 = vsel %vm962, %v9425, %v9427
      %s9429 = scalar_lea.vmem %s1, 26
      %v9430 = vld [vmem:[%s9429] sm:$0x1]
      %v9431 = vunpack.c.l.bf16 %v9430
      %9432 = vset.pattern.permute.xlu0 0
      %9433 = vperm.xlu0 %9432, %v9351
      %v9434 = vpop.permute.xlu0 %9433
      %9436 = vset.pattern.permute.xlu0 0
      %9437 = vperm.xlu0 %9436, %v9353
      %v9438 = vpop.permute.xlu0 %9437
      %9440 = vset.pattern.permute.xlu0 0
      %9441 = vperm.xlu0 %9440, %v9356
      %v9442 = vpop.permute.xlu0 %9441
      %9444 = vset.pattern.permute.xlu0 0
      %9445 = vperm.xlu0 %9444, %v9358
      %v9446 = vpop.permute.xlu0 %9445
      %9448 = vset.pattern.permute.xlu0 0
      %9449 = vperm.xlu0 %9448, %v9361
      %v9450 = vpop.permute.xlu0 %9449
      %9452 = vset.pattern.permute.xlu0 0
      %9453 = vperm.xlu0 %9452, %v9363
      %v9454 = vpop.permute.xlu0 %9453
      %9456 = vset.pattern.permute.xlu0 0
      %9457 = vperm.xlu0 %9456, %v9366
      %v9458 = vpop.permute.xlu0 %9457
      %9460 = vset.pattern.permute.xlu0 0
      %9461 = vperm.xlu0 %9460, %v9368
      %v9462 = vpop.permute.xlu0 %9461
      %9464 = vset.pattern.permute.xlu0 0
      %9465 = vperm.xlu0 %9464, %v9371
      %v9466 = vpop.permute.xlu0 %9465
      %9468 = vset.pattern.permute.xlu0 0
      %9469 = vperm.xlu0 %9468, %v9373
      %v9470 = vpop.permute.xlu0 %9469
      %9472 = vset.pattern.permute.xlu0 0
      %9473 = vperm.xlu0 %9472, %v9376
      %v9474 = vpop.permute.xlu0 %9473
      %9476 = vset.pattern.permute.xlu0 0
      %9477 = vperm.xlu0 %9476, %v9378
      %v9478 = vpop.permute.xlu0 %9477
      %9480 = vset.pattern.permute.xlu0 0
      %9481 = vperm.xlu0 %9480, %v9381
      %v9482 = vpop.permute.xlu0 %9481
      %9484 = vset.pattern.permute.xlu0 0
      %9485 = vperm.xlu0 %9484, %v9383
      %v9486 = vpop.permute.xlu0 %9485
      %9488 = vset.pattern.permute.xlu0 0
      %9489 = vperm.xlu0 %9488, %v9386
      %v9490 = vpop.permute.xlu0 %9489
      %9492 = vset.pattern.permute.xlu0 0
      %9493 = vperm.xlu0 %9492, %v9388
      %v9494 = vpop.permute.xlu0 %9493
      %9496 = vset.pattern.permute.xlu0 0
      %9497 = vperm.xlu0 %9496, %v9391
      %v9498 = vpop.permute.xlu0 %9497
      %9500 = vset.pattern.permute.xlu0 0
      %9501 = vperm.xlu0 %9500, %v9393
      %v9502 = vpop.permute.xlu0 %9501
      %9504 = vset.pattern.permute.xlu0 0
      %9505 = vperm.xlu0 %9504, %v9396
      %v9506 = vpop.permute.xlu0 %9505
      %9508 = vset.pattern.permute.xlu0 0
      %9509 = vperm.xlu0 %9508, %v9398
      %v9510 = vpop.permute.xlu0 %9509
      %9512 = vset.pattern.permute.xlu0 0
      %9513 = vperm.xlu0 %9512, %v9401
      %v9514 = vpop.permute.xlu0 %9513
      %9516 = vset.pattern.permute.xlu0 0
      %9517 = vperm.xlu0 %9516, %v9403
      %v9518 = vpop.permute.xlu0 %9517
      %9520 = vset.pattern.permute.xlu0 0
      %9521 = vperm.xlu0 %9520, %v9406
      %v9522 = vpop.permute.xlu0 %9521
      %9524 = vset.pattern.permute.xlu0 0
      %9525 = vperm.xlu0 %9524, %v9408
      %v9526 = vpop.permute.xlu0 %9525
      %9528 = vset.pattern.permute.xlu0 0
      %9529 = vperm.xlu0 %9528, %v9411
      %v9530 = vpop.permute.xlu0 %9529
      %9532 = vset.pattern.permute.xlu0 0
      %9533 = vperm.xlu0 %9532, %v9413
      %v9534 = vpop.permute.xlu0 %9533
      %9536 = vset.pattern.permute.xlu0 0
      %9537 = vperm.xlu0 %9536, %v9416
      %v9538 = vpop.permute.xlu0 %9537
      %9540 = vset.pattern.permute.xlu0 0
      %9541 = vperm.xlu0 %9540, %v9418
      %v9542 = vpop.permute.xlu0 %9541
      %9544 = vset.pattern.permute.xlu0 0
      %9545 = vperm.xlu0 %9544, %v9421
      %v9546 = vpop.permute.xlu0 %9545
      %9548 = vset.pattern.permute.xlu0 0
      %9549 = vperm.xlu0 %9548, %v9423
      %v9550 = vpop.permute.xlu0 %9549
      %9552 = vset.pattern.permute.xlu0 0
      %9553 = vperm.xlu0 %9552, %v9426
      %v9554 = vpop.permute.xlu0 %9553
      %9556 = vset.pattern.permute.xlu0 0
      %9557 = vperm.xlu0 %9556, %v9428
      %v9558 = vpop.permute.xlu0 %9557
      %v9560 = vlaneseq
      %v9561 = vshrl.u32 %v9560, 7
      %v9562 = vsub.s32 0, %v9561
      %v9563 = vrot.slane %v9431, %v9562
      %v9564 = vmul.f32 %v9434, %v9563
      %v9565 = vmul.f32 %v9438, %v9563
      %v9566 = vmul.f32 %v9442, %v9563
      %v9567 = vmul.f32 %v9446, %v9563
      %v9568 = vmul.f32 %v9450, %v9563
      %v9569 = vmul.f32 %v9454, %v9563
      %v9570 = vmul.f32 %v9458, %v9563
      %v9571 = vmul.f32 %v9462, %v9563
      %v9572 = vmul.f32 %v9466, %v9563
      %v9573 = vmul.f32 %v9470, %v9563
      %v9574 = vmul.f32 %v9474, %v9563
      %v9575 = vmul.f32 %v9478, %v9563
      %v9576 = vmul.f32 %v9482, %v9563
      %v9577 = vmul.f32 %v9486, %v9563
      %v9578 = vmul.f32 %v9490, %v9563
      %v9579 = vmul.f32 %v9494, %v9563
      %v9580 = vmul.f32 %v9498, %v9563
      %v9581 = vmul.f32 %v9502, %v9563
      %v9582 = vmul.f32 %v9506, %v9563
      %v9583 = vmul.f32 %v9510, %v9563
      %v9584 = vmul.f32 %v9514, %v9563
      %v9585 = vmul.f32 %v9518, %v9563
      %v9586 = vmul.f32 %v9522, %v9563
      %v9587 = vmul.f32 %v9526, %v9563
      %v9588 = vmul.f32 %v9530, %v9563
      %v9589 = vmul.f32 %v9534, %v9563
      %v9590 = vmul.f32 %v9538, %v9563
      %v9591 = vmul.f32 %v9542, %v9563
      %v9592 = vmul.f32 %v9546, %v9563
      %v9593 = vmul.f32 %v9550, %v9563
      %v9594 = vmul.f32 %v9554, %v9563
      %v9595 = vmul.f32 %v9558, %v9563
      %v9596 = vadd.f32 %v9269, %v9564
      %v9597 = vadd.f32 %v9270, %v9565
      %v9598 = vadd.f32 %v9271, %v9566
      %v9599 = vadd.f32 %v9272, %v9567
      %v9600 = vadd.f32 %v9273, %v9568
      %v9601 = vadd.f32 %v9274, %v9569
      %v9602 = vadd.f32 %v9275, %v9570
      %v9603 = vadd.f32 %v9276, %v9571
      %v9604 = vadd.f32 %v9277, %v9572
      %v9605 = vadd.f32 %v9278, %v9573
      %v9606 = vadd.f32 %v9279, %v9574
      %v9607 = vadd.f32 %v9280, %v9575
      %v9608 = vadd.f32 %v9281, %v9576
      %v9609 = vadd.f32 %v9282, %v9577
      %v9610 = vadd.f32 %v9283, %v9578
      %v9611 = vadd.f32 %v9284, %v9579
      %v9612 = vadd.f32 %v9285, %v9580
      %v9613 = vadd.f32 %v9286, %v9581
      %v9614 = vadd.f32 %v9287, %v9582
      %v9615 = vadd.f32 %v9288, %v9583
      %v9616 = vadd.f32 %v9289, %v9584
      %v9617 = vadd.f32 %v9290, %v9585
      %v9618 = vadd.f32 %v9291, %v9586
      %v9619 = vadd.f32 %v9292, %v9587
      %v9620 = vadd.f32 %v9293, %v9588
      %v9621 = vadd.f32 %v9294, %v9589
      %v9622 = vadd.f32 %v9295, %v9590
      %v9623 = vadd.f32 %v9296, %v9591
      %v9624 = vadd.f32 %v9297, %v9592
      %v9625 = vadd.f32 %v9298, %v9593
      %v9626 = vadd.f32 %v9299, %v9594
      %v9627 = vadd.f32 %v9300, %v9595
      %v9628 = vld [vmem:[%s2] sm:$0x1]
      %v9630 = vlaneseq
      %v9631 = vshrl.u32 %v9630, 7
      %v9632 = vsub.s32 0, %v9631
      %v9633 = vrot.slane %v9628, %v9632
      %v9635 = vadd.f32 %v9596, %v9633
      %v9636 = vadd.f32 %v9597, %v9633
      %v9637 = vadd.f32 %v9598, %v9633
      %v9638 = vadd.f32 %v9599, %v9633
      %v9639 = vadd.f32 %v9600, %v9633
      %v9640 = vadd.f32 %v9601, %v9633
      %v9641 = vadd.f32 %v9602, %v9633
      %v9642 = vadd.f32 %v9603, %v9633
      %v9643 = vadd.f32 %v9604, %v9633
      %v9644 = vadd.f32 %v9605, %v9633
      %v9645 = vadd.f32 %v9606, %v9633
      %v9646 = vadd.f32 %v9607, %v9633
      %v9647 = vadd.f32 %v9608, %v9633
      %v9648 = vadd.f32 %v9609, %v9633
      %v9649 = vadd.f32 %v9610, %v9633
      %v9650 = vadd.f32 %v9611, %v9633
      %v9651 = vadd.f32 %v9612, %v9633
      %v9652 = vadd.f32 %v9613, %v9633
      %v9653 = vadd.f32 %v9614, %v9633
      %v9654 = vadd.f32 %v9615, %v9633
      %v9655 = vadd.f32 %v9616, %v9633
      %v9656 = vadd.f32 %v9617, %v9633
      %v9657 = vadd.f32 %v9618, %v9633
      %v9658 = vadd.f32 %v9619, %v9633
      %v9659 = vadd.f32 %v9620, %v9633
      %v9660 = vadd.f32 %v9621, %v9633
      %v9661 = vadd.f32 %v9622, %v9633
      %v9662 = vadd.f32 %v9623, %v9633
      %v9663 = vadd.f32 %v9624, %v9633
      %v9664 = vadd.f32 %v9625, %v9633
      %v9665 = vadd.f32 %v9626, %v9633
      %v9666 = vadd.f32 %v9627, %v9633
      %v9667 = vmax.f32 %v9635, 0.0
      %v9668 = vmax.f32 %v9636, 0.0
      %v9669 = vmax.f32 %v9637, 0.0
      %v9670 = vmax.f32 %v9638, 0.0
      %v9671 = vmax.f32 %v9639, 0.0
      %v9672 = vmax.f32 %v9640, 0.0
      %v9673 = vmax.f32 %v9641, 0.0
      %v9674 = vmax.f32 %v9642, 0.0
      %v9675 = vmax.f32 %v9643, 0.0
      %v9676 = vmax.f32 %v9644, 0.0
      %v9677 = vmax.f32 %v9645, 0.0
      %v9678 = vmax.f32 %v9646, 0.0
      %v9679 = vmax.f32 %v9647, 0.0
      %v9680 = vmax.f32 %v9648, 0.0
      %v9681 = vmax.f32 %v9649, 0.0
      %v9682 = vmax.f32 %v9650, 0.0
      %v9683 = vmax.f32 %v9651, 0.0
      %v9684 = vmax.f32 %v9652, 0.0
      %v9685 = vmax.f32 %v9653, 0.0
      %v9686 = vmax.f32 %v9654, 0.0
      %v9687 = vmax.f32 %v9655, 0.0
      %v9688 = vmax.f32 %v9656, 0.0
      %v9689 = vmax.f32 %v9657, 0.0
      %v9690 = vmax.f32 %v9658, 0.0
      %v9691 = vmax.f32 %v9659, 0.0
      %v9692 = vmax.f32 %v9660, 0.0
      %v9693 = vmax.f32 %v9661, 0.0
      %v9694 = vmax.f32 %v9662, 0.0
      %v9695 = vmax.f32 %v9663, 0.0
      %v9696 = vmax.f32 %v9664, 0.0
      %v9697 = vmax.f32 %v9665, 0.0
      %v9698 = vmax.f32 %v9666, 0.0
      %vm9699 = vcmask 31744
      %9700 = vst.msk [vmem:[%s192] sm:$0xff] %vm9699, %v9667
      %9701 = vst.msk [vmem:[%s192 + $0x8] sm:$0xff] %vm9699, %v9668
      %9702 = vst.msk [vmem:[%s192 + $0x10] sm:$0xff] %vm9699, %v9669
      %9703 = vst.msk [vmem:[%s192 + $0x18] sm:$0xff] %vm9699, %v9670
      %9704 = vst.msk [vmem:[%s192 + $0x20] sm:$0xff] %vm9699, %v9671
      %9705 = vst.msk [vmem:[%s192 + $0x28] sm:$0xff] %vm9699, %v9672
      %9706 = vst.msk [vmem:[%s192 + $0x30] sm:$0xff] %vm9699, %v9673
      %9707 = vst.msk [vmem:[%s192 + $0x38] sm:$0xff] %vm9699, %v9674
      %9708 = vst.msk [vmem:[%s192 + $0x40] sm:$0xff] %vm9699, %v9675
      %9709 = vst.msk [vmem:[%s192 + $0x48] sm:$0xff] %vm9699, %v9676
      %9710 = vst.msk [vmem:[%s192 + $0x50] sm:$0xff] %vm9699, %v9677
      %9711 = vst.msk [vmem:[%s192 + $0x58] sm:$0xff] %vm9699, %v9678
      %9712 = vst.msk [vmem:[%s192 + $0x60] sm:$0xff] %vm9699, %v9679
      %9713 = vst.msk [vmem:[%s192 + $0x68] sm:$0xff] %vm9699, %v9680
      %9714 = vst.msk [vmem:[%s192 + $0x70] sm:$0xff] %vm9699, %v9681
      %9715 = vst.msk [vmem:[%s192 + $0x78] sm:$0xff] %vm9699, %v9682
      %9716 = vst.msk [vmem:[%s192 + $0x80] sm:$0xff] %vm9699, %v9683
      %9717 = vst.msk [vmem:[%s192 + $0x88] sm:$0xff] %vm9699, %v9684
      %9718 = vst.msk [vmem:[%s192 + $0x90] sm:$0xff] %vm9699, %v9685
      %9719 = vst.msk [vmem:[%s192 + $0x98] sm:$0xff] %vm9699, %v9686
      %9720 = vst.msk [vmem:[%s192 + $0xa0] sm:$0xff] %vm9699, %v9687
      %9721 = vst.msk [vmem:[%s192 + $0xa8] sm:$0xff] %vm9699, %v9688
      %9722 = vst.msk [vmem:[%s192 + $0xb0] sm:$0xff] %vm9699, %v9689
      %9723 = vst.msk [vmem:[%s192 + $0xb8] sm:$0xff] %vm9699, %v9690
      %9724 = vst.msk [vmem:[%s192 + $0xc0] sm:$0xff] %vm9699, %v9691
      %9725 = vst.msk [vmem:[%s192 + $0xc8] sm:$0xff] %vm9699, %v9692
      %9726 = vst.msk [vmem:[%s192 + $0xd0] sm:$0xff] %vm9699, %v9693
      %9727 = vst.msk [vmem:[%s192 + $0xd8] sm:$0xff] %vm9699, %v9694
      %9728 = vst.msk [vmem:[%s192 + $0xe0] sm:$0xff] %vm9699, %v9695
      %9729 = vst.msk [vmem:[%s192 + $0xe8] sm:$0xff] %vm9699, %v9696
      %9730 = vst.msk [vmem:[%s192 + $0xf0] sm:$0xff] %vm9699, %v9697
      %9731 = vst.msk [vmem:[%s192 + $0xf8] sm:$0xff] %vm9699, %v9698
      %p9732 = scmp.lt.s32.totalorder %s18, 0
      %s9733 = scalar_select %p9732, %s18, 0
      %p9734 = scmp.lt.s32.totalorder %s19, 15
      %s9735 = scalar_select %p9734, %s19, 15
      %s9736 = smul.addr %s9735, 32
      %s9737 = smul.addr %s9733, 512
      %s9738 = sadd.s32 %s9736, %s9737
      %s9739 = smul.addr %s9738, 8
      %s9740 = scalar_lea.vmem %s3, %s9739
      // Predicated region
      $region33: #{tpu_custom_call.1} parent=31 // pred_check
        %p9741 = pneg %p114
      $region34: #{tpu_custom_call.1} parent=31 // pred_check_branch
        %9743 = sbr.rel (%p9741) target = $region36
      $region35: #{tpu_custom_call.1} parent=31 // pred_region
        _
      $region36: #{tpu_custom_call.1} parent=31 // pred_fallthru
        _
    $region32: #{tpu_custom_call.1} parent=5 // pred_fallthru
      _
    %p9744 = scmp.le.s32.totalorder 2, %s9
    // Predicated region
    $region37: #{tpu_custom_call.1} parent=5 // pred_check
      %p9745 = pneg %p9744
    $region38: #{tpu_custom_call.1} parent=5 // pred_check_branch
      %9747 = sbr.rel (%p9745) target = $region40
    $region39: #{tpu_custom_call.1} parent=5 // pred_region
      %s9748 = ssub.s32 %s9, 2
      // Predicated region
      $region41: #{tpu_custom_call.1} parent=39 // pred_check
        %p9749 = pneg %p120
      $region42: #{tpu_custom_call.1} parent=39 // pred_check_branch
        %9751 = sbr.rel (%p9749) target = $region44
      $region43: #{tpu_custom_call.1} parent=39 // pred_region
        %p9752 = scmp.lt.s32.totalorder %s20, 0
        %s9753 = scalar_select %p9752, %s20, 0
        %p9754 = scmp.lt.s32.totalorder %s21, 15
        %s9755 = scalar_select %p9754, %s21, 15
        %s9756 = smul.addr %s9755, 32
        %s9757 = smul.addr %s9753, 512
        %s9758 = sadd.s32 %s9756, %s9757
        %s9759 = smul.addr %s9758, 8
        %s9760 = scalar_lea.vmem %s3, %s9759
      $region44: #{tpu_custom_call.1} parent=39 // pred_fallthru
        _
    $region40: #{tpu_custom_call.1} parent=5 // pred_fallthru
      _
  $region6: #{tpu_custom_call.1} parent=0 // loop_footer
    %s13 = sadd.s32 1, %s9
  $region7: #{tpu_custom_call.1} parent=0 // loop_footer_branch
    %8 = sbr.rel target = $region3
  $region8: #{tpu_custom_call.1} parent=0 // loop_exit
    _

</llo_original>
